<compile_context>
chip_gen: v6e
topology: v6e:2x2x1
jax: 0.10.0
libtpu: 0.0.40
codegen_flags: <defaults>
</compile_context>

<pallas_src>
import functools

import jax
import jax.numpy as jnp
from jax.experimental import pallas as pl
from jax.experimental.pallas import tpu as pltpu

# ---- config (config['method']['deq_cal'][...]) -------------------------------
GAMMA = 0.1                 # theta_gamma
ALPHA = 0.5                 # theta_alpha
SIGMA = 15.0 / 255.0        # warmup.theta_sigma / 255
IS_UPDATE_THETA_ITERATIVELY = True
IS_UPDATE_THETA_ITERATIVELY_BC = True
THETA_CKPT = "g_denoise"

_LANE_CHOICES = (1024, 512, 256, 128)
_TARGET_BLOCK_ROWS = 512               # 512 x 1024 x 4B = 2 MiB per f32 block
_VMEM_LIMIT_BYTES = 48 * 1024 * 1024   # safe on v5e/v6e (128 MiB) and v7x (64 MiB)


# ------------------------------------------------------------------------------
# Elementwise kernel: non-bc gradient step
#   theta <- theta - gamma * (dc + alpha * (theta - theta_label))
# ------------------------------------------------------------------------------
def _grad_step_nobc_kernel(theta_ref, x_ref, y_ref, label_ref, out_ref, *,
                           gamma, alpha):
    # TODO(synk): grad_theta() is external; modeled as
    #             d/dtheta 0.5*||x*theta - y||^2 = x*(x*theta - y); `sf` ignored.
    theta = theta_ref[...]
    xv = x_ref[...]
    yv = y_ref[...]
    dc = xv * (xv * theta - yv)
    out_ref[...] = theta - gamma * (dc + alpha * (theta - label_ref[...]))


def _pick_lane(n):
    for lane in _LANE_CHOICES:
        if n % lane == 0:
            return lane
    return None


def _pick_block_rows(rows, target=_TARGET_BLOCK_ROWS):
    if rows <= target:
        return rows
    for br in range(target, 7, -8):           # largest mult-of-8 divisor <= target
        if rows % br == 0:
            return br
    # TODO(synk): rows with no multiple-of-8 divisor <= target fall back to one block.
    return rows


def _run_elementwise(kernel_fn, *arrays):
    shape = arrays[0].shape
    dtype = arrays[0].dtype
    n = arrays[0].size

    lane = _pick_lane(n)
    if lane is None:
        # TODO(synk): ragged n (not a multiple of 128) keeps the pad+slice fallback.
        lane = 128
        rows = pl.cdiv(n, lane)
        n_pad = rows * lane
        flats = [jnp.pad(a.reshape(-1), (0, n_pad - n)).reshape(rows, lane)
                 for a in arrays]
    else:
        rows = n // lane
        n_pad = n
        flats = [a.reshape(rows, lane) for a in arrays]   # free reshape, no pad

    block_rows = _pick_block_rows(rows)
    spec = pl.BlockSpec((block_rows, lane), lambda i: (i, 0))
    out2d = pl.pallas_call(
        kernel_fn,
        grid=(rows // block_rows,),
        in_specs=[spec] * len(flats),
        out_specs=spec,
        out_shape=jax.ShapeDtypeStruct((rows, lane), dtype),
        input_output_aliases={0: 0},            # theta buffer reused for the output
        compiler_params=pltpu.CompilerParams(
            dimension_semantics=("parallel",),
            vmem_limit_bytes=_VMEM_LIMIT_BYTES),
    )(*flats)

    if n_pad != n:
        return out2d.reshape(-1)[:n].reshape(shape)
    return out2d.reshape(shape)


def grad_step_nobc(theta, x, y, theta_label, *, gamma, alpha):
    return _run_elementwise(
        functools.partial(_grad_step_nobc_kernel, gamma=gamma, alpha=alpha),
        theta, x, y, theta_label)


# ------------------------------------------------------------------------------
# Fused bc branch (one kernel, NCHW, W on lanes):
#   theta1  = theta - gamma * x*(x*theta - y)            (grad step, in VMEM)
#   cnn_in  = cat(theta1, sigma-map)                     (noise chan built in-kernel)
#   hidden  = ReLU(Conv3x3(cnn_in; w1, b1))              (zero halo, VMEM only)
#   prior   = Conv3x3(hidden; w2, b2)
#   out     = alpha * prior + (1 - alpha) * theta1
# Grid = (batch, H // tile_h); output row-tiled, inputs full-image (revisited).
# ------------------------------------------------------------------------------
def _fused_bc_prior_kernel(theta_ref, x_ref, y_ref, w1_ref, b1_ref, w2_ref,
                           b2_ref, out_ref, xpad_ref, hpad_ref,
                           *, gamma, alpha, sigma):
    # theta/x/y_ref : (C, H, W)   full-image NCHW blocks (revisited across j)
    # out_ref       : (C, TH, W)  one row tile of the updated theta
    # w1_ref        : (CHID*CIN1*9,) f32 SMEM (OIHW flat); b1_ref: (CHID,) SMEM
    # w2_ref        : (C*CHID*9,)    f32 SMEM (OIHW flat); b2_ref: (C,)    SMEM
    # xpad_ref      : (CIN1, TH+4, W+2) f32 VMEM   (theta1 + noise chan, zero halo)
    # hpad_ref      : (CHID, TH+2, W+2) f32 VMEM   (hidden activation,  zero halo)
    c, th, w = out_ref.shape
    cin1 = xpad_ref.shape[0]
    chid = hpad_ref.shape[0]
    has_noise = cin1 > c
    hrows = th + 2

    j = pl.program_id(1)
    last = pl.num_programs(1) - 1
    row0 = pl.multiple_of(j * th, th)

    def theta1_rows(start, nrows):
        # fused data-consistency gradient step (never written to HBM)
        # TODO(synk): grad_theta() is external; modeled as x*(x*theta - y), sf ignored.
        t = theta_ref[:, pl.ds(start, nrows), :]
        xv = x_ref[:, pl.ds(start, nrows), :]
        yv = y_ref[:, pl.ds(start, nrows), :]
        return t - gamma * (xv * (xv * t - yv))

    # ---- build zero-padded conv input: zero ONLY the halo ring ---------------
    xpad_ref[:, :, 0:1] = jnp.zeros((cin1, th + 4, 1), jnp.float32)
    xpad_ref[:, :, w + 1:w + 2] = jnp.zeros((cin1, th + 4, 1), jnp.float32)

    xpad_ref[0:c, 2:th + 2, 1:w + 1] = theta1_rows(row0, th)
    if has_noise:
        xpad_ref[c, 2:th + 2, 1:w + 1] = jnp.full((th, w), sigma, jnp.float32)

    @pl.when(j == 0)
    def _():                      # image rows -2,-1 -> conv zero padding
        xpad_ref[:, 0:2, :] = jnp.zeros((cin1, 2, w + 2), jnp.float32)

    @pl.when(j > 0)
    def _():                      # 2-row top halo from the neighbouring tile
        xpad_ref[0:c, 0:2, 1:w + 1] = theta1_rows(row0 - 2, 2)
        if has_noise:
            xpad_ref[c, 0:2, 1:w + 1] = jnp.full((2, w), sigma, jnp.float32)

    @pl.when(j == last)
    def _():                      # image rows H,H+1 -> conv zero padding
        xpad_ref[:, th + 2:th + 4, :] = jnp.zeros((cin1, 2, w + 2), jnp.float32)

    @pl.when(j < last)
    def _():                      # 2-row bottom halo from the neighbouring tile
        xpad_ref[0:c, th + 2:th + 4, 1:w + 1] = theta1_rows(row0 + th, 2)
        if has_noise:
            xpad_ref[c, th + 2:th + 4, 1:w + 1] = jnp.full((2, w), sigma, jnp.float32)

    # ---- layer 1: Conv3x3(cin1 -> chid) + ReLU over TH+2 hidden rows ---------
    # Tiny channel counts => VPU broadcast-FMA with SMEM scalar weights (no tiny-K
    # MXU matmuls, no patch relayouts).  Shifted taps are static sublane/lane slices.
    slabs1 = [xpad_ref[ci, dh:dh + hrows, dw:dw + w]
              for ci in range(cin1) for dh in range(3) for dw in range(3)]

    hpad_ref[:, :, 0:1] = jnp.zeros((chid, hrows, 1), jnp.float32)
    hpad_ref[:, :, w + 1:w + 2] = jnp.zeros((chid, hrows, 1), jnp.float32)

    for co in range(chid):
        acc = jnp.zeros((hrows, w), jnp.float32) + b1_ref[co]
        k = 0
        for ci in range(cin1):
            for dh in range(3):
                for dw in range(3):
                    acc = acc + w1_ref[((co * cin1 + ci) * 3 + dh) * 3 + dw] * slabs1[k]
                    k += 1
        hpad_ref[co, :, 1:w + 1] = jnp.maximum(acc, 0.0)

    # hidden rows outside the image are conv zero padding, not Conv(zero rows)
    @pl.when(j == 0)
    def _():
        hpad_ref[:, 0:1, :] = jnp.zeros((chid, 1, w + 2), jnp.float32)

    @pl.when(j == last)
    def _():
        hpad_ref[:, hrows - 1:hrows, :] = jnp.zeros((chid, 1, w + 2), jnp.float32)

    # ---- layer 2: Conv3x3(chid -> c) + alpha-combine, one dense store per chan
    slabs2 = [hpad_ref[ci, dh:dh + th, dw:dw + w]
              for ci in range(chid) for dh in range(3) for dw in range(3)]

    for co in range(c):
        acc = jnp.zeros((th, w), jnp.float32) + b2_ref[co]
        k = 0
        for ci in range(chid):
            for dh in range(3):
                for dw in range(3):
                    acc = acc + w2_ref[((co * chid + ci) * 3 + dh) * 3 + dw] * slabs2[k]
                    k += 1
        theta1_co = xpad_ref[co, 2:th + 2, 1:w + 1]     # theta1 tile reused from VMEM
        out_ref[co] = (alpha * acc + (1.0 - alpha) * theta1_co).astype(out_ref.dtype)


def _pick_tile_h(h, target=64):
    best = None
    t = 8
    while t <= min(h, target):
        if h % t == 0:
            best = t
        t += 8
    if best is None:
        return h                          # no mult-of-8 divisor: single full-height tile
    if best == h and h > 8:               # prefer >=2 row tiles (v7x megacore)
        for t in range(best - 8, 7, -8):
            if h % t == 0:
                return t
    return best


def fused_bc_update(theta, x, y, w1, b1, w2, b2, *, gamma, alpha, noise_sigma):
    b, c, h, w = theta.shape
    chid, cin1 = w1.shape[0], w1.shape[1]
    cout = w2.shape[0]
    assert cout == c
    assert cin1 == c + (1 if noise_sigma is not None else 0)

    tile_h = _pick_tile_h(h)
    n_h = h // tile_h

    kernel = functools.partial(
        _fused_bc_prior_kernel, gamma=float(gamma), alpha=float(alpha),
        sigma=(0.0 if noise_sigma is None else float(noise_sigma)))

    img_spec = pl.BlockSpec((None, c, h, w), lambda bi, j: (bi, 0, 0, 0))
    smem_spec = pl.BlockSpec(memory_space=pltpu.MemorySpace.SMEM)

    cost = pl.CostEstimate(
        flops=2 * b * h * w * 9 * (cin1 * chid + chid * cout) + 5 * b * c * h * w,
        transcendentals=0,
        bytes_accessed=4 * 4 * b * c * h * w
        + 4 * (w1.size + b1.size + w2.size + b2.size))

    # TODO(synk): for very large images, switch theta/x/y to halo'd row blocks
    # (manual DMA) instead of whole-image revisited blocks to bound input VMEM.
    return pl.pallas_call(
        kernel,
        grid=(b, n_h),
        in_specs=[img_spec, img_spec, img_spec,
                  smem_spec, smem_spec, smem_spec, smem_spec],
        out_specs=pl.BlockSpec((None, c, tile_h, w), lambda bi, j: (bi, 0, j, 0)),
        out_shape=jax.ShapeDtypeStruct((b, c, h, w), theta.dtype),
        scratch_shapes=[pltpu.VMEM((cin1, tile_h + 4, w + 2), jnp.float32),
                        pltpu.VMEM((chid, tile_h + 2, w + 2), jnp.float32)],
        compiler_params=pltpu.CompilerParams(
            dimension_semantics=("parallel", "parallel"),
            vmem_limit_bytes=_VMEM_LIMIT_BYTES),
        cost_estimate=cost,
    )(theta, x, y,
      w1.astype(jnp.float32).reshape(-1), b1.astype(jnp.float32),
      w2.astype(jnp.float32).reshape(-1), b2.astype(jnp.float32))


# ------------------------------------------------------------------------------
# Parameter init for the prior CNN (net_theta is external; modeled as
# Conv3x3(C+1 -> hidden) -> ReLU -> Conv3x3(hidden -> C), OIHW weights).
# ------------------------------------------------------------------------------
def init_cnn_params(key, c_in, c_hidden, c_out):
    k1, k2, k3, k4 = jax.random.split(key, 4)
    w1 = jax.random.normal(k1, (c_hidden, c_in, 3, 3), jnp.float32) * 0.1
    b1 = jax.random.normal(k2, (c_hidden,), jnp.float32) * 0.01
    w2 = jax.random.normal(k3, (c_out, c_hidden, 3, 3), jnp.float32) * 0.1
    b2 = jax.random.normal(k4, (c_out,), jnp.float32) * 0.01
    return w1, b1, w2, b2


# ------------------------------------------------------------------------------
# ParameterUpdate.forward
# ------------------------------------------------------------------------------
def parameter_update_forward(theta, x, y, theta_label, params, *,
                             gamma=GAMMA, alpha=ALPHA, sigma=SIGMA,
                             is_update_theta_iteratively=IS_UPDATE_THETA_ITERATIVELY,
                             is_update_theta_iteratively_bc=IS_UPDATE_THETA_ITERATIVELY_BC,
                             theta_ckpt=THETA_CKPT):
    if not is_update_theta_iteratively:
        return theta

    if is_update_theta_iteratively_bc:
        w1, b1, w2, b2 = params
        noise_sigma = sigma if theta_ckpt == "g_denoise" else None
        # grad step + noise-channel concat + Conv-ReLU-Conv + alpha-combine,
        # all in one NCHW (W-on-lanes) kernel: no transposes, no HBM round trips.
        return fused_bc_update(theta, x, y, w1, b1, w2, b2,
                               gamma=gamma, alpha=alpha, noise_sigma=noise_sigma)
    else:
        return grad_step_nobc(theta, x, y, theta_label, gamma=gamma, alpha=alpha)


if __name__ == "__main__":
    key = jax.random.PRNGKey(0)
    B, C, H, W = 2, 3, 16, 16
    CHID = 8
    kt, kx, ky, kl, kp = jax.random.split(key, 5)
    theta = jax.random.normal(kt, (B, C, H, W), jnp.float32)
    x = jax.random.normal(kx, (B, C, H, W), jnp.float32)
    y = jax.random.normal(ky, (B, C, H, W), jnp.float32)
    theta_label = jax.random.normal(kl, (B, C, H, W), jnp.float32)

    # 'g_denoise' prior takes C+1 input channels (image + noise-level map)
    params = init_cnn_params(kp, C + 1, CHID, C)

    out = parameter_update_forward(theta, x, y, theta_label, params)
    jax.block_until_ready(out)
    assert out.shape == (B, C, H, W) and out.dtype == jnp.float32
    assert bool(jnp.all(jnp.isfinite(out)))

    # also exercise the non-bc branch (pure elementwise Pallas kernel)
    out2 = parameter_update_forward(theta, x, y, theta_label, params,
                                    is_update_theta_iteratively_bc=False)
    jax.block_until_ready(out2)
    assert out2.shape == (B, C, H, W)
    assert bool(jnp.all(jnp.isfinite(out2)))

    print("KERNEL_OK")
</pallas_src>

<mosaic_0001>
module attributes {stable_mosaic.version = 11 : i64} {
  func.func @_fused_bc_prior_kernel(%arg0: i32, %arg1: i32, %arg2: memref<1x3x16x16xf32, #tpu.memory_space<vmem>>, %arg3: memref<1x3x16x16xf32, #tpu.memory_space<vmem>>, %arg4: memref<1x3x16x16xf32, #tpu.memory_space<vmem>>, %arg5: memref<288xf32, #tpu.memory_space<smem>>, %arg6: memref<8xf32, #tpu.memory_space<smem>>, %arg7: memref<216xf32, #tpu.memory_space<smem>>, %arg8: memref<3xf32, #tpu.memory_space<smem>>, %arg9: memref<1x3x8x16xf32, #tpu.memory_space<vmem>>, %arg10: memref<4x12x18xf32, #tpu.memory_space<vmem>>, %arg11: memref<8x10x18xf32, #tpu.memory_space<vmem>>) attributes {dimension_semantics = [#tpu.dimension_semantics<parallel>, #tpu.dimension_semantics<parallel>], iteration_bounds = array<i64: 2, 2>, scalar_prefetch = 0 : i64, scratch_operands = 2 : i64, tpu.core_type = #tpu.core_type<tc>, window_params = [{transform_indices = @transform_0, window_bounds = array<i64: 1, 3, 16, 16>}, {transform_indices = @transform_1, window_bounds = array<i64: 1, 3, 16, 16>}, {transform_indices = @transform_2, window_bounds = array<i64: 1, 3, 16, 16>}, {transform_indices = @transform_3, window_bounds = array<i64: 288>}, {transform_indices = @transform_4, window_bounds = array<i64: 8>}, {transform_indices = @transform_5, window_bounds = array<i64: 216>}, {transform_indices = @transform_6, window_bounds = array<i64: 3>}, {transform_indices = @transform_7, window_bounds = array<i64: 1, 3, 8, 16>}]} {
    %c8_i32 = arith.constant 8 : i32
    %0 = arith.muli %arg1, %c8_i32 : i32
    %1 = tpu.assume_multiple %0, 8 : i32
    %cst = arith.constant 0.000000e+00 : f32
    %2 = vector.broadcast %cst : f32 to vector<4x12x1xf32>
    %c0 = arith.constant 0 : index
    %c0_0 = arith.constant 0 : index
    %c0_1 = arith.constant 0 : index
    %3 = vector.load %arg10[%c0, %c0_0, %c0_1] : memref<4x12x18xf32, #tpu.memory_space<vmem>>, vector<4x12x1xf32>
    tpu.vector_store %arg10[%c0, %c0_0, %c0_1], %2 {strides = array<i32>} : memref<4x12x18xf32, #tpu.memory_space<vmem>>, vector<4x12x1xf32>,
    %cst_2 = arith.constant 0.000000e+00 : f32
    %4 = vector.broadcast %cst_2 : f32 to vector<4x12x1xf32>
    %c0_3 = arith.constant 0 : index
    %c0_4 = arith.constant 0 : index
    %c17 = arith.constant 17 : index
    %5 = vector.load %arg10[%c0_3, %c0_4, %c17] : memref<4x12x18xf32, #tpu.memory_space<vmem>>, vector<4x12x1xf32>
    tpu.vector_store %arg10[%c0_3, %c0_4, %c17], %4 {strides = array<i32>} : memref<4x12x18xf32, #tpu.memory_space<vmem>>, vector<4x12x1xf32>,
    %c0_5 = arith.constant 0 : index
    %c0_6 = arith.constant 0 : index
    %6 = arith.index_cast %1 : i32 to index
    %c0_7 = arith.constant 0 : index
    %7 = vector.load %arg2[%c0_5, %c0_6, %6, %c0_7] : memref<1x3x16x16xf32, #tpu.memory_space<vmem>>, vector<1x3x8x16xf32>
    %8 = vector.shape_cast %7 : vector<1x3x8x16xf32> to vector<3x8x16xf32>
    %c0_8 = arith.constant 0 : index
    %c0_9 = arith.constant 0 : index
    %9 = arith.index_cast %1 : i32 to index
    %c0_10 = arith.constant 0 : index
    %10 = vector.load %arg3[%c0_8, %c0_9, %9, %c0_10] : memref<1x3x16x16xf32, #tpu.memory_space<vmem>>, vector<1x3x8x16xf32>
    %11 = vector.shape_cast %10 : vector<1x3x8x16xf32> to vector<3x8x16xf32>
    %c0_11 = arith.constant 0 : index
    %c0_12 = arith.constant 0 : index
    %12 = arith.index_cast %1 : i32 to index
    %c0_13 = arith.constant 0 : index
    %13 = vector.load %arg4[%c0_11, %c0_12, %12, %c0_13] : memref<1x3x16x16xf32, #tpu.memory_space<vmem>>, vector<1x3x8x16xf32>
    %14 = vector.shape_cast %13 : vector<1x3x8x16xf32> to vector<3x8x16xf32>
    %15 = arith.mulf %11, %8 : vector<3x8x16xf32>
    %16 = arith.subf %15, %14 : vector<3x8x16xf32>
    %17 = arith.mulf %11, %16 : vector<3x8x16xf32>
    %cst_14 = arith.constant 1.000000e-01 : f32
    %18 = vector.broadcast %cst_14 : f32 to vector<3x8x16xf32>
    %19 = arith.mulf %18, %17 : vector<3x8x16xf32>
    %20 = arith.subf %8, %19 : vector<3x8x16xf32>
    %c0_15 = arith.constant 0 : index
    %c2 = arith.constant 2 : index
    %c1 = arith.constant 1 : index
    %21 = vector.load %arg10[%c0_15, %c2, %c1] : memref<4x12x18xf32, #tpu.memory_space<vmem>>, vector<3x8x16xf32>
    tpu.vector_store %arg10[%c0_15, %c2, %c1], %20 {strides = array<i32>} : memref<4x12x18xf32, #tpu.memory_space<vmem>>, vector<3x8x16xf32>,
    %cst_16 = arith.constant 0.0588235296 : f32
    %22 = vector.broadcast %cst_16 : f32 to vector<8x16xf32>
    %c3 = arith.constant 3 : index
    %c2_17 = arith.constant 2 : index
    %c1_18 = arith.constant 1 : index
    %23 = vector.load %arg10[%c3, %c2_17, %c1_18] : memref<4x12x18xf32, #tpu.memory_space<vmem>>, vector<1x8x16xf32>
    %24 = vector.shape_cast %23 : vector<1x8x16xf32> to vector<8x16xf32>
    %25 = vector.shape_cast %22 : vector<8x16xf32> to vector<1x8x16xf32>
    tpu.vector_store %arg10[%c3, %c2_17, %c1_18], %25 {strides = array<i32>} : memref<4x12x18xf32, #tpu.memory_space<vmem>>, vector<1x8x16xf32>,
    %c0_i32 = arith.constant 0 : i32
    %26 = arith.cmpi eq, %arg1, %c0_i32 : i32
    %27 = arith.extui %26 : i1 to i32
    %c0_i32_19 = arith.constant 0 : i32
    %28 = arith.cmpi ne, %27, %c0_i32_19 : i32
    scf.if %28 {
      %cst_663 = arith.constant 0.000000e+00 : f32
      %2394 = vector.broadcast %cst_663 : f32 to vector<4x2x18xf32>
      %c0_664 = arith.constant 0 : index
      %c0_665 = arith.constant 0 : index
      %c0_666 = arith.constant 0 : index
      %2395 = vector.load %arg10[%c0_664, %c0_665, %c0_666] : memref<4x12x18xf32, #tpu.memory_space<vmem>>, vector<4x2x18xf32>
      tpu.vector_store %arg10[%c0_664, %c0_665, %c0_666], %2394 {strides = array<i32>} : memref<4x12x18xf32, #tpu.memory_space<vmem>>, vector<4x2x18xf32>,
    } else {
    }
    %c0_i32_20 = arith.constant 0 : i32
    %29 = arith.cmpi sgt, %arg1, %c0_i32_20 : i32
    %30 = arith.extui %29 : i1 to i32
    %c0_i32_21 = arith.constant 0 : i32
    %31 = arith.cmpi ne, %30, %c0_i32_21 : i32
    scf.if %31 {
      %c2_i32 = arith.constant 2 : i32
      %2394 = arith.subi %1, %c2_i32 : i32
      %c0_663 = arith.constant 0 : index
      %c0_664 = arith.constant 0 : index
      %2395 = arith.index_cast %2394 : i32 to index
      %c0_665 = arith.constant 0 : index
      %2396 = vector.load %arg2[%c0_663, %c0_664, %2395, %c0_665] : memref<1x3x16x16xf32, #tpu.memory_space<vmem>>, vector<1x3x2x16xf32>
      %2397 = vector.shape_cast %2396 : vector<1x3x2x16xf32> to vector<3x2x16xf32>
      %c0_666 = arith.constant 0 : index
      %c0_667 = arith.constant 0 : index
      %2398 = arith.index_cast %2394 : i32 to index
      %c0_668 = arith.constant 0 : index
      %2399 = vector.load %arg3[%c0_666, %c0_667, %2398, %c0_668] : memref<1x3x16x16xf32, #tpu.memory_space<vmem>>, vector<1x3x2x16xf32>
      %2400 = vector.shape_cast %2399 : vector<1x3x2x16xf32> to vector<3x2x16xf32>
      %c0_669 = arith.constant 0 : index
      %c0_670 = arith.constant 0 : index
      %2401 = arith.index_cast %2394 : i32 to index
      %c0_671 = arith.constant 0 : index
      %2402 = vector.load %arg4[%c0_669, %c0_670, %2401, %c0_671] : memref<1x3x16x16xf32, #tpu.memory_space<vmem>>, vector<1x3x2x16xf32>
      %2403 = vector.shape_cast %2402 : vector<1x3x2x16xf32> to vector<3x2x16xf32>
      %2404 = arith.mulf %2400, %2397 : vector<3x2x16xf32>
      %2405 = arith.subf %2404, %2403 : vector<3x2x16xf32>
      %2406 = arith.mulf %2400, %2405 : vector<3x2x16xf32>
      %cst_672 = arith.constant 1.000000e-01 : f32
      %2407 = vector.broadcast %cst_672 : f32 to vector<3x2x16xf32>
      %2408 = arith.mulf %2407, %2406 : vector<3x2x16xf32>
      %2409 = arith.subf %2397, %2408 : vector<3x2x16xf32>
      %c0_673 = arith.constant 0 : index
      %c0_674 = arith.constant 0 : index
      %c1_675 = arith.constant 1 : index
      %2410 = vector.load %arg10[%c0_673, %c0_674, %c1_675] : memref<4x12x18xf32, #tpu.memory_space<vmem>>, vector<3x2x16xf32>
      tpu.vector_store %arg10[%c0_673, %c0_674, %c1_675], %2409 {strides = array<i32>} : memref<4x12x18xf32, #tpu.memory_space<vmem>>, vector<3x2x16xf32>,
      %cst_676 = arith.constant 0.0588235296 : f32
      %2411 = vector.broadcast %cst_676 : f32 to vector<2x16xf32>
      %c3_677 = arith.constant 3 : index
      %c0_678 = arith.constant 0 : index
      %c1_679 = arith.constant 1 : index
      %2412 = vector.load %arg10[%c3_677, %c0_678, %c1_679] : memref<4x12x18xf32, #tpu.memory_space<vmem>>, vector<1x2x16xf32>
      %2413 = vector.shape_cast %2412 : vector<1x2x16xf32> to vector<2x16xf32>
      %2414 = vector.shape_cast %2411 : vector<2x16xf32> to vector<1x2x16xf32>
      tpu.vector_store %arg10[%c3_677, %c0_678, %c1_679], %2414 {strides = array<i32>} : memref<4x12x18xf32, #tpu.memory_space<vmem>>, vector<1x2x16xf32>,
    } else {
    }
    %c1_i32 = arith.constant 1 : i32
    %32 = arith.cmpi eq, %arg1, %c1_i32 : i32
    %33 = arith.extui %32 : i1 to i32
    %c0_i32_22 = arith.constant 0 : i32
    %34 = arith.cmpi ne, %33, %c0_i32_22 : i32
    scf.if %34 {
      %cst_663 = arith.constant 0.000000e+00 : f32
      %2394 = vector.broadcast %cst_663 : f32 to vector<4x2x18xf32>
      %c0_664 = arith.constant 0 : index
      %c10_665 = arith.constant 10 : index
      %c0_666 = arith.constant 0 : index
      %2395 = vector.load %arg10[%c0_664, %c10_665, %c0_666] : memref<4x12x18xf32, #tpu.memory_space<vmem>>, vector<4x2x18xf32>
      tpu.vector_store %arg10[%c0_664, %c10_665, %c0_666], %2394 {strides = array<i32>} : memref<4x12x18xf32, #tpu.memory_space<vmem>>, vector<4x2x18xf32>,
    } else {
    }
    %c1_i32_23 = arith.constant 1 : i32
    %35 = arith.cmpi slt, %arg1, %c1_i32_23 : i32
    %36 = arith.extui %35 : i1 to i32
    %c0_i32_24 = arith.constant 0 : i32
    %37 = arith.cmpi ne, %36, %c0_i32_24 : i32
    scf.if %37 {
      %c8_i32_663 = arith.constant 8 : i32
      %2394 = arith.addi %1, %c8_i32_663 : i32
      %c0_664 = arith.constant 0 : index
      %c0_665 = arith.constant 0 : index
      %2395 = arith.index_cast %2394 : i32 to index
      %c0_666 = arith.constant 0 : index
      %2396 = vector.load %arg2[%c0_664, %c0_665, %2395, %c0_666] : memref<1x3x16x16xf32, #tpu.memory_space<vmem>>, vector<1x3x2x16xf32>
      %2397 = vector.shape_cast %2396 : vector<1x3x2x16xf32> to vector<3x2x16xf32>
      %c0_667 = arith.constant 0 : index
      %c0_668 = arith.constant 0 : index
      %2398 = arith.index_cast %2394 : i32 to index
      %c0_669 = arith.constant 0 : index
      %2399 = vector.load %arg3[%c0_667, %c0_668, %2398, %c0_669] : memref<1x3x16x16xf32, #tpu.memory_space<vmem>>, vector<1x3x2x16xf32>
      %2400 = vector.shape_cast %2399 : vector<1x3x2x16xf32> to vector<3x2x16xf32>
      %c0_670 = arith.constant 0 : index
      %c0_671 = arith.constant 0 : index
      %2401 = arith.index_cast %2394 : i32 to index
      %c0_672 = arith.constant 0 : index
      %2402 = vector.load %arg4[%c0_670, %c0_671, %2401, %c0_672] : memref<1x3x16x16xf32, #tpu.memory_space<vmem>>, vector<1x3x2x16xf32>
      %2403 = vector.shape_cast %2402 : vector<1x3x2x16xf32> to vector<3x2x16xf32>
      %2404 = arith.mulf %2400, %2397 : vector<3x2x16xf32>
      %2405 = arith.subf %2404, %2403 : vector<3x2x16xf32>
      %2406 = arith.mulf %2400, %2405 : vector<3x2x16xf32>
      %cst_673 = arith.constant 1.000000e-01 : f32
      %2407 = vector.broadcast %cst_673 : f32 to vector<3x2x16xf32>
      %2408 = arith.mulf %2407, %2406 : vector<3x2x16xf32>
      %2409 = arith.subf %2397, %2408 : vector<3x2x16xf32>
      %c0_674 = arith.constant 0 : index
      %c10_675 = arith.constant 10 : index
      %c1_676 = arith.constant 1 : index
      %2410 = vector.load %arg10[%c0_674, %c10_675, %c1_676] : memref<4x12x18xf32, #tpu.memory_space<vmem>>, vector<3x2x16xf32>
      tpu.vector_store %arg10[%c0_674, %c10_675, %c1_676], %2409 {strides = array<i32>} : memref<4x12x18xf32, #tpu.memory_space<vmem>>, vector<3x2x16xf32>,
      %cst_677 = arith.constant 0.0588235296 : f32
      %2411 = vector.broadcast %cst_677 : f32 to vector<2x16xf32>
      %c3_678 = arith.constant 3 : index
      %c10_679 = arith.constant 10 : index
      %c1_680 = arith.constant 1 : index
      %2412 = vector.load %arg10[%c3_678, %c10_679, %c1_680] : memref<4x12x18xf32, #tpu.memory_space<vmem>>, vector<1x2x16xf32>
      %2413 = vector.shape_cast %2412 : vector<1x2x16xf32> to vector<2x16xf32>
      %2414 = vector.shape_cast %2411 : vector<2x16xf32> to vector<1x2x16xf32>
      tpu.vector_store %arg10[%c3_678, %c10_679, %c1_680], %2414 {strides = array<i32>} : memref<4x12x18xf32, #tpu.memory_space<vmem>>, vector<1x2x16xf32>,
    } else {
    }
    %c0_25 = arith.constant 0 : index
    %c0_26 = arith.constant 0 : index
    %c0_27 = arith.constant 0 : index
    %38 = vector.load %arg10[%c0_25, %c0_26, %c0_27] : memref<4x12x18xf32, #tpu.memory_space<vmem>>, vector<1x10x16xf32>
    %39 = vector.shape_cast %38 : vector<1x10x16xf32> to vector<10x16xf32>
    %c0_28 = arith.constant 0 : index
    %c0_29 = arith.constant 0 : index
    %c1_30 = arith.constant 1 : index
    %40 = vector.load %arg10[%c0_28, %c0_29, %c1_30] : memref<4x12x18xf32, #tpu.memory_space<vmem>>, vector<1x10x16xf32>
    %41 = vector.shape_cast %40 : vector<1x10x16xf32> to vector<10x16xf32>
    %c0_31 = arith.constant 0 : index
    %c0_32 = arith.constant 0 : index
    %c2_33 = arith.constant 2 : index
    %42 = vector.load %arg10[%c0_31, %c0_32, %c2_33] : memref<4x12x18xf32, #tpu.memory_space<vmem>>, vector<1x10x16xf32>
    %43 = vector.shape_cast %42 : vector<1x10x16xf32> to vector<10x16xf32>
    %c0_34 = arith.constant 0 : index
    %c1_35 = arith.constant 1 : index
    %c0_36 = arith.constant 0 : index
    %44 = vector.load %arg10[%c0_34, %c1_35, %c0_36] : memref<4x12x18xf32, #tpu.memory_space<vmem>>, vector<1x10x16xf32>
    %45 = vector.shape_cast %44 : vector<1x10x16xf32> to vector<10x16xf32>
    %c0_37 = arith.constant 0 : index
    %c1_38 = arith.constant 1 : index
    %c1_39 = arith.constant 1 : index
    %46 = vector.load %arg10[%c0_37, %c1_38, %c1_39] : memref<4x12x18xf32, #tpu.memory_space<vmem>>, vector<1x10x16xf32>
    %47 = vector.shape_cast %46 : vector<1x10x16xf32> to vector<10x16xf32>
    %c0_40 = arith.constant 0 : index
    %c1_41 = arith.constant 1 : index
    %c2_42 = arith.constant 2 : index
    %48 = vector.load %arg10[%c0_40, %c1_41, %c2_42] : memref<4x12x18xf32, #tpu.memory_space<vmem>>, vector<1x10x16xf32>
    %49 = vector.shape_cast %48 : vector<1x10x16xf32> to vector<10x16xf32>
    %c0_43 = arith.constant 0 : index
    %c2_44 = arith.constant 2 : index
    %c0_45 = arith.constant 0 : index
    %50 = vector.load %arg10[%c0_43, %c2_44, %c0_45] : memref<4x12x18xf32, #tpu.memory_space<vmem>>, vector<1x10x16xf32>
    %51 = vector.shape_cast %50 : vector<1x10x16xf32> to vector<10x16xf32>
    %c0_46 = arith.constant 0 : index
    %c2_47 = arith.constant 2 : index
    %c1_48 = arith.constant 1 : index
    %52 = vector.load %arg10[%c0_46, %c2_47, %c1_48] : memref<4x12x18xf32, #tpu.memory_space<vmem>>, vector<1x10x16xf32>
    %53 = vector.shape_cast %52 : vector<1x10x16xf32> to vector<10x16xf32>
    %c0_49 = arith.constant 0 : index
    %c2_50 = arith.constant 2 : index
    %c2_51 = arith.constant 2 : index
    %54 = vector.load %arg10[%c0_49, %c2_50, %c2_51] : memref<4x12x18xf32, #tpu.memory_space<vmem>>, vector<1x10x16xf32>
    %55 = vector.shape_cast %54 : vector<1x10x16xf32> to vector<10x16xf32>
    %c1_52 = arith.constant 1 : index
    %c0_53 = arith.constant 0 : index
    %c0_54 = arith.constant 0 : index
    %56 = vector.load %arg10[%c1_52, %c0_53, %c0_54] : memref<4x12x18xf32, #tpu.memory_space<vmem>>, vector<1x10x16xf32>
    %57 = vector.shape_cast %56 : vector<1x10x16xf32> to vector<10x16xf32>
    %c1_55 = arith.constant 1 : index
    %c0_56 = arith.constant 0 : index
    %c1_57 = arith.constant 1 : index
    %58 = vector.load %arg10[%c1_55, %c0_56, %c1_57] : memref<4x12x18xf32, #tpu.memory_space<vmem>>, vector<1x10x16xf32>
    %59 = vector.shape_cast %58 : vector<1x10x16xf32> to vector<10x16xf32>
    %c1_58 = arith.constant 1 : index
    %c0_59 = arith.constant 0 : index
    %c2_60 = arith.constant 2 : index
    %60 = vector.load %arg10[%c1_58, %c0_59, %c2_60] : memref<4x12x18xf32, #tpu.memory_space<vmem>>, vector<1x10x16xf32>
    %61 = vector.shape_cast %60 : vector<1x10x16xf32> to vector<10x16xf32>
    %c1_61 = arith.constant 1 : index
    %c1_62 = arith.constant 1 : index
    %c0_63 = arith.constant 0 : index
    %62 = vector.load %arg10[%c1_61, %c1_62, %c0_63] : memref<4x12x18xf32, #tpu.memory_space<vmem>>, vector<1x10x16xf32>
    %63 = vector.shape_cast %62 : vector<1x10x16xf32> to vector<10x16xf32>
    %c1_64 = arith.constant 1 : index
    %c1_65 = arith.constant 1 : index
    %c1_66 = arith.constant 1 : index
    %64 = vector.load %arg10[%c1_64, %c1_65, %c1_66] : memref<4x12x18xf32, #tpu.memory_space<vmem>>, vector<1x10x16xf32>
    %65 = vector.shape_cast %64 : vector<1x10x16xf32> to vector<10x16xf32>
    %c1_67 = arith.constant 1 : index
    %c1_68 = arith.constant 1 : index
    %c2_69 = arith.constant 2 : index
    %66 = vector.load %arg10[%c1_67, %c1_68, %c2_69] : memref<4x12x18xf32, #tpu.memory_space<vmem>>, vector<1x10x16xf32>
    %67 = vector.shape_cast %66 : vector<1x10x16xf32> to vector<10x16xf32>
    %c1_70 = arith.constant 1 : index
    %c2_71 = arith.constant 2 : index
    %c0_72 = arith.constant 0 : index
    %68 = vector.load %arg10[%c1_70, %c2_71, %c0_72] : memref<4x12x18xf32, #tpu.memory_space<vmem>>, vector<1x10x16xf32>
    %69 = vector.shape_cast %68 : vector<1x10x16xf32> to vector<10x16xf32>
    %c1_73 = arith.constant 1 : index
    %c2_74 = arith.constant 2 : index
    %c1_75 = arith.constant 1 : index
    %70 = vector.load %arg10[%c1_73, %c2_74, %c1_75] : memref<4x12x18xf32, #tpu.memory_space<vmem>>, vector<1x10x16xf32>
    %71 = vector.shape_cast %70 : vector<1x10x16xf32> to vector<10x16xf32>
    %c1_76 = arith.constant 1 : index
    %c2_77 = arith.constant 2 : index
    %c2_78 = arith.constant 2 : index
    %72 = vector.load %arg10[%c1_76, %c2_77, %c2_78] : memref<4x12x18xf32, #tpu.memory_space<vmem>>, vector<1x10x16xf32>
    %73 = vector.shape_cast %72 : vector<1x10x16xf32> to vector<10x16xf32>
    %c2_79 = arith.constant 2 : index
    %c0_80 = arith.constant 0 : index
    %c0_81 = arith.constant 0 : index
    %74 = vector.load %arg10[%c2_79, %c0_80, %c0_81] : memref<4x12x18xf32, #tpu.memory_space<vmem>>, vector<1x10x16xf32>
    %75 = vector.shape_cast %74 : vector<1x10x16xf32> to vector<10x16xf32>
    %c2_82 = arith.constant 2 : index
    %c0_83 = arith.constant 0 : index
    %c1_84 = arith.constant 1 : index
    %76 = vector.load %arg10[%c2_82, %c0_83, %c1_84] : memref<4x12x18xf32, #tpu.memory_space<vmem>>, vector<1x10x16xf32>
    %77 = vector.shape_cast %76 : vector<1x10x16xf32> to vector<10x16xf32>
    %c2_85 = arith.constant 2 : index
    %c0_86 = arith.constant 0 : index
    %c2_87 = arith.constant 2 : index
    %78 = vector.load %arg10[%c2_85, %c0_86, %c2_87] : memref<4x12x18xf32, #tpu.memory_space<vmem>>, vector<1x10x16xf32>
    %79 = vector.shape_cast %78 : vector<1x10x16xf32> to vector<10x16xf32>
    %c2_88 = arith.constant 2 : index
    %c1_89 = arith.constant 1 : index
    %c0_90 = arith.constant 0 : index
    %80 = vector.load %arg10[%c2_88, %c1_89, %c0_90] : memref<4x12x18xf32, #tpu.memory_space<vmem>>, vector<1x10x16xf32>
    %81 = vector.shape_cast %80 : vector<1x10x16xf32> to vector<10x16xf32>
    %c2_91 = arith.constant 2 : index
    %c1_92 = arith.constant 1 : index
    %c1_93 = arith.constant 1 : index
    %82 = vector.load %arg10[%c2_91, %c1_92, %c1_93] : memref<4x12x18xf32, #tpu.memory_space<vmem>>, vector<1x10x16xf32>
    %83 = vector.shape_cast %82 : vector<1x10x16xf32> to vector<10x16xf32>
    %c2_94 = arith.constant 2 : index
    %c1_95 = arith.constant 1 : index
    %c2_96 = arith.constant 2 : index
    %84 = vector.load %arg10[%c2_94, %c1_95, %c2_96] : memref<4x12x18xf32, #tpu.memory_space<vmem>>, vector<1x10x16xf32>
    %85 = vector.shape_cast %84 : vector<1x10x16xf32> to vector<10x16xf32>
    %c2_97 = arith.constant 2 : index
    %c2_98 = arith.constant 2 : index
    %c0_99 = arith.constant 0 : index
    %86 = vector.load %arg10[%c2_97, %c2_98, %c0_99] : memref<4x12x18xf32, #tpu.memory_space<vmem>>, vector<1x10x16xf32>
    %87 = vector.shape_cast %86 : vector<1x10x16xf32> to vector<10x16xf32>
    %c2_100 = arith.constant 2 : index
    %c2_101 = arith.constant 2 : index
    %c1_102 = arith.constant 1 : index
    %88 = vector.load %arg10[%c2_100, %c2_101, %c1_102] : memref<4x12x18xf32, #tpu.memory_space<vmem>>, vector<1x10x16xf32>
    %89 = vector.shape_cast %88 : vector<1x10x16xf32> to vector<10x16xf32>
    %c2_103 = arith.constant 2 : index
    %c2_104 = arith.constant 2 : index
    %c2_105 = arith.constant 2 : index
    %90 = vector.load %arg10[%c2_103, %c2_104, %c2_105] : memref<4x12x18xf32, #tpu.memory_space<vmem>>, vector<1x10x16xf32>
    %91 = vector.shape_cast %90 : vector<1x10x16xf32> to vector<10x16xf32>
    %c3_106 = arith.constant 3 : index
    %c0_107 = arith.constant 0 : index
    %c0_108 = arith.constant 0 : index
    %92 = vector.load %arg10[%c3_106, %c0_107, %c0_108] : memref<4x12x18xf32, #tpu.memory_space<vmem>>, vector<1x10x16xf32>
    %93 = vector.shape_cast %92 : vector<1x10x16xf32> to vector<10x16xf32>
    %c3_109 = arith.constant 3 : index
    %c0_110 = arith.constant 0 : index
    %c1_111 = arith.constant 1 : index
    %94 = vector.load %arg10[%c3_109, %c0_110, %c1_111] : memref<4x12x18xf32, #tpu.memory_space<vmem>>, vector<1x10x16xf32>
    %95 = vector.shape_cast %94 : vector<1x10x16xf32> to vector<10x16xf32>
    %c3_112 = arith.constant 3 : index
    %c0_113 = arith.constant 0 : index
    %c2_114 = arith.constant 2 : index
    %96 = vector.load %arg10[%c3_112, %c0_113, %c2_114] : memref<4x12x18xf32, #tpu.memory_space<vmem>>, vector<1x10x16xf32>
    %97 = vector.shape_cast %96 : vector<1x10x16xf32> to vector<10x16xf32>
    %c3_115 = arith.constant 3 : index
    %c1_116 = arith.constant 1 : index
    %c0_117 = arith.constant 0 : index
    %98 = vector.load %arg10[%c3_115, %c1_116, %c0_117] : memref<4x12x18xf32, #tpu.memory_space<vmem>>, vector<1x10x16xf32>
    %99 = vector.shape_cast %98 : vector<1x10x16xf32> to vector<10x16xf32>
    %c3_118 = arith.constant 3 : index
    %c1_119 = arith.constant 1 : index
    %c1_120 = arith.constant 1 : index
    %100 = vector.load %arg10[%c3_118, %c1_119, %c1_120] : memref<4x12x18xf32, #tpu.memory_space<vmem>>, vector<1x10x16xf32>
    %101 = vector.shape_cast %100 : vector<1x10x16xf32> to vector<10x16xf32>
    %c3_121 = arith.constant 3 : index
    %c1_122 = arith.constant 1 : index
    %c2_123 = arith.constant 2 : index
    %102 = vector.load %arg10[%c3_121, %c1_122, %c2_123] : memref<4x12x18xf32, #tpu.memory_space<vmem>>, vector<1x10x16xf32>
    %103 = vector.shape_cast %102 : vector<1x10x16xf32> to vector<10x16xf32>
    %c3_124 = arith.constant 3 : index
    %c2_125 = arith.constant 2 : index
    %c0_126 = arith.constant 0 : index
    %104 = vector.load %arg10[%c3_124, %c2_125, %c0_126] : memref<4x12x18xf32, #tpu.memory_space<vmem>>, vector<1x10x16xf32>
    %105 = vector.shape_cast %104 : vector<1x10x16xf32> to vector<10x16xf32>
    %c3_127 = arith.constant 3 : index
    %c2_128 = arith.constant 2 : index
    %c1_129 = arith.constant 1 : index
    %106 = vector.load %arg10[%c3_127, %c2_128, %c1_129] : memref<4x12x18xf32, #tpu.memory_space<vmem>>, vector<1x10x16xf32>
    %107 = vector.shape_cast %106 : vector<1x10x16xf32> to vector<10x16xf32>
    %c3_130 = arith.constant 3 : index
    %c2_131 = arith.constant 2 : index
    %c2_132 = arith.constant 2 : index
    %108 = vector.load %arg10[%c3_130, %c2_131, %c2_132] : memref<4x12x18xf32, #tpu.memory_space<vmem>>, vector<1x10x16xf32>
    %109 = vector.shape_cast %108 : vector<1x10x16xf32> to vector<10x16xf32>
    %cst_133 = arith.constant 0.000000e+00 : f32
    %110 = vector.broadcast %cst_133 : f32 to vector<8x10x1xf32>
    %c0_134 = arith.constant 0 : index
    %c0_135 = arith.constant 0 : index
    %c0_136 = arith.constant 0 : index
    %111 = vector.load %arg11[%c0_134, %c0_135, %c0_136] : memref<8x10x18xf32, #tpu.memory_space<vmem>>, vector<8x10x1xf32>
    tpu.vector_store %arg11[%c0_134, %c0_135, %c0_136], %110 {strides = array<i32>} : memref<8x10x18xf32, #tpu.memory_space<vmem>>, vector<8x10x1xf32>,
    %cst_137 = arith.constant 0.000000e+00 : f32
    %112 = vector.broadcast %cst_137 : f32 to vector<8x10x1xf32>
    %c0_138 = arith.constant 0 : index
    %c0_139 = arith.constant 0 : index
    %c17_140 = arith.constant 17 : index
    %113 = vector.load %arg11[%c0_138, %c0_139, %c17_140] : memref<8x10x18xf32, #tpu.memory_space<vmem>>, vector<8x10x1xf32>
    tpu.vector_store %arg11[%c0_138, %c0_139, %c17_140], %112 {strides = array<i32>} : memref<8x10x18xf32, #tpu.memory_space<vmem>>, vector<8x10x1xf32>,
    %cst_141 = arith.constant 0.000000e+00 : f32
    %114 = vector.broadcast %cst_141 : f32 to vector<10x16xf32>
    %c0_142 = arith.constant 0 : index
    %115 = memref.load %arg6[%c0_142] : memref<8xf32, #tpu.memory_space<smem>>
    %116 = vector.broadcast %115 : f32 to vector<10x16xf32>
    %117 = arith.addf %114, %116 : vector<10x16xf32>
    %c0_143 = arith.constant 0 : index
    %118 = memref.load %arg5[%c0_143] : memref<288xf32, #tpu.memory_space<smem>>
    %119 = vector.broadcast %118 : f32 to vector<10x16xf32>
    %120 = arith.mulf %119, %39 : vector<10x16xf32>
    %121 = arith.addf %117, %120 : vector<10x16xf32>
    %c1_144 = arith.constant 1 : index
    %122 = memref.load %arg5[%c1_144] : memref<288xf32, #tpu.memory_space<smem>>
    %123 = vector.broadcast %122 : f32 to vector<10x16xf32>
    %124 = arith.mulf %123, %41 : vector<10x16xf32>
    %125 = arith.addf %121, %124 : vector<10x16xf32>
    %c2_145 = arith.constant 2 : index
    %126 = memref.load %arg5[%c2_145] : memref<288xf32, #tpu.memory_space<smem>>
    %127 = vector.broadcast %126 : f32 to vector<10x16xf32>
    %128 = arith.mulf %127, %43 : vector<10x16xf32>
    %129 = arith.addf %125, %128 : vector<10x16xf32>
    %c3_146 = arith.constant 3 : index
    %130 = memref.load %arg5[%c3_146] : memref<288xf32, #tpu.memory_space<smem>>
    %131 = vector.broadcast %130 : f32 to vector<10x16xf32>
    %132 = arith.mulf %131, %45 : vector<10x16xf32>
    %133 = arith.addf %129, %132 : vector<10x16xf32>
    %c4 = arith.constant 4 : index
    %134 = memref.load %arg5[%c4] : memref<288xf32, #tpu.memory_space<smem>>
    %135 = vector.broadcast %134 : f32 to vector<10x16xf32>
    %136 = arith.mulf %135, %47 : vector<10x16xf32>
    %137 = arith.addf %133, %136 : vector<10x16xf32>
    %c5 = arith.constant 5 : index
    %138 = memref.load %arg5[%c5] : memref<288xf32, #tpu.memory_space<smem>>
    %139 = vector.broadcast %138 : f32 to vector<10x16xf32>
    %140 = arith.mulf %139, %49 : vector<10x16xf32>
    %141 = arith.addf %137, %140 : vector<10x16xf32>
    %c6 = arith.constant 6 : index
    %142 = memref.load %arg5[%c6] : memref<288xf32, #tpu.memory_space<smem>>
    %143 = vector.broadcast %142 : f32 to vector<10x16xf32>
    %144 = arith.mulf %143, %51 : vector<10x16xf32>
    %145 = arith.addf %141, %144 : vector<10x16xf32>
    %c7 = arith.constant 7 : index
    %146 = memref.load %arg5[%c7] : memref<288xf32, #tpu.memory_space<smem>>
    %147 = vector.broadcast %146 : f32 to vector<10x16xf32>
    %148 = arith.mulf %147, %53 : vector<10x16xf32>
    %149 = arith.addf %145, %148 : vector<10x16xf32>
    %c8 = arith.constant 8 : index
    %150 = memref.load %arg5[%c8] : memref<288xf32, #tpu.memory_space<smem>>
    %151 = vector.broadcast %150 : f32 to vector<10x16xf32>
    %152 = arith.mulf %151, %55 : vector<10x16xf32>
    %153 = arith.addf %149, %152 : vector<10x16xf32>
    %c9 = arith.constant 9 : index
    %154 = memref.load %arg5[%c9] : memref<288xf32, #tpu.memory_space<smem>>
    %155 = vector.broadcast %154 : f32 to vector<10x16xf32>
    %156 = arith.mulf %155, %57 : vector<10x16xf32>
    %157 = arith.addf %153, %156 : vector<10x16xf32>
    %c10 = arith.constant 10 : index
    %158 = memref.load %arg5[%c10] : memref<288xf32, #tpu.memory_space<smem>>
    %159 = vector.broadcast %158 : f32 to vector<10x16xf32>
    %160 = arith.mulf %159, %59 : vector<10x16xf32>
    %161 = arith.addf %157, %160 : vector<10x16xf32>
    %c11 = arith.constant 11 : index
    %162 = memref.load %arg5[%c11] : memref<288xf32, #tpu.memory_space<smem>>
    %163 = vector.broadcast %162 : f32 to vector<10x16xf32>
    %164 = arith.mulf %163, %61 : vector<10x16xf32>
    %165 = arith.addf %161, %164 : vector<10x16xf32>
    %c12 = arith.constant 12 : index
    %166 = memref.load %arg5[%c12] : memref<288xf32, #tpu.memory_space<smem>>
    %167 = vector.broadcast %166 : f32 to vector<10x16xf32>
    %168 = arith.mulf %167, %63 : vector<10x16xf32>
    %169 = arith.addf %165, %168 : vector<10x16xf32>
    %c13 = arith.constant 13 : index
    %170 = memref.load %arg5[%c13] : memref<288xf32, #tpu.memory_space<smem>>
    %171 = vector.broadcast %170 : f32 to vector<10x16xf32>
    %172 = arith.mulf %171, %65 : vector<10x16xf32>
    %173 = arith.addf %169, %172 : vector<10x16xf32>
    %c14 = arith.constant 14 : index
    %174 = memref.load %arg5[%c14] : memref<288xf32, #tpu.memory_space<smem>>
    %175 = vector.broadcast %174 : f32 to vector<10x16xf32>
    %176 = arith.mulf %175, %67 : vector<10x16xf32>
    %177 = arith.addf %173, %176 : vector<10x16xf32>
    %c15 = arith.constant 15 : index
    %178 = memref.load %arg5[%c15] : memref<288xf32, #tpu.memory_space<smem>>
    %179 = vector.broadcast %178 : f32 to vector<10x16xf32>
    %180 = arith.mulf %179, %69 : vector<10x16xf32>
    %181 = arith.addf %177, %180 : vector<10x16xf32>
    %c16 = arith.constant 16 : index
    %182 = memref.load %arg5[%c16] : memref<288xf32, #tpu.memory_space<smem>>
    %183 = vector.broadcast %182 : f32 to vector<10x16xf32>
    %184 = arith.mulf %183, %71 : vector<10x16xf32>
    %185 = arith.addf %181, %184 : vector<10x16xf32>
    %c17_147 = arith.constant 17 : index
    %186 = memref.load %arg5[%c17_147] : memref<288xf32, #tpu.memory_space<smem>>
    %187 = vector.broadcast %186 : f32 to vector<10x16xf32>
    %188 = arith.mulf %187, %73 : vector<10x16xf32>
    %189 = arith.addf %185, %188 : vector<10x16xf32>
    %c18 = arith.constant 18 : index
    %190 = memref.load %arg5[%c18] : memref<288xf32, #tpu.memory_space<smem>>
    %191 = vector.broadcast %190 : f32 to vector<10x16xf32>
    %192 = arith.mulf %191, %75 : vector<10x16xf32>
    %193 = arith.addf %189, %192 : vector<10x16xf32>
    %c19 = arith.constant 19 : index
    %194 = memref.load %arg5[%c19] : memref<288xf32, #tpu.memory_space<smem>>
    %195 = vector.broadcast %194 : f32 to vector<10x16xf32>
    %196 = arith.mulf %195, %77 : vector<10x16xf32>
    %197 = arith.addf %193, %196 : vector<10x16xf32>
    %c20 = arith.constant 20 : index
    %198 = memref.load %arg5[%c20] : memref<288xf32, #tpu.memory_space<smem>>
    %199 = vector.broadcast %198 : f32 to vector<10x16xf32>
    %200 = arith.mulf %199, %79 : vector<10x16xf32>
    %201 = arith.addf %197, %200 : vector<10x16xf32>
    %c21 = arith.constant 21 : index
    %202 = memref.load %arg5[%c21] : memref<288xf32, #tpu.memory_space<smem>>
    %203 = vector.broadcast %202 : f32 to vector<10x16xf32>
    %204 = arith.mulf %203, %81 : vector<10x16xf32>
    %205 = arith.addf %201, %204 : vector<10x16xf32>
    %c22 = arith.constant 22 : index
    %206 = memref.load %arg5[%c22] : memref<288xf32, #tpu.memory_space<smem>>
    %207 = vector.broadcast %206 : f32 to vector<10x16xf32>
    %208 = arith.mulf %207, %83 : vector<10x16xf32>
    %209 = arith.addf %205, %208 : vector<10x16xf32>
    %c23 = arith.constant 23 : index
    %210 = memref.load %arg5[%c23] : memref<288xf32, #tpu.memory_space<smem>>
    %211 = vector.broadcast %210 : f32 to vector<10x16xf32>
    %212 = arith.mulf %211, %85 : vector<10x16xf32>
    %213 = arith.addf %209, %212 : vector<10x16xf32>
    %c24 = arith.constant 24 : index
    %214 = memref.load %arg5[%c24] : memref<288xf32, #tpu.memory_space<smem>>
    %215 = vector.broadcast %214 : f32 to vector<10x16xf32>
    %216 = arith.mulf %215, %87 : vector<10x16xf32>
    %217 = arith.addf %213, %216 : vector<10x16xf32>
    %c25 = arith.constant 25 : index
    %218 = memref.load %arg5[%c25] : memref<288xf32, #tpu.memory_space<smem>>
    %219 = vector.broadcast %218 : f32 to vector<10x16xf32>
    %220 = arith.mulf %219, %89 : vector<10x16xf32>
    %221 = arith.addf %217, %220 : vector<10x16xf32>
    %c26 = arith.constant 26 : index
    %222 = memref.load %arg5[%c26] : memref<288xf32, #tpu.memory_space<smem>>
    %223 = vector.broadcast %222 : f32 to vector<10x16xf32>
    %224 = arith.mulf %223, %91 : vector<10x16xf32>
    %225 = arith.addf %221, %224 : vector<10x16xf32>
    %c27 = arith.constant 27 : index
    %226 = memref.load %arg5[%c27] : memref<288xf32, #tpu.memory_space<smem>>
    %227 = vector.broadcast %226 : f32 to vector<10x16xf32>
    %228 = arith.mulf %227, %93 : vector<10x16xf32>
    %229 = arith.addf %225, %228 : vector<10x16xf32>
    %c28 = arith.constant 28 : index
    %230 = memref.load %arg5[%c28] : memref<288xf32, #tpu.memory_space<smem>>
    %231 = vector.broadcast %230 : f32 to vector<10x16xf32>
    %232 = arith.mulf %231, %95 : vector<10x16xf32>
    %233 = arith.addf %229, %232 : vector<10x16xf32>
    %c29 = arith.constant 29 : index
    %234 = memref.load %arg5[%c29] : memref<288xf32, #tpu.memory_space<smem>>
    %235 = vector.broadcast %234 : f32 to vector<10x16xf32>
    %236 = arith.mulf %235, %97 : vector<10x16xf32>
    %237 = arith.addf %233, %236 : vector<10x16xf32>
    %c30 = arith.constant 30 : index
    %238 = memref.load %arg5[%c30] : memref<288xf32, #tpu.memory_space<smem>>
    %239 = vector.broadcast %238 : f32 to vector<10x16xf32>
    %240 = arith.mulf %239, %99 : vector<10x16xf32>
    %241 = arith.addf %237, %240 : vector<10x16xf32>
    %c31 = arith.constant 31 : index
    %242 = memref.load %arg5[%c31] : memref<288xf32, #tpu.memory_space<smem>>
    %243 = vector.broadcast %242 : f32 to vector<10x16xf32>
    %244 = arith.mulf %243, %101 : vector<10x16xf32>
    %245 = arith.addf %241, %244 : vector<10x16xf32>
    %c32 = arith.constant 32 : index
    %246 = memref.load %arg5[%c32] : memref<288xf32, #tpu.memory_space<smem>>
    %247 = vector.broadcast %246 : f32 to vector<10x16xf32>
    %248 = arith.mulf %247, %103 : vector<10x16xf32>
    %249 = arith.addf %245, %248 : vector<10x16xf32>
    %c33 = arith.constant 33 : index
    %250 = memref.load %arg5[%c33] : memref<288xf32, #tpu.memory_space<smem>>
    %251 = vector.broadcast %250 : f32 to vector<10x16xf32>
    %252 = arith.mulf %251, %105 : vector<10x16xf32>
    %253 = arith.addf %249, %252 : vector<10x16xf32>
    %c34 = arith.constant 34 : index
    %254 = memref.load %arg5[%c34] : memref<288xf32, #tpu.memory_space<smem>>
    %255 = vector.broadcast %254 : f32 to vector<10x16xf32>
    %256 = arith.mulf %255, %107 : vector<10x16xf32>
    %257 = arith.addf %253, %256 : vector<10x16xf32>
    %c35 = arith.constant 35 : index
    %258 = memref.load %arg5[%c35] : memref<288xf32, #tpu.memory_space<smem>>
    %259 = vector.broadcast %258 : f32 to vector<10x16xf32>
    %260 = arith.mulf %259, %109 : vector<10x16xf32>
    %261 = arith.addf %257, %260 : vector<10x16xf32>
    %cst_148 = arith.constant 0.000000e+00 : f32
    %262 = vector.broadcast %cst_148 : f32 to vector<10x16xf32>
    %263 = arith.maximumf %261, %262 : vector<10x16xf32>
    %c0_149 = arith.constant 0 : index
    %c0_150 = arith.constant 0 : index
    %c1_151 = arith.constant 1 : index
    %264 = vector.load %arg11[%c0_149, %c0_150, %c1_151] : memref<8x10x18xf32, #tpu.memory_space<vmem>>, vector<1x10x16xf32>
    %265 = vector.shape_cast %264 : vector<1x10x16xf32> to vector<10x16xf32>
    %266 = vector.shape_cast %263 : vector<10x16xf32> to vector<1x10x16xf32>
    tpu.vector_store %arg11[%c0_149, %c0_150, %c1_151], %266 {strides = array<i32>} : memref<8x10x18xf32, #tpu.memory_space<vmem>>, vector<1x10x16xf32>,
    %cst_152 = arith.constant 0.000000e+00 : f32
    %267 = vector.broadcast %cst_152 : f32 to vector<10x16xf32>
    %c1_153 = arith.constant 1 : index
    %268 = memref.load %arg6[%c1_153] : memref<8xf32, #tpu.memory_space<smem>>
    %269 = vector.broadcast %268 : f32 to vector<10x16xf32>
    %270 = arith.addf %267, %269 : vector<10x16xf32>
    %c36 = arith.constant 36 : index
    %271 = memref.load %arg5[%c36] : memref<288xf32, #tpu.memory_space<smem>>
    %272 = vector.broadcast %271 : f32 to vector<10x16xf32>
    %273 = arith.mulf %272, %39 : vector<10x16xf32>
    %274 = arith.addf %270, %273 : vector<10x16xf32>
    %c37 = arith.constant 37 : index
    %275 = memref.load %arg5[%c37] : memref<288xf32, #tpu.memory_space<smem>>
    %276 = vector.broadcast %275 : f32 to vector<10x16xf32>
    %277 = arith.mulf %276, %41 : vector<10x16xf32>
    %278 = arith.addf %274, %277 : vector<10x16xf32>
    %c38 = arith.constant 38 : index
    %279 = memref.load %arg5[%c38] : memref<288xf32, #tpu.memory_space<smem>>
    %280 = vector.broadcast %279 : f32 to vector<10x16xf32>
    %281 = arith.mulf %280, %43 : vector<10x16xf32>
    %282 = arith.addf %278, %281 : vector<10x16xf32>
    %c39 = arith.constant 39 : index
    %283 = memref.load %arg5[%c39] : memref<288xf32, #tpu.memory_space<smem>>
    %284 = vector.broadcast %283 : f32 to vector<10x16xf32>
    %285 = arith.mulf %284, %45 : vector<10x16xf32>
    %286 = arith.addf %282, %285 : vector<10x16xf32>
    %c40 = arith.constant 40 : index
    %287 = memref.load %arg5[%c40] : memref<288xf32, #tpu.memory_space<smem>>
    %288 = vector.broadcast %287 : f32 to vector<10x16xf32>
    %289 = arith.mulf %288, %47 : vector<10x16xf32>
    %290 = arith.addf %286, %289 : vector<10x16xf32>
    %c41 = arith.constant 41 : index
    %291 = memref.load %arg5[%c41] : memref<288xf32, #tpu.memory_space<smem>>
    %292 = vector.broadcast %291 : f32 to vector<10x16xf32>
    %293 = arith.mulf %292, %49 : vector<10x16xf32>
    %294 = arith.addf %290, %293 : vector<10x16xf32>
    %c42 = arith.constant 42 : index
    %295 = memref.load %arg5[%c42] : memref<288xf32, #tpu.memory_space<smem>>
    %296 = vector.broadcast %295 : f32 to vector<10x16xf32>
    %297 = arith.mulf %296, %51 : vector<10x16xf32>
    %298 = arith.addf %294, %297 : vector<10x16xf32>
    %c43 = arith.constant 43 : index
    %299 = memref.load %arg5[%c43] : memref<288xf32, #tpu.memory_space<smem>>
    %300 = vector.broadcast %299 : f32 to vector<10x16xf32>
    %301 = arith.mulf %300, %53 : vector<10x16xf32>
    %302 = arith.addf %298, %301 : vector<10x16xf32>
    %c44 = arith.constant 44 : index
    %303 = memref.load %arg5[%c44] : memref<288xf32, #tpu.memory_space<smem>>
    %304 = vector.broadcast %303 : f32 to vector<10x16xf32>
    %305 = arith.mulf %304, %55 : vector<10x16xf32>
    %306 = arith.addf %302, %305 : vector<10x16xf32>
    %c45 = arith.constant 45 : index
    %307 = memref.load %arg5[%c45] : memref<288xf32, #tpu.memory_space<smem>>
    %308 = vector.broadcast %307 : f32 to vector<10x16xf32>
    %309 = arith.mulf %308, %57 : vector<10x16xf32>
    %310 = arith.addf %306, %309 : vector<10x16xf32>
    %c46 = arith.constant 46 : index
    %311 = memref.load %arg5[%c46] : memref<288xf32, #tpu.memory_space<smem>>
    %312 = vector.broadcast %311 : f32 to vector<10x16xf32>
    %313 = arith.mulf %312, %59 : vector<10x16xf32>
    %314 = arith.addf %310, %313 : vector<10x16xf32>
    %c47 = arith.constant 47 : index
    %315 = memref.load %arg5[%c47] : memref<288xf32, #tpu.memory_space<smem>>
    %316 = vector.broadcast %315 : f32 to vector<10x16xf32>
    %317 = arith.mulf %316, %61 : vector<10x16xf32>
    %318 = arith.addf %314, %317 : vector<10x16xf32>
    %c48 = arith.constant 48 : index
    %319 = memref.load %arg5[%c48] : memref<288xf32, #tpu.memory_space<smem>>
    %320 = vector.broadcast %319 : f32 to vector<10x16xf32>
    %321 = arith.mulf %320, %63 : vector<10x16xf32>
    %322 = arith.addf %318, %321 : vector<10x16xf32>
    %c49 = arith.constant 49 : index
    %323 = memref.load %arg5[%c49] : memref<288xf32, #tpu.memory_space<smem>>
    %324 = vector.broadcast %323 : f32 to vector<10x16xf32>
    %325 = arith.mulf %324, %65 : vector<10x16xf32>
    %326 = arith.addf %322, %325 : vector<10x16xf32>
    %c50 = arith.constant 50 : index
    %327 = memref.load %arg5[%c50] : memref<288xf32, #tpu.memory_space<smem>>
    %328 = vector.broadcast %327 : f32 to vector<10x16xf32>
    %329 = arith.mulf %328, %67 : vector<10x16xf32>
    %330 = arith.addf %326, %329 : vector<10x16xf32>
    %c51 = arith.constant 51 : index
    %331 = memref.load %arg5[%c51] : memref<288xf32, #tpu.memory_space<smem>>
    %332 = vector.broadcast %331 : f32 to vector<10x16xf32>
    %333 = arith.mulf %332, %69 : vector<10x16xf32>
    %334 = arith.addf %330, %333 : vector<10x16xf32>
    %c52 = arith.constant 52 : index
    %335 = memref.load %arg5[%c52] : memref<288xf32, #tpu.memory_space<smem>>
    %336 = vector.broadcast %335 : f32 to vector<10x16xf32>
    %337 = arith.mulf %336, %71 : vector<10x16xf32>
    %338 = arith.addf %334, %337 : vector<10x16xf32>
    %c53 = arith.constant 53 : index
    %339 = memref.load %arg5[%c53] : memref<288xf32, #tpu.memory_space<smem>>
    %340 = vector.broadcast %339 : f32 to vector<10x16xf32>
    %341 = arith.mulf %340, %73 : vector<10x16xf32>
    %342 = arith.addf %338, %341 : vector<10x16xf32>
    %c54 = arith.constant 54 : index
    %343 = memref.load %arg5[%c54] : memref<288xf32, #tpu.memory_space<smem>>
    %344 = vector.broadcast %343 : f32 to vector<10x16xf32>
    %345 = arith.mulf %344, %75 : vector<10x16xf32>
    %346 = arith.addf %342, %345 : vector<10x16xf32>
    %c55 = arith.constant 55 : index
    %347 = memref.load %arg5[%c55] : memref<288xf32, #tpu.memory_space<smem>>
    %348 = vector.broadcast %347 : f32 to vector<10x16xf32>
    %349 = arith.mulf %348, %77 : vector<10x16xf32>
    %350 = arith.addf %346, %349 : vector<10x16xf32>
    %c56 = arith.constant 56 : index
    %351 = memref.load %arg5[%c56] : memref<288xf32, #tpu.memory_space<smem>>
    %352 = vector.broadcast %351 : f32 to vector<10x16xf32>
    %353 = arith.mulf %352, %79 : vector<10x16xf32>
    %354 = arith.addf %350, %353 : vector<10x16xf32>
    %c57 = arith.constant 57 : index
    %355 = memref.load %arg5[%c57] : memref<288xf32, #tpu.memory_space<smem>>
    %356 = vector.broadcast %355 : f32 to vector<10x16xf32>
    %357 = arith.mulf %356, %81 : vector<10x16xf32>
    %358 = arith.addf %354, %357 : vector<10x16xf32>
    %c58 = arith.constant 58 : index
    %359 = memref.load %arg5[%c58] : memref<288xf32, #tpu.memory_space<smem>>
    %360 = vector.broadcast %359 : f32 to vector<10x16xf32>
    %361 = arith.mulf %360, %83 : vector<10x16xf32>
    %362 = arith.addf %358, %361 : vector<10x16xf32>
    %c59 = arith.constant 59 : index
    %363 = memref.load %arg5[%c59] : memref<288xf32, #tpu.memory_space<smem>>
    %364 = vector.broadcast %363 : f32 to vector<10x16xf32>
    %365 = arith.mulf %364, %85 : vector<10x16xf32>
    %366 = arith.addf %362, %365 : vector<10x16xf32>
    %c60 = arith.constant 60 : index
    %367 = memref.load %arg5[%c60] : memref<288xf32, #tpu.memory_space<smem>>
    %368 = vector.broadcast %367 : f32 to vector<10x16xf32>
    %369 = arith.mulf %368, %87 : vector<10x16xf32>
    %370 = arith.addf %366, %369 : vector<10x16xf32>
    %c61 = arith.constant 61 : index
    %371 = memref.load %arg5[%c61] : memref<288xf32, #tpu.memory_space<smem>>
    %372 = vector.broadcast %371 : f32 to vector<10x16xf32>
    %373 = arith.mulf %372, %89 : vector<10x16xf32>
    %374 = arith.addf %370, %373 : vector<10x16xf32>
    %c62 = arith.constant 62 : index
    %375 = memref.load %arg5[%c62] : memref<288xf32, #tpu.memory_space<smem>>
    %376 = vector.broadcast %375 : f32 to vector<10x16xf32>
    %377 = arith.mulf %376, %91 : vector<10x16xf32>
    %378 = arith.addf %374, %377 : vector<10x16xf32>
    %c63 = arith.constant 63 : index
    %379 = memref.load %arg5[%c63] : memref<288xf32, #tpu.memory_space<smem>>
    %380 = vector.broadcast %379 : f32 to vector<10x16xf32>
    %381 = arith.mulf %380, %93 : vector<10x16xf32>
    %382 = arith.addf %378, %381 : vector<10x16xf32>
    %c64 = arith.constant 64 : index
    %383 = memref.load %arg5[%c64] : memref<288xf32, #tpu.memory_space<smem>>
    %384 = vector.broadcast %383 : f32 to vector<10x16xf32>
    %385 = arith.mulf %384, %95 : vector<10x16xf32>
    %386 = arith.addf %382, %385 : vector<10x16xf32>
    %c65 = arith.constant 65 : index
    %387 = memref.load %arg5[%c65] : memref<288xf32, #tpu.memory_space<smem>>
    %388 = vector.broadcast %387 : f32 to vector<10x16xf32>
    %389 = arith.mulf %388, %97 : vector<10x16xf32>
    %390 = arith.addf %386, %389 : vector<10x16xf32>
    %c66 = arith.constant 66 : index
    %391 = memref.load %arg5[%c66] : memref<288xf32, #tpu.memory_space<smem>>
    %392 = vector.broadcast %391 : f32 to vector<10x16xf32>
    %393 = arith.mulf %392, %99 : vector<10x16xf32>
    %394 = arith.addf %390, %393 : vector<10x16xf32>
    %c67 = arith.constant 67 : index
    %395 = memref.load %arg5[%c67] : memref<288xf32, #tpu.memory_space<smem>>
    %396 = vector.broadcast %395 : f32 to vector<10x16xf32>
    %397 = arith.mulf %396, %101 : vector<10x16xf32>
    %398 = arith.addf %394, %397 : vector<10x16xf32>
    %c68 = arith.constant 68 : index
    %399 = memref.load %arg5[%c68] : memref<288xf32, #tpu.memory_space<smem>>
    %400 = vector.broadcast %399 : f32 to vector<10x16xf32>
    %401 = arith.mulf %400, %103 : vector<10x16xf32>
    %402 = arith.addf %398, %401 : vector<10x16xf32>
    %c69 = arith.constant 69 : index
    %403 = memref.load %arg5[%c69] : memref<288xf32, #tpu.memory_space<smem>>
    %404 = vector.broadcast %403 : f32 to vector<10x16xf32>
    %405 = arith.mulf %404, %105 : vector<10x16xf32>
    %406 = arith.addf %402, %405 : vector<10x16xf32>
    %c70 = arith.constant 70 : index
    %407 = memref.load %arg5[%c70] : memref<288xf32, #tpu.memory_space<smem>>
    %408 = vector.broadcast %407 : f32 to vector<10x16xf32>
    %409 = arith.mulf %408, %107 : vector<10x16xf32>
    %410 = arith.addf %406, %409 : vector<10x16xf32>
    %c71 = arith.constant 71 : index
    %411 = memref.load %arg5[%c71] : memref<288xf32, #tpu.memory_space<smem>>
    %412 = vector.broadcast %411 : f32 to vector<10x16xf32>
    %413 = arith.mulf %412, %109 : vector<10x16xf32>
    %414 = arith.addf %410, %413 : vector<10x16xf32>
    %cst_154 = arith.constant 0.000000e+00 : f32
    %415 = vector.broadcast %cst_154 : f32 to vector<10x16xf32>
    %416 = arith.maximumf %414, %415 : vector<10x16xf32>
    %c1_155 = arith.constant 1 : index
    %c0_156 = arith.constant 0 : index
    %c1_157 = arith.constant 1 : index
    %417 = vector.load %arg11[%c1_155, %c0_156, %c1_157] : memref<8x10x18xf32, #tpu.memory_space<vmem>>, vector<1x10x16xf32>
    %418 = vector.shape_cast %417 : vector<1x10x16xf32> to vector<10x16xf32>
    %419 = vector.shape_cast %416 : vector<10x16xf32> to vector<1x10x16xf32>
    tpu.vector_store %arg11[%c1_155, %c0_156, %c1_157], %419 {strides = array<i32>} : memref<8x10x18xf32, #tpu.memory_space<vmem>>, vector<1x10x16xf32>,
    %cst_158 = arith.constant 0.000000e+00 : f32
    %420 = vector.broadcast %cst_158 : f32 to vector<10x16xf32>
    %c2_159 = arith.constant 2 : index
    %421 = memref.load %arg6[%c2_159] : memref<8xf32, #tpu.memory_space<smem>>
    %422 = vector.broadcast %421 : f32 to vector<10x16xf32>
    %423 = arith.addf %420, %422 : vector<10x16xf32>
    %c72 = arith.constant 72 : index
    %424 = memref.load %arg5[%c72] : memref<288xf32, #tpu.memory_space<smem>>
    %425 = vector.broadcast %424 : f32 to vector<10x16xf32>
    %426 = arith.mulf %425, %39 : vector<10x16xf32>
    %427 = arith.addf %423, %426 : vector<10x16xf32>
    %c73 = arith.constant 73 : index
    %428 = memref.load %arg5[%c73] : memref<288xf32, #tpu.memory_space<smem>>
    %429 = vector.broadcast %428 : f32 to vector<10x16xf32>
    %430 = arith.mulf %429, %41 : vector<10x16xf32>
    %431 = arith.addf %427, %430 : vector<10x16xf32>
    %c74 = arith.constant 74 : index
    %432 = memref.load %arg5[%c74] : memref<288xf32, #tpu.memory_space<smem>>
    %433 = vector.broadcast %432 : f32 to vector<10x16xf32>
    %434 = arith.mulf %433, %43 : vector<10x16xf32>
    %435 = arith.addf %431, %434 : vector<10x16xf32>
    %c75 = arith.constant 75 : index
    %436 = memref.load %arg5[%c75] : memref<288xf32, #tpu.memory_space<smem>>
    %437 = vector.broadcast %436 : f32 to vector<10x16xf32>
    %438 = arith.mulf %437, %45 : vector<10x16xf32>
    %439 = arith.addf %435, %438 : vector<10x16xf32>
    %c76 = arith.constant 76 : index
    %440 = memref.load %arg5[%c76] : memref<288xf32, #tpu.memory_space<smem>>
    %441 = vector.broadcast %440 : f32 to vector<10x16xf32>
    %442 = arith.mulf %441, %47 : vector<10x16xf32>
    %443 = arith.addf %439, %442 : vector<10x16xf32>
    %c77 = arith.constant 77 : index
    %444 = memref.load %arg5[%c77] : memref<288xf32, #tpu.memory_space<smem>>
    %445 = vector.broadcast %444 : f32 to vector<10x16xf32>
    %446 = arith.mulf %445, %49 : vector<10x16xf32>
    %447 = arith.addf %443, %446 : vector<10x16xf32>
    %c78 = arith.constant 78 : index
    %448 = memref.load %arg5[%c78] : memref<288xf32, #tpu.memory_space<smem>>
    %449 = vector.broadcast %448 : f32 to vector<10x16xf32>
    %450 = arith.mulf %449, %51 : vector<10x16xf32>
    %451 = arith.addf %447, %450 : vector<10x16xf32>
    %c79 = arith.constant 79 : index
    %452 = memref.load %arg5[%c79] : memref<288xf32, #tpu.memory_space<smem>>
    %453 = vector.broadcast %452 : f32 to vector<10x16xf32>
    %454 = arith.mulf %453, %53 : vector<10x16xf32>
    %455 = arith.addf %451, %454 : vector<10x16xf32>
    %c80 = arith.constant 80 : index
    %456 = memref.load %arg5[%c80] : memref<288xf32, #tpu.memory_space<smem>>
    %457 = vector.broadcast %456 : f32 to vector<10x16xf32>
    %458 = arith.mulf %457, %55 : vector<10x16xf32>
    %459 = arith.addf %455, %458 : vector<10x16xf32>
    %c81 = arith.constant 81 : index
    %460 = memref.load %arg5[%c81] : memref<288xf32, #tpu.memory_space<smem>>
    %461 = vector.broadcast %460 : f32 to vector<10x16xf32>
    %462 = arith.mulf %461, %57 : vector<10x16xf32>
    %463 = arith.addf %459, %462 : vector<10x16xf32>
    %c82 = arith.constant 82 : index
    %464 = memref.load %arg5[%c82] : memref<288xf32, #tpu.memory_space<smem>>
    %465 = vector.broadcast %464 : f32 to vector<10x16xf32>
    %466 = arith.mulf %465, %59 : vector<10x16xf32>
    %467 = arith.addf %463, %466 : vector<10x16xf32>
    %c83 = arith.constant 83 : index
    %468 = memref.load %arg5[%c83] : memref<288xf32, #tpu.memory_space<smem>>
    %469 = vector.broadcast %468 : f32 to vector<10x16xf32>
    %470 = arith.mulf %469, %61 : vector<10x16xf32>
    %471 = arith.addf %467, %470 : vector<10x16xf32>
    %c84 = arith.constant 84 : index
    %472 = memref.load %arg5[%c84] : memref<288xf32, #tpu.memory_space<smem>>
    %473 = vector.broadcast %472 : f32 to vector<10x16xf32>
    %474 = arith.mulf %473, %63 : vector<10x16xf32>
    %475 = arith.addf %471, %474 : vector<10x16xf32>
    %c85 = arith.constant 85 : index
    %476 = memref.load %arg5[%c85] : memref<288xf32, #tpu.memory_space<smem>>
    %477 = vector.broadcast %476 : f32 to vector<10x16xf32>
    %478 = arith.mulf %477, %65 : vector<10x16xf32>
    %479 = arith.addf %475, %478 : vector<10x16xf32>
    %c86 = arith.constant 86 : index
    %480 = memref.load %arg5[%c86] : memref<288xf32, #tpu.memory_space<smem>>
    %481 = vector.broadcast %480 : f32 to vector<10x16xf32>
    %482 = arith.mulf %481, %67 : vector<10x16xf32>
    %483 = arith.addf %479, %482 : vector<10x16xf32>
    %c87 = arith.constant 87 : index
    %484 = memref.load %arg5[%c87] : memref<288xf32, #tpu.memory_space<smem>>
    %485 = vector.broadcast %484 : f32 to vector<10x16xf32>
    %486 = arith.mulf %485, %69 : vector<10x16xf32>
    %487 = arith.addf %483, %486 : vector<10x16xf32>
    %c88 = arith.constant 88 : index
    %488 = memref.load %arg5[%c88] : memref<288xf32, #tpu.memory_space<smem>>
    %489 = vector.broadcast %488 : f32 to vector<10x16xf32>
    %490 = arith.mulf %489, %71 : vector<10x16xf32>
    %491 = arith.addf %487, %490 : vector<10x16xf32>
    %c89 = arith.constant 89 : index
    %492 = memref.load %arg5[%c89] : memref<288xf32, #tpu.memory_space<smem>>
    %493 = vector.broadcast %492 : f32 to vector<10x16xf32>
    %494 = arith.mulf %493, %73 : vector<10x16xf32>
    %495 = arith.addf %491, %494 : vector<10x16xf32>
    %c90 = arith.constant 90 : index
    %496 = memref.load %arg5[%c90] : memref<288xf32, #tpu.memory_space<smem>>
    %497 = vector.broadcast %496 : f32 to vector<10x16xf32>
    %498 = arith.mulf %497, %75 : vector<10x16xf32>
    %499 = arith.addf %495, %498 : vector<10x16xf32>
    %c91 = arith.constant 91 : index
    %500 = memref.load %arg5[%c91] : memref<288xf32, #tpu.memory_space<smem>>
    %501 = vector.broadcast %500 : f32 to vector<10x16xf32>
    %502 = arith.mulf %501, %77 : vector<10x16xf32>
    %503 = arith.addf %499, %502 : vector<10x16xf32>
    %c92 = arith.constant 92 : index
    %504 = memref.load %arg5[%c92] : memref<288xf32, #tpu.memory_space<smem>>
    %505 = vector.broadcast %504 : f32 to vector<10x16xf32>
    %506 = arith.mulf %505, %79 : vector<10x16xf32>
    %507 = arith.addf %503, %506 : vector<10x16xf32>
    %c93 = arith.constant 93 : index
    %508 = memref.load %arg5[%c93] : memref<288xf32, #tpu.memory_space<smem>>
    %509 = vector.broadcast %508 : f32 to vector<10x16xf32>
    %510 = arith.mulf %509, %81 : vector<10x16xf32>
    %511 = arith.addf %507, %510 : vector<10x16xf32>
    %c94 = arith.constant 94 : index
    %512 = memref.load %arg5[%c94] : memref<288xf32, #tpu.memory_space<smem>>
    %513 = vector.broadcast %512 : f32 to vector<10x16xf32>
    %514 = arith.mulf %513, %83 : vector<10x16xf32>
    %515 = arith.addf %511, %514 : vector<10x16xf32>
    %c95 = arith.constant 95 : index
    %516 = memref.load %arg5[%c95] : memref<288xf32, #tpu.memory_space<smem>>
    %517 = vector.broadcast %516 : f32 to vector<10x16xf32>
    %518 = arith.mulf %517, %85 : vector<10x16xf32>
    %519 = arith.addf %515, %518 : vector<10x16xf32>
    %c96 = arith.constant 96 : index
    %520 = memref.load %arg5[%c96] : memref<288xf32, #tpu.memory_space<smem>>
    %521 = vector.broadcast %520 : f32 to vector<10x16xf32>
    %522 = arith.mulf %521, %87 : vector<10x16xf32>
    %523 = arith.addf %519, %522 : vector<10x16xf32>
    %c97 = arith.constant 97 : index
    %524 = memref.load %arg5[%c97] : memref<288xf32, #tpu.memory_space<smem>>
    %525 = vector.broadcast %524 : f32 to vector<10x16xf32>
    %526 = arith.mulf %525, %89 : vector<10x16xf32>
    %527 = arith.addf %523, %526 : vector<10x16xf32>
    %c98 = arith.constant 98 : index
    %528 = memref.load %arg5[%c98] : memref<288xf32, #tpu.memory_space<smem>>
    %529 = vector.broadcast %528 : f32 to vector<10x16xf32>
    %530 = arith.mulf %529, %91 : vector<10x16xf32>
    %531 = arith.addf %527, %530 : vector<10x16xf32>
    %c99 = arith.constant 99 : index
    %532 = memref.load %arg5[%c99] : memref<288xf32, #tpu.memory_space<smem>>
    %533 = vector.broadcast %532 : f32 to vector<10x16xf32>
    %534 = arith.mulf %533, %93 : vector<10x16xf32>
    %535 = arith.addf %531, %534 : vector<10x16xf32>
    %c100 = arith.constant 100 : index
    %536 = memref.load %arg5[%c100] : memref<288xf32, #tpu.memory_space<smem>>
    %537 = vector.broadcast %536 : f32 to vector<10x16xf32>
    %538 = arith.mulf %537, %95 : vector<10x16xf32>
    %539 = arith.addf %535, %538 : vector<10x16xf32>
    %c101 = arith.constant 101 : index
    %540 = memref.load %arg5[%c101] : memref<288xf32, #tpu.memory_space<smem>>
    %541 = vector.broadcast %540 : f32 to vector<10x16xf32>
    %542 = arith.mulf %541, %97 : vector<10x16xf32>
    %543 = arith.addf %539, %542 : vector<10x16xf32>
    %c102 = arith.constant 102 : index
    %544 = memref.load %arg5[%c102] : memref<288xf32, #tpu.memory_space<smem>>
    %545 = vector.broadcast %544 : f32 to vector<10x16xf32>
    %546 = arith.mulf %545, %99 : vector<10x16xf32>
    %547 = arith.addf %543, %546 : vector<10x16xf32>
    %c103 = arith.constant 103 : index
    %548 = memref.load %arg5[%c103] : memref<288xf32, #tpu.memory_space<smem>>
    %549 = vector.broadcast %548 : f32 to vector<10x16xf32>
    %550 = arith.mulf %549, %101 : vector<10x16xf32>
    %551 = arith.addf %547, %550 : vector<10x16xf32>
    %c104 = arith.constant 104 : index
    %552 = memref.load %arg5[%c104] : memref<288xf32, #tpu.memory_space<smem>>
    %553 = vector.broadcast %552 : f32 to vector<10x16xf32>
    %554 = arith.mulf %553, %103 : vector<10x16xf32>
    %555 = arith.addf %551, %554 : vector<10x16xf32>
    %c105 = arith.constant 105 : index
    %556 = memref.load %arg5[%c105] : memref<288xf32, #tpu.memory_space<smem>>
    %557 = vector.broadcast %556 : f32 to vector<10x16xf32>
    %558 = arith.mulf %557, %105 : vector<10x16xf32>
    %559 = arith.addf %555, %558 : vector<10x16xf32>
    %c106 = arith.constant 106 : index
    %560 = memref.load %arg5[%c106] : memref<288xf32, #tpu.memory_space<smem>>
    %561 = vector.broadcast %560 : f32 to vector<10x16xf32>
    %562 = arith.mulf %561, %107 : vector<10x16xf32>
    %563 = arith.addf %559, %562 : vector<10x16xf32>
    %c107 = arith.constant 107 : index
    %564 = memref.load %arg5[%c107] : memref<288xf32, #tpu.memory_space<smem>>
    %565 = vector.broadcast %564 : f32 to vector<10x16xf32>
    %566 = arith.mulf %565, %109 : vector<10x16xf32>
    %567 = arith.addf %563, %566 : vector<10x16xf32>
    %cst_160 = arith.constant 0.000000e+00 : f32
    %568 = vector.broadcast %cst_160 : f32 to vector<10x16xf32>
    %569 = arith.maximumf %567, %568 : vector<10x16xf32>
    %c2_161 = arith.constant 2 : index
    %c0_162 = arith.constant 0 : index
    %c1_163 = arith.constant 1 : index
    %570 = vector.load %arg11[%c2_161, %c0_162, %c1_163] : memref<8x10x18xf32, #tpu.memory_space<vmem>>, vector<1x10x16xf32>
    %571 = vector.shape_cast %570 : vector<1x10x16xf32> to vector<10x16xf32>
    %572 = vector.shape_cast %569 : vector<10x16xf32> to vector<1x10x16xf32>
    tpu.vector_store %arg11[%c2_161, %c0_162, %c1_163], %572 {strides = array<i32>} : memref<8x10x18xf32, #tpu.memory_space<vmem>>, vector<1x10x16xf32>,
    %cst_164 = arith.constant 0.000000e+00 : f32
    %573 = vector.broadcast %cst_164 : f32 to vector<10x16xf32>
    %c3_165 = arith.constant 3 : index
    %574 = memref.load %arg6[%c3_165] : memref<8xf32, #tpu.memory_space<smem>>
    %575 = vector.broadcast %574 : f32 to vector<10x16xf32>
    %576 = arith.addf %573, %575 : vector<10x16xf32>
    %c108 = arith.constant 108 : index
    %577 = memref.load %arg5[%c108] : memref<288xf32, #tpu.memory_space<smem>>
    %578 = vector.broadcast %577 : f32 to vector<10x16xf32>
    %579 = arith.mulf %578, %39 : vector<10x16xf32>
    %580 = arith.addf %576, %579 : vector<10x16xf32>
    %c109 = arith.constant 109 : index
    %581 = memref.load %arg5[%c109] : memref<288xf32, #tpu.memory_space<smem>>
    %582 = vector.broadcast %581 : f32 to vector<10x16xf32>
    %583 = arith.mulf %582, %41 : vector<10x16xf32>
    %584 = arith.addf %580, %583 : vector<10x16xf32>
    %c110 = arith.constant 110 : index
    %585 = memref.load %arg5[%c110] : memref<288xf32, #tpu.memory_space<smem>>
    %586 = vector.broadcast %585 : f32 to vector<10x16xf32>
    %587 = arith.mulf %586, %43 : vector<10x16xf32>
    %588 = arith.addf %584, %587 : vector<10x16xf32>
    %c111 = arith.constant 111 : index
    %589 = memref.load %arg5[%c111] : memref<288xf32, #tpu.memory_space<smem>>
    %590 = vector.broadcast %589 : f32 to vector<10x16xf32>
    %591 = arith.mulf %590, %45 : vector<10x16xf32>
    %592 = arith.addf %588, %591 : vector<10x16xf32>
    %c112 = arith.constant 112 : index
    %593 = memref.load %arg5[%c112] : memref<288xf32, #tpu.memory_space<smem>>
    %594 = vector.broadcast %593 : f32 to vector<10x16xf32>
    %595 = arith.mulf %594, %47 : vector<10x16xf32>
    %596 = arith.addf %592, %595 : vector<10x16xf32>
    %c113 = arith.constant 113 : index
    %597 = memref.load %arg5[%c113] : memref<288xf32, #tpu.memory_space<smem>>
    %598 = vector.broadcast %597 : f32 to vector<10x16xf32>
    %599 = arith.mulf %598, %49 : vector<10x16xf32>
    %600 = arith.addf %596, %599 : vector<10x16xf32>
    %c114 = arith.constant 114 : index
    %601 = memref.load %arg5[%c114] : memref<288xf32, #tpu.memory_space<smem>>
    %602 = vector.broadcast %601 : f32 to vector<10x16xf32>
    %603 = arith.mulf %602, %51 : vector<10x16xf32>
    %604 = arith.addf %600, %603 : vector<10x16xf32>
    %c115 = arith.constant 115 : index
    %605 = memref.load %arg5[%c115] : memref<288xf32, #tpu.memory_space<smem>>
    %606 = vector.broadcast %605 : f32 to vector<10x16xf32>
    %607 = arith.mulf %606, %53 : vector<10x16xf32>
    %608 = arith.addf %604, %607 : vector<10x16xf32>
    %c116 = arith.constant 116 : index
    %609 = memref.load %arg5[%c116] : memref<288xf32, #tpu.memory_space<smem>>
    %610 = vector.broadcast %609 : f32 to vector<10x16xf32>
    %611 = arith.mulf %610, %55 : vector<10x16xf32>
    %612 = arith.addf %608, %611 : vector<10x16xf32>
    %c117 = arith.constant 117 : index
    %613 = memref.load %arg5[%c117] : memref<288xf32, #tpu.memory_space<smem>>
    %614 = vector.broadcast %613 : f32 to vector<10x16xf32>
    %615 = arith.mulf %614, %57 : vector<10x16xf32>
    %616 = arith.addf %612, %615 : vector<10x16xf32>
    %c118 = arith.constant 118 : index
    %617 = memref.load %arg5[%c118] : memref<288xf32, #tpu.memory_space<smem>>
    %618 = vector.broadcast %617 : f32 to vector<10x16xf32>
    %619 = arith.mulf %618, %59 : vector<10x16xf32>
    %620 = arith.addf %616, %619 : vector<10x16xf32>
    %c119 = arith.constant 119 : index
    %621 = memref.load %arg5[%c119] : memref<288xf32, #tpu.memory_space<smem>>
    %622 = vector.broadcast %621 : f32 to vector<10x16xf32>
    %623 = arith.mulf %622, %61 : vector<10x16xf32>
    %624 = arith.addf %620, %623 : vector<10x16xf32>
    %c120 = arith.constant 120 : index
    %625 = memref.load %arg5[%c120] : memref<288xf32, #tpu.memory_space<smem>>
    %626 = vector.broadcast %625 : f32 to vector<10x16xf32>
    %627 = arith.mulf %626, %63 : vector<10x16xf32>
    %628 = arith.addf %624, %627 : vector<10x16xf32>
    %c121 = arith.constant 121 : index
    %629 = memref.load %arg5[%c121] : memref<288xf32, #tpu.memory_space<smem>>
    %630 = vector.broadcast %629 : f32 to vector<10x16xf32>
    %631 = arith.mulf %630, %65 : vector<10x16xf32>
    %632 = arith.addf %628, %631 : vector<10x16xf32>
    %c122 = arith.constant 122 : index
    %633 = memref.load %arg5[%c122] : memref<288xf32, #tpu.memory_space<smem>>
    %634 = vector.broadcast %633 : f32 to vector<10x16xf32>
    %635 = arith.mulf %634, %67 : vector<10x16xf32>
    %636 = arith.addf %632, %635 : vector<10x16xf32>
    %c123 = arith.constant 123 : index
    %637 = memref.load %arg5[%c123] : memref<288xf32, #tpu.memory_space<smem>>
    %638 = vector.broadcast %637 : f32 to vector<10x16xf32>
    %639 = arith.mulf %638, %69 : vector<10x16xf32>
    %640 = arith.addf %636, %639 : vector<10x16xf32>
    %c124 = arith.constant 124 : index
    %641 = memref.load %arg5[%c124] : memref<288xf32, #tpu.memory_space<smem>>
    %642 = vector.broadcast %641 : f32 to vector<10x16xf32>
    %643 = arith.mulf %642, %71 : vector<10x16xf32>
    %644 = arith.addf %640, %643 : vector<10x16xf32>
    %c125 = arith.constant 125 : index
    %645 = memref.load %arg5[%c125] : memref<288xf32, #tpu.memory_space<smem>>
    %646 = vector.broadcast %645 : f32 to vector<10x16xf32>
    %647 = arith.mulf %646, %73 : vector<10x16xf32>
    %648 = arith.addf %644, %647 : vector<10x16xf32>
    %c126 = arith.constant 126 : index
    %649 = memref.load %arg5[%c126] : memref<288xf32, #tpu.memory_space<smem>>
    %650 = vector.broadcast %649 : f32 to vector<10x16xf32>
    %651 = arith.mulf %650, %75 : vector<10x16xf32>
    %652 = arith.addf %648, %651 : vector<10x16xf32>
    %c127 = arith.constant 127 : index
    %653 = memref.load %arg5[%c127] : memref<288xf32, #tpu.memory_space<smem>>
    %654 = vector.broadcast %653 : f32 to vector<10x16xf32>
    %655 = arith.mulf %654, %77 : vector<10x16xf32>
    %656 = arith.addf %652, %655 : vector<10x16xf32>
    %c128 = arith.constant 128 : index
    %657 = memref.load %arg5[%c128] : memref<288xf32, #tpu.memory_space<smem>>
    %658 = vector.broadcast %657 : f32 to vector<10x16xf32>
    %659 = arith.mulf %658, %79 : vector<10x16xf32>
    %660 = arith.addf %656, %659 : vector<10x16xf32>
    %c129 = arith.constant 129 : index
    %661 = memref.load %arg5[%c129] : memref<288xf32, #tpu.memory_space<smem>>
    %662 = vector.broadcast %661 : f32 to vector<10x16xf32>
    %663 = arith.mulf %662, %81 : vector<10x16xf32>
    %664 = arith.addf %660, %663 : vector<10x16xf32>
    %c130 = arith.constant 130 : index
    %665 = memref.load %arg5[%c130] : memref<288xf32, #tpu.memory_space<smem>>
    %666 = vector.broadcast %665 : f32 to vector<10x16xf32>
    %667 = arith.mulf %666, %83 : vector<10x16xf32>
    %668 = arith.addf %664, %667 : vector<10x16xf32>
    %c131 = arith.constant 131 : index
    %669 = memref.load %arg5[%c131] : memref<288xf32, #tpu.memory_space<smem>>
    %670 = vector.broadcast %669 : f32 to vector<10x16xf32>
    %671 = arith.mulf %670, %85 : vector<10x16xf32>
    %672 = arith.addf %668, %671 : vector<10x16xf32>
    %c132 = arith.constant 132 : index
    %673 = memref.load %arg5[%c132] : memref<288xf32, #tpu.memory_space<smem>>
    %674 = vector.broadcast %673 : f32 to vector<10x16xf32>
    %675 = arith.mulf %674, %87 : vector<10x16xf32>
    %676 = arith.addf %672, %675 : vector<10x16xf32>
    %c133 = arith.constant 133 : index
    %677 = memref.load %arg5[%c133] : memref<288xf32, #tpu.memory_space<smem>>
    %678 = vector.broadcast %677 : f32 to vector<10x16xf32>
    %679 = arith.mulf %678, %89 : vector<10x16xf32>
    %680 = arith.addf %676, %679 : vector<10x16xf32>
    %c134 = arith.constant 134 : index
    %681 = memref.load %arg5[%c134] : memref<288xf32, #tpu.memory_space<smem>>
    %682 = vector.broadcast %681 : f32 to vector<10x16xf32>
    %683 = arith.mulf %682, %91 : vector<10x16xf32>
    %684 = arith.addf %680, %683 : vector<10x16xf32>
    %c135 = arith.constant 135 : index
    %685 = memref.load %arg5[%c135] : memref<288xf32, #tpu.memory_space<smem>>
    %686 = vector.broadcast %685 : f32 to vector<10x16xf32>
    %687 = arith.mulf %686, %93 : vector<10x16xf32>
    %688 = arith.addf %684, %687 : vector<10x16xf32>
    %c136 = arith.constant 136 : index
    %689 = memref.load %arg5[%c136] : memref<288xf32, #tpu.memory_space<smem>>
    %690 = vector.broadcast %689 : f32 to vector<10x16xf32>
    %691 = arith.mulf %690, %95 : vector<10x16xf32>
    %692 = arith.addf %688, %691 : vector<10x16xf32>
    %c137 = arith.constant 137 : index
    %693 = memref.load %arg5[%c137] : memref<288xf32, #tpu.memory_space<smem>>
    %694 = vector.broadcast %693 : f32 to vector<10x16xf32>
    %695 = arith.mulf %694, %97 : vector<10x16xf32>
    %696 = arith.addf %692, %695 : vector<10x16xf32>
    %c138 = arith.constant 138 : index
    %697 = memref.load %arg5[%c138] : memref<288xf32, #tpu.memory_space<smem>>
    %698 = vector.broadcast %697 : f32 to vector<10x16xf32>
    %699 = arith.mulf %698, %99 : vector<10x16xf32>
    %700 = arith.addf %696, %699 : vector<10x16xf32>
    %c139 = arith.constant 139 : index
    %701 = memref.load %arg5[%c139] : memref<288xf32, #tpu.memory_space<smem>>
    %702 = vector.broadcast %701 : f32 to vector<10x16xf32>
    %703 = arith.mulf %702, %101 : vector<10x16xf32>
    %704 = arith.addf %700, %703 : vector<10x16xf32>
    %c140 = arith.constant 140 : index
    %705 = memref.load %arg5[%c140] : memref<288xf32, #tpu.memory_space<smem>>
    %706 = vector.broadcast %705 : f32 to vector<10x16xf32>
    %707 = arith.mulf %706, %103 : vector<10x16xf32>
    %708 = arith.addf %704, %707 : vector<10x16xf32>
    %c141 = arith.constant 141 : index
    %709 = memref.load %arg5[%c141] : memref<288xf32, #tpu.memory_space<smem>>
    %710 = vector.broadcast %709 : f32 to vector<10x16xf32>
    %711 = arith.mulf %710, %105 : vector<10x16xf32>
    %712 = arith.addf %708, %711 : vector<10x16xf32>
    %c142 = arith.constant 142 : index
    %713 = memref.load %arg5[%c142] : memref<288xf32, #tpu.memory_space<smem>>
    %714 = vector.broadcast %713 : f32 to vector<10x16xf32>
    %715 = arith.mulf %714, %107 : vector<10x16xf32>
    %716 = arith.addf %712, %715 : vector<10x16xf32>
    %c143 = arith.constant 143 : index
    %717 = memref.load %arg5[%c143] : memref<288xf32, #tpu.memory_space<smem>>
    %718 = vector.broadcast %717 : f32 to vector<10x16xf32>
    %719 = arith.mulf %718, %109 : vector<10x16xf32>
    %720 = arith.addf %716, %719 : vector<10x16xf32>
    %cst_166 = arith.constant 0.000000e+00 : f32
    %721 = vector.broadcast %cst_166 : f32 to vector<10x16xf32>
    %722 = arith.maximumf %720, %721 : vector<10x16xf32>
    %c3_167 = arith.constant 3 : index
    %c0_168 = arith.constant 0 : index
    %c1_169 = arith.constant 1 : index
    %723 = vector.load %arg11[%c3_167, %c0_168, %c1_169] : memref<8x10x18xf32, #tpu.memory_space<vmem>>, vector<1x10x16xf32>
    %724 = vector.shape_cast %723 : vector<1x10x16xf32> to vector<10x16xf32>
    %725 = vector.shape_cast %722 : vector<10x16xf32> to vector<1x10x16xf32>
    tpu.vector_store %arg11[%c3_167, %c0_168, %c1_169], %725 {strides = array<i32>} : memref<8x10x18xf32, #tpu.memory_space<vmem>>, vector<1x10x16xf32>,
    %cst_170 = arith.constant 0.000000e+00 : f32
    %726 = vector.broadcast %cst_170 : f32 to vector<10x16xf32>
    %c4_171 = arith.constant 4 : index
    %727 = memref.load %arg6[%c4_171] : memref<8xf32, #tpu.memory_space<smem>>
    %728 = vector.broadcast %727 : f32 to vector<10x16xf32>
    %729 = arith.addf %726, %728 : vector<10x16xf32>
    %c144 = arith.constant 144 : index
    %730 = memref.load %arg5[%c144] : memref<288xf32, #tpu.memory_space<smem>>
    %731 = vector.broadcast %730 : f32 to vector<10x16xf32>
    %732 = arith.mulf %731, %39 : vector<10x16xf32>
    %733 = arith.addf %729, %732 : vector<10x16xf32>
    %c145 = arith.constant 145 : index
    %734 = memref.load %arg5[%c145] : memref<288xf32, #tpu.memory_space<smem>>
    %735 = vector.broadcast %734 : f32 to vector<10x16xf32>
    %736 = arith.mulf %735, %41 : vector<10x16xf32>
    %737 = arith.addf %733, %736 : vector<10x16xf32>
    %c146 = arith.constant 146 : index
    %738 = memref.load %arg5[%c146] : memref<288xf32, #tpu.memory_space<smem>>
    %739 = vector.broadcast %738 : f32 to vector<10x16xf32>
    %740 = arith.mulf %739, %43 : vector<10x16xf32>
    %741 = arith.addf %737, %740 : vector<10x16xf32>
    %c147 = arith.constant 147 : index
    %742 = memref.load %arg5[%c147] : memref<288xf32, #tpu.memory_space<smem>>
    %743 = vector.broadcast %742 : f32 to vector<10x16xf32>
    %744 = arith.mulf %743, %45 : vector<10x16xf32>
    %745 = arith.addf %741, %744 : vector<10x16xf32>
    %c148 = arith.constant 148 : index
    %746 = memref.load %arg5[%c148] : memref<288xf32, #tpu.memory_space<smem>>
    %747 = vector.broadcast %746 : f32 to vector<10x16xf32>
    %748 = arith.mulf %747, %47 : vector<10x16xf32>
    %749 = arith.addf %745, %748 : vector<10x16xf32>
    %c149 = arith.constant 149 : index
    %750 = memref.load %arg5[%c149] : memref<288xf32, #tpu.memory_space<smem>>
    %751 = vector.broadcast %750 : f32 to vector<10x16xf32>
    %752 = arith.mulf %751, %49 : vector<10x16xf32>
    %753 = arith.addf %749, %752 : vector<10x16xf32>
    %c150 = arith.constant 150 : index
    %754 = memref.load %arg5[%c150] : memref<288xf32, #tpu.memory_space<smem>>
    %755 = vector.broadcast %754 : f32 to vector<10x16xf32>
    %756 = arith.mulf %755, %51 : vector<10x16xf32>
    %757 = arith.addf %753, %756 : vector<10x16xf32>
    %c151 = arith.constant 151 : index
    %758 = memref.load %arg5[%c151] : memref<288xf32, #tpu.memory_space<smem>>
    %759 = vector.broadcast %758 : f32 to vector<10x16xf32>
    %760 = arith.mulf %759, %53 : vector<10x16xf32>
    %761 = arith.addf %757, %760 : vector<10x16xf32>
    %c152 = arith.constant 152 : index
    %762 = memref.load %arg5[%c152] : memref<288xf32, #tpu.memory_space<smem>>
    %763 = vector.broadcast %762 : f32 to vector<10x16xf32>
    %764 = arith.mulf %763, %55 : vector<10x16xf32>
    %765 = arith.addf %761, %764 : vector<10x16xf32>
    %c153 = arith.constant 153 : index
    %766 = memref.load %arg5[%c153] : memref<288xf32, #tpu.memory_space<smem>>
    %767 = vector.broadcast %766 : f32 to vector<10x16xf32>
    %768 = arith.mulf %767, %57 : vector<10x16xf32>
    %769 = arith.addf %765, %768 : vector<10x16xf32>
    %c154 = arith.constant 154 : index
    %770 = memref.load %arg5[%c154] : memref<288xf32, #tpu.memory_space<smem>>
    %771 = vector.broadcast %770 : f32 to vector<10x16xf32>
    %772 = arith.mulf %771, %59 : vector<10x16xf32>
    %773 = arith.addf %769, %772 : vector<10x16xf32>
    %c155 = arith.constant 155 : index
    %774 = memref.load %arg5[%c155] : memref<288xf32, #tpu.memory_space<smem>>
    %775 = vector.broadcast %774 : f32 to vector<10x16xf32>
    %776 = arith.mulf %775, %61 : vector<10x16xf32>
    %777 = arith.addf %773, %776 : vector<10x16xf32>
    %c156 = arith.constant 156 : index
    %778 = memref.load %arg5[%c156] : memref<288xf32, #tpu.memory_space<smem>>
    %779 = vector.broadcast %778 : f32 to vector<10x16xf32>
    %780 = arith.mulf %779, %63 : vector<10x16xf32>
    %781 = arith.addf %777, %780 : vector<10x16xf32>
    %c157 = arith.constant 157 : index
    %782 = memref.load %arg5[%c157] : memref<288xf32, #tpu.memory_space<smem>>
    %783 = vector.broadcast %782 : f32 to vector<10x16xf32>
    %784 = arith.mulf %783, %65 : vector<10x16xf32>
    %785 = arith.addf %781, %784 : vector<10x16xf32>
    %c158 = arith.constant 158 : index
    %786 = memref.load %arg5[%c158] : memref<288xf32, #tpu.memory_space<smem>>
    %787 = vector.broadcast %786 : f32 to vector<10x16xf32>
    %788 = arith.mulf %787, %67 : vector<10x16xf32>
    %789 = arith.addf %785, %788 : vector<10x16xf32>
    %c159 = arith.constant 159 : index
    %790 = memref.load %arg5[%c159] : memref<288xf32, #tpu.memory_space<smem>>
    %791 = vector.broadcast %790 : f32 to vector<10x16xf32>
    %792 = arith.mulf %791, %69 : vector<10x16xf32>
    %793 = arith.addf %789, %792 : vector<10x16xf32>
    %c160 = arith.constant 160 : index
    %794 = memref.load %arg5[%c160] : memref<288xf32, #tpu.memory_space<smem>>
    %795 = vector.broadcast %794 : f32 to vector<10x16xf32>
    %796 = arith.mulf %795, %71 : vector<10x16xf32>
    %797 = arith.addf %793, %796 : vector<10x16xf32>
    %c161 = arith.constant 161 : index
    %798 = memref.load %arg5[%c161] : memref<288xf32, #tpu.memory_space<smem>>
    %799 = vector.broadcast %798 : f32 to vector<10x16xf32>
    %800 = arith.mulf %799, %73 : vector<10x16xf32>
    %801 = arith.addf %797, %800 : vector<10x16xf32>
    %c162 = arith.constant 162 : index
    %802 = memref.load %arg5[%c162] : memref<288xf32, #tpu.memory_space<smem>>
    %803 = vector.broadcast %802 : f32 to vector<10x16xf32>
    %804 = arith.mulf %803, %75 : vector<10x16xf32>
    %805 = arith.addf %801, %804 : vector<10x16xf32>
    %c163 = arith.constant 163 : index
    %806 = memref.load %arg5[%c163] : memref<288xf32, #tpu.memory_space<smem>>
    %807 = vector.broadcast %806 : f32 to vector<10x16xf32>
    %808 = arith.mulf %807, %77 : vector<10x16xf32>
    %809 = arith.addf %805, %808 : vector<10x16xf32>
    %c164 = arith.constant 164 : index
    %810 = memref.load %arg5[%c164] : memref<288xf32, #tpu.memory_space<smem>>
    %811 = vector.broadcast %810 : f32 to vector<10x16xf32>
    %812 = arith.mulf %811, %79 : vector<10x16xf32>
    %813 = arith.addf %809, %812 : vector<10x16xf32>
    %c165 = arith.constant 165 : index
    %814 = memref.load %arg5[%c165] : memref<288xf32, #tpu.memory_space<smem>>
    %815 = vector.broadcast %814 : f32 to vector<10x16xf32>
    %816 = arith.mulf %815, %81 : vector<10x16xf32>
    %817 = arith.addf %813, %816 : vector<10x16xf32>
    %c166 = arith.constant 166 : index
    %818 = memref.load %arg5[%c166] : memref<288xf32, #tpu.memory_space<smem>>
    %819 = vector.broadcast %818 : f32 to vector<10x16xf32>
    %820 = arith.mulf %819, %83 : vector<10x16xf32>
    %821 = arith.addf %817, %820 : vector<10x16xf32>
    %c167 = arith.constant 167 : index
    %822 = memref.load %arg5[%c167] : memref<288xf32, #tpu.memory_space<smem>>
    %823 = vector.broadcast %822 : f32 to vector<10x16xf32>
    %824 = arith.mulf %823, %85 : vector<10x16xf32>
    %825 = arith.addf %821, %824 : vector<10x16xf32>
    %c168 = arith.constant 168 : index
    %826 = memref.load %arg5[%c168] : memref<288xf32, #tpu.memory_space<smem>>
    %827 = vector.broadcast %826 : f32 to vector<10x16xf32>
    %828 = arith.mulf %827, %87 : vector<10x16xf32>
    %829 = arith.addf %825, %828 : vector<10x16xf32>
    %c169 = arith.constant 169 : index
    %830 = memref.load %arg5[%c169] : memref<288xf32, #tpu.memory_space<smem>>
    %831 = vector.broadcast %830 : f32 to vector<10x16xf32>
    %832 = arith.mulf %831, %89 : vector<10x16xf32>
    %833 = arith.addf %829, %832 : vector<10x16xf32>
    %c170 = arith.constant 170 : index
    %834 = memref.load %arg5[%c170] : memref<288xf32, #tpu.memory_space<smem>>
    %835 = vector.broadcast %834 : f32 to vector<10x16xf32>
    %836 = arith.mulf %835, %91 : vector<10x16xf32>
    %837 = arith.addf %833, %836 : vector<10x16xf32>
    %c171 = arith.constant 171 : index
    %838 = memref.load %arg5[%c171] : memref<288xf32, #tpu.memory_space<smem>>
    %839 = vector.broadcast %838 : f32 to vector<10x16xf32>
    %840 = arith.mulf %839, %93 : vector<10x16xf32>
    %841 = arith.addf %837, %840 : vector<10x16xf32>
    %c172 = arith.constant 172 : index
    %842 = memref.load %arg5[%c172] : memref<288xf32, #tpu.memory_space<smem>>
    %843 = vector.broadcast %842 : f32 to vector<10x16xf32>
    %844 = arith.mulf %843, %95 : vector<10x16xf32>
    %845 = arith.addf %841, %844 : vector<10x16xf32>
    %c173 = arith.constant 173 : index
    %846 = memref.load %arg5[%c173] : memref<288xf32, #tpu.memory_space<smem>>
    %847 = vector.broadcast %846 : f32 to vector<10x16xf32>
    %848 = arith.mulf %847, %97 : vector<10x16xf32>
    %849 = arith.addf %845, %848 : vector<10x16xf32>
    %c174 = arith.constant 174 : index
    %850 = memref.load %arg5[%c174] : memref<288xf32, #tpu.memory_space<smem>>
    %851 = vector.broadcast %850 : f32 to vector<10x16xf32>
    %852 = arith.mulf %851, %99 : vector<10x16xf32>
    %853 = arith.addf %849, %852 : vector<10x16xf32>
    %c175 = arith.constant 175 : index
    %854 = memref.load %arg5[%c175] : memref<288xf32, #tpu.memory_space<smem>>
    %855 = vector.broadcast %854 : f32 to vector<10x16xf32>
    %856 = arith.mulf %855, %101 : vector<10x16xf32>
    %857 = arith.addf %853, %856 : vector<10x16xf32>
    %c176 = arith.constant 176 : index
    %858 = memref.load %arg5[%c176] : memref<288xf32, #tpu.memory_space<smem>>
    %859 = vector.broadcast %858 : f32 to vector<10x16xf32>
    %860 = arith.mulf %859, %103 : vector<10x16xf32>
    %861 = arith.addf %857, %860 : vector<10x16xf32>
    %c177 = arith.constant 177 : index
    %862 = memref.load %arg5[%c177] : memref<288xf32, #tpu.memory_space<smem>>
    %863 = vector.broadcast %862 : f32 to vector<10x16xf32>
    %864 = arith.mulf %863, %105 : vector<10x16xf32>
    %865 = arith.addf %861, %864 : vector<10x16xf32>
    %c178 = arith.constant 178 : index
    %866 = memref.load %arg5[%c178] : memref<288xf32, #tpu.memory_space<smem>>
    %867 = vector.broadcast %866 : f32 to vector<10x16xf32>
    %868 = arith.mulf %867, %107 : vector<10x16xf32>
    %869 = arith.addf %865, %868 : vector<10x16xf32>
    %c179 = arith.constant 179 : index
    %870 = memref.load %arg5[%c179] : memref<288xf32, #tpu.memory_space<smem>>
    %871 = vector.broadcast %870 : f32 to vector<10x16xf32>
    %872 = arith.mulf %871, %109 : vector<10x16xf32>
    %873 = arith.addf %869, %872 : vector<10x16xf32>
    %cst_172 = arith.constant 0.000000e+00 : f32
    %874 = vector.broadcast %cst_172 : f32 to vector<10x16xf32>
    %875 = arith.maximumf %873, %874 : vector<10x16xf32>
    %c4_173 = arith.constant 4 : index
    %c0_174 = arith.constant 0 : index
    %c1_175 = arith.constant 1 : index
    %876 = vector.load %arg11[%c4_173, %c0_174, %c1_175] : memref<8x10x18xf32, #tpu.memory_space<vmem>>, vector<1x10x16xf32>
    %877 = vector.shape_cast %876 : vector<1x10x16xf32> to vector<10x16xf32>
    %878 = vector.shape_cast %875 : vector<10x16xf32> to vector<1x10x16xf32>
    tpu.vector_store %arg11[%c4_173, %c0_174, %c1_175], %878 {strides = array<i32>} : memref<8x10x18xf32, #tpu.memory_space<vmem>>, vector<1x10x16xf32>,
    %cst_176 = arith.constant 0.000000e+00 : f32
    %879 = vector.broadcast %cst_176 : f32 to vector<10x16xf32>
    %c5_177 = arith.constant 5 : index
    %880 = memref.load %arg6[%c5_177] : memref<8xf32, #tpu.memory_space<smem>>
    %881 = vector.broadcast %880 : f32 to vector<10x16xf32>
    %882 = arith.addf %879, %881 : vector<10x16xf32>
    %c180 = arith.constant 180 : index
    %883 = memref.load %arg5[%c180] : memref<288xf32, #tpu.memory_space<smem>>
    %884 = vector.broadcast %883 : f32 to vector<10x16xf32>
    %885 = arith.mulf %884, %39 : vector<10x16xf32>
    %886 = arith.addf %882, %885 : vector<10x16xf32>
    %c181 = arith.constant 181 : index
    %887 = memref.load %arg5[%c181] : memref<288xf32, #tpu.memory_space<smem>>
    %888 = vector.broadcast %887 : f32 to vector<10x16xf32>
    %889 = arith.mulf %888, %41 : vector<10x16xf32>
    %890 = arith.addf %886, %889 : vector<10x16xf32>
    %c182 = arith.constant 182 : index
    %891 = memref.load %arg5[%c182] : memref<288xf32, #tpu.memory_space<smem>>
    %892 = vector.broadcast %891 : f32 to vector<10x16xf32>
    %893 = arith.mulf %892, %43 : vector<10x16xf32>
    %894 = arith.addf %890, %893 : vector<10x16xf32>
    %c183 = arith.constant 183 : index
    %895 = memref.load %arg5[%c183] : memref<288xf32, #tpu.memory_space<smem>>
    %896 = vector.broadcast %895 : f32 to vector<10x16xf32>
    %897 = arith.mulf %896, %45 : vector<10x16xf32>
    %898 = arith.addf %894, %897 : vector<10x16xf32>
    %c184 = arith.constant 184 : index
    %899 = memref.load %arg5[%c184] : memref<288xf32, #tpu.memory_space<smem>>
    %900 = vector.broadcast %899 : f32 to vector<10x16xf32>
    %901 = arith.mulf %900, %47 : vector<10x16xf32>
    %902 = arith.addf %898, %901 : vector<10x16xf32>
    %c185 = arith.constant 185 : index
    %903 = memref.load %arg5[%c185] : memref<288xf32, #tpu.memory_space<smem>>
    %904 = vector.broadcast %903 : f32 to vector<10x16xf32>
    %905 = arith.mulf %904, %49 : vector<10x16xf32>
    %906 = arith.addf %902, %905 : vector<10x16xf32>
    %c186 = arith.constant 186 : index
    %907 = memref.load %arg5[%c186] : memref<288xf32, #tpu.memory_space<smem>>
    %908 = vector.broadcast %907 : f32 to vector<10x16xf32>
    %909 = arith.mulf %908, %51 : vector<10x16xf32>
    %910 = arith.addf %906, %909 : vector<10x16xf32>
    %c187 = arith.constant 187 : index
    %911 = memref.load %arg5[%c187] : memref<288xf32, #tpu.memory_space<smem>>
    %912 = vector.broadcast %911 : f32 to vector<10x16xf32>
    %913 = arith.mulf %912, %53 : vector<10x16xf32>
    %914 = arith.addf %910, %913 : vector<10x16xf32>
    %c188 = arith.constant 188 : index
    %915 = memref.load %arg5[%c188] : memref<288xf32, #tpu.memory_space<smem>>
    %916 = vector.broadcast %915 : f32 to vector<10x16xf32>
    %917 = arith.mulf %916, %55 : vector<10x16xf32>
    %918 = arith.addf %914, %917 : vector<10x16xf32>
    %c189 = arith.constant 189 : index
    %919 = memref.load %arg5[%c189] : memref<288xf32, #tpu.memory_space<smem>>
    %920 = vector.broadcast %919 : f32 to vector<10x16xf32>
    %921 = arith.mulf %920, %57 : vector<10x16xf32>
    %922 = arith.addf %918, %921 : vector<10x16xf32>
    %c190 = arith.constant 190 : index
    %923 = memref.load %arg5[%c190] : memref<288xf32, #tpu.memory_space<smem>>
    %924 = vector.broadcast %923 : f32 to vector<10x16xf32>
    %925 = arith.mulf %924, %59 : vector<10x16xf32>
    %926 = arith.addf %922, %925 : vector<10x16xf32>
    %c191 = arith.constant 191 : index
    %927 = memref.load %arg5[%c191] : memref<288xf32, #tpu.memory_space<smem>>
    %928 = vector.broadcast %927 : f32 to vector<10x16xf32>
    %929 = arith.mulf %928, %61 : vector<10x16xf32>
    %930 = arith.addf %926, %929 : vector<10x16xf32>
    %c192 = arith.constant 192 : index
    %931 = memref.load %arg5[%c192] : memref<288xf32, #tpu.memory_space<smem>>
    %932 = vector.broadcast %931 : f32 to vector<10x16xf32>
    %933 = arith.mulf %932, %63 : vector<10x16xf32>
    %934 = arith.addf %930, %933 : vector<10x16xf32>
    %c193 = arith.constant 193 : index
    %935 = memref.load %arg5[%c193] : memref<288xf32, #tpu.memory_space<smem>>
    %936 = vector.broadcast %935 : f32 to vector<10x16xf32>
    %937 = arith.mulf %936, %65 : vector<10x16xf32>
    %938 = arith.addf %934, %937 : vector<10x16xf32>
    %c194 = arith.constant 194 : index
    %939 = memref.load %arg5[%c194] : memref<288xf32, #tpu.memory_space<smem>>
    %940 = vector.broadcast %939 : f32 to vector<10x16xf32>
    %941 = arith.mulf %940, %67 : vector<10x16xf32>
    %942 = arith.addf %938, %941 : vector<10x16xf32>
    %c195 = arith.constant 195 : index
    %943 = memref.load %arg5[%c195] : memref<288xf32, #tpu.memory_space<smem>>
    %944 = vector.broadcast %943 : f32 to vector<10x16xf32>
    %945 = arith.mulf %944, %69 : vector<10x16xf32>
    %946 = arith.addf %942, %945 : vector<10x16xf32>
    %c196 = arith.constant 196 : index
    %947 = memref.load %arg5[%c196] : memref<288xf32, #tpu.memory_space<smem>>
    %948 = vector.broadcast %947 : f32 to vector<10x16xf32>
    %949 = arith.mulf %948, %71 : vector<10x16xf32>
    %950 = arith.addf %946, %949 : vector<10x16xf32>
    %c197 = arith.constant 197 : index
    %951 = memref.load %arg5[%c197] : memref<288xf32, #tpu.memory_space<smem>>
    %952 = vector.broadcast %951 : f32 to vector<10x16xf32>
    %953 = arith.mulf %952, %73 : vector<10x16xf32>
    %954 = arith.addf %950, %953 : vector<10x16xf32>
    %c198 = arith.constant 198 : index
    %955 = memref.load %arg5[%c198] : memref<288xf32, #tpu.memory_space<smem>>
    %956 = vector.broadcast %955 : f32 to vector<10x16xf32>
    %957 = arith.mulf %956, %75 : vector<10x16xf32>
    %958 = arith.addf %954, %957 : vector<10x16xf32>
    %c199 = arith.constant 199 : index
    %959 = memref.load %arg5[%c199] : memref<288xf32, #tpu.memory_space<smem>>
    %960 = vector.broadcast %959 : f32 to vector<10x16xf32>
    %961 = arith.mulf %960, %77 : vector<10x16xf32>
    %962 = arith.addf %958, %961 : vector<10x16xf32>
    %c200 = arith.constant 200 : index
    %963 = memref.load %arg5[%c200] : memref<288xf32, #tpu.memory_space<smem>>
    %964 = vector.broadcast %963 : f32 to vector<10x16xf32>
    %965 = arith.mulf %964, %79 : vector<10x16xf32>
    %966 = arith.addf %962, %965 : vector<10x16xf32>
    %c201 = arith.constant 201 : index
    %967 = memref.load %arg5[%c201] : memref<288xf32, #tpu.memory_space<smem>>
    %968 = vector.broadcast %967 : f32 to vector<10x16xf32>
    %969 = arith.mulf %968, %81 : vector<10x16xf32>
    %970 = arith.addf %966, %969 : vector<10x16xf32>
    %c202 = arith.constant 202 : index
    %971 = memref.load %arg5[%c202] : memref<288xf32, #tpu.memory_space<smem>>
    %972 = vector.broadcast %971 : f32 to vector<10x16xf32>
    %973 = arith.mulf %972, %83 : vector<10x16xf32>
    %974 = arith.addf %970, %973 : vector<10x16xf32>
    %c203 = arith.constant 203 : index
    %975 = memref.load %arg5[%c203] : memref<288xf32, #tpu.memory_space<smem>>
    %976 = vector.broadcast %975 : f32 to vector<10x16xf32>
    %977 = arith.mulf %976, %85 : vector<10x16xf32>
    %978 = arith.addf %974, %977 : vector<10x16xf32>
    %c204 = arith.constant 204 : index
    %979 = memref.load %arg5[%c204] : memref<288xf32, #tpu.memory_space<smem>>
    %980 = vector.broadcast %979 : f32 to vector<10x16xf32>
    %981 = arith.mulf %980, %87 : vector<10x16xf32>
    %982 = arith.addf %978, %981 : vector<10x16xf32>
    %c205 = arith.constant 205 : index
    %983 = memref.load %arg5[%c205] : memref<288xf32, #tpu.memory_space<smem>>
    %984 = vector.broadcast %983 : f32 to vector<10x16xf32>
    %985 = arith.mulf %984, %89 : vector<10x16xf32>
    %986 = arith.addf %982, %985 : vector<10x16xf32>
    %c206 = arith.constant 206 : index
    %987 = memref.load %arg5[%c206] : memref<288xf32, #tpu.memory_space<smem>>
    %988 = vector.broadcast %987 : f32 to vector<10x16xf32>
    %989 = arith.mulf %988, %91 : vector<10x16xf32>
    %990 = arith.addf %986, %989 : vector<10x16xf32>
    %c207 = arith.constant 207 : index
    %991 = memref.load %arg5[%c207] : memref<288xf32, #tpu.memory_space<smem>>
    %992 = vector.broadcast %991 : f32 to vector<10x16xf32>
    %993 = arith.mulf %992, %93 : vector<10x16xf32>
    %994 = arith.addf %990, %993 : vector<10x16xf32>
    %c208 = arith.constant 208 : index
    %995 = memref.load %arg5[%c208] : memref<288xf32, #tpu.memory_space<smem>>
    %996 = vector.broadcast %995 : f32 to vector<10x16xf32>
    %997 = arith.mulf %996, %95 : vector<10x16xf32>
    %998 = arith.addf %994, %997 : vector<10x16xf32>
    %c209 = arith.constant 209 : index
    %999 = memref.load %arg5[%c209] : memref<288xf32, #tpu.memory_space<smem>>
    %1000 = vector.broadcast %999 : f32 to vector<10x16xf32>
    %1001 = arith.mulf %1000, %97 : vector<10x16xf32>
    %1002 = arith.addf %998, %1001 : vector<10x16xf32>
    %c210 = arith.constant 210 : index
    %1003 = memref.load %arg5[%c210] : memref<288xf32, #tpu.memory_space<smem>>
    %1004 = vector.broadcast %1003 : f32 to vector<10x16xf32>
    %1005 = arith.mulf %1004, %99 : vector<10x16xf32>
    %1006 = arith.addf %1002, %1005 : vector<10x16xf32>
    %c211 = arith.constant 211 : index
    %1007 = memref.load %arg5[%c211] : memref<288xf32, #tpu.memory_space<smem>>
    %1008 = vector.broadcast %1007 : f32 to vector<10x16xf32>
    %1009 = arith.mulf %1008, %101 : vector<10x16xf32>
    %1010 = arith.addf %1006, %1009 : vector<10x16xf32>
    %c212 = arith.constant 212 : index
    %1011 = memref.load %arg5[%c212] : memref<288xf32, #tpu.memory_space<smem>>
    %1012 = vector.broadcast %1011 : f32 to vector<10x16xf32>
    %1013 = arith.mulf %1012, %103 : vector<10x16xf32>
    %1014 = arith.addf %1010, %1013 : vector<10x16xf32>
    %c213 = arith.constant 213 : index
    %1015 = memref.load %arg5[%c213] : memref<288xf32, #tpu.memory_space<smem>>
    %1016 = vector.broadcast %1015 : f32 to vector<10x16xf32>
    %1017 = arith.mulf %1016, %105 : vector<10x16xf32>
    %1018 = arith.addf %1014, %1017 : vector<10x16xf32>
    %c214 = arith.constant 214 : index
    %1019 = memref.load %arg5[%c214] : memref<288xf32, #tpu.memory_space<smem>>
    %1020 = vector.broadcast %1019 : f32 to vector<10x16xf32>
    %1021 = arith.mulf %1020, %107 : vector<10x16xf32>
    %1022 = arith.addf %1018, %1021 : vector<10x16xf32>
    %c215 = arith.constant 215 : index
    %1023 = memref.load %arg5[%c215] : memref<288xf32, #tpu.memory_space<smem>>
    %1024 = vector.broadcast %1023 : f32 to vector<10x16xf32>
    %1025 = arith.mulf %1024, %109 : vector<10x16xf32>
    %1026 = arith.addf %1022, %1025 : vector<10x16xf32>
    %cst_178 = arith.constant 0.000000e+00 : f32
    %1027 = vector.broadcast %cst_178 : f32 to vector<10x16xf32>
    %1028 = arith.maximumf %1026, %1027 : vector<10x16xf32>
    %c5_179 = arith.constant 5 : index
    %c0_180 = arith.constant 0 : index
    %c1_181 = arith.constant 1 : index
    %1029 = vector.load %arg11[%c5_179, %c0_180, %c1_181] : memref<8x10x18xf32, #tpu.memory_space<vmem>>, vector<1x10x16xf32>
    %1030 = vector.shape_cast %1029 : vector<1x10x16xf32> to vector<10x16xf32>
    %1031 = vector.shape_cast %1028 : vector<10x16xf32> to vector<1x10x16xf32>
    tpu.vector_store %arg11[%c5_179, %c0_180, %c1_181], %1031 {strides = array<i32>} : memref<8x10x18xf32, #tpu.memory_space<vmem>>, vector<1x10x16xf32>,
    %cst_182 = arith.constant 0.000000e+00 : f32
    %1032 = vector.broadcast %cst_182 : f32 to vector<10x16xf32>
    %c6_183 = arith.constant 6 : index
    %1033 = memref.load %arg6[%c6_183] : memref<8xf32, #tpu.memory_space<smem>>
    %1034 = vector.broadcast %1033 : f32 to vector<10x16xf32>
    %1035 = arith.addf %1032, %1034 : vector<10x16xf32>
    %c216 = arith.constant 216 : index
    %1036 = memref.load %arg5[%c216] : memref<288xf32, #tpu.memory_space<smem>>
    %1037 = vector.broadcast %1036 : f32 to vector<10x16xf32>
    %1038 = arith.mulf %1037, %39 : vector<10x16xf32>
    %1039 = arith.addf %1035, %1038 : vector<10x16xf32>
    %c217 = arith.constant 217 : index
    %1040 = memref.load %arg5[%c217] : memref<288xf32, #tpu.memory_space<smem>>
    %1041 = vector.broadcast %1040 : f32 to vector<10x16xf32>
    %1042 = arith.mulf %1041, %41 : vector<10x16xf32>
    %1043 = arith.addf %1039, %1042 : vector<10x16xf32>
    %c218 = arith.constant 218 : index
    %1044 = memref.load %arg5[%c218] : memref<288xf32, #tpu.memory_space<smem>>
    %1045 = vector.broadcast %1044 : f32 to vector<10x16xf32>
    %1046 = arith.mulf %1045, %43 : vector<10x16xf32>
    %1047 = arith.addf %1043, %1046 : vector<10x16xf32>
    %c219 = arith.constant 219 : index
    %1048 = memref.load %arg5[%c219] : memref<288xf32, #tpu.memory_space<smem>>
    %1049 = vector.broadcast %1048 : f32 to vector<10x16xf32>
    %1050 = arith.mulf %1049, %45 : vector<10x16xf32>
    %1051 = arith.addf %1047, %1050 : vector<10x16xf32>
    %c220 = arith.constant 220 : index
    %1052 = memref.load %arg5[%c220] : memref<288xf32, #tpu.memory_space<smem>>
    %1053 = vector.broadcast %1052 : f32 to vector<10x16xf32>
    %1054 = arith.mulf %1053, %47 : vector<10x16xf32>
    %1055 = arith.addf %1051, %1054 : vector<10x16xf32>
    %c221 = arith.constant 221 : index
    %1056 = memref.load %arg5[%c221] : memref<288xf32, #tpu.memory_space<smem>>
    %1057 = vector.broadcast %1056 : f32 to vector<10x16xf32>
    %1058 = arith.mulf %1057, %49 : vector<10x16xf32>
    %1059 = arith.addf %1055, %1058 : vector<10x16xf32>
    %c222 = arith.constant 222 : index
    %1060 = memref.load %arg5[%c222] : memref<288xf32, #tpu.memory_space<smem>>
    %1061 = vector.broadcast %1060 : f32 to vector<10x16xf32>
    %1062 = arith.mulf %1061, %51 : vector<10x16xf32>
    %1063 = arith.addf %1059, %1062 : vector<10x16xf32>
    %c223 = arith.constant 223 : index
    %1064 = memref.load %arg5[%c223] : memref<288xf32, #tpu.memory_space<smem>>
    %1065 = vector.broadcast %1064 : f32 to vector<10x16xf32>
    %1066 = arith.mulf %1065, %53 : vector<10x16xf32>
    %1067 = arith.addf %1063, %1066 : vector<10x16xf32>
    %c224 = arith.constant 224 : index
    %1068 = memref.load %arg5[%c224] : memref<288xf32, #tpu.memory_space<smem>>
    %1069 = vector.broadcast %1068 : f32 to vector<10x16xf32>
    %1070 = arith.mulf %1069, %55 : vector<10x16xf32>
    %1071 = arith.addf %1067, %1070 : vector<10x16xf32>
    %c225 = arith.constant 225 : index
    %1072 = memref.load %arg5[%c225] : memref<288xf32, #tpu.memory_space<smem>>
    %1073 = vector.broadcast %1072 : f32 to vector<10x16xf32>
    %1074 = arith.mulf %1073, %57 : vector<10x16xf32>
    %1075 = arith.addf %1071, %1074 : vector<10x16xf32>
    %c226 = arith.constant 226 : index
    %1076 = memref.load %arg5[%c226] : memref<288xf32, #tpu.memory_space<smem>>
    %1077 = vector.broadcast %1076 : f32 to vector<10x16xf32>
    %1078 = arith.mulf %1077, %59 : vector<10x16xf32>
    %1079 = arith.addf %1075, %1078 : vector<10x16xf32>
    %c227 = arith.constant 227 : index
    %1080 = memref.load %arg5[%c227] : memref<288xf32, #tpu.memory_space<smem>>
    %1081 = vector.broadcast %1080 : f32 to vector<10x16xf32>
    %1082 = arith.mulf %1081, %61 : vector<10x16xf32>
    %1083 = arith.addf %1079, %1082 : vector<10x16xf32>
    %c228 = arith.constant 228 : index
    %1084 = memref.load %arg5[%c228] : memref<288xf32, #tpu.memory_space<smem>>
    %1085 = vector.broadcast %1084 : f32 to vector<10x16xf32>
    %1086 = arith.mulf %1085, %63 : vector<10x16xf32>
    %1087 = arith.addf %1083, %1086 : vector<10x16xf32>
    %c229 = arith.constant 229 : index
    %1088 = memref.load %arg5[%c229] : memref<288xf32, #tpu.memory_space<smem>>
    %1089 = vector.broadcast %1088 : f32 to vector<10x16xf32>
    %1090 = arith.mulf %1089, %65 : vector<10x16xf32>
    %1091 = arith.addf %1087, %1090 : vector<10x16xf32>
    %c230 = arith.constant 230 : index
    %1092 = memref.load %arg5[%c230] : memref<288xf32, #tpu.memory_space<smem>>
    %1093 = vector.broadcast %1092 : f32 to vector<10x16xf32>
    %1094 = arith.mulf %1093, %67 : vector<10x16xf32>
    %1095 = arith.addf %1091, %1094 : vector<10x16xf32>
    %c231 = arith.constant 231 : index
    %1096 = memref.load %arg5[%c231] : memref<288xf32, #tpu.memory_space<smem>>
    %1097 = vector.broadcast %1096 : f32 to vector<10x16xf32>
    %1098 = arith.mulf %1097, %69 : vector<10x16xf32>
    %1099 = arith.addf %1095, %1098 : vector<10x16xf32>
    %c232 = arith.constant 232 : index
    %1100 = memref.load %arg5[%c232] : memref<288xf32, #tpu.memory_space<smem>>
    %1101 = vector.broadcast %1100 : f32 to vector<10x16xf32>
    %1102 = arith.mulf %1101, %71 : vector<10x16xf32>
    %1103 = arith.addf %1099, %1102 : vector<10x16xf32>
    %c233 = arith.constant 233 : index
    %1104 = memref.load %arg5[%c233] : memref<288xf32, #tpu.memory_space<smem>>
    %1105 = vector.broadcast %1104 : f32 to vector<10x16xf32>
    %1106 = arith.mulf %1105, %73 : vector<10x16xf32>
    %1107 = arith.addf %1103, %1106 : vector<10x16xf32>
    %c234 = arith.constant 234 : index
    %1108 = memref.load %arg5[%c234] : memref<288xf32, #tpu.memory_space<smem>>
    %1109 = vector.broadcast %1108 : f32 to vector<10x16xf32>
    %1110 = arith.mulf %1109, %75 : vector<10x16xf32>
    %1111 = arith.addf %1107, %1110 : vector<10x16xf32>
    %c235 = arith.constant 235 : index
    %1112 = memref.load %arg5[%c235] : memref<288xf32, #tpu.memory_space<smem>>
    %1113 = vector.broadcast %1112 : f32 to vector<10x16xf32>
    %1114 = arith.mulf %1113, %77 : vector<10x16xf32>
    %1115 = arith.addf %1111, %1114 : vector<10x16xf32>
    %c236 = arith.constant 236 : index
    %1116 = memref.load %arg5[%c236] : memref<288xf32, #tpu.memory_space<smem>>
    %1117 = vector.broadcast %1116 : f32 to vector<10x16xf32>
    %1118 = arith.mulf %1117, %79 : vector<10x16xf32>
    %1119 = arith.addf %1115, %1118 : vector<10x16xf32>
    %c237 = arith.constant 237 : index
    %1120 = memref.load %arg5[%c237] : memref<288xf32, #tpu.memory_space<smem>>
    %1121 = vector.broadcast %1120 : f32 to vector<10x16xf32>
    %1122 = arith.mulf %1121, %81 : vector<10x16xf32>
    %1123 = arith.addf %1119, %1122 : vector<10x16xf32>
    %c238 = arith.constant 238 : index
    %1124 = memref.load %arg5[%c238] : memref<288xf32, #tpu.memory_space<smem>>
    %1125 = vector.broadcast %1124 : f32 to vector<10x16xf32>
    %1126 = arith.mulf %1125, %83 : vector<10x16xf32>
    %1127 = arith.addf %1123, %1126 : vector<10x16xf32>
    %c239 = arith.constant 239 : index
    %1128 = memref.load %arg5[%c239] : memref<288xf32, #tpu.memory_space<smem>>
    %1129 = vector.broadcast %1128 : f32 to vector<10x16xf32>
    %1130 = arith.mulf %1129, %85 : vector<10x16xf32>
    %1131 = arith.addf %1127, %1130 : vector<10x16xf32>
    %c240 = arith.constant 240 : index
    %1132 = memref.load %arg5[%c240] : memref<288xf32, #tpu.memory_space<smem>>
    %1133 = vector.broadcast %1132 : f32 to vector<10x16xf32>
    %1134 = arith.mulf %1133, %87 : vector<10x16xf32>
    %1135 = arith.addf %1131, %1134 : vector<10x16xf32>
    %c241 = arith.constant 241 : index
    %1136 = memref.load %arg5[%c241] : memref<288xf32, #tpu.memory_space<smem>>
    %1137 = vector.broadcast %1136 : f32 to vector<10x16xf32>
    %1138 = arith.mulf %1137, %89 : vector<10x16xf32>
    %1139 = arith.addf %1135, %1138 : vector<10x16xf32>
    %c242 = arith.constant 242 : index
    %1140 = memref.load %arg5[%c242] : memref<288xf32, #tpu.memory_space<smem>>
    %1141 = vector.broadcast %1140 : f32 to vector<10x16xf32>
    %1142 = arith.mulf %1141, %91 : vector<10x16xf32>
    %1143 = arith.addf %1139, %1142 : vector<10x16xf32>
    %c243 = arith.constant 243 : index
    %1144 = memref.load %arg5[%c243] : memref<288xf32, #tpu.memory_space<smem>>
    %1145 = vector.broadcast %1144 : f32 to vector<10x16xf32>
    %1146 = arith.mulf %1145, %93 : vector<10x16xf32>
    %1147 = arith.addf %1143, %1146 : vector<10x16xf32>
    %c244 = arith.constant 244 : index
    %1148 = memref.load %arg5[%c244] : memref<288xf32, #tpu.memory_space<smem>>
    %1149 = vector.broadcast %1148 : f32 to vector<10x16xf32>
    %1150 = arith.mulf %1149, %95 : vector<10x16xf32>
    %1151 = arith.addf %1147, %1150 : vector<10x16xf32>
    %c245 = arith.constant 245 : index
    %1152 = memref.load %arg5[%c245] : memref<288xf32, #tpu.memory_space<smem>>
    %1153 = vector.broadcast %1152 : f32 to vector<10x16xf32>
    %1154 = arith.mulf %1153, %97 : vector<10x16xf32>
    %1155 = arith.addf %1151, %1154 : vector<10x16xf32>
    %c246 = arith.constant 246 : index
    %1156 = memref.load %arg5[%c246] : memref<288xf32, #tpu.memory_space<smem>>
    %1157 = vector.broadcast %1156 : f32 to vector<10x16xf32>
    %1158 = arith.mulf %1157, %99 : vector<10x16xf32>
    %1159 = arith.addf %1155, %1158 : vector<10x16xf32>
    %c247 = arith.constant 247 : index
    %1160 = memref.load %arg5[%c247] : memref<288xf32, #tpu.memory_space<smem>>
    %1161 = vector.broadcast %1160 : f32 to vector<10x16xf32>
    %1162 = arith.mulf %1161, %101 : vector<10x16xf32>
    %1163 = arith.addf %1159, %1162 : vector<10x16xf32>
    %c248 = arith.constant 248 : index
    %1164 = memref.load %arg5[%c248] : memref<288xf32, #tpu.memory_space<smem>>
    %1165 = vector.broadcast %1164 : f32 to vector<10x16xf32>
    %1166 = arith.mulf %1165, %103 : vector<10x16xf32>
    %1167 = arith.addf %1163, %1166 : vector<10x16xf32>
    %c249 = arith.constant 249 : index
    %1168 = memref.load %arg5[%c249] : memref<288xf32, #tpu.memory_space<smem>>
    %1169 = vector.broadcast %1168 : f32 to vector<10x16xf32>
    %1170 = arith.mulf %1169, %105 : vector<10x16xf32>
    %1171 = arith.addf %1167, %1170 : vector<10x16xf32>
    %c250 = arith.constant 250 : index
    %1172 = memref.load %arg5[%c250] : memref<288xf32, #tpu.memory_space<smem>>
    %1173 = vector.broadcast %1172 : f32 to vector<10x16xf32>
    %1174 = arith.mulf %1173, %107 : vector<10x16xf32>
    %1175 = arith.addf %1171, %1174 : vector<10x16xf32>
    %c251 = arith.constant 251 : index
    %1176 = memref.load %arg5[%c251] : memref<288xf32, #tpu.memory_space<smem>>
    %1177 = vector.broadcast %1176 : f32 to vector<10x16xf32>
    %1178 = arith.mulf %1177, %109 : vector<10x16xf32>
    %1179 = arith.addf %1175, %1178 : vector<10x16xf32>
    %cst_184 = arith.constant 0.000000e+00 : f32
    %1180 = vector.broadcast %cst_184 : f32 to vector<10x16xf32>
    %1181 = arith.maximumf %1179, %1180 : vector<10x16xf32>
    %c6_185 = arith.constant 6 : index
    %c0_186 = arith.constant 0 : index
    %c1_187 = arith.constant 1 : index
    %1182 = vector.load %arg11[%c6_185, %c0_186, %c1_187] : memref<8x10x18xf32, #tpu.memory_space<vmem>>, vector<1x10x16xf32>
    %1183 = vector.shape_cast %1182 : vector<1x10x16xf32> to vector<10x16xf32>
    %1184 = vector.shape_cast %1181 : vector<10x16xf32> to vector<1x10x16xf32>
    tpu.vector_store %arg11[%c6_185, %c0_186, %c1_187], %1184 {strides = array<i32>} : memref<8x10x18xf32, #tpu.memory_space<vmem>>, vector<1x10x16xf32>,
    %cst_188 = arith.constant 0.000000e+00 : f32
    %1185 = vector.broadcast %cst_188 : f32 to vector<10x16xf32>
    %c7_189 = arith.constant 7 : index
    %1186 = memref.load %arg6[%c7_189] : memref<8xf32, #tpu.memory_space<smem>>
    %1187 = vector.broadcast %1186 : f32 to vector<10x16xf32>
    %1188 = arith.addf %1185, %1187 : vector<10x16xf32>
    %c252 = arith.constant 252 : index
    %1189 = memref.load %arg5[%c252] : memref<288xf32, #tpu.memory_space<smem>>
    %1190 = vector.broadcast %1189 : f32 to vector<10x16xf32>
    %1191 = arith.mulf %1190, %39 : vector<10x16xf32>
    %1192 = arith.addf %1188, %1191 : vector<10x16xf32>
    %c253 = arith.constant 253 : index
    %1193 = memref.load %arg5[%c253] : memref<288xf32, #tpu.memory_space<smem>>
    %1194 = vector.broadcast %1193 : f32 to vector<10x16xf32>
    %1195 = arith.mulf %1194, %41 : vector<10x16xf32>
    %1196 = arith.addf %1192, %1195 : vector<10x16xf32>
    %c254 = arith.constant 254 : index
    %1197 = memref.load %arg5[%c254] : memref<288xf32, #tpu.memory_space<smem>>
    %1198 = vector.broadcast %1197 : f32 to vector<10x16xf32>
    %1199 = arith.mulf %1198, %43 : vector<10x16xf32>
    %1200 = arith.addf %1196, %1199 : vector<10x16xf32>
    %c255 = arith.constant 255 : index
    %1201 = memref.load %arg5[%c255] : memref<288xf32, #tpu.memory_space<smem>>
    %1202 = vector.broadcast %1201 : f32 to vector<10x16xf32>
    %1203 = arith.mulf %1202, %45 : vector<10x16xf32>
    %1204 = arith.addf %1200, %1203 : vector<10x16xf32>
    %c256 = arith.constant 256 : index
    %1205 = memref.load %arg5[%c256] : memref<288xf32, #tpu.memory_space<smem>>
    %1206 = vector.broadcast %1205 : f32 to vector<10x16xf32>
    %1207 = arith.mulf %1206, %47 : vector<10x16xf32>
    %1208 = arith.addf %1204, %1207 : vector<10x16xf32>
    %c257 = arith.constant 257 : index
    %1209 = memref.load %arg5[%c257] : memref<288xf32, #tpu.memory_space<smem>>
    %1210 = vector.broadcast %1209 : f32 to vector<10x16xf32>
    %1211 = arith.mulf %1210, %49 : vector<10x16xf32>
    %1212 = arith.addf %1208, %1211 : vector<10x16xf32>
    %c258 = arith.constant 258 : index
    %1213 = memref.load %arg5[%c258] : memref<288xf32, #tpu.memory_space<smem>>
    %1214 = vector.broadcast %1213 : f32 to vector<10x16xf32>
    %1215 = arith.mulf %1214, %51 : vector<10x16xf32>
    %1216 = arith.addf %1212, %1215 : vector<10x16xf32>
    %c259 = arith.constant 259 : index
    %1217 = memref.load %arg5[%c259] : memref<288xf32, #tpu.memory_space<smem>>
    %1218 = vector.broadcast %1217 : f32 to vector<10x16xf32>
    %1219 = arith.mulf %1218, %53 : vector<10x16xf32>
    %1220 = arith.addf %1216, %1219 : vector<10x16xf32>
    %c260 = arith.constant 260 : index
    %1221 = memref.load %arg5[%c260] : memref<288xf32, #tpu.memory_space<smem>>
    %1222 = vector.broadcast %1221 : f32 to vector<10x16xf32>
    %1223 = arith.mulf %1222, %55 : vector<10x16xf32>
    %1224 = arith.addf %1220, %1223 : vector<10x16xf32>
    %c261 = arith.constant 261 : index
    %1225 = memref.load %arg5[%c261] : memref<288xf32, #tpu.memory_space<smem>>
    %1226 = vector.broadcast %1225 : f32 to vector<10x16xf32>
    %1227 = arith.mulf %1226, %57 : vector<10x16xf32>
    %1228 = arith.addf %1224, %1227 : vector<10x16xf32>
    %c262 = arith.constant 262 : index
    %1229 = memref.load %arg5[%c262] : memref<288xf32, #tpu.memory_space<smem>>
    %1230 = vector.broadcast %1229 : f32 to vector<10x16xf32>
    %1231 = arith.mulf %1230, %59 : vector<10x16xf32>
    %1232 = arith.addf %1228, %1231 : vector<10x16xf32>
    %c263 = arith.constant 263 : index
    %1233 = memref.load %arg5[%c263] : memref<288xf32, #tpu.memory_space<smem>>
    %1234 = vector.broadcast %1233 : f32 to vector<10x16xf32>
    %1235 = arith.mulf %1234, %61 : vector<10x16xf32>
    %1236 = arith.addf %1232, %1235 : vector<10x16xf32>
    %c264 = arith.constant 264 : index
    %1237 = memref.load %arg5[%c264] : memref<288xf32, #tpu.memory_space<smem>>
    %1238 = vector.broadcast %1237 : f32 to vector<10x16xf32>
    %1239 = arith.mulf %1238, %63 : vector<10x16xf32>
    %1240 = arith.addf %1236, %1239 : vector<10x16xf32>
    %c265 = arith.constant 265 : index
    %1241 = memref.load %arg5[%c265] : memref<288xf32, #tpu.memory_space<smem>>
    %1242 = vector.broadcast %1241 : f32 to vector<10x16xf32>
    %1243 = arith.mulf %1242, %65 : vector<10x16xf32>
    %1244 = arith.addf %1240, %1243 : vector<10x16xf32>
    %c266 = arith.constant 266 : index
    %1245 = memref.load %arg5[%c266] : memref<288xf32, #tpu.memory_space<smem>>
    %1246 = vector.broadcast %1245 : f32 to vector<10x16xf32>
    %1247 = arith.mulf %1246, %67 : vector<10x16xf32>
    %1248 = arith.addf %1244, %1247 : vector<10x16xf32>
    %c267 = arith.constant 267 : index
    %1249 = memref.load %arg5[%c267] : memref<288xf32, #tpu.memory_space<smem>>
    %1250 = vector.broadcast %1249 : f32 to vector<10x16xf32>
    %1251 = arith.mulf %1250, %69 : vector<10x16xf32>
    %1252 = arith.addf %1248, %1251 : vector<10x16xf32>
    %c268 = arith.constant 268 : index
    %1253 = memref.load %arg5[%c268] : memref<288xf32, #tpu.memory_space<smem>>
    %1254 = vector.broadcast %1253 : f32 to vector<10x16xf32>
    %1255 = arith.mulf %1254, %71 : vector<10x16xf32>
    %1256 = arith.addf %1252, %1255 : vector<10x16xf32>
    %c269 = arith.constant 269 : index
    %1257 = memref.load %arg5[%c269] : memref<288xf32, #tpu.memory_space<smem>>
    %1258 = vector.broadcast %1257 : f32 to vector<10x16xf32>
    %1259 = arith.mulf %1258, %73 : vector<10x16xf32>
    %1260 = arith.addf %1256, %1259 : vector<10x16xf32>
    %c270 = arith.constant 270 : index
    %1261 = memref.load %arg5[%c270] : memref<288xf32, #tpu.memory_space<smem>>
    %1262 = vector.broadcast %1261 : f32 to vector<10x16xf32>
    %1263 = arith.mulf %1262, %75 : vector<10x16xf32>
    %1264 = arith.addf %1260, %1263 : vector<10x16xf32>
    %c271 = arith.constant 271 : index
    %1265 = memref.load %arg5[%c271] : memref<288xf32, #tpu.memory_space<smem>>
    %1266 = vector.broadcast %1265 : f32 to vector<10x16xf32>
    %1267 = arith.mulf %1266, %77 : vector<10x16xf32>
    %1268 = arith.addf %1264, %1267 : vector<10x16xf32>
    %c272 = arith.constant 272 : index
    %1269 = memref.load %arg5[%c272] : memref<288xf32, #tpu.memory_space<smem>>
    %1270 = vector.broadcast %1269 : f32 to vector<10x16xf32>
    %1271 = arith.mulf %1270, %79 : vector<10x16xf32>
    %1272 = arith.addf %1268, %1271 : vector<10x16xf32>
    %c273 = arith.constant 273 : index
    %1273 = memref.load %arg5[%c273] : memref<288xf32, #tpu.memory_space<smem>>
    %1274 = vector.broadcast %1273 : f32 to vector<10x16xf32>
    %1275 = arith.mulf %1274, %81 : vector<10x16xf32>
    %1276 = arith.addf %1272, %1275 : vector<10x16xf32>
    %c274 = arith.constant 274 : index
    %1277 = memref.load %arg5[%c274] : memref<288xf32, #tpu.memory_space<smem>>
    %1278 = vector.broadcast %1277 : f32 to vector<10x16xf32>
    %1279 = arith.mulf %1278, %83 : vector<10x16xf32>
    %1280 = arith.addf %1276, %1279 : vector<10x16xf32>
    %c275 = arith.constant 275 : index
    %1281 = memref.load %arg5[%c275] : memref<288xf32, #tpu.memory_space<smem>>
    %1282 = vector.broadcast %1281 : f32 to vector<10x16xf32>
    %1283 = arith.mulf %1282, %85 : vector<10x16xf32>
    %1284 = arith.addf %1280, %1283 : vector<10x16xf32>
    %c276 = arith.constant 276 : index
    %1285 = memref.load %arg5[%c276] : memref<288xf32, #tpu.memory_space<smem>>
    %1286 = vector.broadcast %1285 : f32 to vector<10x16xf32>
    %1287 = arith.mulf %1286, %87 : vector<10x16xf32>
    %1288 = arith.addf %1284, %1287 : vector<10x16xf32>
    %c277 = arith.constant 277 : index
    %1289 = memref.load %arg5[%c277] : memref<288xf32, #tpu.memory_space<smem>>
    %1290 = vector.broadcast %1289 : f32 to vector<10x16xf32>
    %1291 = arith.mulf %1290, %89 : vector<10x16xf32>
    %1292 = arith.addf %1288, %1291 : vector<10x16xf32>
    %c278 = arith.constant 278 : index
    %1293 = memref.load %arg5[%c278] : memref<288xf32, #tpu.memory_space<smem>>
    %1294 = vector.broadcast %1293 : f32 to vector<10x16xf32>
    %1295 = arith.mulf %1294, %91 : vector<10x16xf32>
    %1296 = arith.addf %1292, %1295 : vector<10x16xf32>
    %c279 = arith.constant 279 : index
    %1297 = memref.load %arg5[%c279] : memref<288xf32, #tpu.memory_space<smem>>
    %1298 = vector.broadcast %1297 : f32 to vector<10x16xf32>
    %1299 = arith.mulf %1298, %93 : vector<10x16xf32>
    %1300 = arith.addf %1296, %1299 : vector<10x16xf32>
    %c280 = arith.constant 280 : index
    %1301 = memref.load %arg5[%c280] : memref<288xf32, #tpu.memory_space<smem>>
    %1302 = vector.broadcast %1301 : f32 to vector<10x16xf32>
    %1303 = arith.mulf %1302, %95 : vector<10x16xf32>
    %1304 = arith.addf %1300, %1303 : vector<10x16xf32>
    %c281 = arith.constant 281 : index
    %1305 = memref.load %arg5[%c281] : memref<288xf32, #tpu.memory_space<smem>>
    %1306 = vector.broadcast %1305 : f32 to vector<10x16xf32>
    %1307 = arith.mulf %1306, %97 : vector<10x16xf32>
    %1308 = arith.addf %1304, %1307 : vector<10x16xf32>
    %c282 = arith.constant 282 : index
    %1309 = memref.load %arg5[%c282] : memref<288xf32, #tpu.memory_space<smem>>
    %1310 = vector.broadcast %1309 : f32 to vector<10x16xf32>
    %1311 = arith.mulf %1310, %99 : vector<10x16xf32>
    %1312 = arith.addf %1308, %1311 : vector<10x16xf32>
    %c283 = arith.constant 283 : index
    %1313 = memref.load %arg5[%c283] : memref<288xf32, #tpu.memory_space<smem>>
    %1314 = vector.broadcast %1313 : f32 to vector<10x16xf32>
    %1315 = arith.mulf %1314, %101 : vector<10x16xf32>
    %1316 = arith.addf %1312, %1315 : vector<10x16xf32>
    %c284 = arith.constant 284 : index
    %1317 = memref.load %arg5[%c284] : memref<288xf32, #tpu.memory_space<smem>>
    %1318 = vector.broadcast %1317 : f32 to vector<10x16xf32>
    %1319 = arith.mulf %1318, %103 : vector<10x16xf32>
    %1320 = arith.addf %1316, %1319 : vector<10x16xf32>
    %c285 = arith.constant 285 : index
    %1321 = memref.load %arg5[%c285] : memref<288xf32, #tpu.memory_space<smem>>
    %1322 = vector.broadcast %1321 : f32 to vector<10x16xf32>
    %1323 = arith.mulf %1322, %105 : vector<10x16xf32>
    %1324 = arith.addf %1320, %1323 : vector<10x16xf32>
    %c286 = arith.constant 286 : index
    %1325 = memref.load %arg5[%c286] : memref<288xf32, #tpu.memory_space<smem>>
    %1326 = vector.broadcast %1325 : f32 to vector<10x16xf32>
    %1327 = arith.mulf %1326, %107 : vector<10x16xf32>
    %1328 = arith.addf %1324, %1327 : vector<10x16xf32>
    %c287 = arith.constant 287 : index
    %1329 = memref.load %arg5[%c287] : memref<288xf32, #tpu.memory_space<smem>>
    %1330 = vector.broadcast %1329 : f32 to vector<10x16xf32>
    %1331 = arith.mulf %1330, %109 : vector<10x16xf32>
    %1332 = arith.addf %1328, %1331 : vector<10x16xf32>
    %cst_190 = arith.constant 0.000000e+00 : f32
    %1333 = vector.broadcast %cst_190 : f32 to vector<10x16xf32>
    %1334 = arith.maximumf %1332, %1333 : vector<10x16xf32>
    %c7_191 = arith.constant 7 : index
    %c0_192 = arith.constant 0 : index
    %c1_193 = arith.constant 1 : index
    %1335 = vector.load %arg11[%c7_191, %c0_192, %c1_193] : memref<8x10x18xf32, #tpu.memory_space<vmem>>, vector<1x10x16xf32>
    %1336 = vector.shape_cast %1335 : vector<1x10x16xf32> to vector<10x16xf32>
    %1337 = vector.shape_cast %1334 : vector<10x16xf32> to vector<1x10x16xf32>
    tpu.vector_store %arg11[%c7_191, %c0_192, %c1_193], %1337 {strides = array<i32>} : memref<8x10x18xf32, #tpu.memory_space<vmem>>, vector<1x10x16xf32>,
    %c0_i32_194 = arith.constant 0 : i32
    %1338 = arith.cmpi eq, %arg1, %c0_i32_194 : i32
    %1339 = arith.extui %1338 : i1 to i32
    %c0_i32_195 = arith.constant 0 : i32
    %1340 = arith.cmpi ne, %1339, %c0_i32_195 : i32
    scf.if %1340 {
      %cst_663 = arith.constant 0.000000e+00 : f32
      %2394 = vector.broadcast %cst_663 : f32 to vector<8x1x18xf32>
      %c0_664 = arith.constant 0 : index
      %c0_665 = arith.constant 0 : index
      %c0_666 = arith.constant 0 : index
      %2395 = vector.load %arg11[%c0_664, %c0_665, %c0_666] : memref<8x10x18xf32, #tpu.memory_space<vmem>>, vector<8x1x18xf32>
      tpu.vector_store %arg11[%c0_664, %c0_665, %c0_666], %2394 {strides = array<i32>} : memref<8x10x18xf32, #tpu.memory_space<vmem>>, vector<8x1x18xf32>,
    } else {
    }
    %c1_i32_196 = arith.constant 1 : i32
    %1341 = arith.cmpi eq, %arg1, %c1_i32_196 : i32
    %1342 = arith.extui %1341 : i1 to i32
    %c0_i32_197 = arith.constant 0 : i32
    %1343 = arith.cmpi ne, %1342, %c0_i32_197 : i32
    scf.if %1343 {
      %cst_663 = arith.constant 0.000000e+00 : f32
      %2394 = vector.broadcast %cst_663 : f32 to vector<8x1x18xf32>
      %c0_664 = arith.constant 0 : index
      %c9_665 = arith.constant 9 : index
      %c0_666 = arith.constant 0 : index
      %2395 = vector.load %arg11[%c0_664, %c9_665, %c0_666] : memref<8x10x18xf32, #tpu.memory_space<vmem>>, vector<8x1x18xf32>
      tpu.vector_store %arg11[%c0_664, %c9_665, %c0_666], %2394 {strides = array<i32>} : memref<8x10x18xf32, #tpu.memory_space<vmem>>, vector<8x1x18xf32>,
    } else {
    }
    %c0_198 = arith.constant 0 : index
    %c0_199 = arith.constant 0 : index
    %c0_200 = arith.constant 0 : index
    %1344 = vector.load %arg11[%c0_198, %c0_199, %c0_200] : memref<8x10x18xf32, #tpu.memory_space<vmem>>, vector<1x8x16xf32>
    %1345 = vector.shape_cast %1344 : vector<1x8x16xf32> to vector<8x16xf32>
    %c0_201 = arith.constant 0 : index
    %c0_202 = arith.constant 0 : index
    %c1_203 = arith.constant 1 : index
    %1346 = vector.load %arg11[%c0_201, %c0_202, %c1_203] : memref<8x10x18xf32, #tpu.memory_space<vmem>>, vector<1x8x16xf32>
    %1347 = vector.shape_cast %1346 : vector<1x8x16xf32> to vector<8x16xf32>
    %c0_204 = arith.constant 0 : index
    %c0_205 = arith.constant 0 : index
    %c2_206 = arith.constant 2 : index
    %1348 = vector.load %arg11[%c0_204, %c0_205, %c2_206] : memref<8x10x18xf32, #tpu.memory_space<vmem>>, vector<1x8x16xf32>
    %1349 = vector.shape_cast %1348 : vector<1x8x16xf32> to vector<8x16xf32>
    %c0_207 = arith.constant 0 : index
    %c1_208 = arith.constant 1 : index
    %c0_209 = arith.constant 0 : index
    %1350 = vector.load %arg11[%c0_207, %c1_208, %c0_209] : memref<8x10x18xf32, #tpu.memory_space<vmem>>, vector<1x8x16xf32>
    %1351 = vector.shape_cast %1350 : vector<1x8x16xf32> to vector<8x16xf32>
    %c0_210 = arith.constant 0 : index
    %c1_211 = arith.constant 1 : index
    %c1_212 = arith.constant 1 : index
    %1352 = vector.load %arg11[%c0_210, %c1_211, %c1_212] : memref<8x10x18xf32, #tpu.memory_space<vmem>>, vector<1x8x16xf32>
    %1353 = vector.shape_cast %1352 : vector<1x8x16xf32> to vector<8x16xf32>
    %c0_213 = arith.constant 0 : index
    %c1_214 = arith.constant 1 : index
    %c2_215 = arith.constant 2 : index
    %1354 = vector.load %arg11[%c0_213, %c1_214, %c2_215] : memref<8x10x18xf32, #tpu.memory_space<vmem>>, vector<1x8x16xf32>
    %1355 = vector.shape_cast %1354 : vector<1x8x16xf32> to vector<8x16xf32>
    %c0_216 = arith.constant 0 : index
    %c2_217 = arith.constant 2 : index
    %c0_218 = arith.constant 0 : index
    %1356 = vector.load %arg11[%c0_216, %c2_217, %c0_218] : memref<8x10x18xf32, #tpu.memory_space<vmem>>, vector<1x8x16xf32>
    %1357 = vector.shape_cast %1356 : vector<1x8x16xf32> to vector<8x16xf32>
    %c0_219 = arith.constant 0 : index
    %c2_220 = arith.constant 2 : index
    %c1_221 = arith.constant 1 : index
    %1358 = vector.load %arg11[%c0_219, %c2_220, %c1_221] : memref<8x10x18xf32, #tpu.memory_space<vmem>>, vector<1x8x16xf32>
    %1359 = vector.shape_cast %1358 : vector<1x8x16xf32> to vector<8x16xf32>
    %c0_222 = arith.constant 0 : index
    %c2_223 = arith.constant 2 : index
    %c2_224 = arith.constant 2 : index
    %1360 = vector.load %arg11[%c0_222, %c2_223, %c2_224] : memref<8x10x18xf32, #tpu.memory_space<vmem>>, vector<1x8x16xf32>
    %1361 = vector.shape_cast %1360 : vector<1x8x16xf32> to vector<8x16xf32>
    %c1_225 = arith.constant 1 : index
    %c0_226 = arith.constant 0 : index
    %c0_227 = arith.constant 0 : index
    %1362 = vector.load %arg11[%c1_225, %c0_226, %c0_227] : memref<8x10x18xf32, #tpu.memory_space<vmem>>, vector<1x8x16xf32>
    %1363 = vector.shape_cast %1362 : vector<1x8x16xf32> to vector<8x16xf32>
    %c1_228 = arith.constant 1 : index
    %c0_229 = arith.constant 0 : index
    %c1_230 = arith.constant 1 : index
    %1364 = vector.load %arg11[%c1_228, %c0_229, %c1_230] : memref<8x10x18xf32, #tpu.memory_space<vmem>>, vector<1x8x16xf32>
    %1365 = vector.shape_cast %1364 : vector<1x8x16xf32> to vector<8x16xf32>
    %c1_231 = arith.constant 1 : index
    %c0_232 = arith.constant 0 : index
    %c2_233 = arith.constant 2 : index
    %1366 = vector.load %arg11[%c1_231, %c0_232, %c2_233] : memref<8x10x18xf32, #tpu.memory_space<vmem>>, vector<1x8x16xf32>
    %1367 = vector.shape_cast %1366 : vector<1x8x16xf32> to vector<8x16xf32>
    %c1_234 = arith.constant 1 : index
    %c1_235 = arith.constant 1 : index
    %c0_236 = arith.constant 0 : index
    %1368 = vector.load %arg11[%c1_234, %c1_235, %c0_236] : memref<8x10x18xf32, #tpu.memory_space<vmem>>, vector<1x8x16xf32>
    %1369 = vector.shape_cast %1368 : vector<1x8x16xf32> to vector<8x16xf32>
    %c1_237 = arith.constant 1 : index
    %c1_238 = arith.constant 1 : index
    %c1_239 = arith.constant 1 : index
    %1370 = vector.load %arg11[%c1_237, %c1_238, %c1_239] : memref<8x10x18xf32, #tpu.memory_space<vmem>>, vector<1x8x16xf32>
    %1371 = vector.shape_cast %1370 : vector<1x8x16xf32> to vector<8x16xf32>
    %c1_240 = arith.constant 1 : index
    %c1_241 = arith.constant 1 : index
    %c2_242 = arith.constant 2 : index
    %1372 = vector.load %arg11[%c1_240, %c1_241, %c2_242] : memref<8x10x18xf32, #tpu.memory_space<vmem>>, vector<1x8x16xf32>
    %1373 = vector.shape_cast %1372 : vector<1x8x16xf32> to vector<8x16xf32>
    %c1_243 = arith.constant 1 : index
    %c2_244 = arith.constant 2 : index
    %c0_245 = arith.constant 0 : index
    %1374 = vector.load %arg11[%c1_243, %c2_244, %c0_245] : memref<8x10x18xf32, #tpu.memory_space<vmem>>, vector<1x8x16xf32>
    %1375 = vector.shape_cast %1374 : vector<1x8x16xf32> to vector<8x16xf32>
    %c1_246 = arith.constant 1 : index
    %c2_247 = arith.constant 2 : index
    %c1_248 = arith.constant 1 : index
    %1376 = vector.load %arg11[%c1_246, %c2_247, %c1_248] : memref<8x10x18xf32, #tpu.memory_space<vmem>>, vector<1x8x16xf32>
    %1377 = vector.shape_cast %1376 : vector<1x8x16xf32> to vector<8x16xf32>
    %c1_249 = arith.constant 1 : index
    %c2_250 = arith.constant 2 : index
    %c2_251 = arith.constant 2 : index
    %1378 = vector.load %arg11[%c1_249, %c2_250, %c2_251] : memref<8x10x18xf32, #tpu.memory_space<vmem>>, vector<1x8x16xf32>
    %1379 = vector.shape_cast %1378 : vector<1x8x16xf32> to vector<8x16xf32>
    %c2_252 = arith.constant 2 : index
    %c0_253 = arith.constant 0 : index
    %c0_254 = arith.constant 0 : index
    %1380 = vector.load %arg11[%c2_252, %c0_253, %c0_254] : memref<8x10x18xf32, #tpu.memory_space<vmem>>, vector<1x8x16xf32>
    %1381 = vector.shape_cast %1380 : vector<1x8x16xf32> to vector<8x16xf32>
    %c2_255 = arith.constant 2 : index
    %c0_256 = arith.constant 0 : index
    %c1_257 = arith.constant 1 : index
    %1382 = vector.load %arg11[%c2_255, %c0_256, %c1_257] : memref<8x10x18xf32, #tpu.memory_space<vmem>>, vector<1x8x16xf32>
    %1383 = vector.shape_cast %1382 : vector<1x8x16xf32> to vector<8x16xf32>
    %c2_258 = arith.constant 2 : index
    %c0_259 = arith.constant 0 : index
    %c2_260 = arith.constant 2 : index
    %1384 = vector.load %arg11[%c2_258, %c0_259, %c2_260] : memref<8x10x18xf32, #tpu.memory_space<vmem>>, vector<1x8x16xf32>
    %1385 = vector.shape_cast %1384 : vector<1x8x16xf32> to vector<8x16xf32>
    %c2_261 = arith.constant 2 : index
    %c1_262 = arith.constant 1 : index
    %c0_263 = arith.constant 0 : index
    %1386 = vector.load %arg11[%c2_261, %c1_262, %c0_263] : memref<8x10x18xf32, #tpu.memory_space<vmem>>, vector<1x8x16xf32>
    %1387 = vector.shape_cast %1386 : vector<1x8x16xf32> to vector<8x16xf32>
    %c2_264 = arith.constant 2 : index
    %c1_265 = arith.constant 1 : index
    %c1_266 = arith.constant 1 : index
    %1388 = vector.load %arg11[%c2_264, %c1_265, %c1_266] : memref<8x10x18xf32, #tpu.memory_space<vmem>>, vector<1x8x16xf32>
    %1389 = vector.shape_cast %1388 : vector<1x8x16xf32> to vector<8x16xf32>
    %c2_267 = arith.constant 2 : index
    %c1_268 = arith.constant 1 : index
    %c2_269 = arith.constant 2 : index
    %1390 = vector.load %arg11[%c2_267, %c1_268, %c2_269] : memref<8x10x18xf32, #tpu.memory_space<vmem>>, vector<1x8x16xf32>
    %1391 = vector.shape_cast %1390 : vector<1x8x16xf32> to vector<8x16xf32>
    %c2_270 = arith.constant 2 : index
    %c2_271 = arith.constant 2 : index
    %c0_272 = arith.constant 0 : index
    %1392 = vector.load %arg11[%c2_270, %c2_271, %c0_272] : memref<8x10x18xf32, #tpu.memory_space<vmem>>, vector<1x8x16xf32>
    %1393 = vector.shape_cast %1392 : vector<1x8x16xf32> to vector<8x16xf32>
    %c2_273 = arith.constant 2 : index
    %c2_274 = arith.constant 2 : index
    %c1_275 = arith.constant 1 : index
    %1394 = vector.load %arg11[%c2_273, %c2_274, %c1_275] : memref<8x10x18xf32, #tpu.memory_space<vmem>>, vector<1x8x16xf32>
    %1395 = vector.shape_cast %1394 : vector<1x8x16xf32> to vector<8x16xf32>
    %c2_276 = arith.constant 2 : index
    %c2_277 = arith.constant 2 : index
    %c2_278 = arith.constant 2 : index
    %1396 = vector.load %arg11[%c2_276, %c2_277, %c2_278] : memref<8x10x18xf32, #tpu.memory_space<vmem>>, vector<1x8x16xf32>
    %1397 = vector.shape_cast %1396 : vector<1x8x16xf32> to vector<8x16xf32>
    %c3_279 = arith.constant 3 : index
    %c0_280 = arith.constant 0 : index
    %c0_281 = arith.constant 0 : index
    %1398 = vector.load %arg11[%c3_279, %c0_280, %c0_281] : memref<8x10x18xf32, #tpu.memory_space<vmem>>, vector<1x8x16xf32>
    %1399 = vector.shape_cast %1398 : vector<1x8x16xf32> to vector<8x16xf32>
    %c3_282 = arith.constant 3 : index
    %c0_283 = arith.constant 0 : index
    %c1_284 = arith.constant 1 : index
    %1400 = vector.load %arg11[%c3_282, %c0_283, %c1_284] : memref<8x10x18xf32, #tpu.memory_space<vmem>>, vector<1x8x16xf32>
    %1401 = vector.shape_cast %1400 : vector<1x8x16xf32> to vector<8x16xf32>
    %c3_285 = arith.constant 3 : index
    %c0_286 = arith.constant 0 : index
    %c2_287 = arith.constant 2 : index
    %1402 = vector.load %arg11[%c3_285, %c0_286, %c2_287] : memref<8x10x18xf32, #tpu.memory_space<vmem>>, vector<1x8x16xf32>
    %1403 = vector.shape_cast %1402 : vector<1x8x16xf32> to vector<8x16xf32>
    %c3_288 = arith.constant 3 : index
    %c1_289 = arith.constant 1 : index
    %c0_290 = arith.constant 0 : index
    %1404 = vector.load %arg11[%c3_288, %c1_289, %c0_290] : memref<8x10x18xf32, #tpu.memory_space<vmem>>, vector<1x8x16xf32>
    %1405 = vector.shape_cast %1404 : vector<1x8x16xf32> to vector<8x16xf32>
    %c3_291 = arith.constant 3 : index
    %c1_292 = arith.constant 1 : index
    %c1_293 = arith.constant 1 : index
    %1406 = vector.load %arg11[%c3_291, %c1_292, %c1_293] : memref<8x10x18xf32, #tpu.memory_space<vmem>>, vector<1x8x16xf32>
    %1407 = vector.shape_cast %1406 : vector<1x8x16xf32> to vector<8x16xf32>
    %c3_294 = arith.constant 3 : index
    %c1_295 = arith.constant 1 : index
    %c2_296 = arith.constant 2 : index
    %1408 = vector.load %arg11[%c3_294, %c1_295, %c2_296] : memref<8x10x18xf32, #tpu.memory_space<vmem>>, vector<1x8x16xf32>
    %1409 = vector.shape_cast %1408 : vector<1x8x16xf32> to vector<8x16xf32>
    %c3_297 = arith.constant 3 : index
    %c2_298 = arith.constant 2 : index
    %c0_299 = arith.constant 0 : index
    %1410 = vector.load %arg11[%c3_297, %c2_298, %c0_299] : memref<8x10x18xf32, #tpu.memory_space<vmem>>, vector<1x8x16xf32>
    %1411 = vector.shape_cast %1410 : vector<1x8x16xf32> to vector<8x16xf32>
    %c3_300 = arith.constant 3 : index
    %c2_301 = arith.constant 2 : index
    %c1_302 = arith.constant 1 : index
    %1412 = vector.load %arg11[%c3_300, %c2_301, %c1_302] : memref<8x10x18xf32, #tpu.memory_space<vmem>>, vector<1x8x16xf32>
    %1413 = vector.shape_cast %1412 : vector<1x8x16xf32> to vector<8x16xf32>
    %c3_303 = arith.constant 3 : index
    %c2_304 = arith.constant 2 : index
    %c2_305 = arith.constant 2 : index
    %1414 = vector.load %arg11[%c3_303, %c2_304, %c2_305] : memref<8x10x18xf32, #tpu.memory_space<vmem>>, vector<1x8x16xf32>
    %1415 = vector.shape_cast %1414 : vector<1x8x16xf32> to vector<8x16xf32>
    %c4_306 = arith.constant 4 : index
    %c0_307 = arith.constant 0 : index
    %c0_308 = arith.constant 0 : index
    %1416 = vector.load %arg11[%c4_306, %c0_307, %c0_308] : memref<8x10x18xf32, #tpu.memory_space<vmem>>, vector<1x8x16xf32>
    %1417 = vector.shape_cast %1416 : vector<1x8x16xf32> to vector<8x16xf32>
    %c4_309 = arith.constant 4 : index
    %c0_310 = arith.constant 0 : index
    %c1_311 = arith.constant 1 : index
    %1418 = vector.load %arg11[%c4_309, %c0_310, %c1_311] : memref<8x10x18xf32, #tpu.memory_space<vmem>>, vector<1x8x16xf32>
    %1419 = vector.shape_cast %1418 : vector<1x8x16xf32> to vector<8x16xf32>
    %c4_312 = arith.constant 4 : index
    %c0_313 = arith.constant 0 : index
    %c2_314 = arith.constant 2 : index
    %1420 = vector.load %arg11[%c4_312, %c0_313, %c2_314] : memref<8x10x18xf32, #tpu.memory_space<vmem>>, vector<1x8x16xf32>
    %1421 = vector.shape_cast %1420 : vector<1x8x16xf32> to vector<8x16xf32>
    %c4_315 = arith.constant 4 : index
    %c1_316 = arith.constant 1 : index
    %c0_317 = arith.constant 0 : index
    %1422 = vector.load %arg11[%c4_315, %c1_316, %c0_317] : memref<8x10x18xf32, #tpu.memory_space<vmem>>, vector<1x8x16xf32>
    %1423 = vector.shape_cast %1422 : vector<1x8x16xf32> to vector<8x16xf32>
    %c4_318 = arith.constant 4 : index
    %c1_319 = arith.constant 1 : index
    %c1_320 = arith.constant 1 : index
    %1424 = vector.load %arg11[%c4_318, %c1_319, %c1_320] : memref<8x10x18xf32, #tpu.memory_space<vmem>>, vector<1x8x16xf32>
    %1425 = vector.shape_cast %1424 : vector<1x8x16xf32> to vector<8x16xf32>
    %c4_321 = arith.constant 4 : index
    %c1_322 = arith.constant 1 : index
    %c2_323 = arith.constant 2 : index
    %1426 = vector.load %arg11[%c4_321, %c1_322, %c2_323] : memref<8x10x18xf32, #tpu.memory_space<vmem>>, vector<1x8x16xf32>
    %1427 = vector.shape_cast %1426 : vector<1x8x16xf32> to vector<8x16xf32>
    %c4_324 = arith.constant 4 : index
    %c2_325 = arith.constant 2 : index
    %c0_326 = arith.constant 0 : index
    %1428 = vector.load %arg11[%c4_324, %c2_325, %c0_326] : memref<8x10x18xf32, #tpu.memory_space<vmem>>, vector<1x8x16xf32>
    %1429 = vector.shape_cast %1428 : vector<1x8x16xf32> to vector<8x16xf32>
    %c4_327 = arith.constant 4 : index
    %c2_328 = arith.constant 2 : index
    %c1_329 = arith.constant 1 : index
    %1430 = vector.load %arg11[%c4_327, %c2_328, %c1_329] : memref<8x10x18xf32, #tpu.memory_space<vmem>>, vector<1x8x16xf32>
    %1431 = vector.shape_cast %1430 : vector<1x8x16xf32> to vector<8x16xf32>
    %c4_330 = arith.constant 4 : index
    %c2_331 = arith.constant 2 : index
    %c2_332 = arith.constant 2 : index
    %1432 = vector.load %arg11[%c4_330, %c2_331, %c2_332] : memref<8x10x18xf32, #tpu.memory_space<vmem>>, vector<1x8x16xf32>
    %1433 = vector.shape_cast %1432 : vector<1x8x16xf32> to vector<8x16xf32>
    %c5_333 = arith.constant 5 : index
    %c0_334 = arith.constant 0 : index
    %c0_335 = arith.constant 0 : index
    %1434 = vector.load %arg11[%c5_333, %c0_334, %c0_335] : memref<8x10x18xf32, #tpu.memory_space<vmem>>, vector<1x8x16xf32>
    %1435 = vector.shape_cast %1434 : vector<1x8x16xf32> to vector<8x16xf32>
    %c5_336 = arith.constant 5 : index
    %c0_337 = arith.constant 0 : index
    %c1_338 = arith.constant 1 : index
    %1436 = vector.load %arg11[%c5_336, %c0_337, %c1_338] : memref<8x10x18xf32, #tpu.memory_space<vmem>>, vector<1x8x16xf32>
    %1437 = vector.shape_cast %1436 : vector<1x8x16xf32> to vector<8x16xf32>
    %c5_339 = arith.constant 5 : index
    %c0_340 = arith.constant 0 : index
    %c2_341 = arith.constant 2 : index
    %1438 = vector.load %arg11[%c5_339, %c0_340, %c2_341] : memref<8x10x18xf32, #tpu.memory_space<vmem>>, vector<1x8x16xf32>
    %1439 = vector.shape_cast %1438 : vector<1x8x16xf32> to vector<8x16xf32>
    %c5_342 = arith.constant 5 : index
    %c1_343 = arith.constant 1 : index
    %c0_344 = arith.constant 0 : index
    %1440 = vector.load %arg11[%c5_342, %c1_343, %c0_344] : memref<8x10x18xf32, #tpu.memory_space<vmem>>, vector<1x8x16xf32>
    %1441 = vector.shape_cast %1440 : vector<1x8x16xf32> to vector<8x16xf32>
    %c5_345 = arith.constant 5 : index
    %c1_346 = arith.constant 1 : index
    %c1_347 = arith.constant 1 : index
    %1442 = vector.load %arg11[%c5_345, %c1_346, %c1_347] : memref<8x10x18xf32, #tpu.memory_space<vmem>>, vector<1x8x16xf32>
    %1443 = vector.shape_cast %1442 : vector<1x8x16xf32> to vector<8x16xf32>
    %c5_348 = arith.constant 5 : index
    %c1_349 = arith.constant 1 : index
    %c2_350 = arith.constant 2 : index
    %1444 = vector.load %arg11[%c5_348, %c1_349, %c2_350] : memref<8x10x18xf32, #tpu.memory_space<vmem>>, vector<1x8x16xf32>
    %1445 = vector.shape_cast %1444 : vector<1x8x16xf32> to vector<8x16xf32>
    %c5_351 = arith.constant 5 : index
    %c2_352 = arith.constant 2 : index
    %c0_353 = arith.constant 0 : index
    %1446 = vector.load %arg11[%c5_351, %c2_352, %c0_353] : memref<8x10x18xf32, #tpu.memory_space<vmem>>, vector<1x8x16xf32>
    %1447 = vector.shape_cast %1446 : vector<1x8x16xf32> to vector<8x16xf32>
    %c5_354 = arith.constant 5 : index
    %c2_355 = arith.constant 2 : index
    %c1_356 = arith.constant 1 : index
    %1448 = vector.load %arg11[%c5_354, %c2_355, %c1_356] : memref<8x10x18xf32, #tpu.memory_space<vmem>>, vector<1x8x16xf32>
    %1449 = vector.shape_cast %1448 : vector<1x8x16xf32> to vector<8x16xf32>
    %c5_357 = arith.constant 5 : index
    %c2_358 = arith.constant 2 : index
    %c2_359 = arith.constant 2 : index
    %1450 = vector.load %arg11[%c5_357, %c2_358, %c2_359] : memref<8x10x18xf32, #tpu.memory_space<vmem>>, vector<1x8x16xf32>
    %1451 = vector.shape_cast %1450 : vector<1x8x16xf32> to vector<8x16xf32>
    %c6_360 = arith.constant 6 : index
    %c0_361 = arith.constant 0 : index
    %c0_362 = arith.constant 0 : index
    %1452 = vector.load %arg11[%c6_360, %c0_361, %c0_362] : memref<8x10x18xf32, #tpu.memory_space<vmem>>, vector<1x8x16xf32>
    %1453 = vector.shape_cast %1452 : vector<1x8x16xf32> to vector<8x16xf32>
    %c6_363 = arith.constant 6 : index
    %c0_364 = arith.constant 0 : index
    %c1_365 = arith.constant 1 : index
    %1454 = vector.load %arg11[%c6_363, %c0_364, %c1_365] : memref<8x10x18xf32, #tpu.memory_space<vmem>>, vector<1x8x16xf32>
    %1455 = vector.shape_cast %1454 : vector<1x8x16xf32> to vector<8x16xf32>
    %c6_366 = arith.constant 6 : index
    %c0_367 = arith.constant 0 : index
    %c2_368 = arith.constant 2 : index
    %1456 = vector.load %arg11[%c6_366, %c0_367, %c2_368] : memref<8x10x18xf32, #tpu.memory_space<vmem>>, vector<1x8x16xf32>
    %1457 = vector.shape_cast %1456 : vector<1x8x16xf32> to vector<8x16xf32>
    %c6_369 = arith.constant 6 : index
    %c1_370 = arith.constant 1 : index
    %c0_371 = arith.constant 0 : index
    %1458 = vector.load %arg11[%c6_369, %c1_370, %c0_371] : memref<8x10x18xf32, #tpu.memory_space<vmem>>, vector<1x8x16xf32>
    %1459 = vector.shape_cast %1458 : vector<1x8x16xf32> to vector<8x16xf32>
    %c6_372 = arith.constant 6 : index
    %c1_373 = arith.constant 1 : index
    %c1_374 = arith.constant 1 : index
    %1460 = vector.load %arg11[%c6_372, %c1_373, %c1_374] : memref<8x10x18xf32, #tpu.memory_space<vmem>>, vector<1x8x16xf32>
    %1461 = vector.shape_cast %1460 : vector<1x8x16xf32> to vector<8x16xf32>
    %c6_375 = arith.constant 6 : index
    %c1_376 = arith.constant 1 : index
    %c2_377 = arith.constant 2 : index
    %1462 = vector.load %arg11[%c6_375, %c1_376, %c2_377] : memref<8x10x18xf32, #tpu.memory_space<vmem>>, vector<1x8x16xf32>
    %1463 = vector.shape_cast %1462 : vector<1x8x16xf32> to vector<8x16xf32>
    %c6_378 = arith.constant 6 : index
    %c2_379 = arith.constant 2 : index
    %c0_380 = arith.constant 0 : index
    %1464 = vector.load %arg11[%c6_378, %c2_379, %c0_380] : memref<8x10x18xf32, #tpu.memory_space<vmem>>, vector<1x8x16xf32>
    %1465 = vector.shape_cast %1464 : vector<1x8x16xf32> to vector<8x16xf32>
    %c6_381 = arith.constant 6 : index
    %c2_382 = arith.constant 2 : index
    %c1_383 = arith.constant 1 : index
    %1466 = vector.load %arg11[%c6_381, %c2_382, %c1_383] : memref<8x10x18xf32, #tpu.memory_space<vmem>>, vector<1x8x16xf32>
    %1467 = vector.shape_cast %1466 : vector<1x8x16xf32> to vector<8x16xf32>
    %c6_384 = arith.constant 6 : index
    %c2_385 = arith.constant 2 : index
    %c2_386 = arith.constant 2 : index
    %1468 = vector.load %arg11[%c6_384, %c2_385, %c2_386] : memref<8x10x18xf32, #tpu.memory_space<vmem>>, vector<1x8x16xf32>
    %1469 = vector.shape_cast %1468 : vector<1x8x16xf32> to vector<8x16xf32>
    %c7_387 = arith.constant 7 : index
    %c0_388 = arith.constant 0 : index
    %c0_389 = arith.constant 0 : index
    %1470 = vector.load %arg11[%c7_387, %c0_388, %c0_389] : memref<8x10x18xf32, #tpu.memory_space<vmem>>, vector<1x8x16xf32>
    %1471 = vector.shape_cast %1470 : vector<1x8x16xf32> to vector<8x16xf32>
    %c7_390 = arith.constant 7 : index
    %c0_391 = arith.constant 0 : index
    %c1_392 = arith.constant 1 : index
    %1472 = vector.load %arg11[%c7_390, %c0_391, %c1_392] : memref<8x10x18xf32, #tpu.memory_space<vmem>>, vector<1x8x16xf32>
    %1473 = vector.shape_cast %1472 : vector<1x8x16xf32> to vector<8x16xf32>
    %c7_393 = arith.constant 7 : index
    %c0_394 = arith.constant 0 : index
    %c2_395 = arith.constant 2 : index
    %1474 = vector.load %arg11[%c7_393, %c0_394, %c2_395] : memref<8x10x18xf32, #tpu.memory_space<vmem>>, vector<1x8x16xf32>
    %1475 = vector.shape_cast %1474 : vector<1x8x16xf32> to vector<8x16xf32>
    %c7_396 = arith.constant 7 : index
    %c1_397 = arith.constant 1 : index
    %c0_398 = arith.constant 0 : index
    %1476 = vector.load %arg11[%c7_396, %c1_397, %c0_398] : memref<8x10x18xf32, #tpu.memory_space<vmem>>, vector<1x8x16xf32>
    %1477 = vector.shape_cast %1476 : vector<1x8x16xf32> to vector<8x16xf32>
    %c7_399 = arith.constant 7 : index
    %c1_400 = arith.constant 1 : index
    %c1_401 = arith.constant 1 : index
    %1478 = vector.load %arg11[%c7_399, %c1_400, %c1_401] : memref<8x10x18xf32, #tpu.memory_space<vmem>>, vector<1x8x16xf32>
    %1479 = vector.shape_cast %1478 : vector<1x8x16xf32> to vector<8x16xf32>
    %c7_402 = arith.constant 7 : index
    %c1_403 = arith.constant 1 : index
    %c2_404 = arith.constant 2 : index
    %1480 = vector.load %arg11[%c7_402, %c1_403, %c2_404] : memref<8x10x18xf32, #tpu.memory_space<vmem>>, vector<1x8x16xf32>
    %1481 = vector.shape_cast %1480 : vector<1x8x16xf32> to vector<8x16xf32>
    %c7_405 = arith.constant 7 : index
    %c2_406 = arith.constant 2 : index
    %c0_407 = arith.constant 0 : index
    %1482 = vector.load %arg11[%c7_405, %c2_406, %c0_407] : memref<8x10x18xf32, #tpu.memory_space<vmem>>, vector<1x8x16xf32>
    %1483 = vector.shape_cast %1482 : vector<1x8x16xf32> to vector<8x16xf32>
    %c7_408 = arith.constant 7 : index
    %c2_409 = arith.constant 2 : index
    %c1_410 = arith.constant 1 : index
    %1484 = vector.load %arg11[%c7_408, %c2_409, %c1_410] : memref<8x10x18xf32, #tpu.memory_space<vmem>>, vector<1x8x16xf32>
    %1485 = vector.shape_cast %1484 : vector<1x8x16xf32> to vector<8x16xf32>
    %c7_411 = arith.constant 7 : index
    %c2_412 = arith.constant 2 : index
    %c2_413 = arith.constant 2 : index
    %1486 = vector.load %arg11[%c7_411, %c2_412, %c2_413] : memref<8x10x18xf32, #tpu.memory_space<vmem>>, vector<1x8x16xf32>
    %1487 = vector.shape_cast %1486 : vector<1x8x16xf32> to vector<8x16xf32>
    %cst_414 = arith.constant 0.000000e+00 : f32
    %1488 = vector.broadcast %cst_414 : f32 to vector<8x16xf32>
    %c0_415 = arith.constant 0 : index
    %1489 = memref.load %arg8[%c0_415] : memref<3xf32, #tpu.memory_space<smem>>
    %1490 = vector.broadcast %1489 : f32 to vector<8x16xf32>
    %1491 = arith.addf %1488, %1490 : vector<8x16xf32>
    %c0_416 = arith.constant 0 : index
    %1492 = memref.load %arg7[%c0_416] : memref<216xf32, #tpu.memory_space<smem>>
    %1493 = vector.broadcast %1492 : f32 to vector<8x16xf32>
    %1494 = arith.mulf %1493, %1345 : vector<8x16xf32>
    %1495 = arith.addf %1491, %1494 : vector<8x16xf32>
    %c1_417 = arith.constant 1 : index
    %1496 = memref.load %arg7[%c1_417] : memref<216xf32, #tpu.memory_space<smem>>
    %1497 = vector.broadcast %1496 : f32 to vector<8x16xf32>
    %1498 = arith.mulf %1497, %1347 : vector<8x16xf32>
    %1499 = arith.addf %1495, %1498 : vector<8x16xf32>
    %c2_418 = arith.constant 2 : index
    %1500 = memref.load %arg7[%c2_418] : memref<216xf32, #tpu.memory_space<smem>>
    %1501 = vector.broadcast %1500 : f32 to vector<8x16xf32>
    %1502 = arith.mulf %1501, %1349 : vector<8x16xf32>
    %1503 = arith.addf %1499, %1502 : vector<8x16xf32>
    %c3_419 = arith.constant 3 : index
    %1504 = memref.load %arg7[%c3_419] : memref<216xf32, #tpu.memory_space<smem>>
    %1505 = vector.broadcast %1504 : f32 to vector<8x16xf32>
    %1506 = arith.mulf %1505, %1351 : vector<8x16xf32>
    %1507 = arith.addf %1503, %1506 : vector<8x16xf32>
    %c4_420 = arith.constant 4 : index
    %1508 = memref.load %arg7[%c4_420] : memref<216xf32, #tpu.memory_space<smem>>
    %1509 = vector.broadcast %1508 : f32 to vector<8x16xf32>
    %1510 = arith.mulf %1509, %1353 : vector<8x16xf32>
    %1511 = arith.addf %1507, %1510 : vector<8x16xf32>
    %c5_421 = arith.constant 5 : index
    %1512 = memref.load %arg7[%c5_421] : memref<216xf32, #tpu.memory_space<smem>>
    %1513 = vector.broadcast %1512 : f32 to vector<8x16xf32>
    %1514 = arith.mulf %1513, %1355 : vector<8x16xf32>
    %1515 = arith.addf %1511, %1514 : vector<8x16xf32>
    %c6_422 = arith.constant 6 : index
    %1516 = memref.load %arg7[%c6_422] : memref<216xf32, #tpu.memory_space<smem>>
    %1517 = vector.broadcast %1516 : f32 to vector<8x16xf32>
    %1518 = arith.mulf %1517, %1357 : vector<8x16xf32>
    %1519 = arith.addf %1515, %1518 : vector<8x16xf32>
    %c7_423 = arith.constant 7 : index
    %1520 = memref.load %arg7[%c7_423] : memref<216xf32, #tpu.memory_space<smem>>
    %1521 = vector.broadcast %1520 : f32 to vector<8x16xf32>
    %1522 = arith.mulf %1521, %1359 : vector<8x16xf32>
    %1523 = arith.addf %1519, %1522 : vector<8x16xf32>
    %c8_424 = arith.constant 8 : index
    %1524 = memref.load %arg7[%c8_424] : memref<216xf32, #tpu.memory_space<smem>>
    %1525 = vector.broadcast %1524 : f32 to vector<8x16xf32>
    %1526 = arith.mulf %1525, %1361 : vector<8x16xf32>
    %1527 = arith.addf %1523, %1526 : vector<8x16xf32>
    %c9_425 = arith.constant 9 : index
    %1528 = memref.load %arg7[%c9_425] : memref<216xf32, #tpu.memory_space<smem>>
    %1529 = vector.broadcast %1528 : f32 to vector<8x16xf32>
    %1530 = arith.mulf %1529, %1363 : vector<8x16xf32>
    %1531 = arith.addf %1527, %1530 : vector<8x16xf32>
    %c10_426 = arith.constant 10 : index
    %1532 = memref.load %arg7[%c10_426] : memref<216xf32, #tpu.memory_space<smem>>
    %1533 = vector.broadcast %1532 : f32 to vector<8x16xf32>
    %1534 = arith.mulf %1533, %1365 : vector<8x16xf32>
    %1535 = arith.addf %1531, %1534 : vector<8x16xf32>
    %c11_427 = arith.constant 11 : index
    %1536 = memref.load %arg7[%c11_427] : memref<216xf32, #tpu.memory_space<smem>>
    %1537 = vector.broadcast %1536 : f32 to vector<8x16xf32>
    %1538 = arith.mulf %1537, %1367 : vector<8x16xf32>
    %1539 = arith.addf %1535, %1538 : vector<8x16xf32>
    %c12_428 = arith.constant 12 : index
    %1540 = memref.load %arg7[%c12_428] : memref<216xf32, #tpu.memory_space<smem>>
    %1541 = vector.broadcast %1540 : f32 to vector<8x16xf32>
    %1542 = arith.mulf %1541, %1369 : vector<8x16xf32>
    %1543 = arith.addf %1539, %1542 : vector<8x16xf32>
    %c13_429 = arith.constant 13 : index
    %1544 = memref.load %arg7[%c13_429] : memref<216xf32, #tpu.memory_space<smem>>
    %1545 = vector.broadcast %1544 : f32 to vector<8x16xf32>
    %1546 = arith.mulf %1545, %1371 : vector<8x16xf32>
    %1547 = arith.addf %1543, %1546 : vector<8x16xf32>
    %c14_430 = arith.constant 14 : index
    %1548 = memref.load %arg7[%c14_430] : memref<216xf32, #tpu.memory_space<smem>>
    %1549 = vector.broadcast %1548 : f32 to vector<8x16xf32>
    %1550 = arith.mulf %1549, %1373 : vector<8x16xf32>
    %1551 = arith.addf %1547, %1550 : vector<8x16xf32>
    %c15_431 = arith.constant 15 : index
    %1552 = memref.load %arg7[%c15_431] : memref<216xf32, #tpu.memory_space<smem>>
    %1553 = vector.broadcast %1552 : f32 to vector<8x16xf32>
    %1554 = arith.mulf %1553, %1375 : vector<8x16xf32>
    %1555 = arith.addf %1551, %1554 : vector<8x16xf32>
    %c16_432 = arith.constant 16 : index
    %1556 = memref.load %arg7[%c16_432] : memref<216xf32, #tpu.memory_space<smem>>
    %1557 = vector.broadcast %1556 : f32 to vector<8x16xf32>
    %1558 = arith.mulf %1557, %1377 : vector<8x16xf32>
    %1559 = arith.addf %1555, %1558 : vector<8x16xf32>
    %c17_433 = arith.constant 17 : index
    %1560 = memref.load %arg7[%c17_433] : memref<216xf32, #tpu.memory_space<smem>>
    %1561 = vector.broadcast %1560 : f32 to vector<8x16xf32>
    %1562 = arith.mulf %1561, %1379 : vector<8x16xf32>
    %1563 = arith.addf %1559, %1562 : vector<8x16xf32>
    %c18_434 = arith.constant 18 : index
    %1564 = memref.load %arg7[%c18_434] : memref<216xf32, #tpu.memory_space<smem>>
    %1565 = vector.broadcast %1564 : f32 to vector<8x16xf32>
    %1566 = arith.mulf %1565, %1381 : vector<8x16xf32>
    %1567 = arith.addf %1563, %1566 : vector<8x16xf32>
    %c19_435 = arith.constant 19 : index
    %1568 = memref.load %arg7[%c19_435] : memref<216xf32, #tpu.memory_space<smem>>
    %1569 = vector.broadcast %1568 : f32 to vector<8x16xf32>
    %1570 = arith.mulf %1569, %1383 : vector<8x16xf32>
    %1571 = arith.addf %1567, %1570 : vector<8x16xf32>
    %c20_436 = arith.constant 20 : index
    %1572 = memref.load %arg7[%c20_436] : memref<216xf32, #tpu.memory_space<smem>>
    %1573 = vector.broadcast %1572 : f32 to vector<8x16xf32>
    %1574 = arith.mulf %1573, %1385 : vector<8x16xf32>
    %1575 = arith.addf %1571, %1574 : vector<8x16xf32>
    %c21_437 = arith.constant 21 : index
    %1576 = memref.load %arg7[%c21_437] : memref<216xf32, #tpu.memory_space<smem>>
    %1577 = vector.broadcast %1576 : f32 to vector<8x16xf32>
    %1578 = arith.mulf %1577, %1387 : vector<8x16xf32>
    %1579 = arith.addf %1575, %1578 : vector<8x16xf32>
    %c22_438 = arith.constant 22 : index
    %1580 = memref.load %arg7[%c22_438] : memref<216xf32, #tpu.memory_space<smem>>
    %1581 = vector.broadcast %1580 : f32 to vector<8x16xf32>
    %1582 = arith.mulf %1581, %1389 : vector<8x16xf32>
    %1583 = arith.addf %1579, %1582 : vector<8x16xf32>
    %c23_439 = arith.constant 23 : index
    %1584 = memref.load %arg7[%c23_439] : memref<216xf32, #tpu.memory_space<smem>>
    %1585 = vector.broadcast %1584 : f32 to vector<8x16xf32>
    %1586 = arith.mulf %1585, %1391 : vector<8x16xf32>
    %1587 = arith.addf %1583, %1586 : vector<8x16xf32>
    %c24_440 = arith.constant 24 : index
    %1588 = memref.load %arg7[%c24_440] : memref<216xf32, #tpu.memory_space<smem>>
    %1589 = vector.broadcast %1588 : f32 to vector<8x16xf32>
    %1590 = arith.mulf %1589, %1393 : vector<8x16xf32>
    %1591 = arith.addf %1587, %1590 : vector<8x16xf32>
    %c25_441 = arith.constant 25 : index
    %1592 = memref.load %arg7[%c25_441] : memref<216xf32, #tpu.memory_space<smem>>
    %1593 = vector.broadcast %1592 : f32 to vector<8x16xf32>
    %1594 = arith.mulf %1593, %1395 : vector<8x16xf32>
    %1595 = arith.addf %1591, %1594 : vector<8x16xf32>
    %c26_442 = arith.constant 26 : index
    %1596 = memref.load %arg7[%c26_442] : memref<216xf32, #tpu.memory_space<smem>>
    %1597 = vector.broadcast %1596 : f32 to vector<8x16xf32>
    %1598 = arith.mulf %1597, %1397 : vector<8x16xf32>
    %1599 = arith.addf %1595, %1598 : vector<8x16xf32>
    %c27_443 = arith.constant 27 : index
    %1600 = memref.load %arg7[%c27_443] : memref<216xf32, #tpu.memory_space<smem>>
    %1601 = vector.broadcast %1600 : f32 to vector<8x16xf32>
    %1602 = arith.mulf %1601, %1399 : vector<8x16xf32>
    %1603 = arith.addf %1599, %1602 : vector<8x16xf32>
    %c28_444 = arith.constant 28 : index
    %1604 = memref.load %arg7[%c28_444] : memref<216xf32, #tpu.memory_space<smem>>
    %1605 = vector.broadcast %1604 : f32 to vector<8x16xf32>
    %1606 = arith.mulf %1605, %1401 : vector<8x16xf32>
    %1607 = arith.addf %1603, %1606 : vector<8x16xf32>
    %c29_445 = arith.constant 29 : index
    %1608 = memref.load %arg7[%c29_445] : memref<216xf32, #tpu.memory_space<smem>>
    %1609 = vector.broadcast %1608 : f32 to vector<8x16xf32>
    %1610 = arith.mulf %1609, %1403 : vector<8x16xf32>
    %1611 = arith.addf %1607, %1610 : vector<8x16xf32>
    %c30_446 = arith.constant 30 : index
    %1612 = memref.load %arg7[%c30_446] : memref<216xf32, #tpu.memory_space<smem>>
    %1613 = vector.broadcast %1612 : f32 to vector<8x16xf32>
    %1614 = arith.mulf %1613, %1405 : vector<8x16xf32>
    %1615 = arith.addf %1611, %1614 : vector<8x16xf32>
    %c31_447 = arith.constant 31 : index
    %1616 = memref.load %arg7[%c31_447] : memref<216xf32, #tpu.memory_space<smem>>
    %1617 = vector.broadcast %1616 : f32 to vector<8x16xf32>
    %1618 = arith.mulf %1617, %1407 : vector<8x16xf32>
    %1619 = arith.addf %1615, %1618 : vector<8x16xf32>
    %c32_448 = arith.constant 32 : index
    %1620 = memref.load %arg7[%c32_448] : memref<216xf32, #tpu.memory_space<smem>>
    %1621 = vector.broadcast %1620 : f32 to vector<8x16xf32>
    %1622 = arith.mulf %1621, %1409 : vector<8x16xf32>
    %1623 = arith.addf %1619, %1622 : vector<8x16xf32>
    %c33_449 = arith.constant 33 : index
    %1624 = memref.load %arg7[%c33_449] : memref<216xf32, #tpu.memory_space<smem>>
    %1625 = vector.broadcast %1624 : f32 to vector<8x16xf32>
    %1626 = arith.mulf %1625, %1411 : vector<8x16xf32>
    %1627 = arith.addf %1623, %1626 : vector<8x16xf32>
    %c34_450 = arith.constant 34 : index
    %1628 = memref.load %arg7[%c34_450] : memref<216xf32, #tpu.memory_space<smem>>
    %1629 = vector.broadcast %1628 : f32 to vector<8x16xf32>
    %1630 = arith.mulf %1629, %1413 : vector<8x16xf32>
    %1631 = arith.addf %1627, %1630 : vector<8x16xf32>
    %c35_451 = arith.constant 35 : index
    %1632 = memref.load %arg7[%c35_451] : memref<216xf32, #tpu.memory_space<smem>>
    %1633 = vector.broadcast %1632 : f32 to vector<8x16xf32>
    %1634 = arith.mulf %1633, %1415 : vector<8x16xf32>
    %1635 = arith.addf %1631, %1634 : vector<8x16xf32>
    %c36_452 = arith.constant 36 : index
    %1636 = memref.load %arg7[%c36_452] : memref<216xf32, #tpu.memory_space<smem>>
    %1637 = vector.broadcast %1636 : f32 to vector<8x16xf32>
    %1638 = arith.mulf %1637, %1417 : vector<8x16xf32>
    %1639 = arith.addf %1635, %1638 : vector<8x16xf32>
    %c37_453 = arith.constant 37 : index
    %1640 = memref.load %arg7[%c37_453] : memref<216xf32, #tpu.memory_space<smem>>
    %1641 = vector.broadcast %1640 : f32 to vector<8x16xf32>
    %1642 = arith.mulf %1641, %1419 : vector<8x16xf32>
    %1643 = arith.addf %1639, %1642 : vector<8x16xf32>
    %c38_454 = arith.constant 38 : index
    %1644 = memref.load %arg7[%c38_454] : memref<216xf32, #tpu.memory_space<smem>>
    %1645 = vector.broadcast %1644 : f32 to vector<8x16xf32>
    %1646 = arith.mulf %1645, %1421 : vector<8x16xf32>
    %1647 = arith.addf %1643, %1646 : vector<8x16xf32>
    %c39_455 = arith.constant 39 : index
    %1648 = memref.load %arg7[%c39_455] : memref<216xf32, #tpu.memory_space<smem>>
    %1649 = vector.broadcast %1648 : f32 to vector<8x16xf32>
    %1650 = arith.mulf %1649, %1423 : vector<8x16xf32>
    %1651 = arith.addf %1647, %1650 : vector<8x16xf32>
    %c40_456 = arith.constant 40 : index
    %1652 = memref.load %arg7[%c40_456] : memref<216xf32, #tpu.memory_space<smem>>
    %1653 = vector.broadcast %1652 : f32 to vector<8x16xf32>
    %1654 = arith.mulf %1653, %1425 : vector<8x16xf32>
    %1655 = arith.addf %1651, %1654 : vector<8x16xf32>
    %c41_457 = arith.constant 41 : index
    %1656 = memref.load %arg7[%c41_457] : memref<216xf32, #tpu.memory_space<smem>>
    %1657 = vector.broadcast %1656 : f32 to vector<8x16xf32>
    %1658 = arith.mulf %1657, %1427 : vector<8x16xf32>
    %1659 = arith.addf %1655, %1658 : vector<8x16xf32>
    %c42_458 = arith.constant 42 : index
    %1660 = memref.load %arg7[%c42_458] : memref<216xf32, #tpu.memory_space<smem>>
    %1661 = vector.broadcast %1660 : f32 to vector<8x16xf32>
    %1662 = arith.mulf %1661, %1429 : vector<8x16xf32>
    %1663 = arith.addf %1659, %1662 : vector<8x16xf32>
    %c43_459 = arith.constant 43 : index
    %1664 = memref.load %arg7[%c43_459] : memref<216xf32, #tpu.memory_space<smem>>
    %1665 = vector.broadcast %1664 : f32 to vector<8x16xf32>
    %1666 = arith.mulf %1665, %1431 : vector<8x16xf32>
    %1667 = arith.addf %1663, %1666 : vector<8x16xf32>
    %c44_460 = arith.constant 44 : index
    %1668 = memref.load %arg7[%c44_460] : memref<216xf32, #tpu.memory_space<smem>>
    %1669 = vector.broadcast %1668 : f32 to vector<8x16xf32>
    %1670 = arith.mulf %1669, %1433 : vector<8x16xf32>
    %1671 = arith.addf %1667, %1670 : vector<8x16xf32>
    %c45_461 = arith.constant 45 : index
    %1672 = memref.load %arg7[%c45_461] : memref<216xf32, #tpu.memory_space<smem>>
    %1673 = vector.broadcast %1672 : f32 to vector<8x16xf32>
    %1674 = arith.mulf %1673, %1435 : vector<8x16xf32>
    %1675 = arith.addf %1671, %1674 : vector<8x16xf32>
    %c46_462 = arith.constant 46 : index
    %1676 = memref.load %arg7[%c46_462] : memref<216xf32, #tpu.memory_space<smem>>
    %1677 = vector.broadcast %1676 : f32 to vector<8x16xf32>
    %1678 = arith.mulf %1677, %1437 : vector<8x16xf32>
    %1679 = arith.addf %1675, %1678 : vector<8x16xf32>
    %c47_463 = arith.constant 47 : index
    %1680 = memref.load %arg7[%c47_463] : memref<216xf32, #tpu.memory_space<smem>>
    %1681 = vector.broadcast %1680 : f32 to vector<8x16xf32>
    %1682 = arith.mulf %1681, %1439 : vector<8x16xf32>
    %1683 = arith.addf %1679, %1682 : vector<8x16xf32>
    %c48_464 = arith.constant 48 : index
    %1684 = memref.load %arg7[%c48_464] : memref<216xf32, #tpu.memory_space<smem>>
    %1685 = vector.broadcast %1684 : f32 to vector<8x16xf32>
    %1686 = arith.mulf %1685, %1441 : vector<8x16xf32>
    %1687 = arith.addf %1683, %1686 : vector<8x16xf32>
    %c49_465 = arith.constant 49 : index
    %1688 = memref.load %arg7[%c49_465] : memref<216xf32, #tpu.memory_space<smem>>
    %1689 = vector.broadcast %1688 : f32 to vector<8x16xf32>
    %1690 = arith.mulf %1689, %1443 : vector<8x16xf32>
    %1691 = arith.addf %1687, %1690 : vector<8x16xf32>
    %c50_466 = arith.constant 50 : index
    %1692 = memref.load %arg7[%c50_466] : memref<216xf32, #tpu.memory_space<smem>>
    %1693 = vector.broadcast %1692 : f32 to vector<8x16xf32>
    %1694 = arith.mulf %1693, %1445 : vector<8x16xf32>
    %1695 = arith.addf %1691, %1694 : vector<8x16xf32>
    %c51_467 = arith.constant 51 : index
    %1696 = memref.load %arg7[%c51_467] : memref<216xf32, #tpu.memory_space<smem>>
    %1697 = vector.broadcast %1696 : f32 to vector<8x16xf32>
    %1698 = arith.mulf %1697, %1447 : vector<8x16xf32>
    %1699 = arith.addf %1695, %1698 : vector<8x16xf32>
    %c52_468 = arith.constant 52 : index
    %1700 = memref.load %arg7[%c52_468] : memref<216xf32, #tpu.memory_space<smem>>
    %1701 = vector.broadcast %1700 : f32 to vector<8x16xf32>
    %1702 = arith.mulf %1701, %1449 : vector<8x16xf32>
    %1703 = arith.addf %1699, %1702 : vector<8x16xf32>
    %c53_469 = arith.constant 53 : index
    %1704 = memref.load %arg7[%c53_469] : memref<216xf32, #tpu.memory_space<smem>>
    %1705 = vector.broadcast %1704 : f32 to vector<8x16xf32>
    %1706 = arith.mulf %1705, %1451 : vector<8x16xf32>
    %1707 = arith.addf %1703, %1706 : vector<8x16xf32>
    %c54_470 = arith.constant 54 : index
    %1708 = memref.load %arg7[%c54_470] : memref<216xf32, #tpu.memory_space<smem>>
    %1709 = vector.broadcast %1708 : f32 to vector<8x16xf32>
    %1710 = arith.mulf %1709, %1453 : vector<8x16xf32>
    %1711 = arith.addf %1707, %1710 : vector<8x16xf32>
    %c55_471 = arith.constant 55 : index
    %1712 = memref.load %arg7[%c55_471] : memref<216xf32, #tpu.memory_space<smem>>
    %1713 = vector.broadcast %1712 : f32 to vector<8x16xf32>
    %1714 = arith.mulf %1713, %1455 : vector<8x16xf32>
    %1715 = arith.addf %1711, %1714 : vector<8x16xf32>
    %c56_472 = arith.constant 56 : index
    %1716 = memref.load %arg7[%c56_472] : memref<216xf32, #tpu.memory_space<smem>>
    %1717 = vector.broadcast %1716 : f32 to vector<8x16xf32>
    %1718 = arith.mulf %1717, %1457 : vector<8x16xf32>
    %1719 = arith.addf %1715, %1718 : vector<8x16xf32>
    %c57_473 = arith.constant 57 : index
    %1720 = memref.load %arg7[%c57_473] : memref<216xf32, #tpu.memory_space<smem>>
    %1721 = vector.broadcast %1720 : f32 to vector<8x16xf32>
    %1722 = arith.mulf %1721, %1459 : vector<8x16xf32>
    %1723 = arith.addf %1719, %1722 : vector<8x16xf32>
    %c58_474 = arith.constant 58 : index
    %1724 = memref.load %arg7[%c58_474] : memref<216xf32, #tpu.memory_space<smem>>
    %1725 = vector.broadcast %1724 : f32 to vector<8x16xf32>
    %1726 = arith.mulf %1725, %1461 : vector<8x16xf32>
    %1727 = arith.addf %1723, %1726 : vector<8x16xf32>
    %c59_475 = arith.constant 59 : index
    %1728 = memref.load %arg7[%c59_475] : memref<216xf32, #tpu.memory_space<smem>>
    %1729 = vector.broadcast %1728 : f32 to vector<8x16xf32>
    %1730 = arith.mulf %1729, %1463 : vector<8x16xf32>
    %1731 = arith.addf %1727, %1730 : vector<8x16xf32>
    %c60_476 = arith.constant 60 : index
    %1732 = memref.load %arg7[%c60_476] : memref<216xf32, #tpu.memory_space<smem>>
    %1733 = vector.broadcast %1732 : f32 to vector<8x16xf32>
    %1734 = arith.mulf %1733, %1465 : vector<8x16xf32>
    %1735 = arith.addf %1731, %1734 : vector<8x16xf32>
    %c61_477 = arith.constant 61 : index
    %1736 = memref.load %arg7[%c61_477] : memref<216xf32, #tpu.memory_space<smem>>
    %1737 = vector.broadcast %1736 : f32 to vector<8x16xf32>
    %1738 = arith.mulf %1737, %1467 : vector<8x16xf32>
    %1739 = arith.addf %1735, %1738 : vector<8x16xf32>
    %c62_478 = arith.constant 62 : index
    %1740 = memref.load %arg7[%c62_478] : memref<216xf32, #tpu.memory_space<smem>>
    %1741 = vector.broadcast %1740 : f32 to vector<8x16xf32>
    %1742 = arith.mulf %1741, %1469 : vector<8x16xf32>
    %1743 = arith.addf %1739, %1742 : vector<8x16xf32>
    %c63_479 = arith.constant 63 : index
    %1744 = memref.load %arg7[%c63_479] : memref<216xf32, #tpu.memory_space<smem>>
    %1745 = vector.broadcast %1744 : f32 to vector<8x16xf32>
    %1746 = arith.mulf %1745, %1471 : vector<8x16xf32>
    %1747 = arith.addf %1743, %1746 : vector<8x16xf32>
    %c64_480 = arith.constant 64 : index
    %1748 = memref.load %arg7[%c64_480] : memref<216xf32, #tpu.memory_space<smem>>
    %1749 = vector.broadcast %1748 : f32 to vector<8x16xf32>
    %1750 = arith.mulf %1749, %1473 : vector<8x16xf32>
    %1751 = arith.addf %1747, %1750 : vector<8x16xf32>
    %c65_481 = arith.constant 65 : index
    %1752 = memref.load %arg7[%c65_481] : memref<216xf32, #tpu.memory_space<smem>>
    %1753 = vector.broadcast %1752 : f32 to vector<8x16xf32>
    %1754 = arith.mulf %1753, %1475 : vector<8x16xf32>
    %1755 = arith.addf %1751, %1754 : vector<8x16xf32>
    %c66_482 = arith.constant 66 : index
    %1756 = memref.load %arg7[%c66_482] : memref<216xf32, #tpu.memory_space<smem>>
    %1757 = vector.broadcast %1756 : f32 to vector<8x16xf32>
    %1758 = arith.mulf %1757, %1477 : vector<8x16xf32>
    %1759 = arith.addf %1755, %1758 : vector<8x16xf32>
    %c67_483 = arith.constant 67 : index
    %1760 = memref.load %arg7[%c67_483] : memref<216xf32, #tpu.memory_space<smem>>
    %1761 = vector.broadcast %1760 : f32 to vector<8x16xf32>
    %1762 = arith.mulf %1761, %1479 : vector<8x16xf32>
    %1763 = arith.addf %1759, %1762 : vector<8x16xf32>
    %c68_484 = arith.constant 68 : index
    %1764 = memref.load %arg7[%c68_484] : memref<216xf32, #tpu.memory_space<smem>>
    %1765 = vector.broadcast %1764 : f32 to vector<8x16xf32>
    %1766 = arith.mulf %1765, %1481 : vector<8x16xf32>
    %1767 = arith.addf %1763, %1766 : vector<8x16xf32>
    %c69_485 = arith.constant 69 : index
    %1768 = memref.load %arg7[%c69_485] : memref<216xf32, #tpu.memory_space<smem>>
    %1769 = vector.broadcast %1768 : f32 to vector<8x16xf32>
    %1770 = arith.mulf %1769, %1483 : vector<8x16xf32>
    %1771 = arith.addf %1767, %1770 : vector<8x16xf32>
    %c70_486 = arith.constant 70 : index
    %1772 = memref.load %arg7[%c70_486] : memref<216xf32, #tpu.memory_space<smem>>
    %1773 = vector.broadcast %1772 : f32 to vector<8x16xf32>
    %1774 = arith.mulf %1773, %1485 : vector<8x16xf32>
    %1775 = arith.addf %1771, %1774 : vector<8x16xf32>
    %c71_487 = arith.constant 71 : index
    %1776 = memref.load %arg7[%c71_487] : memref<216xf32, #tpu.memory_space<smem>>
    %1777 = vector.broadcast %1776 : f32 to vector<8x16xf32>
    %1778 = arith.mulf %1777, %1487 : vector<8x16xf32>
    %1779 = arith.addf %1775, %1778 : vector<8x16xf32>
    %c0_488 = arith.constant 0 : index
    %c2_489 = arith.constant 2 : index
    %c1_490 = arith.constant 1 : index
    %1780 = vector.load %arg10[%c0_488, %c2_489, %c1_490] : memref<4x12x18xf32, #tpu.memory_space<vmem>>, vector<1x8x16xf32>
    %1781 = vector.shape_cast %1780 : vector<1x8x16xf32> to vector<8x16xf32>
    %cst_491 = arith.constant 5.000000e-01 : f32
    %1782 = vector.broadcast %cst_491 : f32 to vector<8x16xf32>
    %1783 = arith.mulf %1782, %1779 : vector<8x16xf32>
    %cst_492 = arith.constant 5.000000e-01 : f32
    %1784 = vector.broadcast %cst_492 : f32 to vector<8x16xf32>
    %1785 = arith.mulf %1784, %1781 : vector<8x16xf32>
    %1786 = arith.addf %1783, %1785 : vector<8x16xf32>
    %c0_493 = arith.constant 0 : index
    %c0_494 = arith.constant 0 : index
    %c0_495 = arith.constant 0 : index
    %c0_496 = arith.constant 0 : index
    %1787 = vector.load %arg9[%c0_493, %c0_494, %c0_495, %c0_496] : memref<1x3x8x16xf32, #tpu.memory_space<vmem>>, vector<1x1x8x16xf32>
    %1788 = vector.shape_cast %1787 : vector<1x1x8x16xf32> to vector<8x16xf32>
    %1789 = vector.shape_cast %1786 : vector<8x16xf32> to vector<1x1x8x16xf32>
    tpu.vector_store %arg9[%c0_493, %c0_494, %c0_495, %c0_496], %1789 {strides = array<i32>} : memref<1x3x8x16xf32, #tpu.memory_space<vmem>>, vector<1x1x8x16xf32>,
    %cst_497 = arith.constant 0.000000e+00 : f32
    %1790 = vector.broadcast %cst_497 : f32 to vector<8x16xf32>
    %c1_498 = arith.constant 1 : index
    %1791 = memref.load %arg8[%c1_498] : memref<3xf32, #tpu.memory_space<smem>>
    %1792 = vector.broadcast %1791 : f32 to vector<8x16xf32>
    %1793 = arith.addf %1790, %1792 : vector<8x16xf32>
    %c72_499 = arith.constant 72 : index
    %1794 = memref.load %arg7[%c72_499] : memref<216xf32, #tpu.memory_space<smem>>
    %1795 = vector.broadcast %1794 : f32 to vector<8x16xf32>
    %1796 = arith.mulf %1795, %1345 : vector<8x16xf32>
    %1797 = arith.addf %1793, %1796 : vector<8x16xf32>
    %c73_500 = arith.constant 73 : index
    %1798 = memref.load %arg7[%c73_500] : memref<216xf32, #tpu.memory_space<smem>>
    %1799 = vector.broadcast %1798 : f32 to vector<8x16xf32>
    %1800 = arith.mulf %1799, %1347 : vector<8x16xf32>
    %1801 = arith.addf %1797, %1800 : vector<8x16xf32>
    %c74_501 = arith.constant 74 : index
    %1802 = memref.load %arg7[%c74_501] : memref<216xf32, #tpu.memory_space<smem>>
    %1803 = vector.broadcast %1802 : f32 to vector<8x16xf32>
    %1804 = arith.mulf %1803, %1349 : vector<8x16xf32>
    %1805 = arith.addf %1801, %1804 : vector<8x16xf32>
    %c75_502 = arith.constant 75 : index
    %1806 = memref.load %arg7[%c75_502] : memref<216xf32, #tpu.memory_space<smem>>
    %1807 = vector.broadcast %1806 : f32 to vector<8x16xf32>
    %1808 = arith.mulf %1807, %1351 : vector<8x16xf32>
    %1809 = arith.addf %1805, %1808 : vector<8x16xf32>
    %c76_503 = arith.constant 76 : index
    %1810 = memref.load %arg7[%c76_503] : memref<216xf32, #tpu.memory_space<smem>>
    %1811 = vector.broadcast %1810 : f32 to vector<8x16xf32>
    %1812 = arith.mulf %1811, %1353 : vector<8x16xf32>
    %1813 = arith.addf %1809, %1812 : vector<8x16xf32>
    %c77_504 = arith.constant 77 : index
    %1814 = memref.load %arg7[%c77_504] : memref<216xf32, #tpu.memory_space<smem>>
    %1815 = vector.broadcast %1814 : f32 to vector<8x16xf32>
    %1816 = arith.mulf %1815, %1355 : vector<8x16xf32>
    %1817 = arith.addf %1813, %1816 : vector<8x16xf32>
    %c78_505 = arith.constant 78 : index
    %1818 = memref.load %arg7[%c78_505] : memref<216xf32, #tpu.memory_space<smem>>
    %1819 = vector.broadcast %1818 : f32 to vector<8x16xf32>
    %1820 = arith.mulf %1819, %1357 : vector<8x16xf32>
    %1821 = arith.addf %1817, %1820 : vector<8x16xf32>
    %c79_506 = arith.constant 79 : index
    %1822 = memref.load %arg7[%c79_506] : memref<216xf32, #tpu.memory_space<smem>>
    %1823 = vector.broadcast %1822 : f32 to vector<8x16xf32>
    %1824 = arith.mulf %1823, %1359 : vector<8x16xf32>
    %1825 = arith.addf %1821, %1824 : vector<8x16xf32>
    %c80_507 = arith.constant 80 : index
    %1826 = memref.load %arg7[%c80_507] : memref<216xf32, #tpu.memory_space<smem>>
    %1827 = vector.broadcast %1826 : f32 to vector<8x16xf32>
    %1828 = arith.mulf %1827, %1361 : vector<8x16xf32>
    %1829 = arith.addf %1825, %1828 : vector<8x16xf32>
    %c81_508 = arith.constant 81 : index
    %1830 = memref.load %arg7[%c81_508] : memref<216xf32, #tpu.memory_space<smem>>
    %1831 = vector.broadcast %1830 : f32 to vector<8x16xf32>
    %1832 = arith.mulf %1831, %1363 : vector<8x16xf32>
    %1833 = arith.addf %1829, %1832 : vector<8x16xf32>
    %c82_509 = arith.constant 82 : index
    %1834 = memref.load %arg7[%c82_509] : memref<216xf32, #tpu.memory_space<smem>>
    %1835 = vector.broadcast %1834 : f32 to vector<8x16xf32>
    %1836 = arith.mulf %1835, %1365 : vector<8x16xf32>
    %1837 = arith.addf %1833, %1836 : vector<8x16xf32>
    %c83_510 = arith.constant 83 : index
    %1838 = memref.load %arg7[%c83_510] : memref<216xf32, #tpu.memory_space<smem>>
    %1839 = vector.broadcast %1838 : f32 to vector<8x16xf32>
    %1840 = arith.mulf %1839, %1367 : vector<8x16xf32>
    %1841 = arith.addf %1837, %1840 : vector<8x16xf32>
    %c84_511 = arith.constant 84 : index
    %1842 = memref.load %arg7[%c84_511] : memref<216xf32, #tpu.memory_space<smem>>
    %1843 = vector.broadcast %1842 : f32 to vector<8x16xf32>
    %1844 = arith.mulf %1843, %1369 : vector<8x16xf32>
    %1845 = arith.addf %1841, %1844 : vector<8x16xf32>
    %c85_512 = arith.constant 85 : index
    %1846 = memref.load %arg7[%c85_512] : memref<216xf32, #tpu.memory_space<smem>>
    %1847 = vector.broadcast %1846 : f32 to vector<8x16xf32>
    %1848 = arith.mulf %1847, %1371 : vector<8x16xf32>
    %1849 = arith.addf %1845, %1848 : vector<8x16xf32>
    %c86_513 = arith.constant 86 : index
    %1850 = memref.load %arg7[%c86_513] : memref<216xf32, #tpu.memory_space<smem>>
    %1851 = vector.broadcast %1850 : f32 to vector<8x16xf32>
    %1852 = arith.mulf %1851, %1373 : vector<8x16xf32>
    %1853 = arith.addf %1849, %1852 : vector<8x16xf32>
    %c87_514 = arith.constant 87 : index
    %1854 = memref.load %arg7[%c87_514] : memref<216xf32, #tpu.memory_space<smem>>
    %1855 = vector.broadcast %1854 : f32 to vector<8x16xf32>
    %1856 = arith.mulf %1855, %1375 : vector<8x16xf32>
    %1857 = arith.addf %1853, %1856 : vector<8x16xf32>
    %c88_515 = arith.constant 88 : index
    %1858 = memref.load %arg7[%c88_515] : memref<216xf32, #tpu.memory_space<smem>>
    %1859 = vector.broadcast %1858 : f32 to vector<8x16xf32>
    %1860 = arith.mulf %1859, %1377 : vector<8x16xf32>
    %1861 = arith.addf %1857, %1860 : vector<8x16xf32>
    %c89_516 = arith.constant 89 : index
    %1862 = memref.load %arg7[%c89_516] : memref<216xf32, #tpu.memory_space<smem>>
    %1863 = vector.broadcast %1862 : f32 to vector<8x16xf32>
    %1864 = arith.mulf %1863, %1379 : vector<8x16xf32>
    %1865 = arith.addf %1861, %1864 : vector<8x16xf32>
    %c90_517 = arith.constant 90 : index
    %1866 = memref.load %arg7[%c90_517] : memref<216xf32, #tpu.memory_space<smem>>
    %1867 = vector.broadcast %1866 : f32 to vector<8x16xf32>
    %1868 = arith.mulf %1867, %1381 : vector<8x16xf32>
    %1869 = arith.addf %1865, %1868 : vector<8x16xf32>
    %c91_518 = arith.constant 91 : index
    %1870 = memref.load %arg7[%c91_518] : memref<216xf32, #tpu.memory_space<smem>>
    %1871 = vector.broadcast %1870 : f32 to vector<8x16xf32>
    %1872 = arith.mulf %1871, %1383 : vector<8x16xf32>
    %1873 = arith.addf %1869, %1872 : vector<8x16xf32>
    %c92_519 = arith.constant 92 : index
    %1874 = memref.load %arg7[%c92_519] : memref<216xf32, #tpu.memory_space<smem>>
    %1875 = vector.broadcast %1874 : f32 to vector<8x16xf32>
    %1876 = arith.mulf %1875, %1385 : vector<8x16xf32>
    %1877 = arith.addf %1873, %1876 : vector<8x16xf32>
    %c93_520 = arith.constant 93 : index
    %1878 = memref.load %arg7[%c93_520] : memref<216xf32, #tpu.memory_space<smem>>
    %1879 = vector.broadcast %1878 : f32 to vector<8x16xf32>
    %1880 = arith.mulf %1879, %1387 : vector<8x16xf32>
    %1881 = arith.addf %1877, %1880 : vector<8x16xf32>
    %c94_521 = arith.constant 94 : index
    %1882 = memref.load %arg7[%c94_521] : memref<216xf32, #tpu.memory_space<smem>>
    %1883 = vector.broadcast %1882 : f32 to vector<8x16xf32>
    %1884 = arith.mulf %1883, %1389 : vector<8x16xf32>
    %1885 = arith.addf %1881, %1884 : vector<8x16xf32>
    %c95_522 = arith.constant 95 : index
    %1886 = memref.load %arg7[%c95_522] : memref<216xf32, #tpu.memory_space<smem>>
    %1887 = vector.broadcast %1886 : f32 to vector<8x16xf32>
    %1888 = arith.mulf %1887, %1391 : vector<8x16xf32>
    %1889 = arith.addf %1885, %1888 : vector<8x16xf32>
    %c96_523 = arith.constant 96 : index
    %1890 = memref.load %arg7[%c96_523] : memref<216xf32, #tpu.memory_space<smem>>
    %1891 = vector.broadcast %1890 : f32 to vector<8x16xf32>
    %1892 = arith.mulf %1891, %1393 : vector<8x16xf32>
    %1893 = arith.addf %1889, %1892 : vector<8x16xf32>
    %c97_524 = arith.constant 97 : index
    %1894 = memref.load %arg7[%c97_524] : memref<216xf32, #tpu.memory_space<smem>>
    %1895 = vector.broadcast %1894 : f32 to vector<8x16xf32>
    %1896 = arith.mulf %1895, %1395 : vector<8x16xf32>
    %1897 = arith.addf %1893, %1896 : vector<8x16xf32>
    %c98_525 = arith.constant 98 : index
    %1898 = memref.load %arg7[%c98_525] : memref<216xf32, #tpu.memory_space<smem>>
    %1899 = vector.broadcast %1898 : f32 to vector<8x16xf32>
    %1900 = arith.mulf %1899, %1397 : vector<8x16xf32>
    %1901 = arith.addf %1897, %1900 : vector<8x16xf32>
    %c99_526 = arith.constant 99 : index
    %1902 = memref.load %arg7[%c99_526] : memref<216xf32, #tpu.memory_space<smem>>
    %1903 = vector.broadcast %1902 : f32 to vector<8x16xf32>
    %1904 = arith.mulf %1903, %1399 : vector<8x16xf32>
    %1905 = arith.addf %1901, %1904 : vector<8x16xf32>
    %c100_527 = arith.constant 100 : index
    %1906 = memref.load %arg7[%c100_527] : memref<216xf32, #tpu.memory_space<smem>>
    %1907 = vector.broadcast %1906 : f32 to vector<8x16xf32>
    %1908 = arith.mulf %1907, %1401 : vector<8x16xf32>
    %1909 = arith.addf %1905, %1908 : vector<8x16xf32>
    %c101_528 = arith.constant 101 : index
    %1910 = memref.load %arg7[%c101_528] : memref<216xf32, #tpu.memory_space<smem>>
    %1911 = vector.broadcast %1910 : f32 to vector<8x16xf32>
    %1912 = arith.mulf %1911, %1403 : vector<8x16xf32>
    %1913 = arith.addf %1909, %1912 : vector<8x16xf32>
    %c102_529 = arith.constant 102 : index
    %1914 = memref.load %arg7[%c102_529] : memref<216xf32, #tpu.memory_space<smem>>
    %1915 = vector.broadcast %1914 : f32 to vector<8x16xf32>
    %1916 = arith.mulf %1915, %1405 : vector<8x16xf32>
    %1917 = arith.addf %1913, %1916 : vector<8x16xf32>
    %c103_530 = arith.constant 103 : index
    %1918 = memref.load %arg7[%c103_530] : memref<216xf32, #tpu.memory_space<smem>>
    %1919 = vector.broadcast %1918 : f32 to vector<8x16xf32>
    %1920 = arith.mulf %1919, %1407 : vector<8x16xf32>
    %1921 = arith.addf %1917, %1920 : vector<8x16xf32>
    %c104_531 = arith.constant 104 : index
    %1922 = memref.load %arg7[%c104_531] : memref<216xf32, #tpu.memory_space<smem>>
    %1923 = vector.broadcast %1922 : f32 to vector<8x16xf32>
    %1924 = arith.mulf %1923, %1409 : vector<8x16xf32>
    %1925 = arith.addf %1921, %1924 : vector<8x16xf32>
    %c105_532 = arith.constant 105 : index
    %1926 = memref.load %arg7[%c105_532] : memref<216xf32, #tpu.memory_space<smem>>
    %1927 = vector.broadcast %1926 : f32 to vector<8x16xf32>
    %1928 = arith.mulf %1927, %1411 : vector<8x16xf32>
    %1929 = arith.addf %1925, %1928 : vector<8x16xf32>
    %c106_533 = arith.constant 106 : index
    %1930 = memref.load %arg7[%c106_533] : memref<216xf32, #tpu.memory_space<smem>>
    %1931 = vector.broadcast %1930 : f32 to vector<8x16xf32>
    %1932 = arith.mulf %1931, %1413 : vector<8x16xf32>
    %1933 = arith.addf %1929, %1932 : vector<8x16xf32>
    %c107_534 = arith.constant 107 : index
    %1934 = memref.load %arg7[%c107_534] : memref<216xf32, #tpu.memory_space<smem>>
    %1935 = vector.broadcast %1934 : f32 to vector<8x16xf32>
    %1936 = arith.mulf %1935, %1415 : vector<8x16xf32>
    %1937 = arith.addf %1933, %1936 : vector<8x16xf32>
    %c108_535 = arith.constant 108 : index
    %1938 = memref.load %arg7[%c108_535] : memref<216xf32, #tpu.memory_space<smem>>
    %1939 = vector.broadcast %1938 : f32 to vector<8x16xf32>
    %1940 = arith.mulf %1939, %1417 : vector<8x16xf32>
    %1941 = arith.addf %1937, %1940 : vector<8x16xf32>
    %c109_536 = arith.constant 109 : index
    %1942 = memref.load %arg7[%c109_536] : memref<216xf32, #tpu.memory_space<smem>>
    %1943 = vector.broadcast %1942 : f32 to vector<8x16xf32>
    %1944 = arith.mulf %1943, %1419 : vector<8x16xf32>
    %1945 = arith.addf %1941, %1944 : vector<8x16xf32>
    %c110_537 = arith.constant 110 : index
    %1946 = memref.load %arg7[%c110_537] : memref<216xf32, #tpu.memory_space<smem>>
    %1947 = vector.broadcast %1946 : f32 to vector<8x16xf32>
    %1948 = arith.mulf %1947, %1421 : vector<8x16xf32>
    %1949 = arith.addf %1945, %1948 : vector<8x16xf32>
    %c111_538 = arith.constant 111 : index
    %1950 = memref.load %arg7[%c111_538] : memref<216xf32, #tpu.memory_space<smem>>
    %1951 = vector.broadcast %1950 : f32 to vector<8x16xf32>
    %1952 = arith.mulf %1951, %1423 : vector<8x16xf32>
    %1953 = arith.addf %1949, %1952 : vector<8x16xf32>
    %c112_539 = arith.constant 112 : index
    %1954 = memref.load %arg7[%c112_539] : memref<216xf32, #tpu.memory_space<smem>>
    %1955 = vector.broadcast %1954 : f32 to vector<8x16xf32>
    %1956 = arith.mulf %1955, %1425 : vector<8x16xf32>
    %1957 = arith.addf %1953, %1956 : vector<8x16xf32>
    %c113_540 = arith.constant 113 : index
    %1958 = memref.load %arg7[%c113_540] : memref<216xf32, #tpu.memory_space<smem>>
    %1959 = vector.broadcast %1958 : f32 to vector<8x16xf32>
    %1960 = arith.mulf %1959, %1427 : vector<8x16xf32>
    %1961 = arith.addf %1957, %1960 : vector<8x16xf32>
    %c114_541 = arith.constant 114 : index
    %1962 = memref.load %arg7[%c114_541] : memref<216xf32, #tpu.memory_space<smem>>
    %1963 = vector.broadcast %1962 : f32 to vector<8x16xf32>
    %1964 = arith.mulf %1963, %1429 : vector<8x16xf32>
    %1965 = arith.addf %1961, %1964 : vector<8x16xf32>
    %c115_542 = arith.constant 115 : index
    %1966 = memref.load %arg7[%c115_542] : memref<216xf32, #tpu.memory_space<smem>>
    %1967 = vector.broadcast %1966 : f32 to vector<8x16xf32>
    %1968 = arith.mulf %1967, %1431 : vector<8x16xf32>
    %1969 = arith.addf %1965, %1968 : vector<8x16xf32>
    %c116_543 = arith.constant 116 : index
    %1970 = memref.load %arg7[%c116_543] : memref<216xf32, #tpu.memory_space<smem>>
    %1971 = vector.broadcast %1970 : f32 to vector<8x16xf32>
    %1972 = arith.mulf %1971, %1433 : vector<8x16xf32>
    %1973 = arith.addf %1969, %1972 : vector<8x16xf32>
    %c117_544 = arith.constant 117 : index
    %1974 = memref.load %arg7[%c117_544] : memref<216xf32, #tpu.memory_space<smem>>
    %1975 = vector.broadcast %1974 : f32 to vector<8x16xf32>
    %1976 = arith.mulf %1975, %1435 : vector<8x16xf32>
    %1977 = arith.addf %1973, %1976 : vector<8x16xf32>
    %c118_545 = arith.constant 118 : index
    %1978 = memref.load %arg7[%c118_545] : memref<216xf32, #tpu.memory_space<smem>>
    %1979 = vector.broadcast %1978 : f32 to vector<8x16xf32>
    %1980 = arith.mulf %1979, %1437 : vector<8x16xf32>
    %1981 = arith.addf %1977, %1980 : vector<8x16xf32>
    %c119_546 = arith.constant 119 : index
    %1982 = memref.load %arg7[%c119_546] : memref<216xf32, #tpu.memory_space<smem>>
    %1983 = vector.broadcast %1982 : f32 to vector<8x16xf32>
    %1984 = arith.mulf %1983, %1439 : vector<8x16xf32>
    %1985 = arith.addf %1981, %1984 : vector<8x16xf32>
    %c120_547 = arith.constant 120 : index
    %1986 = memref.load %arg7[%c120_547] : memref<216xf32, #tpu.memory_space<smem>>
    %1987 = vector.broadcast %1986 : f32 to vector<8x16xf32>
    %1988 = arith.mulf %1987, %1441 : vector<8x16xf32>
    %1989 = arith.addf %1985, %1988 : vector<8x16xf32>
    %c121_548 = arith.constant 121 : index
    %1990 = memref.load %arg7[%c121_548] : memref<216xf32, #tpu.memory_space<smem>>
    %1991 = vector.broadcast %1990 : f32 to vector<8x16xf32>
    %1992 = arith.mulf %1991, %1443 : vector<8x16xf32>
    %1993 = arith.addf %1989, %1992 : vector<8x16xf32>
    %c122_549 = arith.constant 122 : index
    %1994 = memref.load %arg7[%c122_549] : memref<216xf32, #tpu.memory_space<smem>>
    %1995 = vector.broadcast %1994 : f32 to vector<8x16xf32>
    %1996 = arith.mulf %1995, %1445 : vector<8x16xf32>
    %1997 = arith.addf %1993, %1996 : vector<8x16xf32>
    %c123_550 = arith.constant 123 : index
    %1998 = memref.load %arg7[%c123_550] : memref<216xf32, #tpu.memory_space<smem>>
    %1999 = vector.broadcast %1998 : f32 to vector<8x16xf32>
    %2000 = arith.mulf %1999, %1447 : vector<8x16xf32>
    %2001 = arith.addf %1997, %2000 : vector<8x16xf32>
    %c124_551 = arith.constant 124 : index
    %2002 = memref.load %arg7[%c124_551] : memref<216xf32, #tpu.memory_space<smem>>
    %2003 = vector.broadcast %2002 : f32 to vector<8x16xf32>
    %2004 = arith.mulf %2003, %1449 : vector<8x16xf32>
    %2005 = arith.addf %2001, %2004 : vector<8x16xf32>
    %c125_552 = arith.constant 125 : index
    %2006 = memref.load %arg7[%c125_552] : memref<216xf32, #tpu.memory_space<smem>>
    %2007 = vector.broadcast %2006 : f32 to vector<8x16xf32>
    %2008 = arith.mulf %2007, %1451 : vector<8x16xf32>
    %2009 = arith.addf %2005, %2008 : vector<8x16xf32>
    %c126_553 = arith.constant 126 : index
    %2010 = memref.load %arg7[%c126_553] : memref<216xf32, #tpu.memory_space<smem>>
    %2011 = vector.broadcast %2010 : f32 to vector<8x16xf32>
    %2012 = arith.mulf %2011, %1453 : vector<8x16xf32>
    %2013 = arith.addf %2009, %2012 : vector<8x16xf32>
    %c127_554 = arith.constant 127 : index
    %2014 = memref.load %arg7[%c127_554] : memref<216xf32, #tpu.memory_space<smem>>
    %2015 = vector.broadcast %2014 : f32 to vector<8x16xf32>
    %2016 = arith.mulf %2015, %1455 : vector<8x16xf32>
    %2017 = arith.addf %2013, %2016 : vector<8x16xf32>
    %c128_555 = arith.constant 128 : index
    %2018 = memref.load %arg7[%c128_555] : memref<216xf32, #tpu.memory_space<smem>>
    %2019 = vector.broadcast %2018 : f32 to vector<8x16xf32>
    %2020 = arith.mulf %2019, %1457 : vector<8x16xf32>
    %2021 = arith.addf %2017, %2020 : vector<8x16xf32>
    %c129_556 = arith.constant 129 : index
    %2022 = memref.load %arg7[%c129_556] : memref<216xf32, #tpu.memory_space<smem>>
    %2023 = vector.broadcast %2022 : f32 to vector<8x16xf32>
    %2024 = arith.mulf %2023, %1459 : vector<8x16xf32>
    %2025 = arith.addf %2021, %2024 : vector<8x16xf32>
    %c130_557 = arith.constant 130 : index
    %2026 = memref.load %arg7[%c130_557] : memref<216xf32, #tpu.memory_space<smem>>
    %2027 = vector.broadcast %2026 : f32 to vector<8x16xf32>
    %2028 = arith.mulf %2027, %1461 : vector<8x16xf32>
    %2029 = arith.addf %2025, %2028 : vector<8x16xf32>
    %c131_558 = arith.constant 131 : index
    %2030 = memref.load %arg7[%c131_558] : memref<216xf32, #tpu.memory_space<smem>>
    %2031 = vector.broadcast %2030 : f32 to vector<8x16xf32>
    %2032 = arith.mulf %2031, %1463 : vector<8x16xf32>
    %2033 = arith.addf %2029, %2032 : vector<8x16xf32>
    %c132_559 = arith.constant 132 : index
    %2034 = memref.load %arg7[%c132_559] : memref<216xf32, #tpu.memory_space<smem>>
    %2035 = vector.broadcast %2034 : f32 to vector<8x16xf32>
    %2036 = arith.mulf %2035, %1465 : vector<8x16xf32>
    %2037 = arith.addf %2033, %2036 : vector<8x16xf32>
    %c133_560 = arith.constant 133 : index
    %2038 = memref.load %arg7[%c133_560] : memref<216xf32, #tpu.memory_space<smem>>
    %2039 = vector.broadcast %2038 : f32 to vector<8x16xf32>
    %2040 = arith.mulf %2039, %1467 : vector<8x16xf32>
    %2041 = arith.addf %2037, %2040 : vector<8x16xf32>
    %c134_561 = arith.constant 134 : index
    %2042 = memref.load %arg7[%c134_561] : memref<216xf32, #tpu.memory_space<smem>>
    %2043 = vector.broadcast %2042 : f32 to vector<8x16xf32>
    %2044 = arith.mulf %2043, %1469 : vector<8x16xf32>
    %2045 = arith.addf %2041, %2044 : vector<8x16xf32>
    %c135_562 = arith.constant 135 : index
    %2046 = memref.load %arg7[%c135_562] : memref<216xf32, #tpu.memory_space<smem>>
    %2047 = vector.broadcast %2046 : f32 to vector<8x16xf32>
    %2048 = arith.mulf %2047, %1471 : vector<8x16xf32>
    %2049 = arith.addf %2045, %2048 : vector<8x16xf32>
    %c136_563 = arith.constant 136 : index
    %2050 = memref.load %arg7[%c136_563] : memref<216xf32, #tpu.memory_space<smem>>
    %2051 = vector.broadcast %2050 : f32 to vector<8x16xf32>
    %2052 = arith.mulf %2051, %1473 : vector<8x16xf32>
    %2053 = arith.addf %2049, %2052 : vector<8x16xf32>
    %c137_564 = arith.constant 137 : index
    %2054 = memref.load %arg7[%c137_564] : memref<216xf32, #tpu.memory_space<smem>>
    %2055 = vector.broadcast %2054 : f32 to vector<8x16xf32>
    %2056 = arith.mulf %2055, %1475 : vector<8x16xf32>
    %2057 = arith.addf %2053, %2056 : vector<8x16xf32>
    %c138_565 = arith.constant 138 : index
    %2058 = memref.load %arg7[%c138_565] : memref<216xf32, #tpu.memory_space<smem>>
    %2059 = vector.broadcast %2058 : f32 to vector<8x16xf32>
    %2060 = arith.mulf %2059, %1477 : vector<8x16xf32>
    %2061 = arith.addf %2057, %2060 : vector<8x16xf32>
    %c139_566 = arith.constant 139 : index
    %2062 = memref.load %arg7[%c139_566] : memref<216xf32, #tpu.memory_space<smem>>
    %2063 = vector.broadcast %2062 : f32 to vector<8x16xf32>
    %2064 = arith.mulf %2063, %1479 : vector<8x16xf32>
    %2065 = arith.addf %2061, %2064 : vector<8x16xf32>
    %c140_567 = arith.constant 140 : index
    %2066 = memref.load %arg7[%c140_567] : memref<216xf32, #tpu.memory_space<smem>>
    %2067 = vector.broadcast %2066 : f32 to vector<8x16xf32>
    %2068 = arith.mulf %2067, %1481 : vector<8x16xf32>
    %2069 = arith.addf %2065, %2068 : vector<8x16xf32>
    %c141_568 = arith.constant 141 : index
    %2070 = memref.load %arg7[%c141_568] : memref<216xf32, #tpu.memory_space<smem>>
    %2071 = vector.broadcast %2070 : f32 to vector<8x16xf32>
    %2072 = arith.mulf %2071, %1483 : vector<8x16xf32>
    %2073 = arith.addf %2069, %2072 : vector<8x16xf32>
    %c142_569 = arith.constant 142 : index
    %2074 = memref.load %arg7[%c142_569] : memref<216xf32, #tpu.memory_space<smem>>
    %2075 = vector.broadcast %2074 : f32 to vector<8x16xf32>
    %2076 = arith.mulf %2075, %1485 : vector<8x16xf32>
    %2077 = arith.addf %2073, %2076 : vector<8x16xf32>
    %c143_570 = arith.constant 143 : index
    %2078 = memref.load %arg7[%c143_570] : memref<216xf32, #tpu.memory_space<smem>>
    %2079 = vector.broadcast %2078 : f32 to vector<8x16xf32>
    %2080 = arith.mulf %2079, %1487 : vector<8x16xf32>
    %2081 = arith.addf %2077, %2080 : vector<8x16xf32>
    %c1_571 = arith.constant 1 : index
    %c2_572 = arith.constant 2 : index
    %c1_573 = arith.constant 1 : index
    %2082 = vector.load %arg10[%c1_571, %c2_572, %c1_573] : memref<4x12x18xf32, #tpu.memory_space<vmem>>, vector<1x8x16xf32>
    %2083 = vector.shape_cast %2082 : vector<1x8x16xf32> to vector<8x16xf32>
    %cst_574 = arith.constant 5.000000e-01 : f32
    %2084 = vector.broadcast %cst_574 : f32 to vector<8x16xf32>
    %2085 = arith.mulf %2084, %2081 : vector<8x16xf32>
    %cst_575 = arith.constant 5.000000e-01 : f32
    %2086 = vector.broadcast %cst_575 : f32 to vector<8x16xf32>
    %2087 = arith.mulf %2086, %2083 : vector<8x16xf32>
    %2088 = arith.addf %2085, %2087 : vector<8x16xf32>
    %c0_576 = arith.constant 0 : index
    %c1_577 = arith.constant 1 : index
    %c0_578 = arith.constant 0 : index
    %c0_579 = arith.constant 0 : index
    %2089 = vector.load %arg9[%c0_576, %c1_577, %c0_578, %c0_579] : memref<1x3x8x16xf32, #tpu.memory_space<vmem>>, vector<1x1x8x16xf32>
    %2090 = vector.shape_cast %2089 : vector<1x1x8x16xf32> to vector<8x16xf32>
    %2091 = vector.shape_cast %2088 : vector<8x16xf32> to vector<1x1x8x16xf32>
    tpu.vector_store %arg9[%c0_576, %c1_577, %c0_578, %c0_579], %2091 {strides = array<i32>} : memref<1x3x8x16xf32, #tpu.memory_space<vmem>>, vector<1x1x8x16xf32>,
    %cst_580 = arith.constant 0.000000e+00 : f32
    %2092 = vector.broadcast %cst_580 : f32 to vector<8x16xf32>
    %c2_581 = arith.constant 2 : index
    %2093 = memref.load %arg8[%c2_581] : memref<3xf32, #tpu.memory_space<smem>>
    %2094 = vector.broadcast %2093 : f32 to vector<8x16xf32>
    %2095 = arith.addf %2092, %2094 : vector<8x16xf32>
    %c144_582 = arith.constant 144 : index
    %2096 = memref.load %arg7[%c144_582] : memref<216xf32, #tpu.memory_space<smem>>
    %2097 = vector.broadcast %2096 : f32 to vector<8x16xf32>
    %2098 = arith.mulf %2097, %1345 : vector<8x16xf32>
    %2099 = arith.addf %2095, %2098 : vector<8x16xf32>
    %c145_583 = arith.constant 145 : index
    %2100 = memref.load %arg7[%c145_583] : memref<216xf32, #tpu.memory_space<smem>>
    %2101 = vector.broadcast %2100 : f32 to vector<8x16xf32>
    %2102 = arith.mulf %2101, %1347 : vector<8x16xf32>
    %2103 = arith.addf %2099, %2102 : vector<8x16xf32>
    %c146_584 = arith.constant 146 : index
    %2104 = memref.load %arg7[%c146_584] : memref<216xf32, #tpu.memory_space<smem>>
    %2105 = vector.broadcast %2104 : f32 to vector<8x16xf32>
    %2106 = arith.mulf %2105, %1349 : vector<8x16xf32>
    %2107 = arith.addf %2103, %2106 : vector<8x16xf32>
    %c147_585 = arith.constant 147 : index
    %2108 = memref.load %arg7[%c147_585] : memref<216xf32, #tpu.memory_space<smem>>
    %2109 = vector.broadcast %2108 : f32 to vector<8x16xf32>
    %2110 = arith.mulf %2109, %1351 : vector<8x16xf32>
    %2111 = arith.addf %2107, %2110 : vector<8x16xf32>
    %c148_586 = arith.constant 148 : index
    %2112 = memref.load %arg7[%c148_586] : memref<216xf32, #tpu.memory_space<smem>>
    %2113 = vector.broadcast %2112 : f32 to vector<8x16xf32>
    %2114 = arith.mulf %2113, %1353 : vector<8x16xf32>
    %2115 = arith.addf %2111, %2114 : vector<8x16xf32>
    %c149_587 = arith.constant 149 : index
    %2116 = memref.load %arg7[%c149_587] : memref<216xf32, #tpu.memory_space<smem>>
    %2117 = vector.broadcast %2116 : f32 to vector<8x16xf32>
    %2118 = arith.mulf %2117, %1355 : vector<8x16xf32>
    %2119 = arith.addf %2115, %2118 : vector<8x16xf32>
    %c150_588 = arith.constant 150 : index
    %2120 = memref.load %arg7[%c150_588] : memref<216xf32, #tpu.memory_space<smem>>
    %2121 = vector.broadcast %2120 : f32 to vector<8x16xf32>
    %2122 = arith.mulf %2121, %1357 : vector<8x16xf32>
    %2123 = arith.addf %2119, %2122 : vector<8x16xf32>
    %c151_589 = arith.constant 151 : index
    %2124 = memref.load %arg7[%c151_589] : memref<216xf32, #tpu.memory_space<smem>>
    %2125 = vector.broadcast %2124 : f32 to vector<8x16xf32>
    %2126 = arith.mulf %2125, %1359 : vector<8x16xf32>
    %2127 = arith.addf %2123, %2126 : vector<8x16xf32>
    %c152_590 = arith.constant 152 : index
    %2128 = memref.load %arg7[%c152_590] : memref<216xf32, #tpu.memory_space<smem>>
    %2129 = vector.broadcast %2128 : f32 to vector<8x16xf32>
    %2130 = arith.mulf %2129, %1361 : vector<8x16xf32>
    %2131 = arith.addf %2127, %2130 : vector<8x16xf32>
    %c153_591 = arith.constant 153 : index
    %2132 = memref.load %arg7[%c153_591] : memref<216xf32, #tpu.memory_space<smem>>
    %2133 = vector.broadcast %2132 : f32 to vector<8x16xf32>
    %2134 = arith.mulf %2133, %1363 : vector<8x16xf32>
    %2135 = arith.addf %2131, %2134 : vector<8x16xf32>
    %c154_592 = arith.constant 154 : index
    %2136 = memref.load %arg7[%c154_592] : memref<216xf32, #tpu.memory_space<smem>>
    %2137 = vector.broadcast %2136 : f32 to vector<8x16xf32>
    %2138 = arith.mulf %2137, %1365 : vector<8x16xf32>
    %2139 = arith.addf %2135, %2138 : vector<8x16xf32>
    %c155_593 = arith.constant 155 : index
    %2140 = memref.load %arg7[%c155_593] : memref<216xf32, #tpu.memory_space<smem>>
    %2141 = vector.broadcast %2140 : f32 to vector<8x16xf32>
    %2142 = arith.mulf %2141, %1367 : vector<8x16xf32>
    %2143 = arith.addf %2139, %2142 : vector<8x16xf32>
    %c156_594 = arith.constant 156 : index
    %2144 = memref.load %arg7[%c156_594] : memref<216xf32, #tpu.memory_space<smem>>
    %2145 = vector.broadcast %2144 : f32 to vector<8x16xf32>
    %2146 = arith.mulf %2145, %1369 : vector<8x16xf32>
    %2147 = arith.addf %2143, %2146 : vector<8x16xf32>
    %c157_595 = arith.constant 157 : index
    %2148 = memref.load %arg7[%c157_595] : memref<216xf32, #tpu.memory_space<smem>>
    %2149 = vector.broadcast %2148 : f32 to vector<8x16xf32>
    %2150 = arith.mulf %2149, %1371 : vector<8x16xf32>
    %2151 = arith.addf %2147, %2150 : vector<8x16xf32>
    %c158_596 = arith.constant 158 : index
    %2152 = memref.load %arg7[%c158_596] : memref<216xf32, #tpu.memory_space<smem>>
    %2153 = vector.broadcast %2152 : f32 to vector<8x16xf32>
    %2154 = arith.mulf %2153, %1373 : vector<8x16xf32>
    %2155 = arith.addf %2151, %2154 : vector<8x16xf32>
    %c159_597 = arith.constant 159 : index
    %2156 = memref.load %arg7[%c159_597] : memref<216xf32, #tpu.memory_space<smem>>
    %2157 = vector.broadcast %2156 : f32 to vector<8x16xf32>
    %2158 = arith.mulf %2157, %1375 : vector<8x16xf32>
    %2159 = arith.addf %2155, %2158 : vector<8x16xf32>
    %c160_598 = arith.constant 160 : index
    %2160 = memref.load %arg7[%c160_598] : memref<216xf32, #tpu.memory_space<smem>>
    %2161 = vector.broadcast %2160 : f32 to vector<8x16xf32>
    %2162 = arith.mulf %2161, %1377 : vector<8x16xf32>
    %2163 = arith.addf %2159, %2162 : vector<8x16xf32>
    %c161_599 = arith.constant 161 : index
    %2164 = memref.load %arg7[%c161_599] : memref<216xf32, #tpu.memory_space<smem>>
    %2165 = vector.broadcast %2164 : f32 to vector<8x16xf32>
    %2166 = arith.mulf %2165, %1379 : vector<8x16xf32>
    %2167 = arith.addf %2163, %2166 : vector<8x16xf32>
    %c162_600 = arith.constant 162 : index
    %2168 = memref.load %arg7[%c162_600] : memref<216xf32, #tpu.memory_space<smem>>
    %2169 = vector.broadcast %2168 : f32 to vector<8x16xf32>
    %2170 = arith.mulf %2169, %1381 : vector<8x16xf32>
    %2171 = arith.addf %2167, %2170 : vector<8x16xf32>
    %c163_601 = arith.constant 163 : index
    %2172 = memref.load %arg7[%c163_601] : memref<216xf32, #tpu.memory_space<smem>>
    %2173 = vector.broadcast %2172 : f32 to vector<8x16xf32>
    %2174 = arith.mulf %2173, %1383 : vector<8x16xf32>
    %2175 = arith.addf %2171, %2174 : vector<8x16xf32>
    %c164_602 = arith.constant 164 : index
    %2176 = memref.load %arg7[%c164_602] : memref<216xf32, #tpu.memory_space<smem>>
    %2177 = vector.broadcast %2176 : f32 to vector<8x16xf32>
    %2178 = arith.mulf %2177, %1385 : vector<8x16xf32>
    %2179 = arith.addf %2175, %2178 : vector<8x16xf32>
    %c165_603 = arith.constant 165 : index
    %2180 = memref.load %arg7[%c165_603] : memref<216xf32, #tpu.memory_space<smem>>
    %2181 = vector.broadcast %2180 : f32 to vector<8x16xf32>
    %2182 = arith.mulf %2181, %1387 : vector<8x16xf32>
    %2183 = arith.addf %2179, %2182 : vector<8x16xf32>
    %c166_604 = arith.constant 166 : index
    %2184 = memref.load %arg7[%c166_604] : memref<216xf32, #tpu.memory_space<smem>>
    %2185 = vector.broadcast %2184 : f32 to vector<8x16xf32>
    %2186 = arith.mulf %2185, %1389 : vector<8x16xf32>
    %2187 = arith.addf %2183, %2186 : vector<8x16xf32>
    %c167_605 = arith.constant 167 : index
    %2188 = memref.load %arg7[%c167_605] : memref<216xf32, #tpu.memory_space<smem>>
    %2189 = vector.broadcast %2188 : f32 to vector<8x16xf32>
    %2190 = arith.mulf %2189, %1391 : vector<8x16xf32>
    %2191 = arith.addf %2187, %2190 : vector<8x16xf32>
    %c168_606 = arith.constant 168 : index
    %2192 = memref.load %arg7[%c168_606] : memref<216xf32, #tpu.memory_space<smem>>
    %2193 = vector.broadcast %2192 : f32 to vector<8x16xf32>
    %2194 = arith.mulf %2193, %1393 : vector<8x16xf32>
    %2195 = arith.addf %2191, %2194 : vector<8x16xf32>
    %c169_607 = arith.constant 169 : index
    %2196 = memref.load %arg7[%c169_607] : memref<216xf32, #tpu.memory_space<smem>>
    %2197 = vector.broadcast %2196 : f32 to vector<8x16xf32>
    %2198 = arith.mulf %2197, %1395 : vector<8x16xf32>
    %2199 = arith.addf %2195, %2198 : vector<8x16xf32>
    %c170_608 = arith.constant 170 : index
    %2200 = memref.load %arg7[%c170_608] : memref<216xf32, #tpu.memory_space<smem>>
    %2201 = vector.broadcast %2200 : f32 to vector<8x16xf32>
    %2202 = arith.mulf %2201, %1397 : vector<8x16xf32>
    %2203 = arith.addf %2199, %2202 : vector<8x16xf32>
    %c171_609 = arith.constant 171 : index
    %2204 = memref.load %arg7[%c171_609] : memref<216xf32, #tpu.memory_space<smem>>
    %2205 = vector.broadcast %2204 : f32 to vector<8x16xf32>
    %2206 = arith.mulf %2205, %1399 : vector<8x16xf32>
    %2207 = arith.addf %2203, %2206 : vector<8x16xf32>
    %c172_610 = arith.constant 172 : index
    %2208 = memref.load %arg7[%c172_610] : memref<216xf32, #tpu.memory_space<smem>>
    %2209 = vector.broadcast %2208 : f32 to vector<8x16xf32>
    %2210 = arith.mulf %2209, %1401 : vector<8x16xf32>
    %2211 = arith.addf %2207, %2210 : vector<8x16xf32>
    %c173_611 = arith.constant 173 : index
    %2212 = memref.load %arg7[%c173_611] : memref<216xf32, #tpu.memory_space<smem>>
    %2213 = vector.broadcast %2212 : f32 to vector<8x16xf32>
    %2214 = arith.mulf %2213, %1403 : vector<8x16xf32>
    %2215 = arith.addf %2211, %2214 : vector<8x16xf32>
    %c174_612 = arith.constant 174 : index
    %2216 = memref.load %arg7[%c174_612] : memref<216xf32, #tpu.memory_space<smem>>
    %2217 = vector.broadcast %2216 : f32 to vector<8x16xf32>
    %2218 = arith.mulf %2217, %1405 : vector<8x16xf32>
    %2219 = arith.addf %2215, %2218 : vector<8x16xf32>
    %c175_613 = arith.constant 175 : index
    %2220 = memref.load %arg7[%c175_613] : memref<216xf32, #tpu.memory_space<smem>>
    %2221 = vector.broadcast %2220 : f32 to vector<8x16xf32>
    %2222 = arith.mulf %2221, %1407 : vector<8x16xf32>
    %2223 = arith.addf %2219, %2222 : vector<8x16xf32>
    %c176_614 = arith.constant 176 : index
    %2224 = memref.load %arg7[%c176_614] : memref<216xf32, #tpu.memory_space<smem>>
    %2225 = vector.broadcast %2224 : f32 to vector<8x16xf32>
    %2226 = arith.mulf %2225, %1409 : vector<8x16xf32>
    %2227 = arith.addf %2223, %2226 : vector<8x16xf32>
    %c177_615 = arith.constant 177 : index
    %2228 = memref.load %arg7[%c177_615] : memref<216xf32, #tpu.memory_space<smem>>
    %2229 = vector.broadcast %2228 : f32 to vector<8x16xf32>
    %2230 = arith.mulf %2229, %1411 : vector<8x16xf32>
    %2231 = arith.addf %2227, %2230 : vector<8x16xf32>
    %c178_616 = arith.constant 178 : index
    %2232 = memref.load %arg7[%c178_616] : memref<216xf32, #tpu.memory_space<smem>>
    %2233 = vector.broadcast %2232 : f32 to vector<8x16xf32>
    %2234 = arith.mulf %2233, %1413 : vector<8x16xf32>
    %2235 = arith.addf %2231, %2234 : vector<8x16xf32>
    %c179_617 = arith.constant 179 : index
    %2236 = memref.load %arg7[%c179_617] : memref<216xf32, #tpu.memory_space<smem>>
    %2237 = vector.broadcast %2236 : f32 to vector<8x16xf32>
    %2238 = arith.mulf %2237, %1415 : vector<8x16xf32>
    %2239 = arith.addf %2235, %2238 : vector<8x16xf32>
    %c180_618 = arith.constant 180 : index
    %2240 = memref.load %arg7[%c180_618] : memref<216xf32, #tpu.memory_space<smem>>
    %2241 = vector.broadcast %2240 : f32 to vector<8x16xf32>
    %2242 = arith.mulf %2241, %1417 : vector<8x16xf32>
    %2243 = arith.addf %2239, %2242 : vector<8x16xf32>
    %c181_619 = arith.constant 181 : index
    %2244 = memref.load %arg7[%c181_619] : memref<216xf32, #tpu.memory_space<smem>>
    %2245 = vector.broadcast %2244 : f32 to vector<8x16xf32>
    %2246 = arith.mulf %2245, %1419 : vector<8x16xf32>
    %2247 = arith.addf %2243, %2246 : vector<8x16xf32>
    %c182_620 = arith.constant 182 : index
    %2248 = memref.load %arg7[%c182_620] : memref<216xf32, #tpu.memory_space<smem>>
    %2249 = vector.broadcast %2248 : f32 to vector<8x16xf32>
    %2250 = arith.mulf %2249, %1421 : vector<8x16xf32>
    %2251 = arith.addf %2247, %2250 : vector<8x16xf32>
    %c183_621 = arith.constant 183 : index
    %2252 = memref.load %arg7[%c183_621] : memref<216xf32, #tpu.memory_space<smem>>
    %2253 = vector.broadcast %2252 : f32 to vector<8x16xf32>
    %2254 = arith.mulf %2253, %1423 : vector<8x16xf32>
    %2255 = arith.addf %2251, %2254 : vector<8x16xf32>
    %c184_622 = arith.constant 184 : index
    %2256 = memref.load %arg7[%c184_622] : memref<216xf32, #tpu.memory_space<smem>>
    %2257 = vector.broadcast %2256 : f32 to vector<8x16xf32>
    %2258 = arith.mulf %2257, %1425 : vector<8x16xf32>
    %2259 = arith.addf %2255, %2258 : vector<8x16xf32>
    %c185_623 = arith.constant 185 : index
    %2260 = memref.load %arg7[%c185_623] : memref<216xf32, #tpu.memory_space<smem>>
    %2261 = vector.broadcast %2260 : f32 to vector<8x16xf32>
    %2262 = arith.mulf %2261, %1427 : vector<8x16xf32>
    %2263 = arith.addf %2259, %2262 : vector<8x16xf32>
    %c186_624 = arith.constant 186 : index
    %2264 = memref.load %arg7[%c186_624] : memref<216xf32, #tpu.memory_space<smem>>
    %2265 = vector.broadcast %2264 : f32 to vector<8x16xf32>
    %2266 = arith.mulf %2265, %1429 : vector<8x16xf32>
    %2267 = arith.addf %2263, %2266 : vector<8x16xf32>
    %c187_625 = arith.constant 187 : index
    %2268 = memref.load %arg7[%c187_625] : memref<216xf32, #tpu.memory_space<smem>>
    %2269 = vector.broadcast %2268 : f32 to vector<8x16xf32>
    %2270 = arith.mulf %2269, %1431 : vector<8x16xf32>
    %2271 = arith.addf %2267, %2270 : vector<8x16xf32>
    %c188_626 = arith.constant 188 : index
    %2272 = memref.load %arg7[%c188_626] : memref<216xf32, #tpu.memory_space<smem>>
    %2273 = vector.broadcast %2272 : f32 to vector<8x16xf32>
    %2274 = arith.mulf %2273, %1433 : vector<8x16xf32>
    %2275 = arith.addf %2271, %2274 : vector<8x16xf32>
    %c189_627 = arith.constant 189 : index
    %2276 = memref.load %arg7[%c189_627] : memref<216xf32, #tpu.memory_space<smem>>
    %2277 = vector.broadcast %2276 : f32 to vector<8x16xf32>
    %2278 = arith.mulf %2277, %1435 : vector<8x16xf32>
    %2279 = arith.addf %2275, %2278 : vector<8x16xf32>
    %c190_628 = arith.constant 190 : index
    %2280 = memref.load %arg7[%c190_628] : memref<216xf32, #tpu.memory_space<smem>>
    %2281 = vector.broadcast %2280 : f32 to vector<8x16xf32>
    %2282 = arith.mulf %2281, %1437 : vector<8x16xf32>
    %2283 = arith.addf %2279, %2282 : vector<8x16xf32>
    %c191_629 = arith.constant 191 : index
    %2284 = memref.load %arg7[%c191_629] : memref<216xf32, #tpu.memory_space<smem>>
    %2285 = vector.broadcast %2284 : f32 to vector<8x16xf32>
    %2286 = arith.mulf %2285, %1439 : vector<8x16xf32>
    %2287 = arith.addf %2283, %2286 : vector<8x16xf32>
    %c192_630 = arith.constant 192 : index
    %2288 = memref.load %arg7[%c192_630] : memref<216xf32, #tpu.memory_space<smem>>
    %2289 = vector.broadcast %2288 : f32 to vector<8x16xf32>
    %2290 = arith.mulf %2289, %1441 : vector<8x16xf32>
    %2291 = arith.addf %2287, %2290 : vector<8x16xf32>
    %c193_631 = arith.constant 193 : index
    %2292 = memref.load %arg7[%c193_631] : memref<216xf32, #tpu.memory_space<smem>>
    %2293 = vector.broadcast %2292 : f32 to vector<8x16xf32>
    %2294 = arith.mulf %2293, %1443 : vector<8x16xf32>
    %2295 = arith.addf %2291, %2294 : vector<8x16xf32>
    %c194_632 = arith.constant 194 : index
    %2296 = memref.load %arg7[%c194_632] : memref<216xf32, #tpu.memory_space<smem>>
    %2297 = vector.broadcast %2296 : f32 to vector<8x16xf32>
    %2298 = arith.mulf %2297, %1445 : vector<8x16xf32>
    %2299 = arith.addf %2295, %2298 : vector<8x16xf32>
    %c195_633 = arith.constant 195 : index
    %2300 = memref.load %arg7[%c195_633] : memref<216xf32, #tpu.memory_space<smem>>
    %2301 = vector.broadcast %2300 : f32 to vector<8x16xf32>
    %2302 = arith.mulf %2301, %1447 : vector<8x16xf32>
    %2303 = arith.addf %2299, %2302 : vector<8x16xf32>
    %c196_634 = arith.constant 196 : index
    %2304 = memref.load %arg7[%c196_634] : memref<216xf32, #tpu.memory_space<smem>>
    %2305 = vector.broadcast %2304 : f32 to vector<8x16xf32>
    %2306 = arith.mulf %2305, %1449 : vector<8x16xf32>
    %2307 = arith.addf %2303, %2306 : vector<8x16xf32>
    %c197_635 = arith.constant 197 : index
    %2308 = memref.load %arg7[%c197_635] : memref<216xf32, #tpu.memory_space<smem>>
    %2309 = vector.broadcast %2308 : f32 to vector<8x16xf32>
    %2310 = arith.mulf %2309, %1451 : vector<8x16xf32>
    %2311 = arith.addf %2307, %2310 : vector<8x16xf32>
    %c198_636 = arith.constant 198 : index
    %2312 = memref.load %arg7[%c198_636] : memref<216xf32, #tpu.memory_space<smem>>
    %2313 = vector.broadcast %2312 : f32 to vector<8x16xf32>
    %2314 = arith.mulf %2313, %1453 : vector<8x16xf32>
    %2315 = arith.addf %2311, %2314 : vector<8x16xf32>
    %c199_637 = arith.constant 199 : index
    %2316 = memref.load %arg7[%c199_637] : memref<216xf32, #tpu.memory_space<smem>>
    %2317 = vector.broadcast %2316 : f32 to vector<8x16xf32>
    %2318 = arith.mulf %2317, %1455 : vector<8x16xf32>
    %2319 = arith.addf %2315, %2318 : vector<8x16xf32>
    %c200_638 = arith.constant 200 : index
    %2320 = memref.load %arg7[%c200_638] : memref<216xf32, #tpu.memory_space<smem>>
    %2321 = vector.broadcast %2320 : f32 to vector<8x16xf32>
    %2322 = arith.mulf %2321, %1457 : vector<8x16xf32>
    %2323 = arith.addf %2319, %2322 : vector<8x16xf32>
    %c201_639 = arith.constant 201 : index
    %2324 = memref.load %arg7[%c201_639] : memref<216xf32, #tpu.memory_space<smem>>
    %2325 = vector.broadcast %2324 : f32 to vector<8x16xf32>
    %2326 = arith.mulf %2325, %1459 : vector<8x16xf32>
    %2327 = arith.addf %2323, %2326 : vector<8x16xf32>
    %c202_640 = arith.constant 202 : index
    %2328 = memref.load %arg7[%c202_640] : memref<216xf32, #tpu.memory_space<smem>>
    %2329 = vector.broadcast %2328 : f32 to vector<8x16xf32>
    %2330 = arith.mulf %2329, %1461 : vector<8x16xf32>
    %2331 = arith.addf %2327, %2330 : vector<8x16xf32>
    %c203_641 = arith.constant 203 : index
    %2332 = memref.load %arg7[%c203_641] : memref<216xf32, #tpu.memory_space<smem>>
    %2333 = vector.broadcast %2332 : f32 to vector<8x16xf32>
    %2334 = arith.mulf %2333, %1463 : vector<8x16xf32>
    %2335 = arith.addf %2331, %2334 : vector<8x16xf32>
    %c204_642 = arith.constant 204 : index
    %2336 = memref.load %arg7[%c204_642] : memref<216xf32, #tpu.memory_space<smem>>
    %2337 = vector.broadcast %2336 : f32 to vector<8x16xf32>
    %2338 = arith.mulf %2337, %1465 : vector<8x16xf32>
    %2339 = arith.addf %2335, %2338 : vector<8x16xf32>
    %c205_643 = arith.constant 205 : index
    %2340 = memref.load %arg7[%c205_643] : memref<216xf32, #tpu.memory_space<smem>>
    %2341 = vector.broadcast %2340 : f32 to vector<8x16xf32>
    %2342 = arith.mulf %2341, %1467 : vector<8x16xf32>
    %2343 = arith.addf %2339, %2342 : vector<8x16xf32>
    %c206_644 = arith.constant 206 : index
    %2344 = memref.load %arg7[%c206_644] : memref<216xf32, #tpu.memory_space<smem>>
    %2345 = vector.broadcast %2344 : f32 to vector<8x16xf32>
    %2346 = arith.mulf %2345, %1469 : vector<8x16xf32>
    %2347 = arith.addf %2343, %2346 : vector<8x16xf32>
    %c207_645 = arith.constant 207 : index
    %2348 = memref.load %arg7[%c207_645] : memref<216xf32, #tpu.memory_space<smem>>
    %2349 = vector.broadcast %2348 : f32 to vector<8x16xf32>
    %2350 = arith.mulf %2349, %1471 : vector<8x16xf32>
    %2351 = arith.addf %2347, %2350 : vector<8x16xf32>
    %c208_646 = arith.constant 208 : index
    %2352 = memref.load %arg7[%c208_646] : memref<216xf32, #tpu.memory_space<smem>>
    %2353 = vector.broadcast %2352 : f32 to vector<8x16xf32>
    %2354 = arith.mulf %2353, %1473 : vector<8x16xf32>
    %2355 = arith.addf %2351, %2354 : vector<8x16xf32>
    %c209_647 = arith.constant 209 : index
    %2356 = memref.load %arg7[%c209_647] : memref<216xf32, #tpu.memory_space<smem>>
    %2357 = vector.broadcast %2356 : f32 to vector<8x16xf32>
    %2358 = arith.mulf %2357, %1475 : vector<8x16xf32>
    %2359 = arith.addf %2355, %2358 : vector<8x16xf32>
    %c210_648 = arith.constant 210 : index
    %2360 = memref.load %arg7[%c210_648] : memref<216xf32, #tpu.memory_space<smem>>
    %2361 = vector.broadcast %2360 : f32 to vector<8x16xf32>
    %2362 = arith.mulf %2361, %1477 : vector<8x16xf32>
    %2363 = arith.addf %2359, %2362 : vector<8x16xf32>
    %c211_649 = arith.constant 211 : index
    %2364 = memref.load %arg7[%c211_649] : memref<216xf32, #tpu.memory_space<smem>>
    %2365 = vector.broadcast %2364 : f32 to vector<8x16xf32>
    %2366 = arith.mulf %2365, %1479 : vector<8x16xf32>
    %2367 = arith.addf %2363, %2366 : vector<8x16xf32>
    %c212_650 = arith.constant 212 : index
    %2368 = memref.load %arg7[%c212_650] : memref<216xf32, #tpu.memory_space<smem>>
    %2369 = vector.broadcast %2368 : f32 to vector<8x16xf32>
    %2370 = arith.mulf %2369, %1481 : vector<8x16xf32>
    %2371 = arith.addf %2367, %2370 : vector<8x16xf32>
    %c213_651 = arith.constant 213 : index
    %2372 = memref.load %arg7[%c213_651] : memref<216xf32, #tpu.memory_space<smem>>
    %2373 = vector.broadcast %2372 : f32 to vector<8x16xf32>
    %2374 = arith.mulf %2373, %1483 : vector<8x16xf32>
    %2375 = arith.addf %2371, %2374 : vector<8x16xf32>
    %c214_652 = arith.constant 214 : index
    %2376 = memref.load %arg7[%c214_652] : memref<216xf32, #tpu.memory_space<smem>>
    %2377 = vector.broadcast %2376 : f32 to vector<8x16xf32>
    %2378 = arith.mulf %2377, %1485 : vector<8x16xf32>
    %2379 = arith.addf %2375, %2378 : vector<8x16xf32>
    %c215_653 = arith.constant 215 : index
    %2380 = memref.load %arg7[%c215_653] : memref<216xf32, #tpu.memory_space<smem>>
    %2381 = vector.broadcast %2380 : f32 to vector<8x16xf32>
    %2382 = arith.mulf %2381, %1487 : vector<8x16xf32>
    %2383 = arith.addf %2379, %2382 : vector<8x16xf32>
    %c2_654 = arith.constant 2 : index
    %c2_655 = arith.constant 2 : index
    %c1_656 = arith.constant 1 : index
    %2384 = vector.load %arg10[%c2_654, %c2_655, %c1_656] : memref<4x12x18xf32, #tpu.memory_space<vmem>>, vector<1x8x16xf32>
    %2385 = vector.shape_cast %2384 : vector<1x8x16xf32> to vector<8x16xf32>
    %cst_657 = arith.constant 5.000000e-01 : f32
    %2386 = vector.broadcast %cst_657 : f32 to vector<8x16xf32>
    %2387 = arith.mulf %2386, %2383 : vector<8x16xf32>
    %cst_658 = arith.constant 5.000000e-01 : f32
    %2388 = vector.broadcast %cst_658 : f32 to vector<8x16xf32>
    %2389 = arith.mulf %2388, %2385 : vector<8x16xf32>
    %2390 = arith.addf %2387, %2389 : vector<8x16xf32>
    %c0_659 = arith.constant 0 : index
    %c2_660 = arith.constant 2 : index
    %c0_661 = arith.constant 0 : index
    %c0_662 = arith.constant 0 : index
    %2391 = vector.load %arg9[%c0_659, %c2_660, %c0_661, %c0_662] : memref<1x3x8x16xf32, #tpu.memory_space<vmem>>, vector<1x1x8x16xf32>
    %2392 = vector.shape_cast %2391 : vector<1x1x8x16xf32> to vector<8x16xf32>
    %2393 = vector.shape_cast %2390 : vector<8x16xf32> to vector<1x1x8x16xf32>
    tpu.vector_store %arg9[%c0_659, %c2_660, %c0_661, %c0_662], %2393 {strides = array<i32>} : memref<1x3x8x16xf32, #tpu.memory_space<vmem>>, vector<1x1x8x16xf32>,
    return
  }
  func.func @transform_0(%arg0: i32, %arg1: i32) -> (i32, i32, i32, i32) {
    %c0_i32 = arith.constant 0 : i32
    %c0_i32_0 = arith.constant 0 : i32
    %c0_i32_1 = arith.constant 0 : i32
    %c0_i32_2 = arith.constant 0 : i32
    return %arg0, %c0_i32, %c0_i32_0, %c0_i32_1 : i32, i32, i32, i32
  }
  func.func @transform_1(%arg0: i32, %arg1: i32) -> (i32, i32, i32, i32) {
    %c0_i32 = arith.constant 0 : i32
    %c0_i32_0 = arith.constant 0 : i32
    %c0_i32_1 = arith.constant 0 : i32
    %c0_i32_2 = arith.constant 0 : i32
    return %arg0, %c0_i32, %c0_i32_0, %c0_i32_1 : i32, i32, i32, i32
  }
  func.func @transform_2(%arg0: i32, %arg1: i32) -> (i32, i32, i32, i32) {
    %c0_i32 = arith.constant 0 : i32
    %c0_i32_0 = arith.constant 0 : i32
    %c0_i32_1 = arith.constant 0 : i32
    %c0_i32_2 = arith.constant 0 : i32
    return %arg0, %c0_i32, %c0_i32_0, %c0_i32_1 : i32, i32, i32, i32
  }
  func.func @transform_3(%arg0: i32, %arg1: i32) -> i32 {
    %c0_i32 = arith.constant 0 : i32
    %c0_i32_0 = arith.constant 0 : i32
    return %c0_i32 : i32
  }
  func.func @transform_4(%arg0: i32, %arg1: i32) -> i32 {
    %c0_i32 = arith.constant 0 : i32
    %c0_i32_0 = arith.constant 0 : i32
    return %c0_i32 : i32
  }
  func.func @transform_5(%arg0: i32, %arg1: i32) -> i32 {
    %c0_i32 = arith.constant 0 : i32
    %c0_i32_0 = arith.constant 0 : i32
    return %c0_i32 : i32
  }
  func.func @transform_6(%arg0: i32, %arg1: i32) -> i32 {
    %c0_i32 = arith.constant 0 : i32
    %c0_i32_0 = arith.constant 0 : i32
    return %c0_i32 : i32
  }
  func.func @transform_7(%arg0: i32, %arg1: i32) -> (i32, i32, i32, i32) {
    %c0_i32 = arith.constant 0 : i32
    %c0_i32_0 = arith.constant 0 : i32
    %c0_i32_1 = arith.constant 0 : i32
    return %arg0, %c0_i32, %arg1, %c0_i32_0 : i32, i32, i32, i32
  }
}

</mosaic_0001>

<llo_original>
// kernel: tpu_custom_call.1
$region0: #{tpu_custom_call.1}
  #allocation0 [shape = 'u32[]', space=smem, size = 0x4, offset = 0x4, fixed_abs, tag = 'smem constant byte address 0x4 - core index']
  #allocation1 [shape = 'u32[144,128]{1,0:T(1,128)}', space=vmem, size = 0x12000, scoped, tag = 'internal scratch']
  #allocation2 [shape = 'f32[4,12,18]{2,1,0:T(8,128)}', space=vmem, size = 0x8000, scoped, tag = 'scratch operand']
  #allocation3 [shape = 'f32[8,10,18]{2,1,0:T(8,128)}', space=vmem, size = 0x10000, scoped, tag = 'scratch operand']
  %s0 = inlined_call_operand.hbm [shape: f32[2,3,16,16], index: 0, kind: input, shape index: {}]
  %s1 = inlined_call_operand.hbm [shape: f32[2,3,16,16], index: 1, kind: input, shape index: {}]
  %s2 = inlined_call_operand.hbm [shape: f32[2,3,16,16], index: 2, kind: input, shape index: {}]
  %s3 = inlined_call_operand.vmem [shape: f32[288], index: 3, kind: input, shape index: {}]
  %s4 = inlined_call_operand.vmem [shape: f32[8], index: 4, kind: input, shape index: {}]
  %s5 = inlined_call_operand.vmem [shape: f32[216], index: 5, kind: input, shape index: {}]
  %s6 = inlined_call_operand.vmem [shape: f32[3], index: 6, kind: input, shape index: {}]
  %s7 = inlined_call_operand.hbm [shape: f32[2,3,16,16], index: 7, kind: output, shape index: {}]
  %s8 = sld [smem:[#allocation0]]
  $region113: #{tpu_custom_call.1} parent=0
    _
  %s10 = ssub.s32 1, %s8
  %s11 = scalar_select 0, %s10, %s8
  $region1: #{tpu_custom_call.1} parent=0
    #allocation4 [shape = 'u8[49152]{0}', space=vmem, size = 0xc000, scoped, tag = 'input window, operand 0']
    #allocation5 [shape = 's32[2]{0}', space=sflag, size = 0x8, scoped, tag = 'scoped memory for tpu_custom_call.1']
    #allocation6 [shape = 's32[2]{0}', space=sflag, size = 0x8, scoped, tag = 'scoped memory for tpu_custom_call.1']
    #allocation7 [shape = 's32[2]{0}', space=sflag, size = 0x8, scoped, tag = 'scoped memory for tpu_custom_call.1']
    #allocation8 [shape = 'u8[49152]{0}', space=vmem, size = 0xc000, scoped, tag = 'input window, operand 1']
    #allocation9 [shape = 's32[2]{0}', space=sflag, size = 0x8, scoped, tag = 'scoped memory for tpu_custom_call.1']
    #allocation10 [shape = 'u8[49152]{0}', space=vmem, size = 0xc000, scoped, tag = 'input window, operand 2']
    #allocation11 [shape = 'u8[1536]{0}', space=smem, size = 0x600, scoped, tag = 'input window, operand 3, single buffered']
    #allocation12 [shape = 'u8[512]{0}', space=smem, size = 0x200, scoped, tag = 'input window, operand 4, single buffered']
    #allocation13 [shape = 's32[1]{0}', space=sflag, size = 0x4, scoped, tag = 'scoped memory for tpu_custom_call.1']
    #allocation14 [shape = 'u8[1024]{0}', space=smem, size = 0x400, scoped, tag = 'input window, operand 5, single buffered']
    #allocation15 [shape = 'u8[512]{0}', space=smem, size = 0x200, scoped, tag = 'input window, operand 6, single buffered']
    #allocation16 [shape = 's32[1]{0}', space=sflag, size = 0x4, scoped, tag = 'scoped memory for tpu_custom_call.1']
    #allocation17 [shape = 'u8[24576]{0}', space=vmem, size = 0x6000, scoped, tag = 'output window, operand 0']
    %12 = vsyncpa [#allocation5], 0
    %s13 = scalar_lea.sflag [#allocation5], 1
    %14 = vsyncpa %s13, 0
    %15 = vsyncpa [#allocation9], 0
    %s16 = scalar_lea.sflag [#allocation9], 1
    %17 = vsyncpa %s16, 0
    %18 = vsyncpa [#allocation7], 0
    %19 = vsyncpa [#allocation13], 0
    %20 = vsyncpa [#allocation16], 0
    %21 = vsyncpa [#allocation6], 0
    %s22 = scalar_lea.sflag [#allocation6], 1
    %23 = vsyncpa %s22, 0
    loop: start=0, step=1, limit=6
    $region2: #{tpu_custom_call.1} parent=1 // loop_pre_header
      _
    $region3: #{tpu_custom_call.1} parent=1 // loop_header
      %s25 = sphi 0, %s29
      %p26 = scmp.ge.s32.totalorder %s25, 6
      %s32 = sphi 0, %s44
      %s33 = sphi 0, %s40
      %s34 = sphi 0, %s32
      %s35 = sphi 0, %s33
      %s36 = sphi 0, %s34
      %s37 = sphi 0, %s35
      %s47 = sphi 0, %s49
      %s50 = sphi 0, %s47
      %s51 = sphi 0, %s50
      %s67 = sphi 0, %s51
      %s73 = sphi 0, %s75
      %s76 = sphi 0, %s73
      %s77 = sphi 0, %s76
      %s93 = sphi 0, %s77
      %s99 = sphi 0, %s101
      %s102 = sphi 0, %s99
      %s103 = sphi 0, %s102
      %s119 = sphi 0, %s103
      %s123 = sphi 0, %s123
      %s125 = sphi 0, %s123
      %s126 = sphi 0, %s125
      %s140 = sphi 0, %s126
      %s144 = sphi 0, %s144
      %s146 = sphi 0, %s144
      %s147 = sphi 0, %s146
      %s161 = sphi 0, %s147
      %s165 = sphi 0, %s165
      %s167 = sphi 0, %s165
      %s168 = sphi 0, %s167
      %s182 = sphi 0, %s168
      %s186 = sphi 0, %s186
      %s188 = sphi 0, %s186
      %s189 = sphi 0, %s188
      %s203 = sphi 0, %s189
      %s211 = sphi 0, %s213
      %s214 = sphi 0, %s211
      %s215 = sphi 0, %s214
      %s231 = sphi 0, %s215
    $region4: #{tpu_custom_call.1} parent=1 // loop_header_branch
      %28 = sbr.rel (%p26) target = $region8
    $region5: #{tpu_custom_call.1} parent=1 // loop_body
      %s30 = ssub.s32 %s25, 1
      %s31 = ssub.s32 %s25, 2
      %s38 = sadd.s32 1, %s33
      %p39 = scmp.ge.s32.totalorder %s38, 2
      %s40 = scalar_select %p39, 0, %s38
      %s41 = sadd.s32 1, %s32
      %s42 = scalar_select %p39, %s41, %s32
      %p43 = scmp.ge.s32.totalorder %s42, 2
      %s44 = scalar_select %p43, 0, %s42
      %s45 = ssub.s32 %s32, %s44
      %p46 = scmp.eq.s32.totalorder %s45, 0
      %s48 = sadd.s32 %s47, 1
      %s49 = scalar_select %p46, %s47, %s48
      %p52 = pneg %p46
      %p53 = scmp.eq.s32.totalorder %s25, 3
      %p54 = por %p52, %p53
      %p55 = scmp.ne.s32.totalorder %s47, %s50
      %p56 = scmp.eq.s32.totalorder %s25, 0
      %p57 = por %p55, %p56
      %p58 = scmp.ne.s32.totalorder %s47, %s50
      %p59 = scmp.eq.s32.totalorder %s30, 3
      %p60 = por %p58, %p59
      %p61 = scmp.ne.s32.totalorder %s50, %s51
      %p62 = scmp.eq.s32.totalorder %s30, 0
      %p63 = por %p61, %p62
      %p64 = scmp.ne.s32.totalorder %s50, %s51
      %p65 = scmp.eq.s32.totalorder %s31, 3
      %p66 = por %p64, %p65
      %p68 = scmp.ne.s32.totalorder %s51, %s67
      %p69 = scmp.eq.s32.totalorder %s31, 0
      %p70 = por %p68, %p69
      %s71 = ssub.s32 %s32, %s44
      %p72 = scmp.eq.s32.totalorder %s71, 0
      %s74 = sadd.s32 %s73, 1
      %s75 = scalar_select %p72, %s73, %s74
      %p78 = pneg %p72
      %p79 = scmp.eq.s32.totalorder %s25, 3
      %p80 = por %p78, %p79
      %p81 = scmp.ne.s32.totalorder %s73, %s76
      %p82 = scmp.eq.s32.totalorder %s25, 0
      %p83 = por %p81, %p82
      %p84 = scmp.ne.s32.totalorder %s73, %s76
      %p85 = scmp.eq.s32.totalorder %s30, 3
      %p86 = por %p84, %p85
      %p87 = scmp.ne.s32.totalorder %s76, %s77
      %p88 = scmp.eq.s32.totalorder %s30, 0
      %p89 = por %p87, %p88
      %p90 = scmp.ne.s32.totalorder %s76, %s77
      %p91 = scmp.eq.s32.totalorder %s31, 3
      %p92 = por %p90, %p91
      %p94 = scmp.ne.s32.totalorder %s77, %s93
      %p95 = scmp.eq.s32.totalorder %s31, 0
      %p96 = por %p94, %p95
      %s97 = ssub.s32 %s32, %s44
      %p98 = scmp.eq.s32.totalorder %s97, 0
      %s100 = sadd.s32 %s99, 1
      %s101 = scalar_select %p98, %s99, %s100
      %p104 = pneg %p98
      %p105 = scmp.eq.s32.totalorder %s25, 3
      %p106 = por %p104, %p105
      %p107 = scmp.ne.s32.totalorder %s99, %s102
      %p108 = scmp.eq.s32.totalorder %s25, 0
      %p109 = por %p107, %p108
      %p110 = scmp.ne.s32.totalorder %s99, %s102
      %p111 = scmp.eq.s32.totalorder %s30, 3
      %p112 = por %p110, %p111
      %p113 = scmp.ne.s32.totalorder %s102, %s103
      %p114 = scmp.eq.s32.totalorder %s30, 0
      %p115 = por %p113, %p114
      %p116 = scmp.ne.s32.totalorder %s102, %s103
      %p117 = scmp.eq.s32.totalorder %s31, 3
      %p118 = por %p116, %p117
      %p120 = scmp.ne.s32.totalorder %s103, %s119
      %p121 = scmp.eq.s32.totalorder %s31, 0
      %p122 = por %p120, %p121
      %s124 = sadd.s32 %s123, 1
      %p127 = scmp.eq.s32.totalorder %s25, 3
      %p128 = scmp.ne.s32.totalorder %s123, %s125
      %p129 = scmp.eq.s32.totalorder %s25, 0
      %p130 = por %p128, %p129
      %p131 = scmp.ne.s32.totalorder %s123, %s125
      %p132 = scmp.eq.s32.totalorder %s30, 3
      %p133 = por %p131, %p132
      %p134 = scmp.ne.s32.totalorder %s125, %s126
      %p135 = scmp.eq.s32.totalorder %s30, 0
      %p136 = por %p134, %p135
      %p137 = scmp.ne.s32.totalorder %s125, %s126
      %p138 = scmp.eq.s32.totalorder %s31, 3
      %p139 = por %p137, %p138
      %p141 = scmp.ne.s32.totalorder %s126, %s140
      %p142 = scmp.eq.s32.totalorder %s31, 0
      %p143 = por %p141, %p142
      %s145 = sadd.s32 %s144, 1
      %p148 = scmp.eq.s32.totalorder %s25, 3
      %p149 = scmp.ne.s32.totalorder %s144, %s146
      %p150 = scmp.eq.s32.totalorder %s25, 0
      %p151 = por %p149, %p150
      %p152 = scmp.ne.s32.totalorder %s144, %s146
      %p153 = scmp.eq.s32.totalorder %s30, 3
      %p154 = por %p152, %p153
      %p155 = scmp.ne.s32.totalorder %s146, %s147
      %p156 = scmp.eq.s32.totalorder %s30, 0
      %p157 = por %p155, %p156
      %p158 = scmp.ne.s32.totalorder %s146, %s147
      %p159 = scmp.eq.s32.totalorder %s31, 3
      %p160 = por %p158, %p159
      %p162 = scmp.ne.s32.totalorder %s147, %s161
      %p163 = scmp.eq.s32.totalorder %s31, 0
      %p164 = por %p162, %p163
      %s166 = sadd.s32 %s165, 1
      %p169 = scmp.eq.s32.totalorder %s25, 3
      %p170 = scmp.ne.s32.totalorder %s165, %s167
      %p171 = scmp.eq.s32.totalorder %s25, 0
      %p172 = por %p170, %p171
      %p173 = scmp.ne.s32.totalorder %s165, %s167
      %p174 = scmp.eq.s32.totalorder %s30, 3
      %p175 = por %p173, %p174
      %p176 = scmp.ne.s32.totalorder %s167, %s168
      %p177 = scmp.eq.s32.totalorder %s30, 0
      %p178 = por %p176, %p177
      %p179 = scmp.ne.s32.totalorder %s167, %s168
      %p180 = scmp.eq.s32.totalorder %s31, 3
      %p181 = por %p179, %p180
      %p183 = scmp.ne.s32.totalorder %s168, %s182
      %p184 = scmp.eq.s32.totalorder %s31, 0
      %p185 = por %p183, %p184
      %s187 = sadd.s32 %s186, 1
      %p190 = scmp.eq.s32.totalorder %s25, 3
      %p191 = scmp.ne.s32.totalorder %s186, %s188
      %p192 = scmp.eq.s32.totalorder %s25, 0
      %p193 = por %p191, %p192
      %p194 = scmp.ne.s32.totalorder %s186, %s188
      %p195 = scmp.eq.s32.totalorder %s30, 3
      %p196 = por %p194, %p195
      %p197 = scmp.ne.s32.totalorder %s188, %s189
      %p198 = scmp.eq.s32.totalorder %s30, 0
      %p199 = por %p197, %p198
      %p200 = scmp.ne.s32.totalorder %s188, %s189
      %p201 = scmp.eq.s32.totalorder %s31, 3
      %p202 = por %p200, %p201
      %p204 = scmp.ne.s32.totalorder %s189, %s203
      %p205 = scmp.eq.s32.totalorder %s31, 0
      %p206 = por %p204, %p205
      %s207 = ssub.s32 %s32, %s44
      %s208 = ssub.s32 %s33, %s40
      %s209 = sor.u32 %s207, %s208
      %p210 = scmp.eq.s32.totalorder %s209, 0
      %s212 = sadd.s32 %s211, 1
      %s213 = scalar_select %p210, %s211, %s212
      %p216 = pneg %p210
      %p217 = scmp.eq.s32.totalorder %s25, 3
      %p218 = por %p216, %p217
      %p219 = scmp.ne.s32.totalorder %s211, %s214
      %p220 = scmp.eq.s32.totalorder %s25, 0
      %p221 = por %p219, %p220
      %p222 = scmp.ne.s32.totalorder %s211, %s214
      %p223 = scmp.eq.s32.totalorder %s30, 3
      %p224 = por %p222, %p223
      %p225 = scmp.ne.s32.totalorder %s214, %s215
      %p226 = scmp.eq.s32.totalorder %s30, 0
      %p227 = por %p225, %p226
      %p228 = scmp.ne.s32.totalorder %s214, %s215
      %p229 = scmp.eq.s32.totalorder %s31, 3
      %p230 = por %p228, %p229
      %p232 = scmp.ne.s32.totalorder %s215, %s231
      %p233 = scmp.eq.s32.totalorder %s31, 0
      %p234 = por %p232, %p233
      %p235 = scmp.le.s32.totalorder 1, %s25
      %p236 = scmp.lt.s32.totalorder %s25, 5
      %p237 = pnand %p235, %p236
      %p238 = pneg %p237
      // Predicated region
      $region9: #{tpu_custom_call.1} parent=5 // pred_check
        _
      $region10: #{tpu_custom_call.1} parent=5 // pred_check_branch
        %240 = sbr.rel (%p237) target = $region12
      $region11: #{tpu_custom_call.1} parent=5 // pred_region
        %s241 = ssub.s32 %s25, 1
        // Predicated region
        $region13: #{tpu_custom_call.1} parent=11 // pred_check
          %p242 = pneg %p136
        $region14: #{tpu_custom_call.1} parent=11 // pred_check_branch
          %244 = sbr.rel (%p242) target = $region16
        $region15: #{tpu_custom_call.1} parent=11 // pred_region
          %s246 = ssub.s32 48, 48
          %247 = vsyncadd [#allocation7], %s246
          %s249 = sshll.u32 %s3, 4
          %s250 = int_to_ptr.vmem [resolvable:$true] %s249
          %252 = dma.vmem_to_smem %s250, 48, [#allocation11], [#allocation7]
        $region16: #{tpu_custom_call.1} parent=11 // pred_fallthru
          _
        // Predicated region
        $region17: #{tpu_custom_call.1} parent=11 // pred_check
          %p253 = pneg %p157
        $region18: #{tpu_custom_call.1} parent=11 // pred_check_branch
          %255 = sbr.rel (%p253) target = $region20
        $region19: #{tpu_custom_call.1} parent=11 // pred_region
          %s257 = ssub.s32 16, 16
          %258 = vsyncadd [#allocation13], %s257
          %s260 = sshll.u32 %s4, 4
          %s261 = int_to_ptr.vmem [resolvable:$true] %s260
          %263 = dma.vmem_to_smem %s261, 16, [#allocation12], [#allocation13]
        $region20: #{tpu_custom_call.1} parent=11 // pred_fallthru
          _
        // Predicated region
        $region21: #{tpu_custom_call.1} parent=11 // pred_check
          %p264 = pneg %p178
        $region22: #{tpu_custom_call.1} parent=11 // pred_check_branch
          %266 = sbr.rel (%p264) target = $region24
        $region23: #{tpu_custom_call.1} parent=11 // pred_region
          %s268 = ssub.s32 32, 32
          %269 = vsyncadd [#allocation13], %s268
          %s271 = sshll.u32 %s5, 4
          %s272 = int_to_ptr.vmem [resolvable:$true] %s271
          %274 = dma.vmem_to_smem %s272, 32, [#allocation14], [#allocation13]
        $region24: #{tpu_custom_call.1} parent=11 // pred_fallthru
          _
        // Predicated region
        $region25: #{tpu_custom_call.1} parent=11 // pred_check
          %p275 = pneg %p199
        $region26: #{tpu_custom_call.1} parent=11 // pred_check_branch
          %277 = sbr.rel (%p275) target = $region28
        $region27: #{tpu_custom_call.1} parent=11 // pred_region
          %s279 = ssub.s32 16, 16
          %280 = vsyncadd [#allocation16], %s279
          %s282 = sshll.u32 %s6, 4
          %s283 = int_to_ptr.vmem [resolvable:$true] %s282
          %285 = dma.vmem_to_smem %s283, 16, [#allocation15], [#allocation16]
        $region28: #{tpu_custom_call.1} parent=11 // pred_fallthru
          _
      $region12: #{tpu_custom_call.1} parent=5 // pred_fallthru
        _
      %p286 = scmp.lt.s32.totalorder %s25, 4
      // Predicated region
      $region29: #{tpu_custom_call.1} parent=5 // pred_check
        %p287 = pneg %p286
      $region30: #{tpu_custom_call.1} parent=5 // pred_check_branch
        %289 = sbr.rel (%p287) target = $region32
      $region31: #{tpu_custom_call.1} parent=5 // pred_region
        // Predicated region
        $region33: #{tpu_custom_call.1} parent=31 // pred_check
          %p290 = pneg %p57
        $region34: #{tpu_custom_call.1} parent=31 // pred_check_branch
          %292 = sbr.rel (%p290) target = $region36
        $region35: #{tpu_custom_call.1} parent=31 // pred_region
          %s293 = sand.u32 %s47, 1
          %s294 = scalar_lea.sflag [#allocation5], %s293
          %s295 = sand.u32 %s47, 1
          %s296 = smul.addr %s295, 48
          %s297 = scalar_lea.vmem [#allocation4], %s296
          %s299 = ssub.s32 768, 768
          %300 = vsyncadd %s294, %s299
          %s301 = smul.addr %s32, 6
          %s302 = smul.addr %s301, 128
          %s303 = scalar_lea.hbm %s0, %s302
          %s304 = sshll.u32 %s297, 4
          %s305 = int_to_ptr.vmem [resolvable:$true] %s304
          %310 = dma.hbm_to_vmem [thread:$0]  %s303, 768, %s305, %s294, 128, 128, 8
        $region36: #{tpu_custom_call.1} parent=31 // pred_fallthru
          _
        // Predicated region
        $region37: #{tpu_custom_call.1} parent=31 // pred_check
          %p311 = pneg %p83
        $region38: #{tpu_custom_call.1} parent=31 // pred_check_branch
          %313 = sbr.rel (%p311) target = $region40
        $region39: #{tpu_custom_call.1} parent=31 // pred_region
          %s314 = sand.u32 %s25, 1
          %s315 = scalar_lea.sflag [#allocation9], %s314
          %s316 = sand.u32 %s73, 1
          %s317 = smul.addr %s316, 48
          %s318 = scalar_lea.vmem [#allocation8], %s317
          %s320 = ssub.s32 768, 768
          %321 = vsyncadd %s315, %s320
          %s322 = smul.addr %s32, 6
          %s323 = smul.addr %s322, 128
          %s324 = scalar_lea.hbm %s1, %s323
          %s325 = sshll.u32 %s318, 4
          %s326 = int_to_ptr.vmem [resolvable:$true] %s325
          %331 = dma.hbm_to_vmem [thread:$0]  %s324, 768, %s326, %s315, 128, 128, 8
        $region40: #{tpu_custom_call.1} parent=31 // pred_fallthru
          _
        // Predicated region
        $region41: #{tpu_custom_call.1} parent=31 // pred_check
          %p332 = pneg %p109
        $region42: #{tpu_custom_call.1} parent=31 // pred_check_branch
          %334 = sbr.rel (%p332) target = $region44
        $region43: #{tpu_custom_call.1} parent=31 // pred_region
          %s335 = sand.u32 %s25, 1
          %s336 = scalar_lea.sflag [#allocation9], %s335
          %s337 = sand.u32 %s99, 1
          %s338 = smul.addr %s337, 48
          %s339 = scalar_lea.vmem [#allocation10], %s338
          %s341 = ssub.s32 768, 768
          %342 = vsyncadd %s336, %s341
          %s343 = smul.addr %s32, 6
          %s344 = smul.addr %s343, 128
          %s345 = scalar_lea.hbm %s2, %s344
          %s346 = sshll.u32 %s339, 4
          %s347 = int_to_ptr.vmem [resolvable:$true] %s346
          %352 = dma.hbm_to_vmem [thread:$0]  %s345, 768, %s347, %s336, 128, 128, 8
        $region44: #{tpu_custom_call.1} parent=31 // pred_fallthru
          _
      $region32: #{tpu_custom_call.1} parent=5 // pred_fallthru
        _
      %p353 = scmp.le.s32.totalorder 1, %s25
      %p354 = scmp.lt.s32.totalorder %s25, 5
      %p355 = pnand %p353, %p354
      %p356 = pneg %p355
      // Predicated region
      $region45: #{tpu_custom_call.1} parent=5 // pred_check
        _
      $region46: #{tpu_custom_call.1} parent=5 // pred_check_branch
        %358 = sbr.rel (%p355) target = $region48
      $region47: #{tpu_custom_call.1} parent=5 // pred_region
        %s359 = ssub.s32 %s25, 1
        %s360 = sand.u32 %s50, 1
        %s361 = scalar_lea.sflag [#allocation5], %s360
        %s362 = sand.u32 %s50, 1
        %s363 = smul.addr %s362, 48
        %s364 = scalar_lea.vmem [#allocation4], %s363
        // Predicated region
        $region49: #{tpu_custom_call.1} parent=47 // pred_check
          %p365 = pneg %p63
        $region50: #{tpu_custom_call.1} parent=47 // pred_check_branch
          %367 = sbr.rel (%p365) target = $region52
        $region51: #{tpu_custom_call.1} parent=47 // pred_region
          %368 = dma.done %s361, 768
        $region52: #{tpu_custom_call.1} parent=47 // pred_fallthru
          _
        %s369 = sand.u32 %s30, 1
        %s370 = scalar_lea.sflag [#allocation9], %s369
        %s371 = sand.u32 %s76, 1
        %s372 = smul.addr %s371, 48
        %s373 = scalar_lea.vmem [#allocation8], %s372
        // Predicated region
        $region53: #{tpu_custom_call.1} parent=47 // pred_check
          %p374 = pneg %p89
        $region54: #{tpu_custom_call.1} parent=47 // pred_check_branch
          %376 = sbr.rel (%p374) target = $region56
        $region55: #{tpu_custom_call.1} parent=47 // pred_region
          %377 = dma.done %s370, 768
        $region56: #{tpu_custom_call.1} parent=47 // pred_fallthru
          _
        %s378 = sand.u32 %s30, 1
        %s379 = scalar_lea.sflag [#allocation9], %s378
        %s380 = sand.u32 %s102, 1
        %s381 = smul.addr %s380, 48
        %s382 = scalar_lea.vmem [#allocation10], %s381
        // Predicated region
        $region57: #{tpu_custom_call.1} parent=47 // pred_check
          %p383 = pneg %p115
        $region58: #{tpu_custom_call.1} parent=47 // pred_check_branch
          %385 = sbr.rel (%p383) target = $region60
        $region59: #{tpu_custom_call.1} parent=47 // pred_region
          %386 = dma.done %s379, 768
        $region60: #{tpu_custom_call.1} parent=47 // pred_fallthru
          _
        // Predicated region
        $region61: #{tpu_custom_call.1} parent=47 // pred_check
          %p387 = pneg %p136
        $region62: #{tpu_custom_call.1} parent=47 // pred_check_branch
          %389 = sbr.rel (%p387) target = $region64
        $region63: #{tpu_custom_call.1} parent=47 // pred_region
          %390 = dma.done [#allocation7], 48
        $region64: #{tpu_custom_call.1} parent=47 // pred_fallthru
          _
        // Predicated region
        $region65: #{tpu_custom_call.1} parent=47 // pred_check
          %p391 = pneg %p157
        $region66: #{tpu_custom_call.1} parent=47 // pred_check_branch
          %393 = sbr.rel (%p391) target = $region68
        $region67: #{tpu_custom_call.1} parent=47 // pred_region
          %394 = dma.done [#allocation13], 16
        $region68: #{tpu_custom_call.1} parent=47 // pred_fallthru
          _
        // Predicated region
        $region69: #{tpu_custom_call.1} parent=47 // pred_check
          %p395 = pneg %p178
        $region70: #{tpu_custom_call.1} parent=47 // pred_check_branch
          %397 = sbr.rel (%p395) target = $region72
        $region71: #{tpu_custom_call.1} parent=47 // pred_region
          %398 = dma.done [#allocation13], 32
        $region72: #{tpu_custom_call.1} parent=47 // pred_fallthru
          _
        // Predicated region
        $region73: #{tpu_custom_call.1} parent=47 // pred_check
          %p399 = pneg %p199
        $region74: #{tpu_custom_call.1} parent=47 // pred_check_branch
          %401 = sbr.rel (%p399) target = $region76
        $region75: #{tpu_custom_call.1} parent=47 // pred_region
          %402 = dma.done [#allocation16], 16
        $region76: #{tpu_custom_call.1} parent=47 // pred_fallthru
          _
        %403 = sfence
        %s404 = sand.u32 %s50, 1
        %s405 = scalar_lea.sflag [#allocation5], %s404
        %s406 = sand.u32 %s50, 1
        %s407 = smul.addr %s406, 48
        %s408 = scalar_lea.vmem [#allocation4], %s407
        %p409 = pneg %p63
        %p410 = pneg %p60
        %s411 = sand.u32 %s30, 1
        %s412 = scalar_lea.sflag [#allocation9], %s411
        %s413 = sand.u32 %s76, 1
        %s414 = smul.addr %s413, 48
        %s415 = scalar_lea.vmem [#allocation8], %s414
        %p416 = pneg %p89
        %p417 = pneg %p86
        %s418 = sand.u32 %s30, 1
        %s419 = scalar_lea.sflag [#allocation9], %s418
        %s420 = sand.u32 %s102, 1
        %s421 = smul.addr %s420, 48
        %s422 = scalar_lea.vmem [#allocation10], %s421
        %p423 = pneg %p115
        %p424 = pneg %p112
        %p425 = pneg %p136
        %p426 = pneg %p133
        %p427 = pneg %p157
        %p428 = pneg %p154
        %p429 = pneg %p178
        %p430 = pneg %p175
        %p431 = pneg %p199
        %p432 = pneg %p196
        %p433 = pneg %p227
        %p434 = pneg %p224
        %s435 = sand.u32 %s214, 1
        %s436 = scalar_lea.sflag [#allocation6], %s435
        %s437 = sand.u32 %s214, 1
        %s438 = smul.addr %s437, 24
        %s439 = scalar_lea.vmem [#allocation17], %s438
        %s440 = smul.u32 %s35, 8
        %vm441 = vcmask 7168
        %442 = vst.msk [vmem:[#allocation2] sm:$0xff] %vm441, 0.0
        %vm443 = vcmask 3072
        %444 = vst.msk [vmem:[#allocation2 + $0x8] sm:$0xf] %vm443, 0.0
        %445 = vst.msk [vmem:[#allocation2 + $0x10] sm:$0xff] %vm441, 0.0
        %446 = vst.msk [vmem:[#allocation2 + $0x18] sm:$0xf] %vm443, 0.0
        %447 = vst.msk [vmem:[#allocation2 + $0x20] sm:$0xff] %vm441, 0.0
        %448 = vst.msk [vmem:[#allocation2 + $0x28] sm:$0xf] %vm443, 0.0
        %449 = vst.msk [vmem:[#allocation2 + $0x30] sm:$0xff] %vm441, 0.0
        %450 = vst.msk [vmem:[#allocation2 + $0x38] sm:$0xf] %vm443, 0.0
        %vm451 = vcmask 146568
        %452 = vst.msk [vmem:[#allocation2] sm:$0xff] %vm451, 0.0
        %vm453 = vcmask 142472
        %454 = vst.msk [vmem:[#allocation2 + $0x8] sm:$0xf] %vm453, 0.0
        %455 = vst.msk [vmem:[#allocation2 + $0x10] sm:$0xff] %vm451, 0.0
        %456 = vst.msk [vmem:[#allocation2 + $0x18] sm:$0xf] %vm453, 0.0
        %457 = vst.msk [vmem:[#allocation2 + $0x20] sm:$0xff] %vm451, 0.0
        %458 = vst.msk [vmem:[#allocation2 + $0x28] sm:$0xf] %vm453, 0.0
        %459 = vst.msk [vmem:[#allocation2 + $0x30] sm:$0xff] %vm451, 0.0
        %460 = vst.msk [vmem:[#allocation2 + $0x38] sm:$0xf] %vm453, 0.0
        %s461 = scalar_lea.vmem %s364, %s440 [#allocation4]
        %v462 = vld [vmem:[%s461] sm:$0xff]
        %v463 = vld [vmem:[%s461 + $0x10] sm:$0xff]
        %v464 = vld [vmem:[%s461 + $0x20] sm:$0xff]
        %s465 = scalar_lea.vmem %s373, %s440 [#allocation8]
        %v466 = vld [vmem:[%s465] sm:$0xff]
        %v467 = vld [vmem:[%s465 + $0x10] sm:$0xff]
        %v468 = vld [vmem:[%s465 + $0x20] sm:$0xff]
        %s469 = scalar_lea.vmem %s382, %s440 [#allocation10]
        %v470 = vld [vmem:[%s469] sm:$0xff]
        %v471 = vld [vmem:[%s469 + $0x10] sm:$0xff]
        %v472 = vld [vmem:[%s469 + $0x20] sm:$0xff]
        %v473 = vmul.f32 %v466, %v462
        %v474 = vmul.f32 %v467, %v463
        %v475 = vmul.f32 %v468, %v464
        %v476 = vsub.f32 %v473, %v470
        %v477 = vsub.f32 %v474, %v471
        %v478 = vsub.f32 %v475, %v472
        %v479 = vmul.f32 %v466, %v476
        %v480 = vmul.f32 %v467, %v477
        %v481 = vmul.f32 %v468, %v478
        %v482 = vmul.f32 %v479, 0.1
        %v483 = vmul.f32 %v480, 0.1
        %v484 = vmul.f32 %v481, 0.1
        %v485 = vsub.f32 %v462, %v482
        %v486 = vsub.f32 %v463, %v483
        %v487 = vsub.f32 %v464, %v484
        %491 = vrot.lane.b32.xlu0 %v485, 1
        %v492 = vpop.permute.xlu0 %491
        %493 = vrot.lane.b32.xlu0 %v486, 1
        %v494 = vpop.permute.xlu0 %493
        %495 = vrot.lane.b32.xlu0 %v487, 1
        %v496 = vpop.permute.xlu0 %495
        %vm500 = vcmask 138248
        %501 = vst.msk [vmem:[#allocation2 + $0x2] sm:$0xff] %vm500, %v492
        %502 = vst.msk [vmem:[#allocation2 + $0x12] sm:$0xff] %vm500, %v494
        %503 = vst.msk [vmem:[#allocation2 + $0x22] sm:$0xff] %vm500, %v496
        %s504 = scalar_lea.vmem [#allocation2], 48
        %505 = vst.msk [vmem:[%s504 + $0x2] sm:$0xff] %vm500, 0.05882353
        %p506 = scmp.eq.s32.totalorder %s35, 0
        // Predicated region
        $region77: #{tpu_custom_call.1} parent=47 // pred_check
          %p507 = pneg %p506
        $region78: #{tpu_custom_call.1} parent=47 // pred_check_branch
          %509 = sbr.rel (%p507) target = $region80
        $region79: #{tpu_custom_call.1} parent=47 // pred_region
          %vm510 = vcmask 140288
          %511 = vst.msk [vmem:[#allocation2] sm:$0x3] %vm510, 0.0
          %512 = vst.msk [vmem:[#allocation2 + $0x10] sm:$0x3] %vm510, 0.0
          %513 = vst.msk [vmem:[#allocation2 + $0x20] sm:$0x3] %vm510, 0.0
          %514 = vst.msk [vmem:[#allocation2 + $0x30] sm:$0x3] %vm510, 0.0
        $region80: #{tpu_custom_call.1} parent=47 // pred_fallthru
          _
        %p515 = scmp.gt.s32.totalorder %s35, 0
        // Predicated region
        $region81: #{tpu_custom_call.1} parent=47 // pred_check
          %p516 = pneg %p515
        $region82: #{tpu_custom_call.1} parent=47 // pred_check_branch
          %518 = sbr.rel (%p516) target = $region84
        $region83: #{tpu_custom_call.1} parent=47 // pred_region
          %s519 = ssub.s32 %s440, 2
          %s520 = scalar_lea.vmem %s364, %s519 [#allocation4]
          %v521 = vld [vmem:[%s520] sm:$0x3]
          %v522 = vld [vmem:[%s520 + $0x10] sm:$0x3]
          %v523 = vld [vmem:[%s520 + $0x20] sm:$0x3]
          %s524 = scalar_lea.vmem %s373, %s519 [#allocation8]
          %v525 = vld [vmem:[%s524] sm:$0x3]
          %v526 = vld [vmem:[%s524 + $0x10] sm:$0x3]
          %v527 = vld [vmem:[%s524 + $0x20] sm:$0x3]
          %s528 = scalar_lea.vmem %s382, %s519 [#allocation10]
          %v529 = vld [vmem:[%s528] sm:$0x3]
          %v530 = vld [vmem:[%s528 + $0x10] sm:$0x3]
          %v531 = vld [vmem:[%s528 + $0x20] sm:$0x3]
          %v532 = vmul.f32 %v525, %v521
          %v533 = vmul.f32 %v526, %v522
          %v534 = vmul.f32 %v527, %v523
          %v535 = vsub.f32 %v532, %v529
          %v536 = vsub.f32 %v533, %v530
          %v537 = vsub.f32 %v534, %v531
          %v538 = vmul.f32 %v525, %v535
          %v539 = vmul.f32 %v526, %v536
          %v540 = vmul.f32 %v527, %v537
          %v541 = vmul.f32 %v538, 0.1
          %v542 = vmul.f32 %v539, 0.1
          %v543 = vmul.f32 %v540, 0.1
          %v544 = vsub.f32 %v521, %v541
          %v545 = vsub.f32 %v522, %v542
          %v546 = vsub.f32 %v523, %v543
          %550 = vrot.lane.b32.xlu0 %v544, 1
          %v551 = vpop.permute.xlu0 %550
          %552 = vrot.lane.b32.xlu0 %v545, 1
          %v553 = vpop.permute.xlu0 %552
          %554 = vrot.lane.b32.xlu0 %v546, 1
          %v555 = vpop.permute.xlu0 %554
          %vm559 = vcmask 132104
          %560 = vst.msk [vmem:[#allocation2] sm:$0x3] %vm559, %v551
          %561 = vst.msk [vmem:[#allocation2 + $0x10] sm:$0x3] %vm559, %v553
          %562 = vst.msk [vmem:[#allocation2 + $0x20] sm:$0x3] %vm559, %v555
          %563 = vst.msk [vmem:[%s504] sm:$0x3] %vm559, 0.05882353
        $region84: #{tpu_custom_call.1} parent=47 // pred_fallthru
          _
        %p564 = scmp.eq.s32.totalorder %s35, 1
        // Predicated region
        $region85: #{tpu_custom_call.1} parent=47 // pred_check
          %p565 = pneg %p564
        $region86: #{tpu_custom_call.1} parent=47 // pred_check_branch
          %567 = sbr.rel (%p565) target = $region88
        $region87: #{tpu_custom_call.1} parent=47 // pred_region
          %vm568 = vcmask 140288
          %569 = vst.msk [vmem:[#allocation2 + $0xa] sm:$0x3] %vm568, 0.0
          %570 = vst.msk [vmem:[#allocation2 + $0x1a] sm:$0x3] %vm568, 0.0
          %571 = vst.msk [vmem:[#allocation2 + $0x2a] sm:$0x3] %vm568, 0.0
          %572 = vst.msk [vmem:[#allocation2 + $0x3a] sm:$0x3] %vm568, 0.0
        $region88: #{tpu_custom_call.1} parent=47 // pred_fallthru
          _
        %p573 = scmp.lt.s32.totalorder %s35, 1
        // Predicated region
        $region89: #{tpu_custom_call.1} parent=47 // pred_check
          %p574 = pneg %p573
        $region90: #{tpu_custom_call.1} parent=47 // pred_check_branch
          %576 = sbr.rel (%p574) target = $region92
        $region91: #{tpu_custom_call.1} parent=47 // pred_region
          %s577 = sadd.s32 %s440, 8
          %s578 = scalar_lea.vmem %s364, %s577 [#allocation4]
          %v579 = vld [vmem:[%s578] sm:$0x3]
          %v580 = vld [vmem:[%s578 + $0x10] sm:$0x3]
          %v581 = vld [vmem:[%s578 + $0x20] sm:$0x3]
          %s582 = scalar_lea.vmem %s373, %s577 [#allocation8]
          %v583 = vld [vmem:[%s582] sm:$0x3]
          %v584 = vld [vmem:[%s582 + $0x10] sm:$0x3]
          %v585 = vld [vmem:[%s582 + $0x20] sm:$0x3]
          %s586 = scalar_lea.vmem %s382, %s577 [#allocation10]
          %v587 = vld [vmem:[%s586] sm:$0x3]
          %v588 = vld [vmem:[%s586 + $0x10] sm:$0x3]
          %v589 = vld [vmem:[%s586 + $0x20] sm:$0x3]
          %v590 = vmul.f32 %v583, %v579
          %v591 = vmul.f32 %v584, %v580
          %v592 = vmul.f32 %v585, %v581
          %v593 = vsub.f32 %v590, %v587
          %v594 = vsub.f32 %v591, %v588
          %v595 = vsub.f32 %v592, %v589
          %v596 = vmul.f32 %v583, %v593
          %v597 = vmul.f32 %v584, %v594
          %v598 = vmul.f32 %v585, %v595
          %v599 = vmul.f32 %v596, 0.1
          %v600 = vmul.f32 %v597, 0.1
          %v601 = vmul.f32 %v598, 0.1
          %v602 = vsub.f32 %v579, %v599
          %v603 = vsub.f32 %v580, %v600
          %v604 = vsub.f32 %v581, %v601
          %608 = vrot.lane.b32.xlu0 %v602, 1
          %v609 = vpop.permute.xlu0 %608
          %610 = vrot.lane.b32.xlu0 %v603, 1
          %v611 = vpop.permute.xlu0 %610
          %612 = vrot.lane.b32.xlu0 %v604, 1
          %v613 = vpop.permute.xlu0 %612
          %vm617 = vcmask 132104
          %618 = vst.msk [vmem:[#allocation2 + $0xa] sm:$0x3] %vm617, %v609
          %619 = vst.msk [vmem:[#allocation2 + $0x1a] sm:$0x3] %vm617, %v611
          %620 = vst.msk [vmem:[#allocation2 + $0x2a] sm:$0x3] %vm617, %v613
          %621 = vst.msk [vmem:[%s504 + $0xa] sm:$0x3] %vm617, 0.05882353
        $region92: #{tpu_custom_call.1} parent=47 // pred_fallthru
          _
        %v622 = vld [vmem:[#allocation2] sm:$0xff]
        %v623 = vld [vmem:[#allocation2 + $0x8] sm:$0x3]
        %v624 = vld [vmem:[#allocation2 + $0x1] sm:$0xff]
        %v625 = vld [vmem:[#allocation2 + $0x9] sm:$0x3]
        %v626 = vld [vmem:[#allocation2 + $0x2] sm:$0xff]
        %v627 = vld [vmem:[#allocation2 + $0xa] sm:$0x3]
        %s628 = scalar_lea.vmem [#allocation2], 16
        %v629 = vld [vmem:[%s628] sm:$0xff]
        %v630 = vld [vmem:[%s628 + $0x8] sm:$0x3]
        %v631 = vld [vmem:[%s628 + $0x1] sm:$0xff]
        %v632 = vld [vmem:[%s628 + $0x9] sm:$0x3]
        %v633 = vld [vmem:[%s628 + $0x2] sm:$0xff]
        %v634 = vld [vmem:[%s628 + $0xa] sm:$0x3]
        %s635 = scalar_lea.vmem [#allocation2], 32
        %v636 = vld [vmem:[%s635] sm:$0xff]
        %v637 = vld [vmem:[%s635 + $0x8] sm:$0x3]
        %v638 = vld [vmem:[%s635 + $0x1] sm:$0xff]
        %v639 = vld [vmem:[%s635 + $0x9] sm:$0x3]
        %v640 = vld [vmem:[%s635 + $0x2] sm:$0xff]
        %v641 = vld [vmem:[%s635 + $0xa] sm:$0x3]
        %v642 = vld [vmem:[%s504] sm:$0xff]
        %v643 = vld [vmem:[%s504 + $0x8] sm:$0x3]
        %v644 = vld [vmem:[%s504 + $0x1] sm:$0xff]
        %v645 = vld [vmem:[%s504 + $0x9] sm:$0x3]
        %v646 = vld [vmem:[%s504 + $0x2] sm:$0xff]
        %v647 = vld [vmem:[%s504 + $0xa] sm:$0x3]
        %648 = vst.msk [vmem:[#allocation3] sm:$0xff] %vm441, 0.0
        %vm649 = vcmask 1024
        %650 = vst.msk [vmem:[#allocation3 + $0x8] sm:$0x3] %vm649, 0.0
        %651 = vst.msk [vmem:[#allocation3 + $0x10] sm:$0xff] %vm441, 0.0
        %652 = vst.msk [vmem:[#allocation3 + $0x18] sm:$0x3] %vm649, 0.0
        %653 = vst.msk [vmem:[#allocation3 + $0x20] sm:$0xff] %vm441, 0.0
        %654 = vst.msk [vmem:[#allocation3 + $0x28] sm:$0x3] %vm649, 0.0
        %655 = vst.msk [vmem:[#allocation3 + $0x30] sm:$0xff] %vm441, 0.0
        %656 = vst.msk [vmem:[#allocation3 + $0x38] sm:$0x3] %vm649, 0.0
        %657 = vst.msk [vmem:[#allocation3 + $0x40] sm:$0xff] %vm441, 0.0
        %658 = vst.msk [vmem:[#allocation3 + $0x48] sm:$0x3] %vm649, 0.0
        %659 = vst.msk [vmem:[#allocation3 + $0x50] sm:$0xff] %vm441, 0.0
        %660 = vst.msk [vmem:[#allocation3 + $0x58] sm:$0x3] %vm649, 0.0
        %661 = vst.msk [vmem:[#allocation3 + $0x60] sm:$0xff] %vm441, 0.0
        %662 = vst.msk [vmem:[#allocation3 + $0x68] sm:$0x3] %vm649, 0.0
        %663 = vst.msk [vmem:[#allocation3 + $0x70] sm:$0xff] %vm441, 0.0
        %664 = vst.msk [vmem:[#allocation3 + $0x78] sm:$0x3] %vm649, 0.0
        %665 = vst.msk [vmem:[#allocation3] sm:$0xff] %vm451, 0.0
        %vm666 = vcmask 140424
        %667 = vst.msk [vmem:[#allocation3 + $0x8] sm:$0x3] %vm666, 0.0
        %668 = vst.msk [vmem:[#allocation3 + $0x10] sm:$0xff] %vm451, 0.0
        %669 = vst.msk [vmem:[#allocation3 + $0x18] sm:$0x3] %vm666, 0.0
        %670 = vst.msk [vmem:[#allocation3 + $0x20] sm:$0xff] %vm451, 0.0
        %671 = vst.msk [vmem:[#allocation3 + $0x28] sm:$0x3] %vm666, 0.0
        %672 = vst.msk [vmem:[#allocation3 + $0x30] sm:$0xff] %vm451, 0.0
        %673 = vst.msk [vmem:[#allocation3 + $0x38] sm:$0x3] %vm666, 0.0
        %674 = vst.msk [vmem:[#allocation3 + $0x40] sm:$0xff] %vm451, 0.0
        %675 = vst.msk [vmem:[#allocation3 + $0x48] sm:$0x3] %vm666, 0.0
        %676 = vst.msk [vmem:[#allocation3 + $0x50] sm:$0xff] %vm451, 0.0
        %677 = vst.msk [vmem:[#allocation3 + $0x58] sm:$0x3] %vm666, 0.0
        %678 = vst.msk [vmem:[#allocation3 + $0x60] sm:$0xff] %vm451, 0.0
        %679 = vst.msk [vmem:[#allocation3 + $0x68] sm:$0x3] %vm666, 0.0
        %680 = vst.msk [vmem:[#allocation3 + $0x70] sm:$0xff] %vm451, 0.0
        %681 = vst.msk [vmem:[#allocation3 + $0x78] sm:$0x3] %vm666, 0.0
        %s682 = sld [smem:[#allocation12]]
        %v683 = vstv %s682
        %v684 = vadd.f32 %v683, 0.0
        %s685 = sld [smem:[#allocation11]]
        %v686 = vstv %s685
        %v687 = vmul.f32 %v686, %v622
        %v688 = vmul.f32 %v686, %v623
        %v689 = vadd.f32 %v684, %v687
        %v690 = vadd.f32 %v684, %v688
        %s691 = sld [smem:[#allocation11 + $0x1]]
        %v692 = vstv %s691
        %v693 = vmul.f32 %v692, %v622
        %v694 = vmul.f32 %v692, %v623
        %697 = vrot.lane.b32.xlu0 %v693, 127
        %v698 = vpop.permute.xlu0 %697
        %699 = vrot.lane.b32.xlu0 %v694, 127
        %v700 = vpop.permute.xlu0 %699
        %v703 = vadd.f32 %v689, %v698
        %v704 = vadd.f32 %v690, %v700
        %s705 = sld [smem:[#allocation11 + $0x2]]
        %v706 = vstv %s705
        %v707 = vmul.f32 %v706, %v622
        %v708 = vmul.f32 %v706, %v623
        %711 = vrot.lane.b32.xlu0 %v707, 126
        %v712 = vpop.permute.xlu0 %711
        %713 = vrot.lane.b32.xlu0 %v708, 126
        %v714 = vpop.permute.xlu0 %713
        %v717 = vadd.f32 %v703, %v712
        %v718 = vadd.f32 %v704, %v714
        %s719 = sld [smem:[#allocation11 + $0x3]]
        %v720 = vstv %s719
        %v721 = vmul.f32 %v720, %v624
        %v722 = vmul.f32 %v720, %v625
        %v723 = vadd.f32 %v717, %v721
        %v724 = vadd.f32 %v718, %v722
        %s725 = sld [smem:[#allocation11 + $0x4]]
        %v726 = vstv %s725
        %v727 = vmul.f32 %v726, %v624
        %v728 = vmul.f32 %v726, %v625
        %731 = vrot.lane.b32.xlu0 %v727, 127
        %v732 = vpop.permute.xlu0 %731
        %733 = vrot.lane.b32.xlu0 %v728, 127
        %v734 = vpop.permute.xlu0 %733
        %v737 = vadd.f32 %v723, %v732
        %v738 = vadd.f32 %v724, %v734
        %s739 = sld [smem:[#allocation11 + $0x5]]
        %v740 = vstv %s739
        %v741 = vmul.f32 %v740, %v624
        %v742 = vmul.f32 %v740, %v625
        %745 = vrot.lane.b32.xlu0 %v741, 126
        %v746 = vpop.permute.xlu0 %745
        %747 = vrot.lane.b32.xlu0 %v742, 126
        %v748 = vpop.permute.xlu0 %747
        %v751 = vadd.f32 %v737, %v746
        %v752 = vadd.f32 %v738, %v748
        %s753 = sld [smem:[#allocation11 + $0x6]]
        %v754 = vstv %s753
        %v755 = vmul.f32 %v754, %v626
        %v756 = vmul.f32 %v754, %v627
        %v757 = vadd.f32 %v751, %v755
        %v758 = vadd.f32 %v752, %v756
        %s759 = sld [smem:[#allocation11 + $0x7]]
        %v760 = vstv %s759
        %v761 = vmul.f32 %v760, %v626
        %v762 = vmul.f32 %v760, %v627
        %765 = vrot.lane.b32.xlu0 %v761, 127
        %v766 = vpop.permute.xlu0 %765
        %767 = vrot.lane.b32.xlu0 %v762, 127
        %v768 = vpop.permute.xlu0 %767
        %v771 = vadd.f32 %v757, %v766
        %v772 = vadd.f32 %v758, %v768
        %s773 = sld [smem:[#allocation11 + $0x8]]
        %v774 = vstv %s773
        %v775 = vmul.f32 %v774, %v626
        %v776 = vmul.f32 %v774, %v627
        %779 = vrot.lane.b32.xlu0 %v775, 126
        %v780 = vpop.permute.xlu0 %779
        %781 = vrot.lane.b32.xlu0 %v776, 126
        %v782 = vpop.permute.xlu0 %781
        %v785 = vadd.f32 %v771, %v780
        %v786 = vadd.f32 %v772, %v782
        %s787 = sld [smem:[#allocation11 + $0x9]]
        %v788 = vstv %s787
        %v789 = vmul.f32 %v788, %v629
        %v790 = vmul.f32 %v788, %v630
        %v791 = vadd.f32 %v785, %v789
        %v792 = vadd.f32 %v786, %v790
        %s793 = sld [smem:[#allocation11 + $0xa]]
        %v794 = vstv %s793
        %v795 = vmul.f32 %v794, %v629
        %v796 = vmul.f32 %v794, %v630
        %799 = vrot.lane.b32.xlu0 %v795, 127
        %v800 = vpop.permute.xlu0 %799
        %801 = vrot.lane.b32.xlu0 %v796, 127
        %v802 = vpop.permute.xlu0 %801
        %v805 = vadd.f32 %v791, %v800
        %v806 = vadd.f32 %v792, %v802
        %s807 = sld [smem:[#allocation11 + $0xb]]
        %v808 = vstv %s807
        %v809 = vmul.f32 %v808, %v629
        %v810 = vmul.f32 %v808, %v630
        %813 = vrot.lane.b32.xlu0 %v809, 126
        %v814 = vpop.permute.xlu0 %813
        %815 = vrot.lane.b32.xlu0 %v810, 126
        %v816 = vpop.permute.xlu0 %815
        %v819 = vadd.f32 %v805, %v814
        %v820 = vadd.f32 %v806, %v816
        %s821 = sld [smem:[#allocation11 + $0xc]]
        %v822 = vstv %s821
        %v823 = vmul.f32 %v822, %v631
        %v824 = vmul.f32 %v822, %v632
        %v825 = vadd.f32 %v819, %v823
        %v826 = vadd.f32 %v820, %v824
        %s827 = sld [smem:[#allocation11 + $0xd]]
        %v828 = vstv %s827
        %v829 = vmul.f32 %v828, %v631
        %v830 = vmul.f32 %v828, %v632
        %833 = vrot.lane.b32.xlu0 %v829, 127
        %v834 = vpop.permute.xlu0 %833
        %835 = vrot.lane.b32.xlu0 %v830, 127
        %v836 = vpop.permute.xlu0 %835
        %v839 = vadd.f32 %v825, %v834
        %v840 = vadd.f32 %v826, %v836
        %s841 = sld [smem:[#allocation11 + $0xe]]
        %v842 = vstv %s841
        %v843 = vmul.f32 %v842, %v631
        %v844 = vmul.f32 %v842, %v632
        %847 = vrot.lane.b32.xlu0 %v843, 126
        %v848 = vpop.permute.xlu0 %847
        %849 = vrot.lane.b32.xlu0 %v844, 126
        %v850 = vpop.permute.xlu0 %849
        %v853 = vadd.f32 %v839, %v848
        %v854 = vadd.f32 %v840, %v850
        %s855 = sld [smem:[#allocation11 + $0xf]]
        %v856 = vstv %s855
        %v857 = vmul.f32 %v856, %v633
        %v858 = vmul.f32 %v856, %v634
        %v859 = vadd.f32 %v853, %v857
        %v860 = vadd.f32 %v854, %v858
        %s861 = sld [smem:[#allocation11 + $0x10]]
        %v862 = vstv %s861
        %v863 = vmul.f32 %v862, %v633
        %v864 = vmul.f32 %v862, %v634
        %867 = vrot.lane.b32.xlu0 %v863, 127
        %v868 = vpop.permute.xlu0 %867
        %869 = vrot.lane.b32.xlu0 %v864, 127
        %v870 = vpop.permute.xlu0 %869
        %v873 = vadd.f32 %v859, %v868
        %v874 = vadd.f32 %v860, %v870
        %s875 = sld [smem:[#allocation11 + $0x11]]
        %v876 = vstv %s875
        %v877 = vmul.f32 %v876, %v633
        %v878 = vmul.f32 %v876, %v634
        %881 = vrot.lane.b32.xlu0 %v877, 126
        %v882 = vpop.permute.xlu0 %881
        %883 = vrot.lane.b32.xlu0 %v878, 126
        %v884 = vpop.permute.xlu0 %883
        %v887 = vadd.f32 %v873, %v882
        %v888 = vadd.f32 %v874, %v884
        %s889 = sld [smem:[#allocation11 + $0x12]]
        %v890 = vstv %s889
        %v891 = vmul.f32 %v890, %v636
        %v892 = vmul.f32 %v890, %v637
        %v893 = vadd.f32 %v887, %v891
        %v894 = vadd.f32 %v888, %v892
        %s895 = sld [smem:[#allocation11 + $0x13]]
        %v896 = vstv %s895
        %v897 = vmul.f32 %v896, %v636
        %v898 = vmul.f32 %v896, %v637
        %901 = vrot.lane.b32.xlu0 %v897, 127
        %v902 = vpop.permute.xlu0 %901
        %903 = vrot.lane.b32.xlu0 %v898, 127
        %v904 = vpop.permute.xlu0 %903
        %v907 = vadd.f32 %v893, %v902
        %v908 = vadd.f32 %v894, %v904
        %s909 = sld [smem:[#allocation11 + $0x14]]
        %v910 = vstv %s909
        %v911 = vmul.f32 %v910, %v636
        %v912 = vmul.f32 %v910, %v637
        %915 = vrot.lane.b32.xlu0 %v911, 126
        %v916 = vpop.permute.xlu0 %915
        %917 = vrot.lane.b32.xlu0 %v912, 126
        %v918 = vpop.permute.xlu0 %917
        %v921 = vadd.f32 %v907, %v916
        %v922 = vadd.f32 %v908, %v918
        %s923 = sld [smem:[#allocation11 + $0x15]]
        %v924 = vstv %s923
        %v925 = vmul.f32 %v924, %v638
        %v926 = vmul.f32 %v924, %v639
        %v927 = vadd.f32 %v921, %v925
        %v928 = vadd.f32 %v922, %v926
        %s929 = sld [smem:[#allocation11 + $0x16]]
        %v930 = vstv %s929
        %v931 = vmul.f32 %v930, %v638
        %v932 = vmul.f32 %v930, %v639
        %935 = vrot.lane.b32.xlu0 %v931, 127
        %v936 = vpop.permute.xlu0 %935
        %937 = vrot.lane.b32.xlu0 %v932, 127
        %v938 = vpop.permute.xlu0 %937
        %v941 = vadd.f32 %v927, %v936
        %v942 = vadd.f32 %v928, %v938
        %s943 = sld [smem:[#allocation11 + $0x17]]
        %v944 = vstv %s943
        %v945 = vmul.f32 %v944, %v638
        %v946 = vmul.f32 %v944, %v639
        %949 = vrot.lane.b32.xlu0 %v945, 126
        %v950 = vpop.permute.xlu0 %949
        %951 = vrot.lane.b32.xlu0 %v946, 126
        %v952 = vpop.permute.xlu0 %951
        %v955 = vadd.f32 %v941, %v950
        %v956 = vadd.f32 %v942, %v952
        %s957 = sld [smem:[#allocation11 + $0x18]]
        %v958 = vstv %s957
        %v959 = vmul.f32 %v958, %v640
        %v960 = vmul.f32 %v958, %v641
        %v961 = vadd.f32 %v955, %v959
        %v962 = vadd.f32 %v956, %v960
        %s963 = sld [smem:[#allocation11 + $0x19]]
        %v964 = vstv %s963
        %v965 = vmul.f32 %v964, %v640
        %v966 = vmul.f32 %v964, %v641
        %969 = vrot.lane.b32.xlu0 %v965, 127
        %v970 = vpop.permute.xlu0 %969
        %971 = vrot.lane.b32.xlu0 %v966, 127
        %v972 = vpop.permute.xlu0 %971
        %v975 = vadd.f32 %v961, %v970
        %v976 = vadd.f32 %v962, %v972
        %s977 = sld [smem:[#allocation11 + $0x1a]]
        %v978 = vstv %s977
        %v979 = vmul.f32 %v978, %v640
        %v980 = vmul.f32 %v978, %v641
        %983 = vrot.lane.b32.xlu0 %v979, 126
        %v984 = vpop.permute.xlu0 %983
        %985 = vrot.lane.b32.xlu0 %v980, 126
        %v986 = vpop.permute.xlu0 %985
        %v989 = vadd.f32 %v975, %v984
        %v990 = vadd.f32 %v976, %v986
        %s991 = sld [smem:[#allocation11 + $0x1b]]
        %v992 = vstv %s991
        %v993 = vmul.f32 %v992, %v642
        %v994 = vmul.f32 %v992, %v643
        %v995 = vadd.f32 %v989, %v993
        %v996 = vadd.f32 %v990, %v994
        %s997 = sld [smem:[#allocation11 + $0x1c]]
        %v998 = vstv %s997
        %v999 = vmul.f32 %v998, %v642
        %v1000 = vmul.f32 %v998, %v643
        %1003 = vrot.lane.b32.xlu0 %v999, 127
        %v1004 = vpop.permute.xlu0 %1003
        %1005 = vrot.lane.b32.xlu0 %v1000, 127
        %v1006 = vpop.permute.xlu0 %1005
        %v1009 = vadd.f32 %v995, %v1004
        %v1010 = vadd.f32 %v996, %v1006
        %s1011 = sld [smem:[#allocation11 + $0x1d]]
        %v1012 = vstv %s1011
        %v1013 = vmul.f32 %v1012, %v642
        %v1014 = vmul.f32 %v1012, %v643
        %1017 = vrot.lane.b32.xlu0 %v1013, 126
        %v1018 = vpop.permute.xlu0 %1017
        %1019 = vrot.lane.b32.xlu0 %v1014, 126
        %v1020 = vpop.permute.xlu0 %1019
        %v1023 = vadd.f32 %v1009, %v1018
        %v1024 = vadd.f32 %v1010, %v1020
        %s1025 = sld [smem:[#allocation11 + $0x1e]]
        %v1026 = vstv %s1025
        %v1027 = vmul.f32 %v1026, %v644
        %v1028 = vmul.f32 %v1026, %v645
        %v1029 = vadd.f32 %v1023, %v1027
        %v1030 = vadd.f32 %v1024, %v1028
        %s1031 = sld [smem:[#allocation11 + $0x1f]]
        %v1032 = vstv %s1031
        %v1033 = vmul.f32 %v1032, %v644
        %v1034 = vmul.f32 %v1032, %v645
        %1037 = vrot.lane.b32.xlu0 %v1033, 127
        %v1038 = vpop.permute.xlu0 %1037
        %1039 = vrot.lane.b32.xlu0 %v1034, 127
        %v1040 = vpop.permute.xlu0 %1039
        %v1043 = vadd.f32 %v1029, %v1038
        %v1044 = vadd.f32 %v1030, %v1040
        %s1045 = sld [smem:[#allocation11 + $0x20]]
        %v1046 = vstv %s1045
        %v1047 = vmul.f32 %v1046, %v644
        %v1048 = vmul.f32 %v1046, %v645
        %1051 = vrot.lane.b32.xlu0 %v1047, 126
        %v1052 = vpop.permute.xlu0 %1051
        %1053 = vrot.lane.b32.xlu0 %v1048, 126
        %v1054 = vpop.permute.xlu0 %1053
        %v1057 = vadd.f32 %v1043, %v1052
        %v1058 = vadd.f32 %v1044, %v1054
        %s1059 = sld [smem:[#allocation11 + $0x21]]
        %v1060 = vstv %s1059
        %v1061 = vmul.f32 %v1060, %v646
        %v1062 = vmul.f32 %v1060, %v647
        %v1063 = vadd.f32 %v1057, %v1061
        %v1064 = vadd.f32 %v1058, %v1062
        %s1065 = sld [smem:[#allocation11 + $0x22]]
        %v1066 = vstv %s1065
        %v1067 = vmul.f32 %v1066, %v646
        %v1068 = vmul.f32 %v1066, %v647
        %1071 = vrot.lane.b32.xlu0 %v1067, 127
        %v1072 = vpop.permute.xlu0 %1071
        %1073 = vrot.lane.b32.xlu0 %v1068, 127
        %v1074 = vpop.permute.xlu0 %1073
        %v1077 = vadd.f32 %v1063, %v1072
        %v1078 = vadd.f32 %v1064, %v1074
        %s1079 = sld [smem:[#allocation11 + $0x23]]
        %v1080 = vstv %s1079
        %v1081 = vmul.f32 %v1080, %v646
        %v1082 = vmul.f32 %v1080, %v647
        %1085 = vrot.lane.b32.xlu0 %v1081, 126
        %v1086 = vpop.permute.xlu0 %1085
        %1087 = vrot.lane.b32.xlu0 %v1082, 126
        %v1088 = vpop.permute.xlu0 %1087
        %v1091 = vadd.f32 %v1077, %v1086
        %v1092 = vadd.f32 %v1078, %v1088
        %v1093 = vmax.f32 %v1091, 0.0
        %v1094 = vmax.f32 %v1092, 0.0
        %1097 = vrot.lane.b32.xlu0 %v1093, 1
        %v1098 = vpop.permute.xlu0 %1097
        %1099 = vrot.lane.b32.xlu0 %v1094, 1
        %v1100 = vpop.permute.xlu0 %1099
        %1103 = vst.msk [vmem:[#allocation3] sm:$0xff] %vm500, %v1098
        %vm1104 = vcmask 132104
        %1105 = vst.msk [vmem:[#allocation3 + $0x8] sm:$0x3] %vm1104, %v1100
        %s1106 = sld [smem:[#allocation12 + $0x1]]
        %v1107 = vstv %s1106
        %v1108 = vadd.f32 %v1107, 0.0
        %s1109 = sld [smem:[#allocation11 + $0x24]]
        %v1110 = vstv %s1109
        %v1111 = vmul.f32 %v1110, %v622
        %v1112 = vmul.f32 %v1110, %v623
        %v1113 = vadd.f32 %v1108, %v1111
        %v1114 = vadd.f32 %v1108, %v1112
        %s1115 = sld [smem:[#allocation11 + $0x25]]
        %v1116 = vstv %s1115
        %v1117 = vmul.f32 %v1116, %v622
        %v1118 = vmul.f32 %v1116, %v623
        %1121 = vrot.lane.b32.xlu0 %v1117, 127
        %v1122 = vpop.permute.xlu0 %1121
        %1123 = vrot.lane.b32.xlu0 %v1118, 127
        %v1124 = vpop.permute.xlu0 %1123
        %v1127 = vadd.f32 %v1113, %v1122
        %v1128 = vadd.f32 %v1114, %v1124
        %s1129 = sld [smem:[#allocation11 + $0x26]]
        %v1130 = vstv %s1129
        %v1131 = vmul.f32 %v1130, %v622
        %v1132 = vmul.f32 %v1130, %v623
        %1135 = vrot.lane.b32.xlu0 %v1131, 126
        %v1136 = vpop.permute.xlu0 %1135
        %1137 = vrot.lane.b32.xlu0 %v1132, 126
        %v1138 = vpop.permute.xlu0 %1137
        %v1141 = vadd.f32 %v1127, %v1136
        %v1142 = vadd.f32 %v1128, %v1138
        %s1143 = sld [smem:[#allocation11 + $0x27]]
        %v1144 = vstv %s1143
        %v1145 = vmul.f32 %v1144, %v624
        %v1146 = vmul.f32 %v1144, %v625
        %v1147 = vadd.f32 %v1141, %v1145
        %v1148 = vadd.f32 %v1142, %v1146
        %s1149 = sld [smem:[#allocation11 + $0x28]]
        %v1150 = vstv %s1149
        %v1151 = vmul.f32 %v1150, %v624
        %v1152 = vmul.f32 %v1150, %v625
        %1155 = vrot.lane.b32.xlu0 %v1151, 127
        %v1156 = vpop.permute.xlu0 %1155
        %1157 = vrot.lane.b32.xlu0 %v1152, 127
        %v1158 = vpop.permute.xlu0 %1157
        %v1161 = vadd.f32 %v1147, %v1156
        %v1162 = vadd.f32 %v1148, %v1158
        %s1163 = sld [smem:[#allocation11 + $0x29]]
        %v1164 = vstv %s1163
        %v1165 = vmul.f32 %v1164, %v624
        %v1166 = vmul.f32 %v1164, %v625
        %1169 = vrot.lane.b32.xlu0 %v1165, 126
        %v1170 = vpop.permute.xlu0 %1169
        %1171 = vrot.lane.b32.xlu0 %v1166, 126
        %v1172 = vpop.permute.xlu0 %1171
        %v1175 = vadd.f32 %v1161, %v1170
        %v1176 = vadd.f32 %v1162, %v1172
        %s1177 = sld [smem:[#allocation11 + $0x2a]]
        %v1178 = vstv %s1177
        %v1179 = vmul.f32 %v1178, %v626
        %v1180 = vmul.f32 %v1178, %v627
        %v1181 = vadd.f32 %v1175, %v1179
        %v1182 = vadd.f32 %v1176, %v1180
        %s1183 = sld [smem:[#allocation11 + $0x2b]]
        %v1184 = vstv %s1183
        %v1185 = vmul.f32 %v1184, %v626
        %v1186 = vmul.f32 %v1184, %v627
        %1189 = vrot.lane.b32.xlu0 %v1185, 127
        %v1190 = vpop.permute.xlu0 %1189
        %1191 = vrot.lane.b32.xlu0 %v1186, 127
        %v1192 = vpop.permute.xlu0 %1191
        %v1195 = vadd.f32 %v1181, %v1190
        %v1196 = vadd.f32 %v1182, %v1192
        %s1197 = sld [smem:[#allocation11 + $0x2c]]
        %v1198 = vstv %s1197
        %v1199 = vmul.f32 %v1198, %v626
        %v1200 = vmul.f32 %v1198, %v627
        %1203 = vrot.lane.b32.xlu0 %v1199, 126
        %v1204 = vpop.permute.xlu0 %1203
        %1205 = vrot.lane.b32.xlu0 %v1200, 126
        %v1206 = vpop.permute.xlu0 %1205
        %v1209 = vadd.f32 %v1195, %v1204
        %v1210 = vadd.f32 %v1196, %v1206
        %s1211 = sld [smem:[#allocation11 + $0x2d]]
        %v1212 = vstv %s1211
        %v1213 = vmul.f32 %v1212, %v629
        %v1214 = vmul.f32 %v1212, %v630
        %v1215 = vadd.f32 %v1209, %v1213
        %v1216 = vadd.f32 %v1210, %v1214
        %s1217 = sld [smem:[#allocation11 + $0x2e]]
        %v1218 = vstv %s1217
        %v1219 = vmul.f32 %v1218, %v629
        %v1220 = vmul.f32 %v1218, %v630
        %1223 = vrot.lane.b32.xlu0 %v1219, 127
        %v1224 = vpop.permute.xlu0 %1223
        %1225 = vrot.lane.b32.xlu0 %v1220, 127
        %v1226 = vpop.permute.xlu0 %1225
        %v1229 = vadd.f32 %v1215, %v1224
        %v1230 = vadd.f32 %v1216, %v1226
        %s1231 = sld [smem:[#allocation11 + $0x2f]]
        %v1232 = vstv %s1231
        %v1233 = vmul.f32 %v1232, %v629
        %v1234 = vmul.f32 %v1232, %v630
        %1237 = vrot.lane.b32.xlu0 %v1233, 126
        %v1238 = vpop.permute.xlu0 %1237
        %1239 = vrot.lane.b32.xlu0 %v1234, 126
        %v1240 = vpop.permute.xlu0 %1239
        %v1243 = vadd.f32 %v1229, %v1238
        %v1244 = vadd.f32 %v1230, %v1240
        %s1245 = sld [smem:[#allocation11 + $0x30]]
        %v1246 = vstv %s1245
        %v1247 = vmul.f32 %v1246, %v631
        %v1248 = vmul.f32 %v1246, %v632
        %v1249 = vadd.f32 %v1243, %v1247
        %v1250 = vadd.f32 %v1244, %v1248
        %s1251 = sld [smem:[#allocation11 + $0x31]]
        %v1252 = vstv %s1251
        %v1253 = vmul.f32 %v1252, %v631
        %v1254 = vmul.f32 %v1252, %v632
        %1257 = vrot.lane.b32.xlu0 %v1253, 127
        %v1258 = vpop.permute.xlu0 %1257
        %1259 = vrot.lane.b32.xlu0 %v1254, 127
        %v1260 = vpop.permute.xlu0 %1259
        %v1263 = vadd.f32 %v1249, %v1258
        %v1264 = vadd.f32 %v1250, %v1260
        %s1265 = sld [smem:[#allocation11 + $0x32]]
        %v1266 = vstv %s1265
        %v1267 = vmul.f32 %v1266, %v631
        %v1268 = vmul.f32 %v1266, %v632
        %1271 = vrot.lane.b32.xlu0 %v1267, 126
        %v1272 = vpop.permute.xlu0 %1271
        %1273 = vrot.lane.b32.xlu0 %v1268, 126
        %v1274 = vpop.permute.xlu0 %1273
        %v1277 = vadd.f32 %v1263, %v1272
        %v1278 = vadd.f32 %v1264, %v1274
        %s1279 = sld [smem:[#allocation11 + $0x33]]
        %v1280 = vstv %s1279
        %v1281 = vmul.f32 %v1280, %v633
        %v1282 = vmul.f32 %v1280, %v634
        %v1283 = vadd.f32 %v1277, %v1281
        %v1284 = vadd.f32 %v1278, %v1282
        %s1285 = sld [smem:[#allocation11 + $0x34]]
        %v1286 = vstv %s1285
        %v1287 = vmul.f32 %v1286, %v633
        %v1288 = vmul.f32 %v1286, %v634
        %1291 = vrot.lane.b32.xlu0 %v1287, 127
        %v1292 = vpop.permute.xlu0 %1291
        %1293 = vrot.lane.b32.xlu0 %v1288, 127
        %v1294 = vpop.permute.xlu0 %1293
        %v1297 = vadd.f32 %v1283, %v1292
        %v1298 = vadd.f32 %v1284, %v1294
        %s1299 = sld [smem:[#allocation11 + $0x35]]
        %v1300 = vstv %s1299
        %v1301 = vmul.f32 %v1300, %v633
        %v1302 = vmul.f32 %v1300, %v634
        %1305 = vrot.lane.b32.xlu0 %v1301, 126
        %v1306 = vpop.permute.xlu0 %1305
        %1307 = vrot.lane.b32.xlu0 %v1302, 126
        %v1308 = vpop.permute.xlu0 %1307
        %v1311 = vadd.f32 %v1297, %v1306
        %v1312 = vadd.f32 %v1298, %v1308
        %s1313 = sld [smem:[#allocation11 + $0x36]]
        %v1314 = vstv %s1313
        %v1315 = vmul.f32 %v1314, %v636
        %v1316 = vmul.f32 %v1314, %v637
        %v1317 = vadd.f32 %v1311, %v1315
        %v1318 = vadd.f32 %v1312, %v1316
        %s1319 = sld [smem:[#allocation11 + $0x37]]
        %v1320 = vstv %s1319
        %v1321 = vmul.f32 %v1320, %v636
        %v1322 = vmul.f32 %v1320, %v637
        %1325 = vrot.lane.b32.xlu0 %v1321, 127
        %v1326 = vpop.permute.xlu0 %1325
        %1327 = vrot.lane.b32.xlu0 %v1322, 127
        %v1328 = vpop.permute.xlu0 %1327
        %v1331 = vadd.f32 %v1317, %v1326
        %v1332 = vadd.f32 %v1318, %v1328
        %s1333 = sld [smem:[#allocation11 + $0x38]]
        %v1334 = vstv %s1333
        %v1335 = vmul.f32 %v1334, %v636
        %v1336 = vmul.f32 %v1334, %v637
        %1339 = vrot.lane.b32.xlu0 %v1335, 126
        %v1340 = vpop.permute.xlu0 %1339
        %1341 = vrot.lane.b32.xlu0 %v1336, 126
        %v1342 = vpop.permute.xlu0 %1341
        %v1345 = vadd.f32 %v1331, %v1340
        %v1346 = vadd.f32 %v1332, %v1342
        %s1347 = sld [smem:[#allocation11 + $0x39]]
        %v1348 = vstv %s1347
        %v1349 = vmul.f32 %v1348, %v638
        %v1350 = vmul.f32 %v1348, %v639
        %v1351 = vadd.f32 %v1345, %v1349
        %v1352 = vadd.f32 %v1346, %v1350
        %s1353 = sld [smem:[#allocation11 + $0x3a]]
        %v1354 = vstv %s1353
        %v1355 = vmul.f32 %v1354, %v638
        %v1356 = vmul.f32 %v1354, %v639
        %1359 = vrot.lane.b32.xlu0 %v1355, 127
        %v1360 = vpop.permute.xlu0 %1359
        %1361 = vrot.lane.b32.xlu0 %v1356, 127
        %v1362 = vpop.permute.xlu0 %1361
        %v1365 = vadd.f32 %v1351, %v1360
        %v1366 = vadd.f32 %v1352, %v1362
        %s1367 = sld [smem:[#allocation11 + $0x3b]]
        %v1368 = vstv %s1367
        %v1369 = vmul.f32 %v1368, %v638
        %v1370 = vmul.f32 %v1368, %v639
        %1373 = vrot.lane.b32.xlu0 %v1369, 126
        %v1374 = vpop.permute.xlu0 %1373
        %1375 = vrot.lane.b32.xlu0 %v1370, 126
        %v1376 = vpop.permute.xlu0 %1375
        %v1379 = vadd.f32 %v1365, %v1374
        %v1380 = vadd.f32 %v1366, %v1376
        %s1381 = sld [smem:[#allocation11 + $0x3c]]
        %v1382 = vstv %s1381
        %v1383 = vmul.f32 %v1382, %v640
        %v1384 = vmul.f32 %v1382, %v641
        %v1385 = vadd.f32 %v1379, %v1383
        %v1386 = vadd.f32 %v1380, %v1384
        %s1387 = sld [smem:[#allocation11 + $0x3d]]
        %v1388 = vstv %s1387
        %v1389 = vmul.f32 %v1388, %v640
        %v1390 = vmul.f32 %v1388, %v641
        %1393 = vrot.lane.b32.xlu0 %v1389, 127
        %v1394 = vpop.permute.xlu0 %1393
        %1395 = vrot.lane.b32.xlu0 %v1390, 127
        %v1396 = vpop.permute.xlu0 %1395
        %v1399 = vadd.f32 %v1385, %v1394
        %v1400 = vadd.f32 %v1386, %v1396
        %s1401 = sld [smem:[#allocation11 + $0x3e]]
        %v1402 = vstv %s1401
        %v1403 = vmul.f32 %v1402, %v640
        %v1404 = vmul.f32 %v1402, %v641
        %1407 = vrot.lane.b32.xlu0 %v1403, 126
        %v1408 = vpop.permute.xlu0 %1407
        %1409 = vrot.lane.b32.xlu0 %v1404, 126
        %v1410 = vpop.permute.xlu0 %1409
        %v1413 = vadd.f32 %v1399, %v1408
        %v1414 = vadd.f32 %v1400, %v1410
        %s1415 = sld [smem:[#allocation11 + $0x3f]]
        %v1416 = vstv %s1415
        %v1417 = vmul.f32 %v1416, %v642
        %v1418 = vmul.f32 %v1416, %v643
        %v1419 = vadd.f32 %v1413, %v1417
        %v1420 = vadd.f32 %v1414, %v1418
        %s1421 = sld [smem:[#allocation11 + $0x40]]
        %v1422 = vstv %s1421
        %v1423 = vmul.f32 %v1422, %v642
        %v1424 = vmul.f32 %v1422, %v643
        %1427 = vrot.lane.b32.xlu0 %v1423, 127
        %v1428 = vpop.permute.xlu0 %1427
        %1429 = vrot.lane.b32.xlu0 %v1424, 127
        %v1430 = vpop.permute.xlu0 %1429
        %v1433 = vadd.f32 %v1419, %v1428
        %v1434 = vadd.f32 %v1420, %v1430
        %s1435 = sld [smem:[#allocation11 + $0x41]]
        %v1436 = vstv %s1435
        %v1437 = vmul.f32 %v1436, %v642
        %v1438 = vmul.f32 %v1436, %v643
        %1441 = vrot.lane.b32.xlu0 %v1437, 126
        %v1442 = vpop.permute.xlu0 %1441
        %1443 = vrot.lane.b32.xlu0 %v1438, 126
        %v1444 = vpop.permute.xlu0 %1443
        %v1447 = vadd.f32 %v1433, %v1442
        %v1448 = vadd.f32 %v1434, %v1444
        %s1449 = sld [smem:[#allocation11 + $0x42]]
        %v1450 = vstv %s1449
        %v1451 = vmul.f32 %v1450, %v644
        %v1452 = vmul.f32 %v1450, %v645
        %v1453 = vadd.f32 %v1447, %v1451
        %v1454 = vadd.f32 %v1448, %v1452
        %s1455 = sld [smem:[#allocation11 + $0x43]]
        %v1456 = vstv %s1455
        %v1457 = vmul.f32 %v1456, %v644
        %v1458 = vmul.f32 %v1456, %v645
        %1461 = vrot.lane.b32.xlu0 %v1457, 127
        %v1462 = vpop.permute.xlu0 %1461
        %1463 = vrot.lane.b32.xlu0 %v1458, 127
        %v1464 = vpop.permute.xlu0 %1463
        %v1467 = vadd.f32 %v1453, %v1462
        %v1468 = vadd.f32 %v1454, %v1464
        %s1469 = sld [smem:[#allocation11 + $0x44]]
        %v1470 = vstv %s1469
        %v1471 = vmul.f32 %v1470, %v644
        %v1472 = vmul.f32 %v1470, %v645
        %1475 = vrot.lane.b32.xlu0 %v1471, 126
        %v1476 = vpop.permute.xlu0 %1475
        %1477 = vrot.lane.b32.xlu0 %v1472, 126
        %v1478 = vpop.permute.xlu0 %1477
        %v1481 = vadd.f32 %v1467, %v1476
        %v1482 = vadd.f32 %v1468, %v1478
        %s1483 = sld [smem:[#allocation11 + $0x45]]
        %v1484 = vstv %s1483
        %v1485 = vmul.f32 %v1484, %v646
        %v1486 = vmul.f32 %v1484, %v647
        %v1487 = vadd.f32 %v1481, %v1485
        %v1488 = vadd.f32 %v1482, %v1486
        %s1489 = sld [smem:[#allocation11 + $0x46]]
        %v1490 = vstv %s1489
        %v1491 = vmul.f32 %v1490, %v646
        %v1492 = vmul.f32 %v1490, %v647
        %1495 = vrot.lane.b32.xlu0 %v1491, 127
        %v1496 = vpop.permute.xlu0 %1495
        %1497 = vrot.lane.b32.xlu0 %v1492, 127
        %v1498 = vpop.permute.xlu0 %1497
        %v1501 = vadd.f32 %v1487, %v1496
        %v1502 = vadd.f32 %v1488, %v1498
        %s1503 = sld [smem:[#allocation11 + $0x47]]
        %v1504 = vstv %s1503
        %v1505 = vmul.f32 %v1504, %v646
        %v1506 = vmul.f32 %v1504, %v647
        %1509 = vrot.lane.b32.xlu0 %v1505, 126
        %v1510 = vpop.permute.xlu0 %1509
        %1511 = vrot.lane.b32.xlu0 %v1506, 126
        %v1512 = vpop.permute.xlu0 %1511
        %v1515 = vadd.f32 %v1501, %v1510
        %v1516 = vadd.f32 %v1502, %v1512
        %v1517 = vmax.f32 %v1515, 0.0
        %v1518 = vmax.f32 %v1516, 0.0
        %1521 = vrot.lane.b32.xlu0 %v1517, 1
        %v1522 = vpop.permute.xlu0 %1521
        %1523 = vrot.lane.b32.xlu0 %v1518, 1
        %v1524 = vpop.permute.xlu0 %1523
        %s1527 = scalar_lea.vmem [#allocation3], 16
        %1528 = vst.msk [vmem:[%s1527] sm:$0xff] %vm500, %v1522
        %1529 = vst.msk [vmem:[%s1527 + $0x8] sm:$0x3] %vm1104, %v1524
        %s1530 = sld [smem:[#allocation12 + $0x2]]
        %v1531 = vstv %s1530
        %v1532 = vadd.f32 %v1531, 0.0
        %s1533 = sld [smem:[#allocation11 + $0x48]]
        %v1534 = vstv %s1533
        %v1535 = vmul.f32 %v1534, %v622
        %v1536 = vmul.f32 %v1534, %v623
        %v1537 = vadd.f32 %v1532, %v1535
        %v1538 = vadd.f32 %v1532, %v1536
        %s1539 = sld [smem:[#allocation11 + $0x49]]
        %v1540 = vstv %s1539
        %v1541 = vmul.f32 %v1540, %v622
        %v1542 = vmul.f32 %v1540, %v623
        %1545 = vrot.lane.b32.xlu0 %v1541, 127
        %v1546 = vpop.permute.xlu0 %1545
        %1547 = vrot.lane.b32.xlu0 %v1542, 127
        %v1548 = vpop.permute.xlu0 %1547
        %v1551 = vadd.f32 %v1537, %v1546
        %v1552 = vadd.f32 %v1538, %v1548
        %s1553 = sld [smem:[#allocation11 + $0x4a]]
        %v1554 = vstv %s1553
        %v1555 = vmul.f32 %v1554, %v622
        %v1556 = vmul.f32 %v1554, %v623
        %1559 = vrot.lane.b32.xlu0 %v1555, 126
        %v1560 = vpop.permute.xlu0 %1559
        %1561 = vrot.lane.b32.xlu0 %v1556, 126
        %v1562 = vpop.permute.xlu0 %1561
        %v1565 = vadd.f32 %v1551, %v1560
        %v1566 = vadd.f32 %v1552, %v1562
        %s1567 = sld [smem:[#allocation11 + $0x4b]]
        %v1568 = vstv %s1567
        %v1569 = vmul.f32 %v1568, %v624
        %v1570 = vmul.f32 %v1568, %v625
        %v1571 = vadd.f32 %v1565, %v1569
        %v1572 = vadd.f32 %v1566, %v1570
        %s1573 = sld [smem:[#allocation11 + $0x4c]]
        %v1574 = vstv %s1573
        %v1575 = vmul.f32 %v1574, %v624
        %v1576 = vmul.f32 %v1574, %v625
        %1579 = vrot.lane.b32.xlu0 %v1575, 127
        %v1580 = vpop.permute.xlu0 %1579
        %1581 = vrot.lane.b32.xlu0 %v1576, 127
        %v1582 = vpop.permute.xlu0 %1581
        %v1585 = vadd.f32 %v1571, %v1580
        %v1586 = vadd.f32 %v1572, %v1582
        %s1587 = sld [smem:[#allocation11 + $0x4d]]
        %v1588 = vstv %s1587
        %v1589 = vmul.f32 %v1588, %v624
        %v1590 = vmul.f32 %v1588, %v625
        %1593 = vrot.lane.b32.xlu0 %v1589, 126
        %v1594 = vpop.permute.xlu0 %1593
        %1595 = vrot.lane.b32.xlu0 %v1590, 126
        %v1596 = vpop.permute.xlu0 %1595
        %v1599 = vadd.f32 %v1585, %v1594
        %v1600 = vadd.f32 %v1586, %v1596
        %s1601 = sld [smem:[#allocation11 + $0x4e]]
        %v1602 = vstv %s1601
        %v1603 = vmul.f32 %v1602, %v626
        %v1604 = vmul.f32 %v1602, %v627
        %v1605 = vadd.f32 %v1599, %v1603
        %v1606 = vadd.f32 %v1600, %v1604
        %s1607 = sld [smem:[#allocation11 + $0x4f]]
        %v1608 = vstv %s1607
        %v1609 = vmul.f32 %v1608, %v626
        %v1610 = vmul.f32 %v1608, %v627
        %1613 = vrot.lane.b32.xlu0 %v1609, 127
        %v1614 = vpop.permute.xlu0 %1613
        %1615 = vrot.lane.b32.xlu0 %v1610, 127
        %v1616 = vpop.permute.xlu0 %1615
        %v1619 = vadd.f32 %v1605, %v1614
        %v1620 = vadd.f32 %v1606, %v1616
        %s1621 = sld [smem:[#allocation11 + $0x50]]
        %v1622 = vstv %s1621
        %v1623 = vmul.f32 %v1622, %v626
        %v1624 = vmul.f32 %v1622, %v627
        %1627 = vrot.lane.b32.xlu0 %v1623, 126
        %v1628 = vpop.permute.xlu0 %1627
        %1629 = vrot.lane.b32.xlu0 %v1624, 126
        %v1630 = vpop.permute.xlu0 %1629
        %v1633 = vadd.f32 %v1619, %v1628
        %v1634 = vadd.f32 %v1620, %v1630
        %s1635 = sld [smem:[#allocation11 + $0x51]]
        %v1636 = vstv %s1635
        %v1637 = vmul.f32 %v1636, %v629
        %v1638 = vmul.f32 %v1636, %v630
        %v1639 = vadd.f32 %v1633, %v1637
        %v1640 = vadd.f32 %v1634, %v1638
        %s1641 = sld [smem:[#allocation11 + $0x52]]
        %v1642 = vstv %s1641
        %v1643 = vmul.f32 %v1642, %v629
        %v1644 = vmul.f32 %v1642, %v630
        %1647 = vrot.lane.b32.xlu0 %v1643, 127
        %v1648 = vpop.permute.xlu0 %1647
        %1649 = vrot.lane.b32.xlu0 %v1644, 127
        %v1650 = vpop.permute.xlu0 %1649
        %v1653 = vadd.f32 %v1639, %v1648
        %v1654 = vadd.f32 %v1640, %v1650
        %s1655 = sld [smem:[#allocation11 + $0x53]]
        %v1656 = vstv %s1655
        %v1657 = vmul.f32 %v1656, %v629
        %v1658 = vmul.f32 %v1656, %v630
        %1661 = vrot.lane.b32.xlu0 %v1657, 126
        %v1662 = vpop.permute.xlu0 %1661
        %1663 = vrot.lane.b32.xlu0 %v1658, 126
        %v1664 = vpop.permute.xlu0 %1663
        %v1667 = vadd.f32 %v1653, %v1662
        %v1668 = vadd.f32 %v1654, %v1664
        %s1669 = sld [smem:[#allocation11 + $0x54]]
        %v1670 = vstv %s1669
        %v1671 = vmul.f32 %v1670, %v631
        %v1672 = vmul.f32 %v1670, %v632
        %v1673 = vadd.f32 %v1667, %v1671
        %v1674 = vadd.f32 %v1668, %v1672
        %s1675 = sld [smem:[#allocation11 + $0x55]]
        %v1676 = vstv %s1675
        %v1677 = vmul.f32 %v1676, %v631
        %v1678 = vmul.f32 %v1676, %v632
        %1681 = vrot.lane.b32.xlu0 %v1677, 127
        %v1682 = vpop.permute.xlu0 %1681
        %1683 = vrot.lane.b32.xlu0 %v1678, 127
        %v1684 = vpop.permute.xlu0 %1683
        %v1687 = vadd.f32 %v1673, %v1682
        %v1688 = vadd.f32 %v1674, %v1684
        %s1689 = sld [smem:[#allocation11 + $0x56]]
        %v1690 = vstv %s1689
        %v1691 = vmul.f32 %v1690, %v631
        %v1692 = vmul.f32 %v1690, %v632
        %1695 = vrot.lane.b32.xlu0 %v1691, 126
        %v1696 = vpop.permute.xlu0 %1695
        %1697 = vrot.lane.b32.xlu0 %v1692, 126
        %v1698 = vpop.permute.xlu0 %1697
        %v1701 = vadd.f32 %v1687, %v1696
        %v1702 = vadd.f32 %v1688, %v1698
        %s1703 = sld [smem:[#allocation11 + $0x57]]
        %v1704 = vstv %s1703
        %v1705 = vmul.f32 %v1704, %v633
        %v1706 = vmul.f32 %v1704, %v634
        %v1707 = vadd.f32 %v1701, %v1705
        %v1708 = vadd.f32 %v1702, %v1706
        %s1709 = sld [smem:[#allocation11 + $0x58]]
        %v1710 = vstv %s1709
        %v1711 = vmul.f32 %v1710, %v633
        %v1712 = vmul.f32 %v1710, %v634
        %1715 = vrot.lane.b32.xlu0 %v1711, 127
        %v1716 = vpop.permute.xlu0 %1715
        %1717 = vrot.lane.b32.xlu0 %v1712, 127
        %v1718 = vpop.permute.xlu0 %1717
        %v1721 = vadd.f32 %v1707, %v1716
        %v1722 = vadd.f32 %v1708, %v1718
        %s1723 = sld [smem:[#allocation11 + $0x59]]
        %v1724 = vstv %s1723
        %v1725 = vmul.f32 %v1724, %v633
        %v1726 = vmul.f32 %v1724, %v634
        %1729 = vrot.lane.b32.xlu0 %v1725, 126
        %v1730 = vpop.permute.xlu0 %1729
        %1731 = vrot.lane.b32.xlu0 %v1726, 126
        %v1732 = vpop.permute.xlu0 %1731
        %v1735 = vadd.f32 %v1721, %v1730
        %v1736 = vadd.f32 %v1722, %v1732
        %s1737 = sld [smem:[#allocation11 + $0x5a]]
        %v1738 = vstv %s1737
        %v1739 = vmul.f32 %v1738, %v636
        %v1740 = vmul.f32 %v1738, %v637
        %v1741 = vadd.f32 %v1735, %v1739
        %v1742 = vadd.f32 %v1736, %v1740
        %s1743 = sld [smem:[#allocation11 + $0x5b]]
        %v1744 = vstv %s1743
        %v1745 = vmul.f32 %v1744, %v636
        %v1746 = vmul.f32 %v1744, %v637
        %1749 = vrot.lane.b32.xlu0 %v1745, 127
        %v1750 = vpop.permute.xlu0 %1749
        %1751 = vrot.lane.b32.xlu0 %v1746, 127
        %v1752 = vpop.permute.xlu0 %1751
        %v1755 = vadd.f32 %v1741, %v1750
        %v1756 = vadd.f32 %v1742, %v1752
        %s1757 = sld [smem:[#allocation11 + $0x5c]]
        %v1758 = vstv %s1757
        %v1759 = vmul.f32 %v1758, %v636
        %v1760 = vmul.f32 %v1758, %v637
        %1763 = vrot.lane.b32.xlu0 %v1759, 126
        %v1764 = vpop.permute.xlu0 %1763
        %1765 = vrot.lane.b32.xlu0 %v1760, 126
        %v1766 = vpop.permute.xlu0 %1765
        %v1769 = vadd.f32 %v1755, %v1764
        %v1770 = vadd.f32 %v1756, %v1766
        %s1771 = sld [smem:[#allocation11 + $0x5d]]
        %v1772 = vstv %s1771
        %v1773 = vmul.f32 %v1772, %v638
        %v1774 = vmul.f32 %v1772, %v639
        %v1775 = vadd.f32 %v1769, %v1773
        %v1776 = vadd.f32 %v1770, %v1774
        %s1777 = sld [smem:[#allocation11 + $0x5e]]
        %v1778 = vstv %s1777
        %v1779 = vmul.f32 %v1778, %v638
        %v1780 = vmul.f32 %v1778, %v639
        %1783 = vrot.lane.b32.xlu0 %v1779, 127
        %v1784 = vpop.permute.xlu0 %1783
        %1785 = vrot.lane.b32.xlu0 %v1780, 127
        %v1786 = vpop.permute.xlu0 %1785
        %v1789 = vadd.f32 %v1775, %v1784
        %v1790 = vadd.f32 %v1776, %v1786
        %s1791 = sld [smem:[#allocation11 + $0x5f]]
        %v1792 = vstv %s1791
        %v1793 = vmul.f32 %v1792, %v638
        %v1794 = vmul.f32 %v1792, %v639
        %1797 = vrot.lane.b32.xlu0 %v1793, 126
        %v1798 = vpop.permute.xlu0 %1797
        %1799 = vrot.lane.b32.xlu0 %v1794, 126
        %v1800 = vpop.permute.xlu0 %1799
        %v1803 = vadd.f32 %v1789, %v1798
        %v1804 = vadd.f32 %v1790, %v1800
        %s1805 = sld [smem:[#allocation11 + $0x60]]
        %v1806 = vstv %s1805
        %v1807 = vmul.f32 %v1806, %v640
        %v1808 = vmul.f32 %v1806, %v641
        %v1809 = vadd.f32 %v1803, %v1807
        %v1810 = vadd.f32 %v1804, %v1808
        %s1811 = sld [smem:[#allocation11 + $0x61]]
        %v1812 = vstv %s1811
        %v1813 = vmul.f32 %v1812, %v640
        %v1814 = vmul.f32 %v1812, %v641
        %1817 = vrot.lane.b32.xlu0 %v1813, 127
        %v1818 = vpop.permute.xlu0 %1817
        %1819 = vrot.lane.b32.xlu0 %v1814, 127
        %v1820 = vpop.permute.xlu0 %1819
        %v1823 = vadd.f32 %v1809, %v1818
        %v1824 = vadd.f32 %v1810, %v1820
        %s1825 = sld [smem:[#allocation11 + $0x62]]
        %v1826 = vstv %s1825
        %v1827 = vmul.f32 %v1826, %v640
        %v1828 = vmul.f32 %v1826, %v641
        %1831 = vrot.lane.b32.xlu0 %v1827, 126
        %v1832 = vpop.permute.xlu0 %1831
        %1833 = vrot.lane.b32.xlu0 %v1828, 126
        %v1834 = vpop.permute.xlu0 %1833
        %v1837 = vadd.f32 %v1823, %v1832
        %v1838 = vadd.f32 %v1824, %v1834
        %s1839 = sld [smem:[#allocation11 + $0x63]]
        %v1840 = vstv %s1839
        %v1841 = vmul.f32 %v1840, %v642
        %v1842 = vmul.f32 %v1840, %v643
        %v1843 = vadd.f32 %v1837, %v1841
        %v1844 = vadd.f32 %v1838, %v1842
        %s1845 = sld [smem:[#allocation11 + $0x64]]
        %v1846 = vstv %s1845
        %v1847 = vmul.f32 %v1846, %v642
        %v1848 = vmul.f32 %v1846, %v643
        %1851 = vrot.lane.b32.xlu0 %v1847, 127
        %v1852 = vpop.permute.xlu0 %1851
        %1853 = vrot.lane.b32.xlu0 %v1848, 127
        %v1854 = vpop.permute.xlu0 %1853
        %v1857 = vadd.f32 %v1843, %v1852
        %v1858 = vadd.f32 %v1844, %v1854
        %s1859 = sld [smem:[#allocation11 + $0x65]]
        %v1860 = vstv %s1859
        %v1861 = vmul.f32 %v1860, %v642
        %v1862 = vmul.f32 %v1860, %v643
        %1865 = vrot.lane.b32.xlu0 %v1861, 126
        %v1866 = vpop.permute.xlu0 %1865
        %1867 = vrot.lane.b32.xlu0 %v1862, 126
        %v1868 = vpop.permute.xlu0 %1867
        %v1871 = vadd.f32 %v1857, %v1866
        %v1872 = vadd.f32 %v1858, %v1868
        %s1873 = sld [smem:[#allocation11 + $0x66]]
        %v1874 = vstv %s1873
        %v1875 = vmul.f32 %v1874, %v644
        %v1876 = vmul.f32 %v1874, %v645
        %v1877 = vadd.f32 %v1871, %v1875
        %v1878 = vadd.f32 %v1872, %v1876
        %s1879 = sld [smem:[#allocation11 + $0x67]]
        %v1880 = vstv %s1879
        %v1881 = vmul.f32 %v1880, %v644
        %v1882 = vmul.f32 %v1880, %v645
        %1885 = vrot.lane.b32.xlu0 %v1881, 127
        %v1886 = vpop.permute.xlu0 %1885
        %1887 = vrot.lane.b32.xlu0 %v1882, 127
        %v1888 = vpop.permute.xlu0 %1887
        %v1891 = vadd.f32 %v1877, %v1886
        %v1892 = vadd.f32 %v1878, %v1888
        %s1893 = sld [smem:[#allocation11 + $0x68]]
        %v1894 = vstv %s1893
        %v1895 = vmul.f32 %v1894, %v644
        %v1896 = vmul.f32 %v1894, %v645
        %1899 = vrot.lane.b32.xlu0 %v1895, 126
        %v1900 = vpop.permute.xlu0 %1899
        %1901 = vrot.lane.b32.xlu0 %v1896, 126
        %v1902 = vpop.permute.xlu0 %1901
        %v1905 = vadd.f32 %v1891, %v1900
        %v1906 = vadd.f32 %v1892, %v1902
        %s1907 = sld [smem:[#allocation11 + $0x69]]
        %v1908 = vstv %s1907
        %v1909 = vmul.f32 %v1908, %v646
        %v1910 = vmul.f32 %v1908, %v647
        %v1911 = vadd.f32 %v1905, %v1909
        %v1912 = vadd.f32 %v1906, %v1910
        %s1913 = sld [smem:[#allocation11 + $0x6a]]
        %v1914 = vstv %s1913
        %v1915 = vmul.f32 %v1914, %v646
        %v1916 = vmul.f32 %v1914, %v647
        %1919 = vrot.lane.b32.xlu0 %v1915, 127
        %v1920 = vpop.permute.xlu0 %1919
        %1921 = vrot.lane.b32.xlu0 %v1916, 127
        %v1922 = vpop.permute.xlu0 %1921
        %v1925 = vadd.f32 %v1911, %v1920
        %v1926 = vadd.f32 %v1912, %v1922
        %s1927 = sld [smem:[#allocation11 + $0x6b]]
        %v1928 = vstv %s1927
        %v1929 = vmul.f32 %v1928, %v646
        %v1930 = vmul.f32 %v1928, %v647
        %1933 = vrot.lane.b32.xlu0 %v1929, 126
        %v1934 = vpop.permute.xlu0 %1933
        %1935 = vrot.lane.b32.xlu0 %v1930, 126
        %v1936 = vpop.permute.xlu0 %1935
        %v1939 = vadd.f32 %v1925, %v1934
        %v1940 = vadd.f32 %v1926, %v1936
        %v1941 = vmax.f32 %v1939, 0.0
        %v1942 = vmax.f32 %v1940, 0.0
        %1945 = vrot.lane.b32.xlu0 %v1941, 1
        %v1946 = vpop.permute.xlu0 %1945
        %1947 = vrot.lane.b32.xlu0 %v1942, 1
        %v1948 = vpop.permute.xlu0 %1947
        %s1951 = scalar_lea.vmem [#allocation3], 32
        %1952 = vst.msk [vmem:[%s1951] sm:$0xff] %vm500, %v1946
        %1953 = vst.msk [vmem:[%s1951 + $0x8] sm:$0x3] %vm1104, %v1948
        %s1954 = sld [smem:[#allocation12 + $0x3]]
        %v1955 = vstv %s1954
        %v1956 = vadd.f32 %v1955, 0.0
        %s1957 = sld [smem:[#allocation11 + $0x6c]]
        %v1958 = vstv %s1957
        %v1959 = vmul.f32 %v1958, %v622
        %v1960 = vmul.f32 %v1958, %v623
        %v1961 = vadd.f32 %v1956, %v1959
        %v1962 = vadd.f32 %v1956, %v1960
        %s1963 = sld [smem:[#allocation11 + $0x6d]]
        %v1964 = vstv %s1963
        %v1965 = vmul.f32 %v1964, %v622
        %v1966 = vmul.f32 %v1964, %v623
        %1969 = vrot.lane.b32.xlu0 %v1965, 127
        %v1970 = vpop.permute.xlu0 %1969
        %1971 = vrot.lane.b32.xlu0 %v1966, 127
        %v1972 = vpop.permute.xlu0 %1971
        %v1975 = vadd.f32 %v1961, %v1970
        %v1976 = vadd.f32 %v1962, %v1972
        %s1977 = sld [smem:[#allocation11 + $0x6e]]
        %v1978 = vstv %s1977
        %v1979 = vmul.f32 %v1978, %v622
        %v1980 = vmul.f32 %v1978, %v623
        %1983 = vrot.lane.b32.xlu0 %v1979, 126
        %v1984 = vpop.permute.xlu0 %1983
        %1985 = vrot.lane.b32.xlu0 %v1980, 126
        %v1986 = vpop.permute.xlu0 %1985
        %v1989 = vadd.f32 %v1975, %v1984
        %v1990 = vadd.f32 %v1976, %v1986
        %s1991 = sld [smem:[#allocation11 + $0x6f]]
        %v1992 = vstv %s1991
        %v1993 = vmul.f32 %v1992, %v624
        %v1994 = vmul.f32 %v1992, %v625
        %v1995 = vadd.f32 %v1989, %v1993
        %v1996 = vadd.f32 %v1990, %v1994
        %s1997 = sld [smem:[#allocation11 + $0x70]]
        %v1998 = vstv %s1997
        %v1999 = vmul.f32 %v1998, %v624
        %v2000 = vmul.f32 %v1998, %v625
        %2003 = vrot.lane.b32.xlu0 %v1999, 127
        %v2004 = vpop.permute.xlu0 %2003
        %2005 = vrot.lane.b32.xlu0 %v2000, 127
        %v2006 = vpop.permute.xlu0 %2005
        %v2009 = vadd.f32 %v1995, %v2004
        %v2010 = vadd.f32 %v1996, %v2006
        %s2011 = sld [smem:[#allocation11 + $0x71]]
        %v2012 = vstv %s2011
        %v2013 = vmul.f32 %v2012, %v624
        %v2014 = vmul.f32 %v2012, %v625
        %2017 = vrot.lane.b32.xlu0 %v2013, 126
        %v2018 = vpop.permute.xlu0 %2017
        %2019 = vrot.lane.b32.xlu0 %v2014, 126
        %v2020 = vpop.permute.xlu0 %2019
        %v2023 = vadd.f32 %v2009, %v2018
        %v2024 = vadd.f32 %v2010, %v2020
        %s2025 = sld [smem:[#allocation11 + $0x72]]
        %v2026 = vstv %s2025
        %v2027 = vmul.f32 %v2026, %v626
        %v2028 = vmul.f32 %v2026, %v627
        %v2029 = vadd.f32 %v2023, %v2027
        %v2030 = vadd.f32 %v2024, %v2028
        %s2031 = sld [smem:[#allocation11 + $0x73]]
        %v2032 = vstv %s2031
        %v2033 = vmul.f32 %v2032, %v626
        %v2034 = vmul.f32 %v2032, %v627
        %2037 = vrot.lane.b32.xlu0 %v2033, 127
        %v2038 = vpop.permute.xlu0 %2037
        %2039 = vrot.lane.b32.xlu0 %v2034, 127
        %v2040 = vpop.permute.xlu0 %2039
        %v2043 = vadd.f32 %v2029, %v2038
        %v2044 = vadd.f32 %v2030, %v2040
        %s2045 = sld [smem:[#allocation11 + $0x74]]
        %v2046 = vstv %s2045
        %v2047 = vmul.f32 %v2046, %v626
        %v2048 = vmul.f32 %v2046, %v627
        %2051 = vrot.lane.b32.xlu0 %v2047, 126
        %v2052 = vpop.permute.xlu0 %2051
        %2053 = vrot.lane.b32.xlu0 %v2048, 126
        %v2054 = vpop.permute.xlu0 %2053
        %v2057 = vadd.f32 %v2043, %v2052
        %v2058 = vadd.f32 %v2044, %v2054
        %s2059 = sld [smem:[#allocation11 + $0x75]]
        %v2060 = vstv %s2059
        %v2061 = vmul.f32 %v2060, %v629
        %v2062 = vmul.f32 %v2060, %v630
        %v2063 = vadd.f32 %v2057, %v2061
        %v2064 = vadd.f32 %v2058, %v2062
        %s2065 = sld [smem:[#allocation11 + $0x76]]
        %v2066 = vstv %s2065
        %v2067 = vmul.f32 %v2066, %v629
        %v2068 = vmul.f32 %v2066, %v630
        %2071 = vrot.lane.b32.xlu0 %v2067, 127
        %v2072 = vpop.permute.xlu0 %2071
        %2073 = vrot.lane.b32.xlu0 %v2068, 127
        %v2074 = vpop.permute.xlu0 %2073
        %v2077 = vadd.f32 %v2063, %v2072
        %v2078 = vadd.f32 %v2064, %v2074
        %s2079 = sld [smem:[#allocation11 + $0x77]]
        %v2080 = vstv %s2079
        %v2081 = vmul.f32 %v2080, %v629
        %v2082 = vmul.f32 %v2080, %v630
        %2085 = vrot.lane.b32.xlu0 %v2081, 126
        %v2086 = vpop.permute.xlu0 %2085
        %2087 = vrot.lane.b32.xlu0 %v2082, 126
        %v2088 = vpop.permute.xlu0 %2087
        %v2091 = vadd.f32 %v2077, %v2086
        %v2092 = vadd.f32 %v2078, %v2088
        %s2093 = sld [smem:[#allocation11 + $0x78]]
        %v2094 = vstv %s2093
        %v2095 = vmul.f32 %v2094, %v631
        %v2096 = vmul.f32 %v2094, %v632
        %v2097 = vadd.f32 %v2091, %v2095
        %v2098 = vadd.f32 %v2092, %v2096
        %s2099 = sld [smem:[#allocation11 + $0x79]]
        %v2100 = vstv %s2099
        %v2101 = vmul.f32 %v2100, %v631
        %v2102 = vmul.f32 %v2100, %v632
        %2105 = vrot.lane.b32.xlu0 %v2101, 127
        %v2106 = vpop.permute.xlu0 %2105
        %2107 = vrot.lane.b32.xlu0 %v2102, 127
        %v2108 = vpop.permute.xlu0 %2107
        %v2111 = vadd.f32 %v2097, %v2106
        %v2112 = vadd.f32 %v2098, %v2108
        %s2113 = sld [smem:[#allocation11 + $0x7a]]
        %v2114 = vstv %s2113
        %v2115 = vmul.f32 %v2114, %v631
        %v2116 = vmul.f32 %v2114, %v632
        %2119 = vrot.lane.b32.xlu0 %v2115, 126
        %v2120 = vpop.permute.xlu0 %2119
        %2121 = vrot.lane.b32.xlu0 %v2116, 126
        %v2122 = vpop.permute.xlu0 %2121
        %v2125 = vadd.f32 %v2111, %v2120
        %v2126 = vadd.f32 %v2112, %v2122
        %s2127 = sld [smem:[#allocation11 + $0x7b]]
        %v2128 = vstv %s2127
        %v2129 = vmul.f32 %v2128, %v633
        %v2130 = vmul.f32 %v2128, %v634
        %v2131 = vadd.f32 %v2125, %v2129
        %v2132 = vadd.f32 %v2126, %v2130
        %s2133 = sld [smem:[#allocation11 + $0x7c]]
        %v2134 = vstv %s2133
        %v2135 = vmul.f32 %v2134, %v633
        %v2136 = vmul.f32 %v2134, %v634
        %2139 = vrot.lane.b32.xlu0 %v2135, 127
        %v2140 = vpop.permute.xlu0 %2139
        %2141 = vrot.lane.b32.xlu0 %v2136, 127
        %v2142 = vpop.permute.xlu0 %2141
        %v2145 = vadd.f32 %v2131, %v2140
        %v2146 = vadd.f32 %v2132, %v2142
        %s2147 = sld [smem:[#allocation11 + $0x7d]]
        %v2148 = vstv %s2147
        %v2149 = vmul.f32 %v2148, %v633
        %v2150 = vmul.f32 %v2148, %v634
        %2153 = vrot.lane.b32.xlu0 %v2149, 126
        %v2154 = vpop.permute.xlu0 %2153
        %2155 = vrot.lane.b32.xlu0 %v2150, 126
        %v2156 = vpop.permute.xlu0 %2155
        %v2159 = vadd.f32 %v2145, %v2154
        %v2160 = vadd.f32 %v2146, %v2156
        %s2161 = sld [smem:[#allocation11 + $0x7e]]
        %v2162 = vstv %s2161
        %v2163 = vmul.f32 %v2162, %v636
        %v2164 = vmul.f32 %v2162, %v637
        %v2165 = vadd.f32 %v2159, %v2163
        %v2166 = vadd.f32 %v2160, %v2164
        %s2167 = sld [smem:[#allocation11 + $0x7f]]
        %v2168 = vstv %s2167
        %v2169 = vmul.f32 %v2168, %v636
        %v2170 = vmul.f32 %v2168, %v637
        %2173 = vrot.lane.b32.xlu0 %v2169, 127
        %v2174 = vpop.permute.xlu0 %2173
        %2175 = vrot.lane.b32.xlu0 %v2170, 127
        %v2176 = vpop.permute.xlu0 %2175
        %v2179 = vadd.f32 %v2165, %v2174
        %v2180 = vadd.f32 %v2166, %v2176
        %s2181 = sld [smem:[#allocation11 + $0x80]]
        %v2182 = vstv %s2181
        %v2183 = vmul.f32 %v2182, %v636
        %v2184 = vmul.f32 %v2182, %v637
        %2187 = vrot.lane.b32.xlu0 %v2183, 126
        %v2188 = vpop.permute.xlu0 %2187
        %2189 = vrot.lane.b32.xlu0 %v2184, 126
        %v2190 = vpop.permute.xlu0 %2189
        %v2193 = vadd.f32 %v2179, %v2188
        %v2194 = vadd.f32 %v2180, %v2190
        %s2195 = sld [smem:[#allocation11 + $0x81]]
        %v2196 = vstv %s2195
        %v2197 = vmul.f32 %v2196, %v638
        %v2198 = vmul.f32 %v2196, %v639
        %v2199 = vadd.f32 %v2193, %v2197
        %v2200 = vadd.f32 %v2194, %v2198
        %s2201 = sld [smem:[#allocation11 + $0x82]]
        %v2202 = vstv %s2201
        %v2203 = vmul.f32 %v2202, %v638
        %v2204 = vmul.f32 %v2202, %v639
        %2207 = vrot.lane.b32.xlu0 %v2203, 127
        %v2208 = vpop.permute.xlu0 %2207
        %2209 = vrot.lane.b32.xlu0 %v2204, 127
        %v2210 = vpop.permute.xlu0 %2209
        %v2213 = vadd.f32 %v2199, %v2208
        %v2214 = vadd.f32 %v2200, %v2210
        %s2215 = sld [smem:[#allocation11 + $0x83]]
        %v2216 = vstv %s2215
        %v2217 = vmul.f32 %v2216, %v638
        %v2218 = vmul.f32 %v2216, %v639
        %2221 = vrot.lane.b32.xlu0 %v2217, 126
        %v2222 = vpop.permute.xlu0 %2221
        %2223 = vrot.lane.b32.xlu0 %v2218, 126
        %v2224 = vpop.permute.xlu0 %2223
        %v2227 = vadd.f32 %v2213, %v2222
        %v2228 = vadd.f32 %v2214, %v2224
        %s2229 = sld [smem:[#allocation11 + $0x84]]
        %v2230 = vstv %s2229
        %v2231 = vmul.f32 %v2230, %v640
        %v2232 = vmul.f32 %v2230, %v641
        %v2233 = vadd.f32 %v2227, %v2231
        %v2234 = vadd.f32 %v2228, %v2232
        %s2235 = sld [smem:[#allocation11 + $0x85]]
        %v2236 = vstv %s2235
        %v2237 = vmul.f32 %v2236, %v640
        %v2238 = vmul.f32 %v2236, %v641
        %2241 = vrot.lane.b32.xlu0 %v2237, 127
        %v2242 = vpop.permute.xlu0 %2241
        %2243 = vrot.lane.b32.xlu0 %v2238, 127
        %v2244 = vpop.permute.xlu0 %2243
        %v2247 = vadd.f32 %v2233, %v2242
        %v2248 = vadd.f32 %v2234, %v2244
        %s2249 = sld [smem:[#allocation11 + $0x86]]
        %v2250 = vstv %s2249
        %v2251 = vmul.f32 %v2250, %v640
        %v2252 = vmul.f32 %v2250, %v641
        %2255 = vrot.lane.b32.xlu0 %v2251, 126
        %v2256 = vpop.permute.xlu0 %2255
        %2257 = vrot.lane.b32.xlu0 %v2252, 126
        %v2258 = vpop.permute.xlu0 %2257
        %v2261 = vadd.f32 %v2247, %v2256
        %v2262 = vadd.f32 %v2248, %v2258
        %s2263 = sld [smem:[#allocation11 + $0x87]]
        %v2264 = vstv %s2263
        %v2265 = vmul.f32 %v2264, %v642
        %v2266 = vmul.f32 %v2264, %v643
        %v2267 = vadd.f32 %v2261, %v2265
        %v2268 = vadd.f32 %v2262, %v2266
        %s2269 = sld [smem:[#allocation11 + $0x88]]
        %v2270 = vstv %s2269
        %v2271 = vmul.f32 %v2270, %v642
        %v2272 = vmul.f32 %v2270, %v643
        %2275 = vrot.lane.b32.xlu0 %v2271, 127
        %v2276 = vpop.permute.xlu0 %2275
        %2277 = vrot.lane.b32.xlu0 %v2272, 127
        %v2278 = vpop.permute.xlu0 %2277
        %v2281 = vadd.f32 %v2267, %v2276
        %v2282 = vadd.f32 %v2268, %v2278
        %s2283 = sld [smem:[#allocation11 + $0x89]]
        %v2284 = vstv %s2283
        %v2285 = vmul.f32 %v2284, %v642
        %v2286 = vmul.f32 %v2284, %v643
        %2289 = vrot.lane.b32.xlu0 %v2285, 126
        %v2290 = vpop.permute.xlu0 %2289
        %2291 = vrot.lane.b32.xlu0 %v2286, 126
        %v2292 = vpop.permute.xlu0 %2291
        %v2295 = vadd.f32 %v2281, %v2290
        %v2296 = vadd.f32 %v2282, %v2292
        %s2297 = sld [smem:[#allocation11 + $0x8a]]
        %v2298 = vstv %s2297
        %v2299 = vmul.f32 %v2298, %v644
        %v2300 = vmul.f32 %v2298, %v645
        %v2301 = vadd.f32 %v2295, %v2299
        %v2302 = vadd.f32 %v2296, %v2300
        %s2303 = sld [smem:[#allocation11 + $0x8b]]
        %v2304 = vstv %s2303
        %v2305 = vmul.f32 %v2304, %v644
        %v2306 = vmul.f32 %v2304, %v645
        %2309 = vrot.lane.b32.xlu0 %v2305, 127
        %v2310 = vpop.permute.xlu0 %2309
        %2311 = vrot.lane.b32.xlu0 %v2306, 127
        %v2312 = vpop.permute.xlu0 %2311
        %v2315 = vadd.f32 %v2301, %v2310
        %v2316 = vadd.f32 %v2302, %v2312
        %s2317 = sld [smem:[#allocation11 + $0x8c]]
        %v2318 = vstv %s2317
        %v2319 = vmul.f32 %v2318, %v644
        %v2320 = vmul.f32 %v2318, %v645
        %2323 = vrot.lane.b32.xlu0 %v2319, 126
        %v2324 = vpop.permute.xlu0 %2323
        %2325 = vrot.lane.b32.xlu0 %v2320, 126
        %v2326 = vpop.permute.xlu0 %2325
        %v2329 = vadd.f32 %v2315, %v2324
        %v2330 = vadd.f32 %v2316, %v2326
        %s2331 = sld [smem:[#allocation11 + $0x8d]]
        %v2332 = vstv %s2331
        %v2333 = vmul.f32 %v2332, %v646
        %v2334 = vmul.f32 %v2332, %v647
        %v2335 = vadd.f32 %v2329, %v2333
        %v2336 = vadd.f32 %v2330, %v2334
        %s2337 = sld [smem:[#allocation11 + $0x8e]]
        %v2338 = vstv %s2337
        %v2339 = vmul.f32 %v2338, %v646
        %v2340 = vmul.f32 %v2338, %v647
        %2343 = vrot.lane.b32.xlu0 %v2339, 127
        %v2344 = vpop.permute.xlu0 %2343
        %2345 = vrot.lane.b32.xlu0 %v2340, 127
        %v2346 = vpop.permute.xlu0 %2345
        %v2349 = vadd.f32 %v2335, %v2344
        %v2350 = vadd.f32 %v2336, %v2346
        %s2351 = sld [smem:[#allocation11 + $0x8f]]
        %v2352 = vstv %s2351
        %v2353 = vmul.f32 %v2352, %v646
        %v2354 = vmul.f32 %v2352, %v647
        %2357 = vrot.lane.b32.xlu0 %v2353, 126
        %v2358 = vpop.permute.xlu0 %2357
        %2359 = vrot.lane.b32.xlu0 %v2354, 126
        %v2360 = vpop.permute.xlu0 %2359
        %v2363 = vadd.f32 %v2349, %v2358
        %v2364 = vadd.f32 %v2350, %v2360
        %v2365 = vmax.f32 %v2363, 0.0
        %v2366 = vmax.f32 %v2364, 0.0
        %2369 = vrot.lane.b32.xlu0 %v2365, 1
        %v2370 = vpop.permute.xlu0 %2369
        %2371 = vrot.lane.b32.xlu0 %v2366, 1
        %v2372 = vpop.permute.xlu0 %2371
        %s2375 = scalar_lea.vmem [#allocation3], 48
        %2376 = vst.msk [vmem:[%s2375] sm:$0xff] %vm500, %v2370
        %2377 = vst.msk [vmem:[%s2375 + $0x8] sm:$0x3] %vm1104, %v2372
        %s2378 = sld [smem:[#allocation12 + $0x4]]
        %v2379 = vstv %s2378
        %v2380 = vadd.f32 %v2379, 0.0
        %s2381 = sld [smem:[#allocation11 + $0x90]]
        %v2382 = vstv %s2381
        %v2383 = vmul.f32 %v2382, %v622
        %v2384 = vmul.f32 %v2382, %v623
        %v2385 = vadd.f32 %v2380, %v2383
        %v2386 = vadd.f32 %v2380, %v2384
        %s2387 = sld [smem:[#allocation11 + $0x91]]
        %v2388 = vstv %s2387
        %v2389 = vmul.f32 %v2388, %v622
        %v2390 = vmul.f32 %v2388, %v623
        %2393 = vrot.lane.b32.xlu0 %v2389, 127
        %v2394 = vpop.permute.xlu0 %2393
        %2395 = vrot.lane.b32.xlu0 %v2390, 127
        %v2396 = vpop.permute.xlu0 %2395
        %v2399 = vadd.f32 %v2385, %v2394
        %v2400 = vadd.f32 %v2386, %v2396
        %s2401 = sld [smem:[#allocation11 + $0x92]]
        %v2402 = vstv %s2401
        %v2403 = vmul.f32 %v2402, %v622
        %v2404 = vmul.f32 %v2402, %v623
        %2407 = vrot.lane.b32.xlu0 %v2403, 126
        %v2408 = vpop.permute.xlu0 %2407
        %2409 = vrot.lane.b32.xlu0 %v2404, 126
        %v2410 = vpop.permute.xlu0 %2409
        %v2413 = vadd.f32 %v2399, %v2408
        %v2414 = vadd.f32 %v2400, %v2410
        %s2415 = sld [smem:[#allocation11 + $0x93]]
        %v2416 = vstv %s2415
        %v2417 = vmul.f32 %v2416, %v624
        %v2418 = vmul.f32 %v2416, %v625
        %v2419 = vadd.f32 %v2413, %v2417
        %v2420 = vadd.f32 %v2414, %v2418
        %s2421 = sld [smem:[#allocation11 + $0x94]]
        %v2422 = vstv %s2421
        %v2423 = vmul.f32 %v2422, %v624
        %v2424 = vmul.f32 %v2422, %v625
        %2427 = vrot.lane.b32.xlu0 %v2423, 127
        %v2428 = vpop.permute.xlu0 %2427
        %2429 = vrot.lane.b32.xlu0 %v2424, 127
        %v2430 = vpop.permute.xlu0 %2429
        %v2433 = vadd.f32 %v2419, %v2428
        %v2434 = vadd.f32 %v2420, %v2430
        %s2435 = sld [smem:[#allocation11 + $0x95]]
        %v2436 = vstv %s2435
        %v2437 = vmul.f32 %v2436, %v624
        %v2438 = vmul.f32 %v2436, %v625
        %2441 = vrot.lane.b32.xlu0 %v2437, 126
        %v2442 = vpop.permute.xlu0 %2441
        %2443 = vrot.lane.b32.xlu0 %v2438, 126
        %v2444 = vpop.permute.xlu0 %2443
        %v2447 = vadd.f32 %v2433, %v2442
        %v2448 = vadd.f32 %v2434, %v2444
        %s2449 = sld [smem:[#allocation11 + $0x96]]
        %v2450 = vstv %s2449
        %v2451 = vmul.f32 %v2450, %v626
        %v2452 = vmul.f32 %v2450, %v627
        %v2453 = vadd.f32 %v2447, %v2451
        %v2454 = vadd.f32 %v2448, %v2452
        %s2455 = sld [smem:[#allocation11 + $0x97]]
        %v2456 = vstv %s2455
        %v2457 = vmul.f32 %v2456, %v626
        %v2458 = vmul.f32 %v2456, %v627
        %2461 = vrot.lane.b32.xlu0 %v2457, 127
        %v2462 = vpop.permute.xlu0 %2461
        %2463 = vrot.lane.b32.xlu0 %v2458, 127
        %v2464 = vpop.permute.xlu0 %2463
        %v2467 = vadd.f32 %v2453, %v2462
        %v2468 = vadd.f32 %v2454, %v2464
        %s2469 = sld [smem:[#allocation11 + $0x98]]
        %v2470 = vstv %s2469
        %v2471 = vmul.f32 %v2470, %v626
        %v2472 = vmul.f32 %v2470, %v627
        %2475 = vrot.lane.b32.xlu0 %v2471, 126
        %v2476 = vpop.permute.xlu0 %2475
        %2477 = vrot.lane.b32.xlu0 %v2472, 126
        %v2478 = vpop.permute.xlu0 %2477
        %v2481 = vadd.f32 %v2467, %v2476
        %v2482 = vadd.f32 %v2468, %v2478
        %s2483 = sld [smem:[#allocation11 + $0x99]]
        %v2484 = vstv %s2483
        %v2485 = vmul.f32 %v2484, %v629
        %v2486 = vmul.f32 %v2484, %v630
        %v2487 = vadd.f32 %v2481, %v2485
        %v2488 = vadd.f32 %v2482, %v2486
        %s2489 = sld [smem:[#allocation11 + $0x9a]]
        %v2490 = vstv %s2489
        %v2491 = vmul.f32 %v2490, %v629
        %v2492 = vmul.f32 %v2490, %v630
        %2495 = vrot.lane.b32.xlu0 %v2491, 127
        %v2496 = vpop.permute.xlu0 %2495
        %2497 = vrot.lane.b32.xlu0 %v2492, 127
        %v2498 = vpop.permute.xlu0 %2497
        %v2501 = vadd.f32 %v2487, %v2496
        %v2502 = vadd.f32 %v2488, %v2498
        %s2503 = sld [smem:[#allocation11 + $0x9b]]
        %v2504 = vstv %s2503
        %v2505 = vmul.f32 %v2504, %v629
        %v2506 = vmul.f32 %v2504, %v630
        %2509 = vrot.lane.b32.xlu0 %v2505, 126
        %v2510 = vpop.permute.xlu0 %2509
        %2511 = vrot.lane.b32.xlu0 %v2506, 126
        %v2512 = vpop.permute.xlu0 %2511
        %v2515 = vadd.f32 %v2501, %v2510
        %v2516 = vadd.f32 %v2502, %v2512
        %s2517 = sld [smem:[#allocation11 + $0x9c]]
        %v2518 = vstv %s2517
        %v2519 = vmul.f32 %v2518, %v631
        %v2520 = vmul.f32 %v2518, %v632
        %v2521 = vadd.f32 %v2515, %v2519
        %v2522 = vadd.f32 %v2516, %v2520
        %s2523 = sld [smem:[#allocation11 + $0x9d]]
        %v2524 = vstv %s2523
        %v2525 = vmul.f32 %v2524, %v631
        %v2526 = vmul.f32 %v2524, %v632
        %2529 = vrot.lane.b32.xlu0 %v2525, 127
        %v2530 = vpop.permute.xlu0 %2529
        %2531 = vrot.lane.b32.xlu0 %v2526, 127
        %v2532 = vpop.permute.xlu0 %2531
        %v2535 = vadd.f32 %v2521, %v2530
        %v2536 = vadd.f32 %v2522, %v2532
        %s2537 = sld [smem:[#allocation11 + $0x9e]]
        %v2538 = vstv %s2537
        %v2539 = vmul.f32 %v2538, %v631
        %v2540 = vmul.f32 %v2538, %v632
        %2543 = vrot.lane.b32.xlu0 %v2539, 126
        %v2544 = vpop.permute.xlu0 %2543
        %2545 = vrot.lane.b32.xlu0 %v2540, 126
        %v2546 = vpop.permute.xlu0 %2545
        %v2549 = vadd.f32 %v2535, %v2544
        %v2550 = vadd.f32 %v2536, %v2546
        %s2551 = sld [smem:[#allocation11 + $0x9f]]
        %v2552 = vstv %s2551
        %v2553 = vmul.f32 %v2552, %v633
        %v2554 = vmul.f32 %v2552, %v634
        %v2555 = vadd.f32 %v2549, %v2553
        %v2556 = vadd.f32 %v2550, %v2554
        %s2557 = sld [smem:[#allocation11 + $0xa0]]
        %v2558 = vstv %s2557
        %v2559 = vmul.f32 %v2558, %v633
        %v2560 = vmul.f32 %v2558, %v634
        %2563 = vrot.lane.b32.xlu0 %v2559, 127
        %v2564 = vpop.permute.xlu0 %2563
        %2565 = vrot.lane.b32.xlu0 %v2560, 127
        %v2566 = vpop.permute.xlu0 %2565
        %v2569 = vadd.f32 %v2555, %v2564
        %v2570 = vadd.f32 %v2556, %v2566
        %s2571 = sld [smem:[#allocation11 + $0xa1]]
        %v2572 = vstv %s2571
        %v2573 = vmul.f32 %v2572, %v633
        %v2574 = vmul.f32 %v2572, %v634
        %2577 = vrot.lane.b32.xlu0 %v2573, 126
        %v2578 = vpop.permute.xlu0 %2577
        %2579 = vrot.lane.b32.xlu0 %v2574, 126
        %v2580 = vpop.permute.xlu0 %2579
        %v2583 = vadd.f32 %v2569, %v2578
        %v2584 = vadd.f32 %v2570, %v2580
        %s2585 = sld [smem:[#allocation11 + $0xa2]]
        %v2586 = vstv %s2585
        %v2587 = vmul.f32 %v2586, %v636
        %v2588 = vmul.f32 %v2586, %v637
        %v2589 = vadd.f32 %v2583, %v2587
        %v2590 = vadd.f32 %v2584, %v2588
        %s2591 = sld [smem:[#allocation11 + $0xa3]]
        %v2592 = vstv %s2591
        %v2593 = vmul.f32 %v2592, %v636
        %v2594 = vmul.f32 %v2592, %v637
        %2597 = vrot.lane.b32.xlu0 %v2593, 127
        %v2598 = vpop.permute.xlu0 %2597
        %2599 = vrot.lane.b32.xlu0 %v2594, 127
        %v2600 = vpop.permute.xlu0 %2599
        %v2603 = vadd.f32 %v2589, %v2598
        %v2604 = vadd.f32 %v2590, %v2600
        %s2605 = sld [smem:[#allocation11 + $0xa4]]
        %v2606 = vstv %s2605
        %v2607 = vmul.f32 %v2606, %v636
        %v2608 = vmul.f32 %v2606, %v637
        %2611 = vrot.lane.b32.xlu0 %v2607, 126
        %v2612 = vpop.permute.xlu0 %2611
        %2613 = vrot.lane.b32.xlu0 %v2608, 126
        %v2614 = vpop.permute.xlu0 %2613
        %v2617 = vadd.f32 %v2603, %v2612
        %v2618 = vadd.f32 %v2604, %v2614
        %s2619 = sld [smem:[#allocation11 + $0xa5]]
        %v2620 = vstv %s2619
        %v2621 = vmul.f32 %v2620, %v638
        %v2622 = vmul.f32 %v2620, %v639
        %v2623 = vadd.f32 %v2617, %v2621
        %v2624 = vadd.f32 %v2618, %v2622
        %s2625 = sld [smem:[#allocation11 + $0xa6]]
        %v2626 = vstv %s2625
        %v2627 = vmul.f32 %v2626, %v638
        %v2628 = vmul.f32 %v2626, %v639
        %2631 = vrot.lane.b32.xlu0 %v2627, 127
        %v2632 = vpop.permute.xlu0 %2631
        %2633 = vrot.lane.b32.xlu0 %v2628, 127
        %v2634 = vpop.permute.xlu0 %2633
        %v2637 = vadd.f32 %v2623, %v2632
        %v2638 = vadd.f32 %v2624, %v2634
        %s2639 = sld [smem:[#allocation11 + $0xa7]]
        %v2640 = vstv %s2639
        %v2641 = vmul.f32 %v2640, %v638
        %v2642 = vmul.f32 %v2640, %v639
        %2645 = vrot.lane.b32.xlu0 %v2641, 126
        %v2646 = vpop.permute.xlu0 %2645
        %2647 = vrot.lane.b32.xlu0 %v2642, 126
        %v2648 = vpop.permute.xlu0 %2647
        %v2651 = vadd.f32 %v2637, %v2646
        %v2652 = vadd.f32 %v2638, %v2648
        %s2653 = sld [smem:[#allocation11 + $0xa8]]
        %v2654 = vstv %s2653
        %v2655 = vmul.f32 %v2654, %v640
        %v2656 = vmul.f32 %v2654, %v641
        %v2657 = vadd.f32 %v2651, %v2655
        %v2658 = vadd.f32 %v2652, %v2656
        %s2659 = sld [smem:[#allocation11 + $0xa9]]
        %v2660 = vstv %s2659
        %v2661 = vmul.f32 %v2660, %v640
        %v2662 = vmul.f32 %v2660, %v641
        %2665 = vrot.lane.b32.xlu0 %v2661, 127
        %v2666 = vpop.permute.xlu0 %2665
        %2667 = vrot.lane.b32.xlu0 %v2662, 127
        %v2668 = vpop.permute.xlu0 %2667
        %v2671 = vadd.f32 %v2657, %v2666
        %v2672 = vadd.f32 %v2658, %v2668
        %s2673 = sld [smem:[#allocation11 + $0xaa]]
        %v2674 = vstv %s2673
        %v2675 = vmul.f32 %v2674, %v640
        %v2676 = vmul.f32 %v2674, %v641
        %2679 = vrot.lane.b32.xlu0 %v2675, 126
        %v2680 = vpop.permute.xlu0 %2679
        %2681 = vrot.lane.b32.xlu0 %v2676, 126
        %v2682 = vpop.permute.xlu0 %2681
        %v2685 = vadd.f32 %v2671, %v2680
        %v2686 = vadd.f32 %v2672, %v2682
        %s2687 = sld [smem:[#allocation11 + $0xab]]
        %v2688 = vstv %s2687
        %v2689 = vmul.f32 %v2688, %v642
        %v2690 = vmul.f32 %v2688, %v643
        %v2691 = vadd.f32 %v2685, %v2689
        %v2692 = vadd.f32 %v2686, %v2690
        %s2693 = sld [smem:[#allocation11 + $0xac]]
        %v2694 = vstv %s2693
        %v2695 = vmul.f32 %v2694, %v642
        %v2696 = vmul.f32 %v2694, %v643
        %2699 = vrot.lane.b32.xlu0 %v2695, 127
        %v2700 = vpop.permute.xlu0 %2699
        %2701 = vrot.lane.b32.xlu0 %v2696, 127
        %v2702 = vpop.permute.xlu0 %2701
        %v2705 = vadd.f32 %v2691, %v2700
        %v2706 = vadd.f32 %v2692, %v2702
        %s2707 = sld [smem:[#allocation11 + $0xad]]
        %v2708 = vstv %s2707
        %v2709 = vmul.f32 %v2708, %v642
        %v2710 = vmul.f32 %v2708, %v643
        %2713 = vrot.lane.b32.xlu0 %v2709, 126
        %v2714 = vpop.permute.xlu0 %2713
        %2715 = vrot.lane.b32.xlu0 %v2710, 126
        %v2716 = vpop.permute.xlu0 %2715
        %v2719 = vadd.f32 %v2705, %v2714
        %v2720 = vadd.f32 %v2706, %v2716
        %s2721 = sld [smem:[#allocation11 + $0xae]]
        %v2722 = vstv %s2721
        %v2723 = vmul.f32 %v2722, %v644
        %v2724 = vmul.f32 %v2722, %v645
        %v2725 = vadd.f32 %v2719, %v2723
        %v2726 = vadd.f32 %v2720, %v2724
        %s2727 = sld [smem:[#allocation11 + $0xaf]]
        %v2728 = vstv %s2727
        %v2729 = vmul.f32 %v2728, %v644
        %v2730 = vmul.f32 %v2728, %v645
        %2733 = vrot.lane.b32.xlu0 %v2729, 127
        %v2734 = vpop.permute.xlu0 %2733
        %2735 = vrot.lane.b32.xlu0 %v2730, 127
        %v2736 = vpop.permute.xlu0 %2735
        %v2739 = vadd.f32 %v2725, %v2734
        %v2740 = vadd.f32 %v2726, %v2736
        %s2741 = sld [smem:[#allocation11 + $0xb0]]
        %v2742 = vstv %s2741
        %v2743 = vmul.f32 %v2742, %v644
        %v2744 = vmul.f32 %v2742, %v645
        %2747 = vrot.lane.b32.xlu0 %v2743, 126
        %v2748 = vpop.permute.xlu0 %2747
        %2749 = vrot.lane.b32.xlu0 %v2744, 126
        %v2750 = vpop.permute.xlu0 %2749
        %v2753 = vadd.f32 %v2739, %v2748
        %v2754 = vadd.f32 %v2740, %v2750
        %s2755 = sld [smem:[#allocation11 + $0xb1]]
        %v2756 = vstv %s2755
        %v2757 = vmul.f32 %v2756, %v646
        %v2758 = vmul.f32 %v2756, %v647
        %v2759 = vadd.f32 %v2753, %v2757
        %v2760 = vadd.f32 %v2754, %v2758
        %s2761 = sld [smem:[#allocation11 + $0xb2]]
        %v2762 = vstv %s2761
        %v2763 = vmul.f32 %v2762, %v646
        %v2764 = vmul.f32 %v2762, %v647
        %2767 = vrot.lane.b32.xlu0 %v2763, 127
        %v2768 = vpop.permute.xlu0 %2767
        %2769 = vrot.lane.b32.xlu0 %v2764, 127
        %v2770 = vpop.permute.xlu0 %2769
        %v2773 = vadd.f32 %v2759, %v2768
        %v2774 = vadd.f32 %v2760, %v2770
        %s2775 = sld [smem:[#allocation11 + $0xb3]]
        %v2776 = vstv %s2775
        %v2777 = vmul.f32 %v2776, %v646
        %v2778 = vmul.f32 %v2776, %v647
        %2781 = vrot.lane.b32.xlu0 %v2777, 126
        %v2782 = vpop.permute.xlu0 %2781
        %2783 = vrot.lane.b32.xlu0 %v2778, 126
        %v2784 = vpop.permute.xlu0 %2783
        %v2787 = vadd.f32 %v2773, %v2782
        %v2788 = vadd.f32 %v2774, %v2784
        %v2789 = vmax.f32 %v2787, 0.0
        %v2790 = vmax.f32 %v2788, 0.0
        %2793 = vrot.lane.b32.xlu0 %v2789, 1
        %v2794 = vpop.permute.xlu0 %2793
        %2795 = vrot.lane.b32.xlu0 %v2790, 1
        %v2796 = vpop.permute.xlu0 %2795
        %s2799 = scalar_lea.vmem [#allocation3], 64
        %2800 = vst.msk [vmem:[%s2799] sm:$0xff] %vm500, %v2794
        %2801 = vst.msk [vmem:[%s2799 + $0x8] sm:$0x3] %vm1104, %v2796
        %s2802 = sld [smem:[#allocation12 + $0x5]]
        %v2803 = vstv %s2802
        %v2804 = vadd.f32 %v2803, 0.0
        %s2805 = sld [smem:[#allocation11 + $0xb4]]
        %v2806 = vstv %s2805
        %v2807 = vmul.f32 %v2806, %v622
        %v2808 = vmul.f32 %v2806, %v623
        %v2809 = vadd.f32 %v2804, %v2807
        %v2810 = vadd.f32 %v2804, %v2808
        %s2811 = sld [smem:[#allocation11 + $0xb5]]
        %v2812 = vstv %s2811
        %v2813 = vmul.f32 %v2812, %v622
        %v2814 = vmul.f32 %v2812, %v623
        %2817 = vrot.lane.b32.xlu0 %v2813, 127
        %v2818 = vpop.permute.xlu0 %2817
        %2819 = vrot.lane.b32.xlu0 %v2814, 127
        %v2820 = vpop.permute.xlu0 %2819
        %v2823 = vadd.f32 %v2809, %v2818
        %v2824 = vadd.f32 %v2810, %v2820
        %s2825 = sld [smem:[#allocation11 + $0xb6]]
        %v2826 = vstv %s2825
        %v2827 = vmul.f32 %v2826, %v622
        %v2828 = vmul.f32 %v2826, %v623
        %2831 = vrot.lane.b32.xlu0 %v2827, 126
        %v2832 = vpop.permute.xlu0 %2831
        %2833 = vrot.lane.b32.xlu0 %v2828, 126
        %v2834 = vpop.permute.xlu0 %2833
        %v2837 = vadd.f32 %v2823, %v2832
        %v2838 = vadd.f32 %v2824, %v2834
        %s2839 = sld [smem:[#allocation11 + $0xb7]]
        %v2840 = vstv %s2839
        %v2841 = vmul.f32 %v2840, %v624
        %v2842 = vmul.f32 %v2840, %v625
        %v2843 = vadd.f32 %v2837, %v2841
        %v2844 = vadd.f32 %v2838, %v2842
        %s2845 = sld [smem:[#allocation11 + $0xb8]]
        %v2846 = vstv %s2845
        %v2847 = vmul.f32 %v2846, %v624
        %v2848 = vmul.f32 %v2846, %v625
        %2851 = vrot.lane.b32.xlu0 %v2847, 127
        %v2852 = vpop.permute.xlu0 %2851
        %2853 = vrot.lane.b32.xlu0 %v2848, 127
        %v2854 = vpop.permute.xlu0 %2853
        %v2857 = vadd.f32 %v2843, %v2852
        %v2858 = vadd.f32 %v2844, %v2854
        %s2859 = sld [smem:[#allocation11 + $0xb9]]
        %v2860 = vstv %s2859
        %v2861 = vmul.f32 %v2860, %v624
        %v2862 = vmul.f32 %v2860, %v625
        %2865 = vrot.lane.b32.xlu0 %v2861, 126
        %v2866 = vpop.permute.xlu0 %2865
        %2867 = vrot.lane.b32.xlu0 %v2862, 126
        %v2868 = vpop.permute.xlu0 %2867
        %v2871 = vadd.f32 %v2857, %v2866
        %v2872 = vadd.f32 %v2858, %v2868
        %s2873 = sld [smem:[#allocation11 + $0xba]]
        %v2874 = vstv %s2873
        %v2875 = vmul.f32 %v2874, %v626
        %v2876 = vmul.f32 %v2874, %v627
        %v2877 = vadd.f32 %v2871, %v2875
        %v2878 = vadd.f32 %v2872, %v2876
        %s2879 = sld [smem:[#allocation11 + $0xbb]]
        %v2880 = vstv %s2879
        %v2881 = vmul.f32 %v2880, %v626
        %v2882 = vmul.f32 %v2880, %v627
        %2885 = vrot.lane.b32.xlu0 %v2881, 127
        %v2886 = vpop.permute.xlu0 %2885
        %2887 = vrot.lane.b32.xlu0 %v2882, 127
        %v2888 = vpop.permute.xlu0 %2887
        %v2891 = vadd.f32 %v2877, %v2886
        %v2892 = vadd.f32 %v2878, %v2888
        %s2893 = sld [smem:[#allocation11 + $0xbc]]
        %v2894 = vstv %s2893
        %v2895 = vmul.f32 %v2894, %v626
        %v2896 = vmul.f32 %v2894, %v627
        %2899 = vrot.lane.b32.xlu0 %v2895, 126
        %v2900 = vpop.permute.xlu0 %2899
        %2901 = vrot.lane.b32.xlu0 %v2896, 126
        %v2902 = vpop.permute.xlu0 %2901
        %v2905 = vadd.f32 %v2891, %v2900
        %v2906 = vadd.f32 %v2892, %v2902
        %s2907 = sld [smem:[#allocation11 + $0xbd]]
        %v2908 = vstv %s2907
        %v2909 = vmul.f32 %v2908, %v629
        %v2910 = vmul.f32 %v2908, %v630
        %v2911 = vadd.f32 %v2905, %v2909
        %v2912 = vadd.f32 %v2906, %v2910
        %s2913 = sld [smem:[#allocation11 + $0xbe]]
        %v2914 = vstv %s2913
        %v2915 = vmul.f32 %v2914, %v629
        %v2916 = vmul.f32 %v2914, %v630
        %2919 = vrot.lane.b32.xlu0 %v2915, 127
        %v2920 = vpop.permute.xlu0 %2919
        %2921 = vrot.lane.b32.xlu0 %v2916, 127
        %v2922 = vpop.permute.xlu0 %2921
        %v2925 = vadd.f32 %v2911, %v2920
        %v2926 = vadd.f32 %v2912, %v2922
        %s2927 = sld [smem:[#allocation11 + $0xbf]]
        %v2928 = vstv %s2927
        %v2929 = vmul.f32 %v2928, %v629
        %v2930 = vmul.f32 %v2928, %v630
        %2933 = vrot.lane.b32.xlu0 %v2929, 126
        %v2934 = vpop.permute.xlu0 %2933
        %2935 = vrot.lane.b32.xlu0 %v2930, 126
        %v2936 = vpop.permute.xlu0 %2935
        %v2939 = vadd.f32 %v2925, %v2934
        %v2940 = vadd.f32 %v2926, %v2936
        %s2941 = sld [smem:[#allocation11 + $0xc0]]
        %v2942 = vstv %s2941
        %v2943 = vmul.f32 %v2942, %v631
        %v2944 = vmul.f32 %v2942, %v632
        %v2945 = vadd.f32 %v2939, %v2943
        %v2946 = vadd.f32 %v2940, %v2944
        %s2947 = sld [smem:[#allocation11 + $0xc1]]
        %v2948 = vstv %s2947
        %v2949 = vmul.f32 %v2948, %v631
        %v2950 = vmul.f32 %v2948, %v632
        %2953 = vrot.lane.b32.xlu0 %v2949, 127
        %v2954 = vpop.permute.xlu0 %2953
        %2955 = vrot.lane.b32.xlu0 %v2950, 127
        %v2956 = vpop.permute.xlu0 %2955
        %v2959 = vadd.f32 %v2945, %v2954
        %v2960 = vadd.f32 %v2946, %v2956
        %s2961 = sld [smem:[#allocation11 + $0xc2]]
        %v2962 = vstv %s2961
        %v2963 = vmul.f32 %v2962, %v631
        %v2964 = vmul.f32 %v2962, %v632
        %2967 = vrot.lane.b32.xlu0 %v2963, 126
        %v2968 = vpop.permute.xlu0 %2967
        %2969 = vrot.lane.b32.xlu0 %v2964, 126
        %v2970 = vpop.permute.xlu0 %2969
        %v2973 = vadd.f32 %v2959, %v2968
        %v2974 = vadd.f32 %v2960, %v2970
        %s2975 = sld [smem:[#allocation11 + $0xc3]]
        %v2976 = vstv %s2975
        %v2977 = vmul.f32 %v2976, %v633
        %v2978 = vmul.f32 %v2976, %v634
        %v2979 = vadd.f32 %v2973, %v2977
        %v2980 = vadd.f32 %v2974, %v2978
        %s2981 = sld [smem:[#allocation11 + $0xc4]]
        %v2982 = vstv %s2981
        %v2983 = vmul.f32 %v2982, %v633
        %v2984 = vmul.f32 %v2982, %v634
        %2987 = vrot.lane.b32.xlu0 %v2983, 127
        %v2988 = vpop.permute.xlu0 %2987
        %2989 = vrot.lane.b32.xlu0 %v2984, 127
        %v2990 = vpop.permute.xlu0 %2989
        %v2993 = vadd.f32 %v2979, %v2988
        %v2994 = vadd.f32 %v2980, %v2990
        %s2995 = sld [smem:[#allocation11 + $0xc5]]
        %v2996 = vstv %s2995
        %v2997 = vmul.f32 %v2996, %v633
        %v2998 = vmul.f32 %v2996, %v634
        %3001 = vrot.lane.b32.xlu0 %v2997, 126
        %v3002 = vpop.permute.xlu0 %3001
        %3003 = vrot.lane.b32.xlu0 %v2998, 126
        %v3004 = vpop.permute.xlu0 %3003
        %v3007 = vadd.f32 %v2993, %v3002
        %v3008 = vadd.f32 %v2994, %v3004
        %s3009 = sld [smem:[#allocation11 + $0xc6]]
        %v3010 = vstv %s3009
        %v3011 = vmul.f32 %v3010, %v636
        %v3012 = vmul.f32 %v3010, %v637
        %v3013 = vadd.f32 %v3007, %v3011
        %v3014 = vadd.f32 %v3008, %v3012
        %s3015 = sld [smem:[#allocation11 + $0xc7]]
        %v3016 = vstv %s3015
        %v3017 = vmul.f32 %v3016, %v636
        %v3018 = vmul.f32 %v3016, %v637
        %3021 = vrot.lane.b32.xlu0 %v3017, 127
        %v3022 = vpop.permute.xlu0 %3021
        %3023 = vrot.lane.b32.xlu0 %v3018, 127
        %v3024 = vpop.permute.xlu0 %3023
        %v3027 = vadd.f32 %v3013, %v3022
        %v3028 = vadd.f32 %v3014, %v3024
        %s3029 = sld [smem:[#allocation11 + $0xc8]]
        %v3030 = vstv %s3029
        %v3031 = vmul.f32 %v3030, %v636
        %v3032 = vmul.f32 %v3030, %v637
        %3035 = vrot.lane.b32.xlu0 %v3031, 126
        %v3036 = vpop.permute.xlu0 %3035
        %3037 = vrot.lane.b32.xlu0 %v3032, 126
        %v3038 = vpop.permute.xlu0 %3037
        %v3041 = vadd.f32 %v3027, %v3036
        %v3042 = vadd.f32 %v3028, %v3038
        %s3043 = sld [smem:[#allocation11 + $0xc9]]
        %v3044 = vstv %s3043
        %v3045 = vmul.f32 %v3044, %v638
        %v3046 = vmul.f32 %v3044, %v639
        %v3047 = vadd.f32 %v3041, %v3045
        %v3048 = vadd.f32 %v3042, %v3046
        %s3049 = sld [smem:[#allocation11 + $0xca]]
        %v3050 = vstv %s3049
        %v3051 = vmul.f32 %v3050, %v638
        %v3052 = vmul.f32 %v3050, %v639
        %3055 = vrot.lane.b32.xlu0 %v3051, 127
        %v3056 = vpop.permute.xlu0 %3055
        %3057 = vrot.lane.b32.xlu0 %v3052, 127
        %v3058 = vpop.permute.xlu0 %3057
        %v3061 = vadd.f32 %v3047, %v3056
        %v3062 = vadd.f32 %v3048, %v3058
        %s3063 = sld [smem:[#allocation11 + $0xcb]]
        %v3064 = vstv %s3063
        %v3065 = vmul.f32 %v3064, %v638
        %v3066 = vmul.f32 %v3064, %v639
        %3069 = vrot.lane.b32.xlu0 %v3065, 126
        %v3070 = vpop.permute.xlu0 %3069
        %3071 = vrot.lane.b32.xlu0 %v3066, 126
        %v3072 = vpop.permute.xlu0 %3071
        %v3075 = vadd.f32 %v3061, %v3070
        %v3076 = vadd.f32 %v3062, %v3072
        %s3077 = sld [smem:[#allocation11 + $0xcc]]
        %v3078 = vstv %s3077
        %v3079 = vmul.f32 %v3078, %v640
        %v3080 = vmul.f32 %v3078, %v641
        %v3081 = vadd.f32 %v3075, %v3079
        %v3082 = vadd.f32 %v3076, %v3080
        %s3083 = sld [smem:[#allocation11 + $0xcd]]
        %v3084 = vstv %s3083
        %v3085 = vmul.f32 %v3084, %v640
        %v3086 = vmul.f32 %v3084, %v641
        %3089 = vrot.lane.b32.xlu0 %v3085, 127
        %v3090 = vpop.permute.xlu0 %3089
        %3091 = vrot.lane.b32.xlu0 %v3086, 127
        %v3092 = vpop.permute.xlu0 %3091
        %v3095 = vadd.f32 %v3081, %v3090
        %v3096 = vadd.f32 %v3082, %v3092
        %s3097 = sld [smem:[#allocation11 + $0xce]]
        %v3098 = vstv %s3097
        %v3099 = vmul.f32 %v3098, %v640
        %v3100 = vmul.f32 %v3098, %v641
        %3103 = vrot.lane.b32.xlu0 %v3099, 126
        %v3104 = vpop.permute.xlu0 %3103
        %3105 = vrot.lane.b32.xlu0 %v3100, 126
        %v3106 = vpop.permute.xlu0 %3105
        %v3109 = vadd.f32 %v3095, %v3104
        %v3110 = vadd.f32 %v3096, %v3106
        %s3111 = sld [smem:[#allocation11 + $0xcf]]
        %v3112 = vstv %s3111
        %v3113 = vmul.f32 %v3112, %v642
        %v3114 = vmul.f32 %v3112, %v643
        %v3115 = vadd.f32 %v3109, %v3113
        %v3116 = vadd.f32 %v3110, %v3114
        %s3117 = sld [smem:[#allocation11 + $0xd0]]
        %v3118 = vstv %s3117
        %v3119 = vmul.f32 %v3118, %v642
        %v3120 = vmul.f32 %v3118, %v643
        %3123 = vrot.lane.b32.xlu0 %v3119, 127
        %v3124 = vpop.permute.xlu0 %3123
        %3125 = vrot.lane.b32.xlu0 %v3120, 127
        %v3126 = vpop.permute.xlu0 %3125
        %v3129 = vadd.f32 %v3115, %v3124
        %v3130 = vadd.f32 %v3116, %v3126
        %s3131 = sld [smem:[#allocation11 + $0xd1]]
        %v3132 = vstv %s3131
        %v3133 = vmul.f32 %v3132, %v642
        %v3134 = vmul.f32 %v3132, %v643
        %3137 = vrot.lane.b32.xlu0 %v3133, 126
        %v3138 = vpop.permute.xlu0 %3137
        %3139 = vrot.lane.b32.xlu0 %v3134, 126
        %v3140 = vpop.permute.xlu0 %3139
        %v3143 = vadd.f32 %v3129, %v3138
        %v3144 = vadd.f32 %v3130, %v3140
        %s3145 = sld [smem:[#allocation11 + $0xd2]]
        %v3146 = vstv %s3145
        %v3147 = vmul.f32 %v3146, %v644
        %v3148 = vmul.f32 %v3146, %v645
        %v3149 = vadd.f32 %v3143, %v3147
        %v3150 = vadd.f32 %v3144, %v3148
        %s3151 = sld [smem:[#allocation11 + $0xd3]]
        %v3152 = vstv %s3151
        %v3153 = vmul.f32 %v3152, %v644
        %v3154 = vmul.f32 %v3152, %v645
        %3157 = vrot.lane.b32.xlu0 %v3153, 127
        %v3158 = vpop.permute.xlu0 %3157
        %3159 = vrot.lane.b32.xlu0 %v3154, 127
        %v3160 = vpop.permute.xlu0 %3159
        %v3163 = vadd.f32 %v3149, %v3158
        %v3164 = vadd.f32 %v3150, %v3160
        %s3165 = sld [smem:[#allocation11 + $0xd4]]
        %v3166 = vstv %s3165
        %v3167 = vmul.f32 %v3166, %v644
        %v3168 = vmul.f32 %v3166, %v645
        %3171 = vrot.lane.b32.xlu0 %v3167, 126
        %v3172 = vpop.permute.xlu0 %3171
        %3173 = vrot.lane.b32.xlu0 %v3168, 126
        %v3174 = vpop.permute.xlu0 %3173
        %v3177 = vadd.f32 %v3163, %v3172
        %v3178 = vadd.f32 %v3164, %v3174
        %s3179 = sld [smem:[#allocation11 + $0xd5]]
        %v3180 = vstv %s3179
        %v3181 = vmul.f32 %v3180, %v646
        %v3182 = vmul.f32 %v3180, %v647
        %v3183 = vadd.f32 %v3177, %v3181
        %v3184 = vadd.f32 %v3178, %v3182
        %s3185 = sld [smem:[#allocation11 + $0xd6]]
        %v3186 = vstv %s3185
        %v3187 = vmul.f32 %v3186, %v646
        %v3188 = vmul.f32 %v3186, %v647
        %3191 = vrot.lane.b32.xlu0 %v3187, 127
        %v3192 = vpop.permute.xlu0 %3191
        %3193 = vrot.lane.b32.xlu0 %v3188, 127
        %v3194 = vpop.permute.xlu0 %3193
        %v3197 = vadd.f32 %v3183, %v3192
        %v3198 = vadd.f32 %v3184, %v3194
        %s3199 = sld [smem:[#allocation11 + $0xd7]]
        %v3200 = vstv %s3199
        %v3201 = vmul.f32 %v3200, %v646
        %v3202 = vmul.f32 %v3200, %v647
        %3205 = vrot.lane.b32.xlu0 %v3201, 126
        %v3206 = vpop.permute.xlu0 %3205
        %3207 = vrot.lane.b32.xlu0 %v3202, 126
        %v3208 = vpop.permute.xlu0 %3207
        %v3211 = vadd.f32 %v3197, %v3206
        %v3212 = vadd.f32 %v3198, %v3208
        %v3213 = vmax.f32 %v3211, 0.0
        %v3214 = vmax.f32 %v3212, 0.0
        %3217 = vrot.lane.b32.xlu0 %v3213, 1
        %v3218 = vpop.permute.xlu0 %3217
        %3219 = vrot.lane.b32.xlu0 %v3214, 1
        %v3220 = vpop.permute.xlu0 %3219
        %s3223 = scalar_lea.vmem [#allocation3], 80
        %3224 = vst.msk [vmem:[%s3223] sm:$0xff] %vm500, %v3218
        %3225 = vst.msk [vmem:[%s3223 + $0x8] sm:$0x3] %vm1104, %v3220
        %s3226 = sld [smem:[#allocation12 + $0x6]]
        %v3227 = vstv %s3226
        %v3228 = vadd.f32 %v3227, 0.0
        %s3229 = sld [smem:[#allocation11 + $0xd8]]
        %v3230 = vstv %s3229
        %v3231 = vmul.f32 %v3230, %v622
        %v3232 = vmul.f32 %v3230, %v623
        %v3233 = vadd.f32 %v3228, %v3231
        %v3234 = vadd.f32 %v3228, %v3232
        %s3235 = sld [smem:[#allocation11 + $0xd9]]
        %v3236 = vstv %s3235
        %v3237 = vmul.f32 %v3236, %v622
        %v3238 = vmul.f32 %v3236, %v623
        %3241 = vrot.lane.b32.xlu0 %v3237, 127
        %v3242 = vpop.permute.xlu0 %3241
        %3243 = vrot.lane.b32.xlu0 %v3238, 127
        %v3244 = vpop.permute.xlu0 %3243
        %v3247 = vadd.f32 %v3233, %v3242
        %v3248 = vadd.f32 %v3234, %v3244
        %s3249 = sld [smem:[#allocation11 + $0xda]]
        %v3250 = vstv %s3249
        %v3251 = vmul.f32 %v3250, %v622
        %v3252 = vmul.f32 %v3250, %v623
        %3255 = vrot.lane.b32.xlu0 %v3251, 126
        %v3256 = vpop.permute.xlu0 %3255
        %3257 = vrot.lane.b32.xlu0 %v3252, 126
        %v3258 = vpop.permute.xlu0 %3257
        %v3261 = vadd.f32 %v3247, %v3256
        %v3262 = vadd.f32 %v3248, %v3258
        %s3263 = sld [smem:[#allocation11 + $0xdb]]
        %v3264 = vstv %s3263
        %v3265 = vmul.f32 %v3264, %v624
        %v3266 = vmul.f32 %v3264, %v625
        %v3267 = vadd.f32 %v3261, %v3265
        %v3268 = vadd.f32 %v3262, %v3266
        %s3269 = sld [smem:[#allocation11 + $0xdc]]
        %v3270 = vstv %s3269
        %v3271 = vmul.f32 %v3270, %v624
        %v3272 = vmul.f32 %v3270, %v625
        %3275 = vrot.lane.b32.xlu0 %v3271, 127
        %v3276 = vpop.permute.xlu0 %3275
        %3277 = vrot.lane.b32.xlu0 %v3272, 127
        %v3278 = vpop.permute.xlu0 %3277
        %v3281 = vadd.f32 %v3267, %v3276
        %v3282 = vadd.f32 %v3268, %v3278
        %s3283 = sld [smem:[#allocation11 + $0xdd]]
        %v3284 = vstv %s3283
        %v3285 = vmul.f32 %v3284, %v624
        %v3286 = vmul.f32 %v3284, %v625
        %3289 = vrot.lane.b32.xlu0 %v3285, 126
        %v3290 = vpop.permute.xlu0 %3289
        %3291 = vrot.lane.b32.xlu0 %v3286, 126
        %v3292 = vpop.permute.xlu0 %3291
        %v3295 = vadd.f32 %v3281, %v3290
        %v3296 = vadd.f32 %v3282, %v3292
        %s3297 = sld [smem:[#allocation11 + $0xde]]
        %v3298 = vstv %s3297
        %v3299 = vmul.f32 %v3298, %v626
        %v3300 = vmul.f32 %v3298, %v627
        %v3301 = vadd.f32 %v3295, %v3299
        %v3302 = vadd.f32 %v3296, %v3300
        %s3303 = sld [smem:[#allocation11 + $0xdf]]
        %v3304 = vstv %s3303
        %v3305 = vmul.f32 %v3304, %v626
        %v3306 = vmul.f32 %v3304, %v627
        %3309 = vrot.lane.b32.xlu0 %v3305, 127
        %v3310 = vpop.permute.xlu0 %3309
        %3311 = vrot.lane.b32.xlu0 %v3306, 127
        %v3312 = vpop.permute.xlu0 %3311
        %v3315 = vadd.f32 %v3301, %v3310
        %v3316 = vadd.f32 %v3302, %v3312
        %s3317 = sld [smem:[#allocation11 + $0xe0]]
        %v3318 = vstv %s3317
        %v3319 = vmul.f32 %v3318, %v626
        %v3320 = vmul.f32 %v3318, %v627
        %3323 = vrot.lane.b32.xlu0 %v3319, 126
        %v3324 = vpop.permute.xlu0 %3323
        %3325 = vrot.lane.b32.xlu0 %v3320, 126
        %v3326 = vpop.permute.xlu0 %3325
        %v3329 = vadd.f32 %v3315, %v3324
        %v3330 = vadd.f32 %v3316, %v3326
        %s3331 = sld [smem:[#allocation11 + $0xe1]]
        %v3332 = vstv %s3331
        %v3333 = vmul.f32 %v3332, %v629
        %v3334 = vmul.f32 %v3332, %v630
        %v3335 = vadd.f32 %v3329, %v3333
        %v3336 = vadd.f32 %v3330, %v3334
        %s3337 = sld [smem:[#allocation11 + $0xe2]]
        %v3338 = vstv %s3337
        %v3339 = vmul.f32 %v3338, %v629
        %v3340 = vmul.f32 %v3338, %v630
        %3343 = vrot.lane.b32.xlu0 %v3339, 127
        %v3344 = vpop.permute.xlu0 %3343
        %3345 = vrot.lane.b32.xlu0 %v3340, 127
        %v3346 = vpop.permute.xlu0 %3345
        %v3349 = vadd.f32 %v3335, %v3344
        %v3350 = vadd.f32 %v3336, %v3346
        %s3351 = sld [smem:[#allocation11 + $0xe3]]
        %v3352 = vstv %s3351
        %v3353 = vmul.f32 %v3352, %v629
        %v3354 = vmul.f32 %v3352, %v630
        %3357 = vrot.lane.b32.xlu0 %v3353, 126
        %v3358 = vpop.permute.xlu0 %3357
        %3359 = vrot.lane.b32.xlu0 %v3354, 126
        %v3360 = vpop.permute.xlu0 %3359
        %v3363 = vadd.f32 %v3349, %v3358
        %v3364 = vadd.f32 %v3350, %v3360
        %s3365 = sld [smem:[#allocation11 + $0xe4]]
        %v3366 = vstv %s3365
        %v3367 = vmul.f32 %v3366, %v631
        %v3368 = vmul.f32 %v3366, %v632
        %v3369 = vadd.f32 %v3363, %v3367
        %v3370 = vadd.f32 %v3364, %v3368
        %s3371 = sld [smem:[#allocation11 + $0xe5]]
        %v3372 = vstv %s3371
        %v3373 = vmul.f32 %v3372, %v631
        %v3374 = vmul.f32 %v3372, %v632
        %3377 = vrot.lane.b32.xlu0 %v3373, 127
        %v3378 = vpop.permute.xlu0 %3377
        %3379 = vrot.lane.b32.xlu0 %v3374, 127
        %v3380 = vpop.permute.xlu0 %3379
        %v3383 = vadd.f32 %v3369, %v3378
        %v3384 = vadd.f32 %v3370, %v3380
        %s3385 = sld [smem:[#allocation11 + $0xe6]]
        %v3386 = vstv %s3385
        %v3387 = vmul.f32 %v3386, %v631
        %v3388 = vmul.f32 %v3386, %v632
        %3391 = vrot.lane.b32.xlu0 %v3387, 126
        %v3392 = vpop.permute.xlu0 %3391
        %3393 = vrot.lane.b32.xlu0 %v3388, 126
        %v3394 = vpop.permute.xlu0 %3393
        %v3397 = vadd.f32 %v3383, %v3392
        %v3398 = vadd.f32 %v3384, %v3394
        %s3399 = sld [smem:[#allocation11 + $0xe7]]
        %v3400 = vstv %s3399
        %v3401 = vmul.f32 %v3400, %v633
        %v3402 = vmul.f32 %v3400, %v634
        %v3403 = vadd.f32 %v3397, %v3401
        %v3404 = vadd.f32 %v3398, %v3402
        %s3405 = sld [smem:[#allocation11 + $0xe8]]
        %v3406 = vstv %s3405
        %v3407 = vmul.f32 %v3406, %v633
        %v3408 = vmul.f32 %v3406, %v634
        %3411 = vrot.lane.b32.xlu0 %v3407, 127
        %v3412 = vpop.permute.xlu0 %3411
        %3413 = vrot.lane.b32.xlu0 %v3408, 127
        %v3414 = vpop.permute.xlu0 %3413
        %v3417 = vadd.f32 %v3403, %v3412
        %v3418 = vadd.f32 %v3404, %v3414
        %s3419 = sld [smem:[#allocation11 + $0xe9]]
        %v3420 = vstv %s3419
        %v3421 = vmul.f32 %v3420, %v633
        %v3422 = vmul.f32 %v3420, %v634
        %3425 = vrot.lane.b32.xlu0 %v3421, 126
        %v3426 = vpop.permute.xlu0 %3425
        %3427 = vrot.lane.b32.xlu0 %v3422, 126
        %v3428 = vpop.permute.xlu0 %3427
        %v3431 = vadd.f32 %v3417, %v3426
        %v3432 = vadd.f32 %v3418, %v3428
        %s3433 = sld [smem:[#allocation11 + $0xea]]
        %v3434 = vstv %s3433
        %v3435 = vmul.f32 %v3434, %v636
        %v3436 = vmul.f32 %v3434, %v637
        %v3437 = vadd.f32 %v3431, %v3435
        %v3438 = vadd.f32 %v3432, %v3436
        %s3439 = sld [smem:[#allocation11 + $0xeb]]
        %v3440 = vstv %s3439
        %v3441 = vmul.f32 %v3440, %v636
        %v3442 = vmul.f32 %v3440, %v637
        %3445 = vrot.lane.b32.xlu0 %v3441, 127
        %v3446 = vpop.permute.xlu0 %3445
        %3447 = vrot.lane.b32.xlu0 %v3442, 127
        %v3448 = vpop.permute.xlu0 %3447
        %v3451 = vadd.f32 %v3437, %v3446
        %v3452 = vadd.f32 %v3438, %v3448
        %s3453 = sld [smem:[#allocation11 + $0xec]]
        %v3454 = vstv %s3453
        %v3455 = vmul.f32 %v3454, %v636
        %v3456 = vmul.f32 %v3454, %v637
        %3459 = vrot.lane.b32.xlu0 %v3455, 126
        %v3460 = vpop.permute.xlu0 %3459
        %3461 = vrot.lane.b32.xlu0 %v3456, 126
        %v3462 = vpop.permute.xlu0 %3461
        %v3465 = vadd.f32 %v3451, %v3460
        %v3466 = vadd.f32 %v3452, %v3462
        %s3467 = sld [smem:[#allocation11 + $0xed]]
        %v3468 = vstv %s3467
        %v3469 = vmul.f32 %v3468, %v638
        %v3470 = vmul.f32 %v3468, %v639
        %v3471 = vadd.f32 %v3465, %v3469
        %v3472 = vadd.f32 %v3466, %v3470
        %s3473 = sld [smem:[#allocation11 + $0xee]]
        %v3474 = vstv %s3473
        %v3475 = vmul.f32 %v3474, %v638
        %v3476 = vmul.f32 %v3474, %v639
        %3479 = vrot.lane.b32.xlu0 %v3475, 127
        %v3480 = vpop.permute.xlu0 %3479
        %3481 = vrot.lane.b32.xlu0 %v3476, 127
        %v3482 = vpop.permute.xlu0 %3481
        %v3485 = vadd.f32 %v3471, %v3480
        %v3486 = vadd.f32 %v3472, %v3482
        %s3487 = sld [smem:[#allocation11 + $0xef]]
        %v3488 = vstv %s3487
        %v3489 = vmul.f32 %v3488, %v638
        %v3490 = vmul.f32 %v3488, %v639
        %3493 = vrot.lane.b32.xlu0 %v3489, 126
        %v3494 = vpop.permute.xlu0 %3493
        %3495 = vrot.lane.b32.xlu0 %v3490, 126
        %v3496 = vpop.permute.xlu0 %3495
        %v3499 = vadd.f32 %v3485, %v3494
        %v3500 = vadd.f32 %v3486, %v3496
        %s3501 = sld [smem:[#allocation11 + $0xf0]]
        %v3502 = vstv %s3501
        %v3503 = vmul.f32 %v3502, %v640
        %v3504 = vmul.f32 %v3502, %v641
        %v3505 = vadd.f32 %v3499, %v3503
        %v3506 = vadd.f32 %v3500, %v3504
        %s3507 = sld [smem:[#allocation11 + $0xf1]]
        %v3508 = vstv %s3507
        %v3509 = vmul.f32 %v3508, %v640
        %v3510 = vmul.f32 %v3508, %v641
        %3513 = vrot.lane.b32.xlu0 %v3509, 127
        %v3514 = vpop.permute.xlu0 %3513
        %3515 = vrot.lane.b32.xlu0 %v3510, 127
        %v3516 = vpop.permute.xlu0 %3515
        %v3519 = vadd.f32 %v3505, %v3514
        %v3520 = vadd.f32 %v3506, %v3516
        %s3521 = sld [smem:[#allocation11 + $0xf2]]
        %v3522 = vstv %s3521
        %v3523 = vmul.f32 %v3522, %v640
        %v3524 = vmul.f32 %v3522, %v641
        %3527 = vrot.lane.b32.xlu0 %v3523, 126
        %v3528 = vpop.permute.xlu0 %3527
        %3529 = vrot.lane.b32.xlu0 %v3524, 126
        %v3530 = vpop.permute.xlu0 %3529
        %v3533 = vadd.f32 %v3519, %v3528
        %v3534 = vadd.f32 %v3520, %v3530
        %s3535 = sld [smem:[#allocation11 + $0xf3]]
        %v3536 = vstv %s3535
        %v3537 = vmul.f32 %v3536, %v642
        %v3538 = vmul.f32 %v3536, %v643
        %v3539 = vadd.f32 %v3533, %v3537
        %v3540 = vadd.f32 %v3534, %v3538
        %s3541 = sld [smem:[#allocation11 + $0xf4]]
        %v3542 = vstv %s3541
        %v3543 = vmul.f32 %v3542, %v642
        %v3544 = vmul.f32 %v3542, %v643
        %3547 = vrot.lane.b32.xlu0 %v3543, 127
        %v3548 = vpop.permute.xlu0 %3547
        %3549 = vrot.lane.b32.xlu0 %v3544, 127
        %v3550 = vpop.permute.xlu0 %3549
        %v3553 = vadd.f32 %v3539, %v3548
        %v3554 = vadd.f32 %v3540, %v3550
        %s3555 = sld [smem:[#allocation11 + $0xf5]]
        %v3556 = vstv %s3555
        %v3557 = vmul.f32 %v3556, %v642
        %v3558 = vmul.f32 %v3556, %v643
        %3561 = vrot.lane.b32.xlu0 %v3557, 126
        %v3562 = vpop.permute.xlu0 %3561
        %3563 = vrot.lane.b32.xlu0 %v3558, 126
        %v3564 = vpop.permute.xlu0 %3563
        %v3567 = vadd.f32 %v3553, %v3562
        %v3568 = vadd.f32 %v3554, %v3564
        %s3569 = sld [smem:[#allocation11 + $0xf6]]
        %v3570 = vstv %s3569
        %v3571 = vmul.f32 %v3570, %v644
        %v3572 = vmul.f32 %v3570, %v645
        %v3573 = vadd.f32 %v3567, %v3571
        %v3574 = vadd.f32 %v3568, %v3572
        %s3575 = sld [smem:[#allocation11 + $0xf7]]
        %v3576 = vstv %s3575
        %v3577 = vmul.f32 %v3576, %v644
        %v3578 = vmul.f32 %v3576, %v645
        %3581 = vrot.lane.b32.xlu0 %v3577, 127
        %v3582 = vpop.permute.xlu0 %3581
        %3583 = vrot.lane.b32.xlu0 %v3578, 127
        %v3584 = vpop.permute.xlu0 %3583
        %v3587 = vadd.f32 %v3573, %v3582
        %v3588 = vadd.f32 %v3574, %v3584
        %s3589 = sld [smem:[#allocation11 + $0xf8]]
        %v3590 = vstv %s3589
        %v3591 = vmul.f32 %v3590, %v644
        %v3592 = vmul.f32 %v3590, %v645
        %3595 = vrot.lane.b32.xlu0 %v3591, 126
        %v3596 = vpop.permute.xlu0 %3595
        %3597 = vrot.lane.b32.xlu0 %v3592, 126
        %v3598 = vpop.permute.xlu0 %3597
        %v3601 = vadd.f32 %v3587, %v3596
        %v3602 = vadd.f32 %v3588, %v3598
        %s3603 = sld [smem:[#allocation11 + $0xf9]]
        %v3604 = vstv %s3603
        %v3605 = vmul.f32 %v3604, %v646
        %v3606 = vmul.f32 %v3604, %v647
        %v3607 = vadd.f32 %v3601, %v3605
        %v3608 = vadd.f32 %v3602, %v3606
        %s3609 = sld [smem:[#allocation11 + $0xfa]]
        %v3610 = vstv %s3609
        %v3611 = vmul.f32 %v3610, %v646
        %v3612 = vmul.f32 %v3610, %v647
        %3615 = vrot.lane.b32.xlu0 %v3611, 127
        %v3616 = vpop.permute.xlu0 %3615
        %3617 = vrot.lane.b32.xlu0 %v3612, 127
        %v3618 = vpop.permute.xlu0 %3617
        %v3621 = vadd.f32 %v3607, %v3616
        %v3622 = vadd.f32 %v3608, %v3618
        %s3623 = sld [smem:[#allocation11 + $0xfb]]
        %v3624 = vstv %s3623
        %v3625 = vmul.f32 %v3624, %v646
        %v3626 = vmul.f32 %v3624, %v647
        %3629 = vrot.lane.b32.xlu0 %v3625, 126
        %v3630 = vpop.permute.xlu0 %3629
        %3631 = vrot.lane.b32.xlu0 %v3626, 126
        %v3632 = vpop.permute.xlu0 %3631
        %v3635 = vadd.f32 %v3621, %v3630
        %v3636 = vadd.f32 %v3622, %v3632
        %v3637 = vmax.f32 %v3635, 0.0
        %v3638 = vmax.f32 %v3636, 0.0
        %3641 = vrot.lane.b32.xlu0 %v3637, 1
        %v3642 = vpop.permute.xlu0 %3641
        %3643 = vrot.lane.b32.xlu0 %v3638, 1
        %v3644 = vpop.permute.xlu0 %3643
        %s3647 = scalar_lea.vmem [#allocation3], 96
        %3648 = vst.msk [vmem:[%s3647] sm:$0xff] %vm500, %v3642
        %3649 = vst.msk [vmem:[%s3647 + $0x8] sm:$0x3] %vm1104, %v3644
        %s3650 = sld [smem:[#allocation12 + $0x7]]
        %v3651 = vstv %s3650
        %v3652 = vadd.f32 %v3651, 0.0
        %s3653 = sld [smem:[#allocation11 + $0xfc]]
        %v3654 = vstv %s3653
        %v3655 = vmul.f32 %v3654, %v622
        %v3656 = vmul.f32 %v3654, %v623
        %v3657 = vadd.f32 %v3652, %v3655
        %v3658 = vadd.f32 %v3652, %v3656
        %s3659 = sld [smem:[#allocation11 + $0xfd]]
        %v3660 = vstv %s3659
        %v3661 = vmul.f32 %v3660, %v622
        %v3662 = vmul.f32 %v3660, %v623
        %3665 = vrot.lane.b32.xlu0 %v3661, 127
        %v3666 = vpop.permute.xlu0 %3665
        %3667 = vrot.lane.b32.xlu0 %v3662, 127
        %v3668 = vpop.permute.xlu0 %3667
        %v3671 = vadd.f32 %v3657, %v3666
        %v3672 = vadd.f32 %v3658, %v3668
        %s3673 = sld [smem:[#allocation11 + $0xfe]]
        %v3674 = vstv %s3673
        %v3675 = vmul.f32 %v3674, %v622
        %v3676 = vmul.f32 %v3674, %v623
        %3679 = vrot.lane.b32.xlu0 %v3675, 126
        %v3680 = vpop.permute.xlu0 %3679
        %3681 = vrot.lane.b32.xlu0 %v3676, 126
        %v3682 = vpop.permute.xlu0 %3681
        %v3685 = vadd.f32 %v3671, %v3680
        %v3686 = vadd.f32 %v3672, %v3682
        %s3687 = sld [smem:[#allocation11 + $0xff]]
        %v3688 = vstv %s3687
        %v3689 = vmul.f32 %v3688, %v624
        %v3690 = vmul.f32 %v3688, %v625
        %v3691 = vadd.f32 %v3685, %v3689
        %v3692 = vadd.f32 %v3686, %v3690
        %s3693 = sld [smem:[#allocation11 + $0x100]]
        %v3694 = vstv %s3693
        %v3695 = vmul.f32 %v3694, %v624
        %v3696 = vmul.f32 %v3694, %v625
        %3699 = vrot.lane.b32.xlu0 %v3695, 127
        %v3700 = vpop.permute.xlu0 %3699
        %3701 = vrot.lane.b32.xlu0 %v3696, 127
        %v3702 = vpop.permute.xlu0 %3701
        %v3705 = vadd.f32 %v3691, %v3700
        %v3706 = vadd.f32 %v3692, %v3702
        %s3707 = sld [smem:[#allocation11 + $0x101]]
        %v3708 = vstv %s3707
        %v3709 = vmul.f32 %v3708, %v624
        %v3710 = vmul.f32 %v3708, %v625
        %3713 = vrot.lane.b32.xlu0 %v3709, 126
        %v3714 = vpop.permute.xlu0 %3713
        %3715 = vrot.lane.b32.xlu0 %v3710, 126
        %v3716 = vpop.permute.xlu0 %3715
        %v3719 = vadd.f32 %v3705, %v3714
        %v3720 = vadd.f32 %v3706, %v3716
        %s3721 = sld [smem:[#allocation11 + $0x102]]
        %v3722 = vstv %s3721
        %v3723 = vmul.f32 %v3722, %v626
        %v3724 = vmul.f32 %v3722, %v627
        %v3725 = vadd.f32 %v3719, %v3723
        %v3726 = vadd.f32 %v3720, %v3724
        %s3727 = sld [smem:[#allocation11 + $0x103]]
        %v3728 = vstv %s3727
        %v3729 = vmul.f32 %v3728, %v626
        %v3730 = vmul.f32 %v3728, %v627
        %3733 = vrot.lane.b32.xlu0 %v3729, 127
        %v3734 = vpop.permute.xlu0 %3733
        %3735 = vrot.lane.b32.xlu0 %v3730, 127
        %v3736 = vpop.permute.xlu0 %3735
        %v3739 = vadd.f32 %v3725, %v3734
        %v3740 = vadd.f32 %v3726, %v3736
        %s3741 = sld [smem:[#allocation11 + $0x104]]
        %v3742 = vstv %s3741
        %v3743 = vmul.f32 %v3742, %v626
        %v3744 = vmul.f32 %v3742, %v627
        %3747 = vrot.lane.b32.xlu0 %v3743, 126
        %v3748 = vpop.permute.xlu0 %3747
        %3749 = vrot.lane.b32.xlu0 %v3744, 126
        %v3750 = vpop.permute.xlu0 %3749
        %v3753 = vadd.f32 %v3739, %v3748
        %v3754 = vadd.f32 %v3740, %v3750
        %s3755 = sld [smem:[#allocation11 + $0x105]]
        %v3756 = vstv %s3755
        %v3757 = vmul.f32 %v3756, %v629
        %v3758 = vmul.f32 %v3756, %v630
        %v3759 = vadd.f32 %v3753, %v3757
        %v3760 = vadd.f32 %v3754, %v3758
        %s3761 = sld [smem:[#allocation11 + $0x106]]
        %v3762 = vstv %s3761
        %v3763 = vmul.f32 %v3762, %v629
        %v3764 = vmul.f32 %v3762, %v630
        %3767 = vrot.lane.b32.xlu0 %v3763, 127
        %v3768 = vpop.permute.xlu0 %3767
        %3769 = vrot.lane.b32.xlu0 %v3764, 127
        %v3770 = vpop.permute.xlu0 %3769
        %v3773 = vadd.f32 %v3759, %v3768
        %v3774 = vadd.f32 %v3760, %v3770
        %s3775 = sld [smem:[#allocation11 + $0x107]]
        %v3776 = vstv %s3775
        %v3777 = vmul.f32 %v3776, %v629
        %v3778 = vmul.f32 %v3776, %v630
        %3781 = vrot.lane.b32.xlu0 %v3777, 126
        %v3782 = vpop.permute.xlu0 %3781
        %3783 = vrot.lane.b32.xlu0 %v3778, 126
        %v3784 = vpop.permute.xlu0 %3783
        %v3787 = vadd.f32 %v3773, %v3782
        %v3788 = vadd.f32 %v3774, %v3784
        %s3789 = sld [smem:[#allocation11 + $0x108]]
        %v3790 = vstv %s3789
        %v3791 = vmul.f32 %v3790, %v631
        %v3792 = vmul.f32 %v3790, %v632
        %v3793 = vadd.f32 %v3787, %v3791
        %v3794 = vadd.f32 %v3788, %v3792
        %s3795 = sld [smem:[#allocation11 + $0x109]]
        %v3796 = vstv %s3795
        %v3797 = vmul.f32 %v3796, %v631
        %v3798 = vmul.f32 %v3796, %v632
        %3801 = vrot.lane.b32.xlu0 %v3797, 127
        %v3802 = vpop.permute.xlu0 %3801
        %3803 = vrot.lane.b32.xlu0 %v3798, 127
        %v3804 = vpop.permute.xlu0 %3803
        %v3807 = vadd.f32 %v3793, %v3802
        %v3808 = vadd.f32 %v3794, %v3804
        %s3809 = sld [smem:[#allocation11 + $0x10a]]
        %v3810 = vstv %s3809
        %v3811 = vmul.f32 %v3810, %v631
        %v3812 = vmul.f32 %v3810, %v632
        %3815 = vrot.lane.b32.xlu0 %v3811, 126
        %v3816 = vpop.permute.xlu0 %3815
        %3817 = vrot.lane.b32.xlu0 %v3812, 126
        %v3818 = vpop.permute.xlu0 %3817
        %v3821 = vadd.f32 %v3807, %v3816
        %v3822 = vadd.f32 %v3808, %v3818
        %s3823 = sld [smem:[#allocation11 + $0x10b]]
        %v3824 = vstv %s3823
        %v3825 = vmul.f32 %v3824, %v633
        %v3826 = vmul.f32 %v3824, %v634
        %v3827 = vadd.f32 %v3821, %v3825
        %v3828 = vadd.f32 %v3822, %v3826
        %s3829 = sld [smem:[#allocation11 + $0x10c]]
        %v3830 = vstv %s3829
        %v3831 = vmul.f32 %v3830, %v633
        %v3832 = vmul.f32 %v3830, %v634
        %3835 = vrot.lane.b32.xlu0 %v3831, 127
        %v3836 = vpop.permute.xlu0 %3835
        %3837 = vrot.lane.b32.xlu0 %v3832, 127
        %v3838 = vpop.permute.xlu0 %3837
        %v3841 = vadd.f32 %v3827, %v3836
        %v3842 = vadd.f32 %v3828, %v3838
        %s3843 = sld [smem:[#allocation11 + $0x10d]]
        %v3844 = vstv %s3843
        %v3845 = vmul.f32 %v3844, %v633
        %v3846 = vmul.f32 %v3844, %v634
        %3849 = vrot.lane.b32.xlu0 %v3845, 126
        %v3850 = vpop.permute.xlu0 %3849
        %3851 = vrot.lane.b32.xlu0 %v3846, 126
        %v3852 = vpop.permute.xlu0 %3851
        %v3855 = vadd.f32 %v3841, %v3850
        %v3856 = vadd.f32 %v3842, %v3852
        %s3857 = sld [smem:[#allocation11 + $0x10e]]
        %v3858 = vstv %s3857
        %v3859 = vmul.f32 %v3858, %v636
        %v3860 = vmul.f32 %v3858, %v637
        %v3861 = vadd.f32 %v3855, %v3859
        %v3862 = vadd.f32 %v3856, %v3860
        %s3863 = sld [smem:[#allocation11 + $0x10f]]
        %v3864 = vstv %s3863
        %v3865 = vmul.f32 %v3864, %v636
        %v3866 = vmul.f32 %v3864, %v637
        %3869 = vrot.lane.b32.xlu0 %v3865, 127
        %v3870 = vpop.permute.xlu0 %3869
        %3871 = vrot.lane.b32.xlu0 %v3866, 127
        %v3872 = vpop.permute.xlu0 %3871
        %v3875 = vadd.f32 %v3861, %v3870
        %v3876 = vadd.f32 %v3862, %v3872
        %s3877 = sld [smem:[#allocation11 + $0x110]]
        %v3878 = vstv %s3877
        %v3879 = vmul.f32 %v3878, %v636
        %v3880 = vmul.f32 %v3878, %v637
        %3883 = vrot.lane.b32.xlu0 %v3879, 126
        %v3884 = vpop.permute.xlu0 %3883
        %3885 = vrot.lane.b32.xlu0 %v3880, 126
        %v3886 = vpop.permute.xlu0 %3885
        %v3889 = vadd.f32 %v3875, %v3884
        %v3890 = vadd.f32 %v3876, %v3886
        %s3891 = sld [smem:[#allocation11 + $0x111]]
        %v3892 = vstv %s3891
        %v3893 = vmul.f32 %v3892, %v638
        %v3894 = vmul.f32 %v3892, %v639
        %v3895 = vadd.f32 %v3889, %v3893
        %v3896 = vadd.f32 %v3890, %v3894
        %s3897 = sld [smem:[#allocation11 + $0x112]]
        %v3898 = vstv %s3897
        %v3899 = vmul.f32 %v3898, %v638
        %v3900 = vmul.f32 %v3898, %v639
        %3903 = vrot.lane.b32.xlu0 %v3899, 127
        %v3904 = vpop.permute.xlu0 %3903
        %3905 = vrot.lane.b32.xlu0 %v3900, 127
        %v3906 = vpop.permute.xlu0 %3905
        %v3909 = vadd.f32 %v3895, %v3904
        %v3910 = vadd.f32 %v3896, %v3906
        %s3911 = sld [smem:[#allocation11 + $0x113]]
        %v3912 = vstv %s3911
        %v3913 = vmul.f32 %v3912, %v638
        %v3914 = vmul.f32 %v3912, %v639
        %3917 = vrot.lane.b32.xlu0 %v3913, 126
        %v3918 = vpop.permute.xlu0 %3917
        %3919 = vrot.lane.b32.xlu0 %v3914, 126
        %v3920 = vpop.permute.xlu0 %3919
        %v3923 = vadd.f32 %v3909, %v3918
        %v3924 = vadd.f32 %v3910, %v3920
        %s3925 = sld [smem:[#allocation11 + $0x114]]
        %v3926 = vstv %s3925
        %v3927 = vmul.f32 %v3926, %v640
        %v3928 = vmul.f32 %v3926, %v641
        %v3929 = vadd.f32 %v3923, %v3927
        %v3930 = vadd.f32 %v3924, %v3928
        %s3931 = sld [smem:[#allocation11 + $0x115]]
        %v3932 = vstv %s3931
        %v3933 = vmul.f32 %v3932, %v640
        %v3934 = vmul.f32 %v3932, %v641
        %3937 = vrot.lane.b32.xlu0 %v3933, 127
        %v3938 = vpop.permute.xlu0 %3937
        %3939 = vrot.lane.b32.xlu0 %v3934, 127
        %v3940 = vpop.permute.xlu0 %3939
        %v3943 = vadd.f32 %v3929, %v3938
        %v3944 = vadd.f32 %v3930, %v3940
        %s3945 = sld [smem:[#allocation11 + $0x116]]
        %v3946 = vstv %s3945
        %v3947 = vmul.f32 %v3946, %v640
        %v3948 = vmul.f32 %v3946, %v641
        %3951 = vrot.lane.b32.xlu0 %v3947, 126
        %v3952 = vpop.permute.xlu0 %3951
        %3953 = vrot.lane.b32.xlu0 %v3948, 126
        %v3954 = vpop.permute.xlu0 %3953
        %v3957 = vadd.f32 %v3943, %v3952
        %v3958 = vadd.f32 %v3944, %v3954
        %s3959 = sld [smem:[#allocation11 + $0x117]]
        %v3960 = vstv %s3959
        %v3961 = vmul.f32 %v3960, %v642
        %v3962 = vmul.f32 %v3960, %v643
        %v3963 = vadd.f32 %v3957, %v3961
        %v3964 = vadd.f32 %v3958, %v3962
        %s3965 = sld [smem:[#allocation11 + $0x118]]
        %v3966 = vstv %s3965
        %v3967 = vmul.f32 %v3966, %v642
        %v3968 = vmul.f32 %v3966, %v643
        %3971 = vrot.lane.b32.xlu0 %v3967, 127
        %v3972 = vpop.permute.xlu0 %3971
        %3973 = vrot.lane.b32.xlu0 %v3968, 127
        %v3974 = vpop.permute.xlu0 %3973
        %v3977 = vadd.f32 %v3963, %v3972
        %v3978 = vadd.f32 %v3964, %v3974
        %s3979 = sld [smem:[#allocation11 + $0x119]]
        %v3980 = vstv %s3979
        %v3981 = vmul.f32 %v3980, %v642
        %v3982 = vmul.f32 %v3980, %v643
        %3985 = vrot.lane.b32.xlu0 %v3981, 126
        %v3986 = vpop.permute.xlu0 %3985
        %3987 = vrot.lane.b32.xlu0 %v3982, 126
        %v3988 = vpop.permute.xlu0 %3987
        %v3991 = vadd.f32 %v3977, %v3986
        %v3992 = vadd.f32 %v3978, %v3988
        %s3993 = sld [smem:[#allocation11 + $0x11a]]
        %v3994 = vstv %s3993
        %v3995 = vmul.f32 %v3994, %v644
        %v3996 = vmul.f32 %v3994, %v645
        %v3997 = vadd.f32 %v3991, %v3995
        %v3998 = vadd.f32 %v3992, %v3996
        %s3999 = sld [smem:[#allocation11 + $0x11b]]
        %v4000 = vstv %s3999
        %v4001 = vmul.f32 %v4000, %v644
        %v4002 = vmul.f32 %v4000, %v645
        %4005 = vrot.lane.b32.xlu0 %v4001, 127
        %v4006 = vpop.permute.xlu0 %4005
        %4007 = vrot.lane.b32.xlu0 %v4002, 127
        %v4008 = vpop.permute.xlu0 %4007
        %v4011 = vadd.f32 %v3997, %v4006
        %v4012 = vadd.f32 %v3998, %v4008
        %s4013 = sld [smem:[#allocation11 + $0x11c]]
        %v4014 = vstv %s4013
        %v4015 = vmul.f32 %v4014, %v644
        %v4016 = vmul.f32 %v4014, %v645
        %4019 = vrot.lane.b32.xlu0 %v4015, 126
        %v4020 = vpop.permute.xlu0 %4019
        %4021 = vrot.lane.b32.xlu0 %v4016, 126
        %v4022 = vpop.permute.xlu0 %4021
        %v4025 = vadd.f32 %v4011, %v4020
        %v4026 = vadd.f32 %v4012, %v4022
        %s4027 = sld [smem:[#allocation11 + $0x11d]]
        %v4028 = vstv %s4027
        %v4029 = vmul.f32 %v4028, %v646
        %v4030 = vmul.f32 %v4028, %v647
        %v4031 = vadd.f32 %v4025, %v4029
        %v4032 = vadd.f32 %v4026, %v4030
        %s4033 = sld [smem:[#allocation11 + $0x11e]]
        %v4034 = vstv %s4033
        %v4035 = vmul.f32 %v4034, %v646
        %v4036 = vmul.f32 %v4034, %v647
        %4039 = vrot.lane.b32.xlu0 %v4035, 127
        %v4040 = vpop.permute.xlu0 %4039
        %4041 = vrot.lane.b32.xlu0 %v4036, 127
        %v4042 = vpop.permute.xlu0 %4041
        %v4045 = vadd.f32 %v4031, %v4040
        %v4046 = vadd.f32 %v4032, %v4042
        %s4047 = sld [smem:[#allocation11 + $0x11f]]
        %v4048 = vstv %s4047
        %v4049 = vmul.f32 %v4048, %v646
        %v4050 = vmul.f32 %v4048, %v647
        %4053 = vrot.lane.b32.xlu0 %v4049, 126
        %v4054 = vpop.permute.xlu0 %4053
        %4055 = vrot.lane.b32.xlu0 %v4050, 126
        %v4056 = vpop.permute.xlu0 %4055
        %v4059 = vadd.f32 %v4045, %v4054
        %v4060 = vadd.f32 %v4046, %v4056
        %v4061 = vmax.f32 %v4059, 0.0
        %v4062 = vmax.f32 %v4060, 0.0
        %4065 = vrot.lane.b32.xlu0 %v4061, 1
        %v4066 = vpop.permute.xlu0 %4065
        %4067 = vrot.lane.b32.xlu0 %v4062, 1
        %v4068 = vpop.permute.xlu0 %4067
        %s4071 = scalar_lea.vmem [#allocation3], 112
        %4072 = vst.msk [vmem:[%s4071] sm:$0xff] %vm500, %v4066
        %4073 = vst.msk [vmem:[%s4071 + $0x8] sm:$0x3] %vm1104, %v4068
        // Predicated region
        $region93: #{tpu_custom_call.1} parent=47 // pred_check
          %p4074 = pneg %p506
        $region94: #{tpu_custom_call.1} parent=47 // pred_check_branch
          %4076 = sbr.rel (%p4074) target = $region96
        $region95: #{tpu_custom_call.1} parent=47 // pred_region
          %vm4077 = vcmask 139264
          %4078 = vst.msk [vmem:[#allocation3] sm:$0x1] %vm4077, 0.0
          %4079 = vst.msk [vmem:[#allocation3 + $0x10] sm:$0x1] %vm4077, 0.0
          %4080 = vst.msk [vmem:[#allocation3 + $0x20] sm:$0x1] %vm4077, 0.0
          %4081 = vst.msk [vmem:[#allocation3 + $0x30] sm:$0x1] %vm4077, 0.0
          %4082 = vst.msk [vmem:[#allocation3 + $0x40] sm:$0x1] %vm4077, 0.0
          %4083 = vst.msk [vmem:[#allocation3 + $0x50] sm:$0x1] %vm4077, 0.0
          %4084 = vst.msk [vmem:[#allocation3 + $0x60] sm:$0x1] %vm4077, 0.0
          %4085 = vst.msk [vmem:[#allocation3 + $0x70] sm:$0x1] %vm4077, 0.0
        $region96: #{tpu_custom_call.1} parent=47 // pred_fallthru
          _
        // Predicated region
        $region97: #{tpu_custom_call.1} parent=47 // pred_check
          %p4086 = pneg %p564
        $region98: #{tpu_custom_call.1} parent=47 // pred_check_branch
          %4088 = sbr.rel (%p4086) target = $region100
        $region99: #{tpu_custom_call.1} parent=47 // pred_region
          %vm4089 = vcmask 139264
          %4090 = vst.msk [vmem:[#allocation3 + $0x9] sm:$0x1] %vm4089, 0.0
          %4091 = vst.msk [vmem:[#allocation3 + $0x19] sm:$0x1] %vm4089, 0.0
          %4092 = vst.msk [vmem:[#allocation3 + $0x29] sm:$0x1] %vm4089, 0.0
          %4093 = vst.msk [vmem:[#allocation3 + $0x39] sm:$0x1] %vm4089, 0.0
          %4094 = vst.msk [vmem:[#allocation3 + $0x49] sm:$0x1] %vm4089, 0.0
          %4095 = vst.msk [vmem:[#allocation3 + $0x59] sm:$0x1] %vm4089, 0.0
          %4096 = vst.msk [vmem:[#allocation3 + $0x69] sm:$0x1] %vm4089, 0.0
          %4097 = vst.msk [vmem:[#allocation3 + $0x79] sm:$0x1] %vm4089, 0.0
        $region100: #{tpu_custom_call.1} parent=47 // pred_fallthru
          _
        %v4098 = vld [vmem:[#allocation3] sm:$0xff]
        %v4099 = vld [vmem:[#allocation3 + $0x1] sm:$0xff]
        %v4100 = vld [vmem:[#allocation3 + $0x2] sm:$0xff]
        %v4101 = vld [vmem:[%s1527] sm:$0xff]
        %v4102 = vld [vmem:[%s1527 + $0x1] sm:$0xff]
        %v4103 = vld [vmem:[%s1527 + $0x2] sm:$0xff]
        %v4104 = vld [vmem:[%s1951] sm:$0xff]
        %v4105 = vld [vmem:[%s1951 + $0x1] sm:$0xff]
        %v4106 = vld [vmem:[%s1951 + $0x2] sm:$0xff]
        %v4107 = vld [vmem:[%s2375] sm:$0xff]
        %v4108 = vld [vmem:[%s2375 + $0x1] sm:$0xff]
        %v4109 = vld [vmem:[%s2375 + $0x2] sm:$0xff]
        %v4110 = vld [vmem:[%s2799] sm:$0xff]
        %v4111 = vld [vmem:[%s2799 + $0x1] sm:$0xff]
        %v4112 = vld [vmem:[%s2799 + $0x2] sm:$0xff]
        %v4113 = vld [vmem:[%s3223] sm:$0xff]
        %v4114 = vld [vmem:[%s3223 + $0x1] sm:$0xff]
        %v4115 = vld [vmem:[%s3223 + $0x2] sm:$0xff]
        %v4116 = vld [vmem:[%s3647] sm:$0xff]
        %v4117 = vld [vmem:[%s3647 + $0x1] sm:$0xff]
        %v4118 = vld [vmem:[%s3647 + $0x2] sm:$0xff]
        %v4119 = vld [vmem:[%s4071] sm:$0xff]
        %v4120 = vld [vmem:[%s4071 + $0x1] sm:$0xff]
        %v4121 = vld [vmem:[%s4071 + $0x2] sm:$0xff]
        %s4122 = sld [smem:[#allocation15]]
        %v4123 = vstv %s4122
        %v4124 = vadd.f32 %v4123, 0.0
        %s4125 = sld [smem:[#allocation14]]
        %v4126 = vstv %s4125
        %v4127 = vmul.f32 %v4126, %v4098
        %v4128 = vadd.f32 %v4124, %v4127
        %s4129 = sld [smem:[#allocation14 + $0x1]]
        %v4130 = vstv %s4129
        %v4131 = vmul.f32 %v4130, %v4098
        %4133 = vrot.lane.b32.xlu0 %v4131, 127
        %v4134 = vpop.permute.xlu0 %4133
        %v4136 = vadd.f32 %v4128, %v4134
        %s4137 = sld [smem:[#allocation14 + $0x2]]
        %v4138 = vstv %s4137
        %v4139 = vmul.f32 %v4138, %v4098
        %4141 = vrot.lane.b32.xlu0 %v4139, 126
        %v4142 = vpop.permute.xlu0 %4141
        %v4144 = vadd.f32 %v4136, %v4142
        %s4145 = sld [smem:[#allocation14 + $0x3]]
        %v4146 = vstv %s4145
        %v4147 = vmul.f32 %v4146, %v4099
        %v4148 = vadd.f32 %v4144, %v4147
        %s4149 = sld [smem:[#allocation14 + $0x4]]
        %v4150 = vstv %s4149
        %v4151 = vmul.f32 %v4150, %v4099
        %4153 = vrot.lane.b32.xlu0 %v4151, 127
        %v4154 = vpop.permute.xlu0 %4153
        %v4156 = vadd.f32 %v4148, %v4154
        %s4157 = sld [smem:[#allocation14 + $0x5]]
        %v4158 = vstv %s4157
        %v4159 = vmul.f32 %v4158, %v4099
        %4161 = vrot.lane.b32.xlu0 %v4159, 126
        %v4162 = vpop.permute.xlu0 %4161
        %v4164 = vadd.f32 %v4156, %v4162
        %s4165 = sld [smem:[#allocation14 + $0x6]]
        %v4166 = vstv %s4165
        %v4167 = vmul.f32 %v4166, %v4100
        %v4168 = vadd.f32 %v4164, %v4167
        %s4169 = sld [smem:[#allocation14 + $0x7]]
        %v4170 = vstv %s4169
        %v4171 = vmul.f32 %v4170, %v4100
        %4173 = vrot.lane.b32.xlu0 %v4171, 127
        %v4174 = vpop.permute.xlu0 %4173
        %v4176 = vadd.f32 %v4168, %v4174
        %s4177 = sld [smem:[#allocation14 + $0x8]]
        %v4178 = vstv %s4177
        %v4179 = vmul.f32 %v4178, %v4100
        %4181 = vrot.lane.b32.xlu0 %v4179, 126
        %v4182 = vpop.permute.xlu0 %4181
        %v4184 = vadd.f32 %v4176, %v4182
        %s4185 = sld [smem:[#allocation14 + $0x9]]
        %v4186 = vstv %s4185
        %v4187 = vmul.f32 %v4186, %v4101
        %v4188 = vadd.f32 %v4184, %v4187
        %s4189 = sld [smem:[#allocation14 + $0xa]]
        %v4190 = vstv %s4189
        %v4191 = vmul.f32 %v4190, %v4101
        %4193 = vrot.lane.b32.xlu0 %v4191, 127
        %v4194 = vpop.permute.xlu0 %4193
        %v4196 = vadd.f32 %v4188, %v4194
        %s4197 = sld [smem:[#allocation14 + $0xb]]
        %v4198 = vstv %s4197
        %v4199 = vmul.f32 %v4198, %v4101
        %4201 = vrot.lane.b32.xlu0 %v4199, 126
        %v4202 = vpop.permute.xlu0 %4201
        %v4204 = vadd.f32 %v4196, %v4202
        %s4205 = sld [smem:[#allocation14 + $0xc]]
        %v4206 = vstv %s4205
        %v4207 = vmul.f32 %v4206, %v4102
        %v4208 = vadd.f32 %v4204, %v4207
        %s4209 = sld [smem:[#allocation14 + $0xd]]
        %v4210 = vstv %s4209
        %v4211 = vmul.f32 %v4210, %v4102
        %4213 = vrot.lane.b32.xlu0 %v4211, 127
        %v4214 = vpop.permute.xlu0 %4213
        %v4216 = vadd.f32 %v4208, %v4214
        %s4217 = sld [smem:[#allocation14 + $0xe]]
        %v4218 = vstv %s4217
        %v4219 = vmul.f32 %v4218, %v4102
        %4221 = vrot.lane.b32.xlu0 %v4219, 126
        %v4222 = vpop.permute.xlu0 %4221
        %v4224 = vadd.f32 %v4216, %v4222
        %s4225 = sld [smem:[#allocation14 + $0xf]]
        %v4226 = vstv %s4225
        %v4227 = vmul.f32 %v4226, %v4103
        %v4228 = vadd.f32 %v4224, %v4227
        %s4229 = sld [smem:[#allocation14 + $0x10]]
        %v4230 = vstv %s4229
        %v4231 = vmul.f32 %v4230, %v4103
        %4233 = vrot.lane.b32.xlu0 %v4231, 127
        %v4234 = vpop.permute.xlu0 %4233
        %v4236 = vadd.f32 %v4228, %v4234
        %s4237 = sld [smem:[#allocation14 + $0x11]]
        %v4238 = vstv %s4237
        %v4239 = vmul.f32 %v4238, %v4103
        %4241 = vrot.lane.b32.xlu0 %v4239, 126
        %v4242 = vpop.permute.xlu0 %4241
        %v4244 = vadd.f32 %v4236, %v4242
        %s4245 = sld [smem:[#allocation14 + $0x12]]
        %v4246 = vstv %s4245
        %v4247 = vmul.f32 %v4246, %v4104
        %v4248 = vadd.f32 %v4244, %v4247
        %s4249 = sld [smem:[#allocation14 + $0x13]]
        %v4250 = vstv %s4249
        %v4251 = vmul.f32 %v4250, %v4104
        %4253 = vrot.lane.b32.xlu0 %v4251, 127
        %v4254 = vpop.permute.xlu0 %4253
        %v4256 = vadd.f32 %v4248, %v4254
        %s4257 = sld [smem:[#allocation14 + $0x14]]
        %v4258 = vstv %s4257
        %v4259 = vmul.f32 %v4258, %v4104
        %4261 = vrot.lane.b32.xlu0 %v4259, 126
        %v4262 = vpop.permute.xlu0 %4261
        %v4264 = vadd.f32 %v4256, %v4262
        %s4265 = sld [smem:[#allocation14 + $0x15]]
        %v4266 = vstv %s4265
        %v4267 = vmul.f32 %v4266, %v4105
        %v4268 = vadd.f32 %v4264, %v4267
        %s4269 = sld [smem:[#allocation14 + $0x16]]
        %v4270 = vstv %s4269
        %v4271 = vmul.f32 %v4270, %v4105
        %4273 = vrot.lane.b32.xlu0 %v4271, 127
        %v4274 = vpop.permute.xlu0 %4273
        %v4276 = vadd.f32 %v4268, %v4274
        %s4277 = sld [smem:[#allocation14 + $0x17]]
        %v4278 = vstv %s4277
        %v4279 = vmul.f32 %v4278, %v4105
        %4281 = vrot.lane.b32.xlu0 %v4279, 126
        %v4282 = vpop.permute.xlu0 %4281
        %v4284 = vadd.f32 %v4276, %v4282
        %s4285 = sld [smem:[#allocation14 + $0x18]]
        %v4286 = vstv %s4285
        %v4287 = vmul.f32 %v4286, %v4106
        %v4288 = vadd.f32 %v4284, %v4287
        %s4289 = sld [smem:[#allocation14 + $0x19]]
        %v4290 = vstv %s4289
        %v4291 = vmul.f32 %v4290, %v4106
        %4293 = vrot.lane.b32.xlu0 %v4291, 127
        %v4294 = vpop.permute.xlu0 %4293
        %v4296 = vadd.f32 %v4288, %v4294
        %s4297 = sld [smem:[#allocation14 + $0x1a]]
        %v4298 = vstv %s4297
        %v4299 = vmul.f32 %v4298, %v4106
        %4301 = vrot.lane.b32.xlu0 %v4299, 126
        %v4302 = vpop.permute.xlu0 %4301
        %v4304 = vadd.f32 %v4296, %v4302
        %s4305 = sld [smem:[#allocation14 + $0x1b]]
        %v4306 = vstv %s4305
        %v4307 = vmul.f32 %v4306, %v4107
        %v4308 = vadd.f32 %v4304, %v4307
        %s4309 = sld [smem:[#allocation14 + $0x1c]]
        %v4310 = vstv %s4309
        %v4311 = vmul.f32 %v4310, %v4107
        %4313 = vrot.lane.b32.xlu0 %v4311, 127
        %v4314 = vpop.permute.xlu0 %4313
        %v4316 = vadd.f32 %v4308, %v4314
        %s4317 = sld [smem:[#allocation14 + $0x1d]]
        %v4318 = vstv %s4317
        %v4319 = vmul.f32 %v4318, %v4107
        %4321 = vrot.lane.b32.xlu0 %v4319, 126
        %v4322 = vpop.permute.xlu0 %4321
        %v4324 = vadd.f32 %v4316, %v4322
        %s4325 = sld [smem:[#allocation14 + $0x1e]]
        %v4326 = vstv %s4325
        %v4327 = vmul.f32 %v4326, %v4108
        %v4328 = vadd.f32 %v4324, %v4327
        %s4329 = sld [smem:[#allocation14 + $0x1f]]
        %v4330 = vstv %s4329
        %v4331 = vmul.f32 %v4330, %v4108
        %4333 = vrot.lane.b32.xlu0 %v4331, 127
        %v4334 = vpop.permute.xlu0 %4333
        %v4336 = vadd.f32 %v4328, %v4334
        %s4337 = sld [smem:[#allocation14 + $0x20]]
        %v4338 = vstv %s4337
        %v4339 = vmul.f32 %v4338, %v4108
        %4341 = vrot.lane.b32.xlu0 %v4339, 126
        %v4342 = vpop.permute.xlu0 %4341
        %v4344 = vadd.f32 %v4336, %v4342
        %s4345 = sld [smem:[#allocation14 + $0x21]]
        %v4346 = vstv %s4345
        %v4347 = vmul.f32 %v4346, %v4109
        %v4348 = vadd.f32 %v4344, %v4347
        %s4349 = sld [smem:[#allocation14 + $0x22]]
        %v4350 = vstv %s4349
        %v4351 = vmul.f32 %v4350, %v4109
        %4353 = vrot.lane.b32.xlu0 %v4351, 127
        %v4354 = vpop.permute.xlu0 %4353
        %v4356 = vadd.f32 %v4348, %v4354
        %s4357 = sld [smem:[#allocation14 + $0x23]]
        %v4358 = vstv %s4357
        %v4359 = vmul.f32 %v4358, %v4109
        %4361 = vrot.lane.b32.xlu0 %v4359, 126
        %v4362 = vpop.permute.xlu0 %4361
        %v4364 = vadd.f32 %v4356, %v4362
        %s4365 = sld [smem:[#allocation14 + $0x24]]
        %v4366 = vstv %s4365
        %v4367 = vmul.f32 %v4366, %v4110
        %v4368 = vadd.f32 %v4364, %v4367
        %s4369 = sld [smem:[#allocation14 + $0x25]]
        %v4370 = vstv %s4369
        %v4371 = vmul.f32 %v4370, %v4110
        %4373 = vrot.lane.b32.xlu0 %v4371, 127
        %v4374 = vpop.permute.xlu0 %4373
        %v4376 = vadd.f32 %v4368, %v4374
        %s4377 = sld [smem:[#allocation14 + $0x26]]
        %v4378 = vstv %s4377
        %v4379 = vmul.f32 %v4378, %v4110
        %4381 = vrot.lane.b32.xlu0 %v4379, 126
        %v4382 = vpop.permute.xlu0 %4381
        %v4384 = vadd.f32 %v4376, %v4382
        %s4385 = sld [smem:[#allocation14 + $0x27]]
        %v4386 = vstv %s4385
        %v4387 = vmul.f32 %v4386, %v4111
        %v4388 = vadd.f32 %v4384, %v4387
        %s4389 = sld [smem:[#allocation14 + $0x28]]
        %v4390 = vstv %s4389
        %v4391 = vmul.f32 %v4390, %v4111
        %4393 = vrot.lane.b32.xlu0 %v4391, 127
        %v4394 = vpop.permute.xlu0 %4393
        %v4396 = vadd.f32 %v4388, %v4394
        %s4397 = sld [smem:[#allocation14 + $0x29]]
        %v4398 = vstv %s4397
        %v4399 = vmul.f32 %v4398, %v4111
        %4401 = vrot.lane.b32.xlu0 %v4399, 126
        %v4402 = vpop.permute.xlu0 %4401
        %v4404 = vadd.f32 %v4396, %v4402
        %s4405 = sld [smem:[#allocation14 + $0x2a]]
        %v4406 = vstv %s4405
        %v4407 = vmul.f32 %v4406, %v4112
        %v4408 = vadd.f32 %v4404, %v4407
        %s4409 = sld [smem:[#allocation14 + $0x2b]]
        %v4410 = vstv %s4409
        %v4411 = vmul.f32 %v4410, %v4112
        %4413 = vrot.lane.b32.xlu0 %v4411, 127
        %v4414 = vpop.permute.xlu0 %4413
        %v4416 = vadd.f32 %v4408, %v4414
        %s4417 = sld [smem:[#allocation14 + $0x2c]]
        %v4418 = vstv %s4417
        %v4419 = vmul.f32 %v4418, %v4112
        %4421 = vrot.lane.b32.xlu0 %v4419, 126
        %v4422 = vpop.permute.xlu0 %4421
        %v4424 = vadd.f32 %v4416, %v4422
        %s4425 = sld [smem:[#allocation14 + $0x2d]]
        %v4426 = vstv %s4425
        %v4427 = vmul.f32 %v4426, %v4113
        %v4428 = vadd.f32 %v4424, %v4427
        %s4429 = sld [smem:[#allocation14 + $0x2e]]
        %v4430 = vstv %s4429
        %v4431 = vmul.f32 %v4430, %v4113
        %4433 = vrot.lane.b32.xlu0 %v4431, 127
        %v4434 = vpop.permute.xlu0 %4433
        %v4436 = vadd.f32 %v4428, %v4434
        %s4437 = sld [smem:[#allocation14 + $0x2f]]
        %v4438 = vstv %s4437
        %v4439 = vmul.f32 %v4438, %v4113
        %4441 = vrot.lane.b32.xlu0 %v4439, 126
        %v4442 = vpop.permute.xlu0 %4441
        %v4444 = vadd.f32 %v4436, %v4442
        %s4445 = sld [smem:[#allocation14 + $0x30]]
        %v4446 = vstv %s4445
        %v4447 = vmul.f32 %v4446, %v4114
        %v4448 = vadd.f32 %v4444, %v4447
        %s4449 = sld [smem:[#allocation14 + $0x31]]
        %v4450 = vstv %s4449
        %v4451 = vmul.f32 %v4450, %v4114
        %4453 = vrot.lane.b32.xlu0 %v4451, 127
        %v4454 = vpop.permute.xlu0 %4453
        %v4456 = vadd.f32 %v4448, %v4454
        %s4457 = sld [smem:[#allocation14 + $0x32]]
        %v4458 = vstv %s4457
        %v4459 = vmul.f32 %v4458, %v4114
        %4461 = vrot.lane.b32.xlu0 %v4459, 126
        %v4462 = vpop.permute.xlu0 %4461
        %v4464 = vadd.f32 %v4456, %v4462
        %s4465 = sld [smem:[#allocation14 + $0x33]]
        %v4466 = vstv %s4465
        %v4467 = vmul.f32 %v4466, %v4115
        %v4468 = vadd.f32 %v4464, %v4467
        %s4469 = sld [smem:[#allocation14 + $0x34]]
        %v4470 = vstv %s4469
        %v4471 = vmul.f32 %v4470, %v4115
        %4473 = vrot.lane.b32.xlu0 %v4471, 127
        %v4474 = vpop.permute.xlu0 %4473
        %v4476 = vadd.f32 %v4468, %v4474
        %s4477 = sld [smem:[#allocation14 + $0x35]]
        %v4478 = vstv %s4477
        %v4479 = vmul.f32 %v4478, %v4115
        %4481 = vrot.lane.b32.xlu0 %v4479, 126
        %v4482 = vpop.permute.xlu0 %4481
        %v4484 = vadd.f32 %v4476, %v4482
        %s4485 = sld [smem:[#allocation14 + $0x36]]
        %v4486 = vstv %s4485
        %v4487 = vmul.f32 %v4486, %v4116
        %v4488 = vadd.f32 %v4484, %v4487
        %s4489 = sld [smem:[#allocation14 + $0x37]]
        %v4490 = vstv %s4489
        %v4491 = vmul.f32 %v4490, %v4116
        %4493 = vrot.lane.b32.xlu0 %v4491, 127
        %v4494 = vpop.permute.xlu0 %4493
        %v4496 = vadd.f32 %v4488, %v4494
        %s4497 = sld [smem:[#allocation14 + $0x38]]
        %v4498 = vstv %s4497
        %v4499 = vmul.f32 %v4498, %v4116
        %4501 = vrot.lane.b32.xlu0 %v4499, 126
        %v4502 = vpop.permute.xlu0 %4501
        %v4504 = vadd.f32 %v4496, %v4502
        %s4505 = sld [smem:[#allocation14 + $0x39]]
        %v4506 = vstv %s4505
        %v4507 = vmul.f32 %v4506, %v4117
        %v4508 = vadd.f32 %v4504, %v4507
        %s4509 = sld [smem:[#allocation14 + $0x3a]]
        %v4510 = vstv %s4509
        %v4511 = vmul.f32 %v4510, %v4117
        %4513 = vrot.lane.b32.xlu0 %v4511, 127
        %v4514 = vpop.permute.xlu0 %4513
        %v4516 = vadd.f32 %v4508, %v4514
        %s4517 = sld [smem:[#allocation14 + $0x3b]]
        %v4518 = vstv %s4517
        %v4519 = vmul.f32 %v4518, %v4117
        %4521 = vrot.lane.b32.xlu0 %v4519, 126
        %v4522 = vpop.permute.xlu0 %4521
        %v4524 = vadd.f32 %v4516, %v4522
        %s4525 = sld [smem:[#allocation14 + $0x3c]]
        %v4526 = vstv %s4525
        %v4527 = vmul.f32 %v4526, %v4118
        %v4528 = vadd.f32 %v4524, %v4527
        %s4529 = sld [smem:[#allocation14 + $0x3d]]
        %v4530 = vstv %s4529
        %v4531 = vmul.f32 %v4530, %v4118
        %4533 = vrot.lane.b32.xlu0 %v4531, 127
        %v4534 = vpop.permute.xlu0 %4533
        %v4536 = vadd.f32 %v4528, %v4534
        %s4537 = sld [smem:[#allocation14 + $0x3e]]
        %v4538 = vstv %s4537
        %v4539 = vmul.f32 %v4538, %v4118
        %4541 = vrot.lane.b32.xlu0 %v4539, 126
        %v4542 = vpop.permute.xlu0 %4541
        %v4544 = vadd.f32 %v4536, %v4542
        %s4545 = sld [smem:[#allocation14 + $0x3f]]
        %v4546 = vstv %s4545
        %v4547 = vmul.f32 %v4546, %v4119
        %v4548 = vadd.f32 %v4544, %v4547
        %s4549 = sld [smem:[#allocation14 + $0x40]]
        %v4550 = vstv %s4549
        %v4551 = vmul.f32 %v4550, %v4119
        %4553 = vrot.lane.b32.xlu0 %v4551, 127
        %v4554 = vpop.permute.xlu0 %4553
        %v4556 = vadd.f32 %v4548, %v4554
        %s4557 = sld [smem:[#allocation14 + $0x41]]
        %v4558 = vstv %s4557
        %v4559 = vmul.f32 %v4558, %v4119
        %4561 = vrot.lane.b32.xlu0 %v4559, 126
        %v4562 = vpop.permute.xlu0 %4561
        %v4564 = vadd.f32 %v4556, %v4562
        %s4565 = sld [smem:[#allocation14 + $0x42]]
        %v4566 = vstv %s4565
        %v4567 = vmul.f32 %v4566, %v4120
        %v4568 = vadd.f32 %v4564, %v4567
        %s4569 = sld [smem:[#allocation14 + $0x43]]
        %v4570 = vstv %s4569
        %v4571 = vmul.f32 %v4570, %v4120
        %4573 = vrot.lane.b32.xlu0 %v4571, 127
        %v4574 = vpop.permute.xlu0 %4573
        %v4576 = vadd.f32 %v4568, %v4574
        %s4577 = sld [smem:[#allocation14 + $0x44]]
        %v4578 = vstv %s4577
        %v4579 = vmul.f32 %v4578, %v4120
        %4581 = vrot.lane.b32.xlu0 %v4579, 126
        %v4582 = vpop.permute.xlu0 %4581
        %v4584 = vadd.f32 %v4576, %v4582
        %s4585 = sld [smem:[#allocation14 + $0x45]]
        %v4586 = vstv %s4585
        %v4587 = vmul.f32 %v4586, %v4121
        %v4588 = vadd.f32 %v4584, %v4587
        %s4589 = sld [smem:[#allocation14 + $0x46]]
        %v4590 = vstv %s4589
        %v4591 = vmul.f32 %v4590, %v4121
        %4593 = vrot.lane.b32.xlu0 %v4591, 127
        %v4594 = vpop.permute.xlu0 %4593
        %v4596 = vadd.f32 %v4588, %v4594
        %s4597 = sld [smem:[#allocation14 + $0x47]]
        %v4598 = vstv %s4597
        %v4599 = vmul.f32 %v4598, %v4121
        %4601 = vrot.lane.b32.xlu0 %v4599, 126
        %v4602 = vpop.permute.xlu0 %4601
        %v4604 = vadd.f32 %v4596, %v4602
        %v4605 = vld [vmem:[#allocation2 + $0x2] sm:$0xff]
        %v4606 = vmul.f32 %v4604, 0.5
        %v4607 = vmul.f32 %v4605, 0.5
        %4609 = vrot.lane.b32.xlu0 %v4607, 127
        %v4610 = vpop.permute.xlu0 %4609
        %v4612 = vadd.f32 %v4606, %v4610
        %vm4613 = vcmask 130048
        %4614 = vst.msk [vmem:[%s439] sm:$0xff] %vm4613, %v4612
        %s4615 = sld [smem:[#allocation15 + $0x1]]
        %v4616 = vstv %s4615
        %v4617 = vadd.f32 %v4616, 0.0
        %s4618 = sld [smem:[#allocation14 + $0x48]]
        %v4619 = vstv %s4618
        %v4620 = vmul.f32 %v4619, %v4098
        %v4621 = vadd.f32 %v4617, %v4620
        %s4622 = sld [smem:[#allocation14 + $0x49]]
        %v4623 = vstv %s4622
        %v4624 = vmul.f32 %v4623, %v4098
        %4626 = vrot.lane.b32.xlu0 %v4624, 127
        %v4627 = vpop.permute.xlu0 %4626
        %v4629 = vadd.f32 %v4621, %v4627
        %s4630 = sld [smem:[#allocation14 + $0x4a]]
        %v4631 = vstv %s4630
        %v4632 = vmul.f32 %v4631, %v4098
        %4634 = vrot.lane.b32.xlu0 %v4632, 126
        %v4635 = vpop.permute.xlu0 %4634
        %v4637 = vadd.f32 %v4629, %v4635
        %s4638 = sld [smem:[#allocation14 + $0x4b]]
        %v4639 = vstv %s4638
        %v4640 = vmul.f32 %v4639, %v4099
        %v4641 = vadd.f32 %v4637, %v4640
        %s4642 = sld [smem:[#allocation14 + $0x4c]]
        %v4643 = vstv %s4642
        %v4644 = vmul.f32 %v4643, %v4099
        %4646 = vrot.lane.b32.xlu0 %v4644, 127
        %v4647 = vpop.permute.xlu0 %4646
        %v4649 = vadd.f32 %v4641, %v4647
        %s4650 = sld [smem:[#allocation14 + $0x4d]]
        %v4651 = vstv %s4650
        %v4652 = vmul.f32 %v4651, %v4099
        %4654 = vrot.lane.b32.xlu0 %v4652, 126
        %v4655 = vpop.permute.xlu0 %4654
        %v4657 = vadd.f32 %v4649, %v4655
        %s4658 = sld [smem:[#allocation14 + $0x4e]]
        %v4659 = vstv %s4658
        %v4660 = vmul.f32 %v4659, %v4100
        %v4661 = vadd.f32 %v4657, %v4660
        %s4662 = sld [smem:[#allocation14 + $0x4f]]
        %v4663 = vstv %s4662
        %v4664 = vmul.f32 %v4663, %v4100
        %4666 = vrot.lane.b32.xlu0 %v4664, 127
        %v4667 = vpop.permute.xlu0 %4666
        %v4669 = vadd.f32 %v4661, %v4667
        %s4670 = sld [smem:[#allocation14 + $0x50]]
        %v4671 = vstv %s4670
        %v4672 = vmul.f32 %v4671, %v4100
        %4674 = vrot.lane.b32.xlu0 %v4672, 126
        %v4675 = vpop.permute.xlu0 %4674
        %v4677 = vadd.f32 %v4669, %v4675
        %s4678 = sld [smem:[#allocation14 + $0x51]]
        %v4679 = vstv %s4678
        %v4680 = vmul.f32 %v4679, %v4101
        %v4681 = vadd.f32 %v4677, %v4680
        %s4682 = sld [smem:[#allocation14 + $0x52]]
        %v4683 = vstv %s4682
        %v4684 = vmul.f32 %v4683, %v4101
        %4686 = vrot.lane.b32.xlu0 %v4684, 127
        %v4687 = vpop.permute.xlu0 %4686
        %v4689 = vadd.f32 %v4681, %v4687
        %s4690 = sld [smem:[#allocation14 + $0x53]]
        %v4691 = vstv %s4690
        %v4692 = vmul.f32 %v4691, %v4101
        %4694 = vrot.lane.b32.xlu0 %v4692, 126
        %v4695 = vpop.permute.xlu0 %4694
        %v4697 = vadd.f32 %v4689, %v4695
        %s4698 = sld [smem:[#allocation14 + $0x54]]
        %v4699 = vstv %s4698
        %v4700 = vmul.f32 %v4699, %v4102
        %v4701 = vadd.f32 %v4697, %v4700
        %s4702 = sld [smem:[#allocation14 + $0x55]]
        %v4703 = vstv %s4702
        %v4704 = vmul.f32 %v4703, %v4102
        %4706 = vrot.lane.b32.xlu0 %v4704, 127
        %v4707 = vpop.permute.xlu0 %4706
        %v4709 = vadd.f32 %v4701, %v4707
        %s4710 = sld [smem:[#allocation14 + $0x56]]
        %v4711 = vstv %s4710
        %v4712 = vmul.f32 %v4711, %v4102
        %4714 = vrot.lane.b32.xlu0 %v4712, 126
        %v4715 = vpop.permute.xlu0 %4714
        %v4717 = vadd.f32 %v4709, %v4715
        %s4718 = sld [smem:[#allocation14 + $0x57]]
        %v4719 = vstv %s4718
        %v4720 = vmul.f32 %v4719, %v4103
        %v4721 = vadd.f32 %v4717, %v4720
        %s4722 = sld [smem:[#allocation14 + $0x58]]
        %v4723 = vstv %s4722
        %v4724 = vmul.f32 %v4723, %v4103
        %4726 = vrot.lane.b32.xlu0 %v4724, 127
        %v4727 = vpop.permute.xlu0 %4726
        %v4729 = vadd.f32 %v4721, %v4727
        %s4730 = sld [smem:[#allocation14 + $0x59]]
        %v4731 = vstv %s4730
        %v4732 = vmul.f32 %v4731, %v4103
        %4734 = vrot.lane.b32.xlu0 %v4732, 126
        %v4735 = vpop.permute.xlu0 %4734
        %v4737 = vadd.f32 %v4729, %v4735
        %s4738 = sld [smem:[#allocation14 + $0x5a]]
        %v4739 = vstv %s4738
        %v4740 = vmul.f32 %v4739, %v4104
        %v4741 = vadd.f32 %v4737, %v4740
        %s4742 = sld [smem:[#allocation14 + $0x5b]]
        %v4743 = vstv %s4742
        %v4744 = vmul.f32 %v4743, %v4104
        %4746 = vrot.lane.b32.xlu0 %v4744, 127
        %v4747 = vpop.permute.xlu0 %4746
        %v4749 = vadd.f32 %v4741, %v4747
        %s4750 = sld [smem:[#allocation14 + $0x5c]]
        %v4751 = vstv %s4750
        %v4752 = vmul.f32 %v4751, %v4104
        %4754 = vrot.lane.b32.xlu0 %v4752, 126
        %v4755 = vpop.permute.xlu0 %4754
        %v4757 = vadd.f32 %v4749, %v4755
        %s4758 = sld [smem:[#allocation14 + $0x5d]]
        %v4759 = vstv %s4758
        %v4760 = vmul.f32 %v4759, %v4105
        %v4761 = vadd.f32 %v4757, %v4760
        %s4762 = sld [smem:[#allocation14 + $0x5e]]
        %v4763 = vstv %s4762
        %v4764 = vmul.f32 %v4763, %v4105
        %4766 = vrot.lane.b32.xlu0 %v4764, 127
        %v4767 = vpop.permute.xlu0 %4766
        %v4769 = vadd.f32 %v4761, %v4767
        %s4770 = sld [smem:[#allocation14 + $0x5f]]
        %v4771 = vstv %s4770
        %v4772 = vmul.f32 %v4771, %v4105
        %4774 = vrot.lane.b32.xlu0 %v4772, 126
        %v4775 = vpop.permute.xlu0 %4774
        %v4777 = vadd.f32 %v4769, %v4775
        %s4778 = sld [smem:[#allocation14 + $0x60]]
        %v4779 = vstv %s4778
        %v4780 = vmul.f32 %v4779, %v4106
        %v4781 = vadd.f32 %v4777, %v4780
        %s4782 = sld [smem:[#allocation14 + $0x61]]
        %v4783 = vstv %s4782
        %v4784 = vmul.f32 %v4783, %v4106
        %4786 = vrot.lane.b32.xlu0 %v4784, 127
        %v4787 = vpop.permute.xlu0 %4786
        %v4789 = vadd.f32 %v4781, %v4787
        %s4790 = sld [smem:[#allocation14 + $0x62]]
        %v4791 = vstv %s4790
        %v4792 = vmul.f32 %v4791, %v4106
        %4794 = vrot.lane.b32.xlu0 %v4792, 126
        %v4795 = vpop.permute.xlu0 %4794
        %v4797 = vadd.f32 %v4789, %v4795
        %s4798 = sld [smem:[#allocation14 + $0x63]]
        %v4799 = vstv %s4798
        %v4800 = vmul.f32 %v4799, %v4107
        %v4801 = vadd.f32 %v4797, %v4800
        %s4802 = sld [smem:[#allocation14 + $0x64]]
        %v4803 = vstv %s4802
        %v4804 = vmul.f32 %v4803, %v4107
        %4806 = vrot.lane.b32.xlu0 %v4804, 127
        %v4807 = vpop.permute.xlu0 %4806
        %v4809 = vadd.f32 %v4801, %v4807
        %s4810 = sld [smem:[#allocation14 + $0x65]]
        %v4811 = vstv %s4810
        %v4812 = vmul.f32 %v4811, %v4107
        %4814 = vrot.lane.b32.xlu0 %v4812, 126
        %v4815 = vpop.permute.xlu0 %4814
        %v4817 = vadd.f32 %v4809, %v4815
        %s4818 = sld [smem:[#allocation14 + $0x66]]
        %v4819 = vstv %s4818
        %v4820 = vmul.f32 %v4819, %v4108
        %v4821 = vadd.f32 %v4817, %v4820
        %s4822 = sld [smem:[#allocation14 + $0x67]]
        %v4823 = vstv %s4822
        %v4824 = vmul.f32 %v4823, %v4108
        %4826 = vrot.lane.b32.xlu0 %v4824, 127
        %v4827 = vpop.permute.xlu0 %4826
        %v4829 = vadd.f32 %v4821, %v4827
        %s4830 = sld [smem:[#allocation14 + $0x68]]
        %v4831 = vstv %s4830
        %v4832 = vmul.f32 %v4831, %v4108
        %4834 = vrot.lane.b32.xlu0 %v4832, 126
        %v4835 = vpop.permute.xlu0 %4834
        %v4837 = vadd.f32 %v4829, %v4835
        %s4838 = sld [smem:[#allocation14 + $0x69]]
        %v4839 = vstv %s4838
        %v4840 = vmul.f32 %v4839, %v4109
        %v4841 = vadd.f32 %v4837, %v4840
        %s4842 = sld [smem:[#allocation14 + $0x6a]]
        %v4843 = vstv %s4842
        %v4844 = vmul.f32 %v4843, %v4109
        %4846 = vrot.lane.b32.xlu0 %v4844, 127
        %v4847 = vpop.permute.xlu0 %4846
        %v4849 = vadd.f32 %v4841, %v4847
        %s4850 = sld [smem:[#allocation14 + $0x6b]]
        %v4851 = vstv %s4850
        %v4852 = vmul.f32 %v4851, %v4109
        %4854 = vrot.lane.b32.xlu0 %v4852, 126
        %v4855 = vpop.permute.xlu0 %4854
        %v4857 = vadd.f32 %v4849, %v4855
        %s4858 = sld [smem:[#allocation14 + $0x6c]]
        %v4859 = vstv %s4858
        %v4860 = vmul.f32 %v4859, %v4110
        %v4861 = vadd.f32 %v4857, %v4860
        %s4862 = sld [smem:[#allocation14 + $0x6d]]
        %v4863 = vstv %s4862
        %v4864 = vmul.f32 %v4863, %v4110
        %4866 = vrot.lane.b32.xlu0 %v4864, 127
        %v4867 = vpop.permute.xlu0 %4866
        %v4869 = vadd.f32 %v4861, %v4867
        %s4870 = sld [smem:[#allocation14 + $0x6e]]
        %v4871 = vstv %s4870
        %v4872 = vmul.f32 %v4871, %v4110
        %4874 = vrot.lane.b32.xlu0 %v4872, 126
        %v4875 = vpop.permute.xlu0 %4874
        %v4877 = vadd.f32 %v4869, %v4875
        %s4878 = sld [smem:[#allocation14 + $0x6f]]
        %v4879 = vstv %s4878
        %v4880 = vmul.f32 %v4879, %v4111
        %v4881 = vadd.f32 %v4877, %v4880
        %s4882 = sld [smem:[#allocation14 + $0x70]]
        %v4883 = vstv %s4882
        %v4884 = vmul.f32 %v4883, %v4111
        %4886 = vrot.lane.b32.xlu0 %v4884, 127
        %v4887 = vpop.permute.xlu0 %4886
        %v4889 = vadd.f32 %v4881, %v4887
        %s4890 = sld [smem:[#allocation14 + $0x71]]
        %v4891 = vstv %s4890
        %v4892 = vmul.f32 %v4891, %v4111
        %4894 = vrot.lane.b32.xlu0 %v4892, 126
        %v4895 = vpop.permute.xlu0 %4894
        %v4897 = vadd.f32 %v4889, %v4895
        %s4898 = sld [smem:[#allocation14 + $0x72]]
        %v4899 = vstv %s4898
        %v4900 = vmul.f32 %v4899, %v4112
        %v4901 = vadd.f32 %v4897, %v4900
        %s4902 = sld [smem:[#allocation14 + $0x73]]
        %v4903 = vstv %s4902
        %v4904 = vmul.f32 %v4903, %v4112
        %4906 = vrot.lane.b32.xlu0 %v4904, 127
        %v4907 = vpop.permute.xlu0 %4906
        %v4909 = vadd.f32 %v4901, %v4907
        %s4910 = sld [smem:[#allocation14 + $0x74]]
        %v4911 = vstv %s4910
        %v4912 = vmul.f32 %v4911, %v4112
        %4914 = vrot.lane.b32.xlu0 %v4912, 126
        %v4915 = vpop.permute.xlu0 %4914
        %v4917 = vadd.f32 %v4909, %v4915
        %s4918 = sld [smem:[#allocation14 + $0x75]]
        %v4919 = vstv %s4918
        %v4920 = vmul.f32 %v4919, %v4113
        %v4921 = vadd.f32 %v4917, %v4920
        %s4922 = sld [smem:[#allocation14 + $0x76]]
        %v4923 = vstv %s4922
        %v4924 = vmul.f32 %v4923, %v4113
        %4926 = vrot.lane.b32.xlu0 %v4924, 127
        %v4927 = vpop.permute.xlu0 %4926
        %v4929 = vadd.f32 %v4921, %v4927
        %s4930 = sld [smem:[#allocation14 + $0x77]]
        %v4931 = vstv %s4930
        %v4932 = vmul.f32 %v4931, %v4113
        %4934 = vrot.lane.b32.xlu0 %v4932, 126
        %v4935 = vpop.permute.xlu0 %4934
        %v4937 = vadd.f32 %v4929, %v4935
        %s4938 = sld [smem:[#allocation14 + $0x78]]
        %v4939 = vstv %s4938
        %v4940 = vmul.f32 %v4939, %v4114
        %v4941 = vadd.f32 %v4937, %v4940
        %s4942 = sld [smem:[#allocation14 + $0x79]]
        %v4943 = vstv %s4942
        %v4944 = vmul.f32 %v4943, %v4114
        %4946 = vrot.lane.b32.xlu0 %v4944, 127
        %v4947 = vpop.permute.xlu0 %4946
        %v4949 = vadd.f32 %v4941, %v4947
        %s4950 = sld [smem:[#allocation14 + $0x7a]]
        %v4951 = vstv %s4950
        %v4952 = vmul.f32 %v4951, %v4114
        %4954 = vrot.lane.b32.xlu0 %v4952, 126
        %v4955 = vpop.permute.xlu0 %4954
        %v4957 = vadd.f32 %v4949, %v4955
        %s4958 = sld [smem:[#allocation14 + $0x7b]]
        %v4959 = vstv %s4958
        %v4960 = vmul.f32 %v4959, %v4115
        %v4961 = vadd.f32 %v4957, %v4960
        %s4962 = sld [smem:[#allocation14 + $0x7c]]
        %v4963 = vstv %s4962
        %v4964 = vmul.f32 %v4963, %v4115
        %4966 = vrot.lane.b32.xlu0 %v4964, 127
        %v4967 = vpop.permute.xlu0 %4966
        %v4969 = vadd.f32 %v4961, %v4967
        %s4970 = sld [smem:[#allocation14 + $0x7d]]
        %v4971 = vstv %s4970
        %v4972 = vmul.f32 %v4971, %v4115
        %4974 = vrot.lane.b32.xlu0 %v4972, 126
        %v4975 = vpop.permute.xlu0 %4974
        %v4977 = vadd.f32 %v4969, %v4975
        %s4978 = sld [smem:[#allocation14 + $0x7e]]
        %v4979 = vstv %s4978
        %v4980 = vmul.f32 %v4979, %v4116
        %v4981 = vadd.f32 %v4977, %v4980
        %s4982 = sld [smem:[#allocation14 + $0x7f]]
        %v4983 = vstv %s4982
        %v4984 = vmul.f32 %v4983, %v4116
        %4986 = vrot.lane.b32.xlu0 %v4984, 127
        %v4987 = vpop.permute.xlu0 %4986
        %v4989 = vadd.f32 %v4981, %v4987
        %s4990 = sld [smem:[#allocation14 + $0x80]]
        %v4991 = vstv %s4990
        %v4992 = vmul.f32 %v4991, %v4116
        %4994 = vrot.lane.b32.xlu0 %v4992, 126
        %v4995 = vpop.permute.xlu0 %4994
        %v4997 = vadd.f32 %v4989, %v4995
        %s4998 = sld [smem:[#allocation14 + $0x81]]
        %v4999 = vstv %s4998
        %v5000 = vmul.f32 %v4999, %v4117
        %v5001 = vadd.f32 %v4997, %v5000
        %s5002 = sld [smem:[#allocation14 + $0x82]]
        %v5003 = vstv %s5002
        %v5004 = vmul.f32 %v5003, %v4117
        %5006 = vrot.lane.b32.xlu0 %v5004, 127
        %v5007 = vpop.permute.xlu0 %5006
        %v5009 = vadd.f32 %v5001, %v5007
        %s5010 = sld [smem:[#allocation14 + $0x83]]
        %v5011 = vstv %s5010
        %v5012 = vmul.f32 %v5011, %v4117
        %5014 = vrot.lane.b32.xlu0 %v5012, 126
        %v5015 = vpop.permute.xlu0 %5014
        %v5017 = vadd.f32 %v5009, %v5015
        %s5018 = sld [smem:[#allocation14 + $0x84]]
        %v5019 = vstv %s5018
        %v5020 = vmul.f32 %v5019, %v4118
        %v5021 = vadd.f32 %v5017, %v5020
        %s5022 = sld [smem:[#allocation14 + $0x85]]
        %v5023 = vstv %s5022
        %v5024 = vmul.f32 %v5023, %v4118
        %5026 = vrot.lane.b32.xlu0 %v5024, 127
        %v5027 = vpop.permute.xlu0 %5026
        %v5029 = vadd.f32 %v5021, %v5027
        %s5030 = sld [smem:[#allocation14 + $0x86]]
        %v5031 = vstv %s5030
        %v5032 = vmul.f32 %v5031, %v4118
        %5034 = vrot.lane.b32.xlu0 %v5032, 126
        %v5035 = vpop.permute.xlu0 %5034
        %v5037 = vadd.f32 %v5029, %v5035
        %s5038 = sld [smem:[#allocation14 + $0x87]]
        %v5039 = vstv %s5038
        %v5040 = vmul.f32 %v5039, %v4119
        %v5041 = vadd.f32 %v5037, %v5040
        %s5042 = sld [smem:[#allocation14 + $0x88]]
        %v5043 = vstv %s5042
        %v5044 = vmul.f32 %v5043, %v4119
        %5046 = vrot.lane.b32.xlu0 %v5044, 127
        %v5047 = vpop.permute.xlu0 %5046
        %v5049 = vadd.f32 %v5041, %v5047
        %s5050 = sld [smem:[#allocation14 + $0x89]]
        %v5051 = vstv %s5050
        %v5052 = vmul.f32 %v5051, %v4119
        %5054 = vrot.lane.b32.xlu0 %v5052, 126
        %v5055 = vpop.permute.xlu0 %5054
        %v5057 = vadd.f32 %v5049, %v5055
        %s5058 = sld [smem:[#allocation14 + $0x8a]]
        %v5059 = vstv %s5058
        %v5060 = vmul.f32 %v5059, %v4120
        %v5061 = vadd.f32 %v5057, %v5060
        %s5062 = sld [smem:[#allocation14 + $0x8b]]
        %v5063 = vstv %s5062
        %v5064 = vmul.f32 %v5063, %v4120
        %5066 = vrot.lane.b32.xlu0 %v5064, 127
        %v5067 = vpop.permute.xlu0 %5066
        %v5069 = vadd.f32 %v5061, %v5067
        %s5070 = sld [smem:[#allocation14 + $0x8c]]
        %v5071 = vstv %s5070
        %v5072 = vmul.f32 %v5071, %v4120
        %5074 = vrot.lane.b32.xlu0 %v5072, 126
        %v5075 = vpop.permute.xlu0 %5074
        %v5077 = vadd.f32 %v5069, %v5075
        %s5078 = sld [smem:[#allocation14 + $0x8d]]
        %v5079 = vstv %s5078
        %v5080 = vmul.f32 %v5079, %v4121
        %v5081 = vadd.f32 %v5077, %v5080
        %s5082 = sld [smem:[#allocation14 + $0x8e]]
        %v5083 = vstv %s5082
        %v5084 = vmul.f32 %v5083, %v4121
        %5086 = vrot.lane.b32.xlu0 %v5084, 127
        %v5087 = vpop.permute.xlu0 %5086
        %v5089 = vadd.f32 %v5081, %v5087
        %s5090 = sld [smem:[#allocation14 + $0x8f]]
        %v5091 = vstv %s5090
        %v5092 = vmul.f32 %v5091, %v4121
        %5094 = vrot.lane.b32.xlu0 %v5092, 126
        %v5095 = vpop.permute.xlu0 %5094
        %v5097 = vadd.f32 %v5089, %v5095
        %v5098 = vld [vmem:[%s628 + $0x2] sm:$0xff]
        %v5099 = vmul.f32 %v5097, 0.5
        %v5100 = vmul.f32 %v5098, 0.5
        %5102 = vrot.lane.b32.xlu0 %v5100, 127
        %v5103 = vpop.permute.xlu0 %5102
        %v5105 = vadd.f32 %v5099, %v5103
        %s5106 = scalar_lea.vmem %s439, 8 [#allocation17]
        %5107 = vst.msk [vmem:[%s5106] sm:$0xff] %vm4613, %v5105
        %s5108 = sld [smem:[#allocation15 + $0x2]]
        %v5109 = vstv %s5108
        %v5110 = vadd.f32 %v5109, 0.0
        %s5111 = sld [smem:[#allocation14 + $0x90]]
        %v5112 = vstv %s5111
        %v5113 = vmul.f32 %v5112, %v4098
        %v5114 = vadd.f32 %v5110, %v5113
        %s5115 = sld [smem:[#allocation14 + $0x91]]
        %v5116 = vstv %s5115
        %v5117 = vmul.f32 %v5116, %v4098
        %5119 = vrot.lane.b32.xlu0 %v5117, 127
        %v5120 = vpop.permute.xlu0 %5119
        %v5122 = vadd.f32 %v5114, %v5120
        %s5123 = sld [smem:[#allocation14 + $0x92]]
        %v5124 = vstv %s5123
        %v5125 = vmul.f32 %v5124, %v4098
        %5127 = vrot.lane.b32.xlu0 %v5125, 126
        %v5128 = vpop.permute.xlu0 %5127
        %v5130 = vadd.f32 %v5122, %v5128
        %s5131 = sld [smem:[#allocation14 + $0x93]]
        %v5132 = vstv %s5131
        %v5133 = vmul.f32 %v5132, %v4099
        %v5134 = vadd.f32 %v5130, %v5133
        %s5135 = sld [smem:[#allocation14 + $0x94]]
        %v5136 = vstv %s5135
        %v5137 = vmul.f32 %v5136, %v4099
        %5139 = vrot.lane.b32.xlu0 %v5137, 127
        %v5140 = vpop.permute.xlu0 %5139
        %v5142 = vadd.f32 %v5134, %v5140
        %s5143 = sld [smem:[#allocation14 + $0x95]]
        %v5144 = vstv %s5143
        %v5145 = vmul.f32 %v5144, %v4099
        %5147 = vrot.lane.b32.xlu0 %v5145, 126
        %v5148 = vpop.permute.xlu0 %5147
        %v5150 = vadd.f32 %v5142, %v5148
        %s5151 = sld [smem:[#allocation14 + $0x96]]
        %v5152 = vstv %s5151
        %v5153 = vmul.f32 %v5152, %v4100
        %v5154 = vadd.f32 %v5150, %v5153
        %s5155 = sld [smem:[#allocation14 + $0x97]]
        %v5156 = vstv %s5155
        %v5157 = vmul.f32 %v5156, %v4100
        %5159 = vrot.lane.b32.xlu0 %v5157, 127
        %v5160 = vpop.permute.xlu0 %5159
        %v5162 = vadd.f32 %v5154, %v5160
        %s5163 = sld [smem:[#allocation14 + $0x98]]
        %v5164 = vstv %s5163
        %v5165 = vmul.f32 %v5164, %v4100
        %5167 = vrot.lane.b32.xlu0 %v5165, 126
        %v5168 = vpop.permute.xlu0 %5167
        %v5170 = vadd.f32 %v5162, %v5168
        %s5171 = sld [smem:[#allocation14 + $0x99]]
        %v5172 = vstv %s5171
        %v5173 = vmul.f32 %v5172, %v4101
        %v5174 = vadd.f32 %v5170, %v5173
        %s5175 = sld [smem:[#allocation14 + $0x9a]]
        %v5176 = vstv %s5175
        %v5177 = vmul.f32 %v5176, %v4101
        %5179 = vrot.lane.b32.xlu0 %v5177, 127
        %v5180 = vpop.permute.xlu0 %5179
        %v5182 = vadd.f32 %v5174, %v5180
        %s5183 = sld [smem:[#allocation14 + $0x9b]]
        %v5184 = vstv %s5183
        %v5185 = vmul.f32 %v5184, %v4101
        %5187 = vrot.lane.b32.xlu0 %v5185, 126
        %v5188 = vpop.permute.xlu0 %5187
        %v5190 = vadd.f32 %v5182, %v5188
        %s5191 = sld [smem:[#allocation14 + $0x9c]]
        %v5192 = vstv %s5191
        %v5193 = vmul.f32 %v5192, %v4102
        %v5194 = vadd.f32 %v5190, %v5193
        %s5195 = sld [smem:[#allocation14 + $0x9d]]
        %v5196 = vstv %s5195
        %v5197 = vmul.f32 %v5196, %v4102
        %5199 = vrot.lane.b32.xlu0 %v5197, 127
        %v5200 = vpop.permute.xlu0 %5199
        %v5202 = vadd.f32 %v5194, %v5200
        %s5203 = sld [smem:[#allocation14 + $0x9e]]
        %v5204 = vstv %s5203
        %v5205 = vmul.f32 %v5204, %v4102
        %5207 = vrot.lane.b32.xlu0 %v5205, 126
        %v5208 = vpop.permute.xlu0 %5207
        %v5210 = vadd.f32 %v5202, %v5208
        %s5211 = sld [smem:[#allocation14 + $0x9f]]
        %v5212 = vstv %s5211
        %v5213 = vmul.f32 %v5212, %v4103
        %v5214 = vadd.f32 %v5210, %v5213
        %s5215 = sld [smem:[#allocation14 + $0xa0]]
        %v5216 = vstv %s5215
        %v5217 = vmul.f32 %v5216, %v4103
        %5219 = vrot.lane.b32.xlu0 %v5217, 127
        %v5220 = vpop.permute.xlu0 %5219
        %v5222 = vadd.f32 %v5214, %v5220
        %s5223 = sld [smem:[#allocation14 + $0xa1]]
        %v5224 = vstv %s5223
        %v5225 = vmul.f32 %v5224, %v4103
        %5227 = vrot.lane.b32.xlu0 %v5225, 126
        %v5228 = vpop.permute.xlu0 %5227
        %v5230 = vadd.f32 %v5222, %v5228
        %s5231 = sld [smem:[#allocation14 + $0xa2]]
        %v5232 = vstv %s5231
        %v5233 = vmul.f32 %v5232, %v4104
        %v5234 = vadd.f32 %v5230, %v5233
        %s5235 = sld [smem:[#allocation14 + $0xa3]]
        %v5236 = vstv %s5235
        %v5237 = vmul.f32 %v5236, %v4104
        %5239 = vrot.lane.b32.xlu0 %v5237, 127
        %v5240 = vpop.permute.xlu0 %5239
        %v5242 = vadd.f32 %v5234, %v5240
        %s5243 = sld [smem:[#allocation14 + $0xa4]]
        %v5244 = vstv %s5243
        %v5245 = vmul.f32 %v5244, %v4104
        %5247 = vrot.lane.b32.xlu0 %v5245, 126
        %v5248 = vpop.permute.xlu0 %5247
        %v5250 = vadd.f32 %v5242, %v5248
        %s5251 = sld [smem:[#allocation14 + $0xa5]]
        %v5252 = vstv %s5251
        %v5253 = vmul.f32 %v5252, %v4105
        %v5254 = vadd.f32 %v5250, %v5253
        %s5255 = sld [smem:[#allocation14 + $0xa6]]
        %v5256 = vstv %s5255
        %v5257 = vmul.f32 %v5256, %v4105
        %5259 = vrot.lane.b32.xlu0 %v5257, 127
        %v5260 = vpop.permute.xlu0 %5259
        %v5262 = vadd.f32 %v5254, %v5260
        %s5263 = sld [smem:[#allocation14 + $0xa7]]
        %v5264 = vstv %s5263
        %v5265 = vmul.f32 %v5264, %v4105
        %5267 = vrot.lane.b32.xlu0 %v5265, 126
        %v5268 = vpop.permute.xlu0 %5267
        %v5270 = vadd.f32 %v5262, %v5268
        %s5271 = sld [smem:[#allocation14 + $0xa8]]
        %v5272 = vstv %s5271
        %v5273 = vmul.f32 %v5272, %v4106
        %v5274 = vadd.f32 %v5270, %v5273
        %s5275 = sld [smem:[#allocation14 + $0xa9]]
        %v5276 = vstv %s5275
        %v5277 = vmul.f32 %v5276, %v4106
        %5279 = vrot.lane.b32.xlu0 %v5277, 127
        %v5280 = vpop.permute.xlu0 %5279
        %v5282 = vadd.f32 %v5274, %v5280
        %s5283 = sld [smem:[#allocation14 + $0xaa]]
        %v5284 = vstv %s5283
        %v5285 = vmul.f32 %v5284, %v4106
        %5287 = vrot.lane.b32.xlu0 %v5285, 126
        %v5288 = vpop.permute.xlu0 %5287
        %v5290 = vadd.f32 %v5282, %v5288
        %s5291 = sld [smem:[#allocation14 + $0xab]]
        %v5292 = vstv %s5291
        %v5293 = vmul.f32 %v5292, %v4107
        %v5294 = vadd.f32 %v5290, %v5293
        %s5295 = sld [smem:[#allocation14 + $0xac]]
        %v5296 = vstv %s5295
        %v5297 = vmul.f32 %v5296, %v4107
        %5299 = vrot.lane.b32.xlu0 %v5297, 127
        %v5300 = vpop.permute.xlu0 %5299
        %v5302 = vadd.f32 %v5294, %v5300
        %s5303 = sld [smem:[#allocation14 + $0xad]]
        %v5304 = vstv %s5303
        %v5305 = vmul.f32 %v5304, %v4107
        %5307 = vrot.lane.b32.xlu0 %v5305, 126
        %v5308 = vpop.permute.xlu0 %5307
        %v5310 = vadd.f32 %v5302, %v5308
        %s5311 = sld [smem:[#allocation14 + $0xae]]
        %v5312 = vstv %s5311
        %v5313 = vmul.f32 %v5312, %v4108
        %v5314 = vadd.f32 %v5310, %v5313
        %s5315 = sld [smem:[#allocation14 + $0xaf]]
        %v5316 = vstv %s5315
        %v5317 = vmul.f32 %v5316, %v4108
        %5319 = vrot.lane.b32.xlu0 %v5317, 127
        %v5320 = vpop.permute.xlu0 %5319
        %v5322 = vadd.f32 %v5314, %v5320
        %s5323 = sld [smem:[#allocation14 + $0xb0]]
        %v5324 = vstv %s5323
        %v5325 = vmul.f32 %v5324, %v4108
        %5327 = vrot.lane.b32.xlu0 %v5325, 126
        %v5328 = vpop.permute.xlu0 %5327
        %v5330 = vadd.f32 %v5322, %v5328
        %s5331 = sld [smem:[#allocation14 + $0xb1]]
        %v5332 = vstv %s5331
        %v5333 = vmul.f32 %v5332, %v4109
        %v5334 = vadd.f32 %v5330, %v5333
        %s5335 = sld [smem:[#allocation14 + $0xb2]]
        %v5336 = vstv %s5335
        %v5337 = vmul.f32 %v5336, %v4109
        %5339 = vrot.lane.b32.xlu0 %v5337, 127
        %v5340 = vpop.permute.xlu0 %5339
        %v5342 = vadd.f32 %v5334, %v5340
        %s5343 = sld [smem:[#allocation14 + $0xb3]]
        %v5344 = vstv %s5343
        %v5345 = vmul.f32 %v5344, %v4109
        %5347 = vrot.lane.b32.xlu0 %v5345, 126
        %v5348 = vpop.permute.xlu0 %5347
        %v5350 = vadd.f32 %v5342, %v5348
        %s5351 = sld [smem:[#allocation14 + $0xb4]]
        %v5352 = vstv %s5351
        %v5353 = vmul.f32 %v5352, %v4110
        %v5354 = vadd.f32 %v5350, %v5353
        %s5355 = sld [smem:[#allocation14 + $0xb5]]
        %v5356 = vstv %s5355
        %v5357 = vmul.f32 %v5356, %v4110
        %5359 = vrot.lane.b32.xlu0 %v5357, 127
        %v5360 = vpop.permute.xlu0 %5359
        %v5362 = vadd.f32 %v5354, %v5360
        %s5363 = sld [smem:[#allocation14 + $0xb6]]
        %v5364 = vstv %s5363
        %v5365 = vmul.f32 %v5364, %v4110
        %5367 = vrot.lane.b32.xlu0 %v5365, 126
        %v5368 = vpop.permute.xlu0 %5367
        %v5370 = vadd.f32 %v5362, %v5368
        %s5371 = sld [smem:[#allocation14 + $0xb7]]
        %v5372 = vstv %s5371
        %v5373 = vmul.f32 %v5372, %v4111
        %v5374 = vadd.f32 %v5370, %v5373
        %s5375 = sld [smem:[#allocation14 + $0xb8]]
        %v5376 = vstv %s5375
        %v5377 = vmul.f32 %v5376, %v4111
        %5379 = vrot.lane.b32.xlu0 %v5377, 127
        %v5380 = vpop.permute.xlu0 %5379
        %v5382 = vadd.f32 %v5374, %v5380
        %s5383 = sld [smem:[#allocation14 + $0xb9]]
        %v5384 = vstv %s5383
        %v5385 = vmul.f32 %v5384, %v4111
        %5387 = vrot.lane.b32.xlu0 %v5385, 126
        %v5388 = vpop.permute.xlu0 %5387
        %v5390 = vadd.f32 %v5382, %v5388
        %s5391 = sld [smem:[#allocation14 + $0xba]]
        %v5392 = vstv %s5391
        %v5393 = vmul.f32 %v5392, %v4112
        %v5394 = vadd.f32 %v5390, %v5393
        %s5395 = sld [smem:[#allocation14 + $0xbb]]
        %v5396 = vstv %s5395
        %v5397 = vmul.f32 %v5396, %v4112
        %5399 = vrot.lane.b32.xlu0 %v5397, 127
        %v5400 = vpop.permute.xlu0 %5399
        %v5402 = vadd.f32 %v5394, %v5400
        %s5403 = sld [smem:[#allocation14 + $0xbc]]
        %v5404 = vstv %s5403
        %v5405 = vmul.f32 %v5404, %v4112
        %5407 = vrot.lane.b32.xlu0 %v5405, 126
        %v5408 = vpop.permute.xlu0 %5407
        %v5410 = vadd.f32 %v5402, %v5408
        %s5411 = sld [smem:[#allocation14 + $0xbd]]
        %v5412 = vstv %s5411
        %v5413 = vmul.f32 %v5412, %v4113
        %v5414 = vadd.f32 %v5410, %v5413
        %s5415 = sld [smem:[#allocation14 + $0xbe]]
        %v5416 = vstv %s5415
        %v5417 = vmul.f32 %v5416, %v4113
        %5419 = vrot.lane.b32.xlu0 %v5417, 127
        %v5420 = vpop.permute.xlu0 %5419
        %v5422 = vadd.f32 %v5414, %v5420
        %s5423 = sld [smem:[#allocation14 + $0xbf]]
        %v5424 = vstv %s5423
        %v5425 = vmul.f32 %v5424, %v4113
        %5427 = vrot.lane.b32.xlu0 %v5425, 126
        %v5428 = vpop.permute.xlu0 %5427
        %v5430 = vadd.f32 %v5422, %v5428
        %s5431 = sld [smem:[#allocation14 + $0xc0]]
        %v5432 = vstv %s5431
        %v5433 = vmul.f32 %v5432, %v4114
        %v5434 = vadd.f32 %v5430, %v5433
        %s5435 = sld [smem:[#allocation14 + $0xc1]]
        %v5436 = vstv %s5435
        %v5437 = vmul.f32 %v5436, %v4114
        %5439 = vrot.lane.b32.xlu0 %v5437, 127
        %v5440 = vpop.permute.xlu0 %5439
        %v5442 = vadd.f32 %v5434, %v5440
        %s5443 = sld [smem:[#allocation14 + $0xc2]]
        %v5444 = vstv %s5443
        %v5445 = vmul.f32 %v5444, %v4114
        %5447 = vrot.lane.b32.xlu0 %v5445, 126
        %v5448 = vpop.permute.xlu0 %5447
        %v5450 = vadd.f32 %v5442, %v5448
        %s5451 = sld [smem:[#allocation14 + $0xc3]]
        %v5452 = vstv %s5451
        %v5453 = vmul.f32 %v5452, %v4115
        %v5454 = vadd.f32 %v5450, %v5453
        %s5455 = sld [smem:[#allocation14 + $0xc4]]
        %v5456 = vstv %s5455
        %v5457 = vmul.f32 %v5456, %v4115
        %5459 = vrot.lane.b32.xlu0 %v5457, 127
        %v5460 = vpop.permute.xlu0 %5459
        %v5462 = vadd.f32 %v5454, %v5460
        %s5463 = sld [smem:[#allocation14 + $0xc5]]
        %v5464 = vstv %s5463
        %v5465 = vmul.f32 %v5464, %v4115
        %5467 = vrot.lane.b32.xlu0 %v5465, 126
        %v5468 = vpop.permute.xlu0 %5467
        %v5470 = vadd.f32 %v5462, %v5468
        %s5471 = sld [smem:[#allocation14 + $0xc6]]
        %v5472 = vstv %s5471
        %v5473 = vmul.f32 %v5472, %v4116
        %v5474 = vadd.f32 %v5470, %v5473
        %s5475 = sld [smem:[#allocation14 + $0xc7]]
        %v5476 = vstv %s5475
        %v5477 = vmul.f32 %v5476, %v4116
        %5479 = vrot.lane.b32.xlu0 %v5477, 127
        %v5480 = vpop.permute.xlu0 %5479
        %v5482 = vadd.f32 %v5474, %v5480
        %s5483 = sld [smem:[#allocation14 + $0xc8]]
        %v5484 = vstv %s5483
        %v5485 = vmul.f32 %v5484, %v4116
        %5487 = vrot.lane.b32.xlu0 %v5485, 126
        %v5488 = vpop.permute.xlu0 %5487
        %v5490 = vadd.f32 %v5482, %v5488
        %s5491 = sld [smem:[#allocation14 + $0xc9]]
        %v5492 = vstv %s5491
        %v5493 = vmul.f32 %v5492, %v4117
        %v5494 = vadd.f32 %v5490, %v5493
        %s5495 = sld [smem:[#allocation14 + $0xca]]
        %v5496 = vstv %s5495
        %v5497 = vmul.f32 %v5496, %v4117
        %5499 = vrot.lane.b32.xlu0 %v5497, 127
        %v5500 = vpop.permute.xlu0 %5499
        %v5502 = vadd.f32 %v5494, %v5500
        %s5503 = sld [smem:[#allocation14 + $0xcb]]
        %v5504 = vstv %s5503
        %v5505 = vmul.f32 %v5504, %v4117
        %5507 = vrot.lane.b32.xlu0 %v5505, 126
        %v5508 = vpop.permute.xlu0 %5507
        %v5510 = vadd.f32 %v5502, %v5508
        %s5511 = sld [smem:[#allocation14 + $0xcc]]
        %v5512 = vstv %s5511
        %v5513 = vmul.f32 %v5512, %v4118
        %v5514 = vadd.f32 %v5510, %v5513
        %s5515 = sld [smem:[#allocation14 + $0xcd]]
        %v5516 = vstv %s5515
        %v5517 = vmul.f32 %v5516, %v4118
        %5519 = vrot.lane.b32.xlu0 %v5517, 127
        %v5520 = vpop.permute.xlu0 %5519
        %v5522 = vadd.f32 %v5514, %v5520
        %s5523 = sld [smem:[#allocation14 + $0xce]]
        %v5524 = vstv %s5523
        %v5525 = vmul.f32 %v5524, %v4118
        %5527 = vrot.lane.b32.xlu0 %v5525, 126
        %v5528 = vpop.permute.xlu0 %5527
        %v5530 = vadd.f32 %v5522, %v5528
        %s5531 = sld [smem:[#allocation14 + $0xcf]]
        %v5532 = vstv %s5531
        %v5533 = vmul.f32 %v5532, %v4119
        %v5534 = vadd.f32 %v5530, %v5533
        %s5535 = sld [smem:[#allocation14 + $0xd0]]
        %v5536 = vstv %s5535
        %v5537 = vmul.f32 %v5536, %v4119
        %5539 = vrot.lane.b32.xlu0 %v5537, 127
        %v5540 = vpop.permute.xlu0 %5539
        %v5542 = vadd.f32 %v5534, %v5540
        %s5543 = sld [smem:[#allocation14 + $0xd1]]
        %v5544 = vstv %s5543
        %v5545 = vmul.f32 %v5544, %v4119
        %5547 = vrot.lane.b32.xlu0 %v5545, 126
        %v5548 = vpop.permute.xlu0 %5547
        %v5550 = vadd.f32 %v5542, %v5548
        %s5551 = sld [smem:[#allocation14 + $0xd2]]
        %v5552 = vstv %s5551
        %v5553 = vmul.f32 %v5552, %v4120
        %v5554 = vadd.f32 %v5550, %v5553
        %s5555 = sld [smem:[#allocation14 + $0xd3]]
        %v5556 = vstv %s5555
        %v5557 = vmul.f32 %v5556, %v4120
        %5559 = vrot.lane.b32.xlu0 %v5557, 127
        %v5560 = vpop.permute.xlu0 %5559
        %v5562 = vadd.f32 %v5554, %v5560
        %s5563 = sld [smem:[#allocation14 + $0xd4]]
        %v5564 = vstv %s5563
        %v5565 = vmul.f32 %v5564, %v4120
        %5567 = vrot.lane.b32.xlu0 %v5565, 126
        %v5568 = vpop.permute.xlu0 %5567
        %v5570 = vadd.f32 %v5562, %v5568
        %s5571 = sld [smem:[#allocation14 + $0xd5]]
        %v5572 = vstv %s5571
        %v5573 = vmul.f32 %v5572, %v4121
        %v5574 = vadd.f32 %v5570, %v5573
        %s5575 = sld [smem:[#allocation14 + $0xd6]]
        %v5576 = vstv %s5575
        %v5577 = vmul.f32 %v5576, %v4121
        %5579 = vrot.lane.b32.xlu0 %v5577, 127
        %v5580 = vpop.permute.xlu0 %5579
        %v5582 = vadd.f32 %v5574, %v5580
        %s5583 = sld [smem:[#allocation14 + $0xd7]]
        %v5584 = vstv %s5583
        %v5585 = vmul.f32 %v5584, %v4121
        %5587 = vrot.lane.b32.xlu0 %v5585, 126
        %v5588 = vpop.permute.xlu0 %5587
        %v5590 = vadd.f32 %v5582, %v5588
        %v5591 = vld [vmem:[%s635 + $0x2] sm:$0xff]
        %v5592 = vmul.f32 %v5590, 0.5
        %v5593 = vmul.f32 %v5591, 0.5
        %5595 = vrot.lane.b32.xlu0 %v5593, 127
        %v5596 = vpop.permute.xlu0 %5595
        %v5598 = vadd.f32 %v5592, %v5596
        %s5599 = scalar_lea.vmem %s439, 16 [#allocation17]
        %5600 = vst.msk [vmem:[%s5599] sm:$0xff] %vm4613, %v5598
        %s5601 = sand.u32 %s214, 1
        %s5602 = scalar_lea.sflag [#allocation6], %s5601
        %s5603 = sand.u32 %s214, 1
        %s5604 = smul.addr %s5603, 24
        %s5605 = scalar_lea.vmem [#allocation17], %s5604
        // Predicated region
        $region101: #{tpu_custom_call.1} parent=47 // pred_check
          %p5606 = pneg %p224
        $region102: #{tpu_custom_call.1} parent=47 // pred_check_branch
          %5608 = sbr.rel (%p5606) target = $region104
        $region103: #{tpu_custom_call.1} parent=47 // pred_region
          %s5610 = ssub.s32 384, 384
          %5611 = vsyncadd %s5602, %s5610
          %s5612 = smul.addr %s34, 6
          %s5613 = sadd.s32 %s35, %s5612
          %s5614 = smul.addr %s5613, 128
          %s5615 = scalar_lea.hbm %s7, %s5614
          %s5616 = sshll.u32 %s5605, 4
          %s5617 = int_to_ptr.vmem [resolvable:$true] %s5616
          %5622 = dma.vmem_to_hbm [thread:$0]  %s5617, 384, %s5615, %s5602, 128, 256, 8
        $region104: #{tpu_custom_call.1} parent=47 // pred_fallthru
          _
      $region48: #{tpu_custom_call.1} parent=5 // pred_fallthru
        _
      %p5623 = scmp.le.s32.totalorder 2, %s25
      // Predicated region
      $region105: #{tpu_custom_call.1} parent=5 // pred_check
        %p5624 = pneg %p5623
      $region106: #{tpu_custom_call.1} parent=5 // pred_check_branch
        %5626 = sbr.rel (%p5624) target = $region108
      $region107: #{tpu_custom_call.1} parent=5 // pred_region
        %s5627 = ssub.s32 %s25, 2
        // Predicated region
        $region109: #{tpu_custom_call.1} parent=107 // pred_check
          %p5628 = pneg %p230
        $region110: #{tpu_custom_call.1} parent=107 // pred_check_branch
          %5630 = sbr.rel (%p5628) target = $region112
        $region111: #{tpu_custom_call.1} parent=107 // pred_region
          %s5631 = sand.u32 %s215, 1
          %s5632 = scalar_lea.sflag [#allocation6], %s5631
          %s5633 = sand.u32 %s215, 1
          %s5634 = smul.addr %s5633, 24
          %s5635 = scalar_lea.vmem [#allocation17], %s5634
          %5636 = dma.done %s5632, 384
        $region112: #{tpu_custom_call.1} parent=107 // pred_fallthru
          _
      $region108: #{tpu_custom_call.1} parent=5 // pred_fallthru
        _
    $region6: #{tpu_custom_call.1} parent=1 // loop_footer
      %s29 = sadd.s32 1, %s25
    $region7: #{tpu_custom_call.1} parent=1 // loop_footer_branch
      %24 = sbr.rel target = $region3
    $region8: #{tpu_custom_call.1} parent=1 // loop_exit
      _
    %5637 = vsyncpa [#allocation5], 1
    %s5638 = scalar_lea.sflag [#allocation5], 1
    %5639 = vsyncpa %s5638, 1
    %5640 = vsyncpa [#allocation9], 1
    %s5641 = scalar_lea.sflag [#allocation9], 1
    %5642 = vsyncpa %s5641, 1
    %5643 = vsyncpa [#allocation6], 1
    %s5644 = scalar_lea.sflag [#allocation6], 1
    %5645 = vsyncpa %s5644, 1
    %5646 = vsyncpa [#allocation7], 1
    %s5647 = scalar_lea.sflag [#allocation7], 1
    %5648 = vsyncpa %s5647, 1
    %5649 = vsyncpa [#allocation13], 1
    %5650 = vsyncpa [#allocation16], 1

</llo_original>
